<compile_context>
chip_gen: v7x
topology: tpu7x:2x2x1
jax: 0.10.0
libtpu: 0.0.40
codegen_flags: <defaults>
</compile_context>

<pallas_src>
import math

import jax
import jax.numpy as jnp
from jax.experimental import pallas as pl
from jax.experimental.pallas import tpu as pltpu


# --------------------------- fused kernel body ---------------------------

def _build_critic_kernel(num_layers, in_channels, height, width,
                         num_filters, hidden_dim):
    """Builds the fused Critic forward kernel (one sample per grid step)."""
    strides = [2] + [1] * (num_layers - 1)
    dims = []
    h, w = height, width
    for s in strides:
        h = (h - 3) // s + 1
        w = (w - 3) // s + 1
        dims.append((h, w))

    C = in_channels
    F = num_filters
    Hd = hidden_dim
    n_in = 2 + 2 * num_layers + 15

    def kernel(*refs):
        in_refs = refs[:n_in]
        q1_ref, q2_ref = refs[n_in], refs[n_in + 1]
        act_scr = refs[n_in + 2:]                    # per-layer VMEM scratch

        xp_ref, a_ref = in_refs[0], in_refs[1]
        conv_w = in_refs[2:2 + num_layers]
        conv_b = in_refs[2 + num_layers:2 + 2 * num_layers]
        (fcw_ref, fcb_ref, g_ref, beta_ref,
         w1f_ref, w1a_ref, b1_ref,
         w2a_ref, w2b_ref, b2a_ref, b2b_ref,
         w3a_ref, w3b_ref, b3a_ref, b3b_ref) = in_refs[2 + 2 * num_layers:]

        # ---------- conv stack: in-VMEM im2col via 9 shifted taps ----------
        # layer 0 (stride 2): taps come from the phase-decomposed obs block
        # xp_ref[(dy%2)*2 + dx%2], so all slices are contiguous and static.
        Ho, Wo = dims[0]
        acc = jnp.zeros((Ho, Wo, F), jnp.float32) + conv_b[0][...]
        for dy in range(3):
            for dx in range(3):
                tap = xp_ref[(dy % 2) * 2 + (dx % 2),
                             dy // 2:dy // 2 + Ho,
                             dx // 2:dx // 2 + Wo, :]          # (Ho, Wo, C)
                base = (dy * 3 + dx) * C
                for c in range(C):
                    acc = acc + tap[:, :, c:c + 1] * \
                        conv_w[0][base + c:base + c + 1, :]
        act_scr[0][...] = jnp.maximum(acc, 0.0)

        # layers 1..L-1 (stride 1): taps from the previous layer's VMEM
        # scratch, never touching HBM.
        for l in range(1, num_layers):
            Ho, Wo = dims[l]
            src = act_scr[l - 1]
            acc = jnp.zeros((Ho, Wo, F), jnp.float32) + conv_b[l][...]
            for dy in range(3):
                for dx in range(3):
                    tap = src[dy:dy + Ho, dx:dx + Wo, :]        # (Ho, Wo, F)
                    base = (dy * 3 + dx) * F
                    for c in range(F):
                        acc = acc + tap[:, :, c:c + 1] * \
                            conv_w[l][base + c:base + c + 1, :]
            act_scr[l][...] = jnp.maximum(acc, 0.0)

        # ---------- encoder fc (NHWC flatten folded into weight rows) ------
        Ho, Wo = dims[-1]
        last = act_scr[num_layers - 1]
        y = fcb_ref[...]                                        # (1, feature)
        for hh in range(Ho):
            for ww in range(Wo):
                r0 = (hh * Wo + ww) * F
                y = y + jnp.dot(last[hh, ww:ww + 1, :],
                                fcw_ref[r0:r0 + F, :],
                                preferred_element_type=jnp.float32)

        # ---------- LayerNorm (eps=1e-5, nn.LayerNorm default) -------------
        mean = jnp.mean(y, axis=-1, keepdims=True)
        var = jnp.mean(jnp.square(y - mean), axis=-1, keepdims=True)
        feat = (y - mean) * jax.lax.rsqrt(var + 1e-5) * g_ref[...] \
            + beta_ref[...]

        # ---------- both Q heads --------------------------------------------
        # concat(feat, action) folded into a split first matmul; heads' W1 is
        # stacked (dense), W2/W3 stay per-head dense (no block-diag zeros).
        a = a_ref[0]                                            # (1, A)
        h1 = (jnp.dot(feat, w1f_ref[...], preferred_element_type=jnp.float32)
              + jnp.dot(a, w1a_ref[...], preferred_element_type=jnp.float32)
              + b1_ref[...])
        h1 = jnp.maximum(h1, 0.0)                               # (1, 2*Hd)
        h1a, h1b = h1[:, :Hd], h1[:, Hd:]
        h2a = jnp.maximum(
            jnp.dot(h1a, w2a_ref[...], preferred_element_type=jnp.float32)
            + b2a_ref[...], 0.0)
        h2b = jnp.maximum(
            jnp.dot(h1b, w2b_ref[...], preferred_element_type=jnp.float32)
            + b2b_ref[...], 0.0)
        q1_ref[0] = (jnp.dot(h2a, w3a_ref[...],
                             preferred_element_type=jnp.float32) + b3a_ref[...])
        q2_ref[0] = (jnp.dot(h2b, w3b_ref[...],
                             preferred_element_type=jnp.float32) + b3b_ref[...])

    return kernel, dims


# ------------------------------ forward ----------------------------------

def critic_forward(params, obs, action):
    """obs: (B, C, H, W) float in [0, 255] (NCHW); action: (B, A).

    Returns (q1, q2), each (B, 1).  The /255 normalization is folded into the
    first conv's weights; the only XLA glue is one relayout of the raw obs.
    """
    obs = obs.astype(jnp.float32)
    action = action.astype(jnp.float32)
    B, C, H, W = obs.shape
    assert H % 2 == 0 and W % 2 == 0, "even spatial dims required"
    A = action.shape[1]

    num_layers = len(params['conv_w'])
    F = params['conv_b'][0].shape[1]
    Hd = params['q_w2_1'].shape[0]

    # Phase decomposition for the stride-2 first conv:
    #   xph[b*4 + py*2 + px, r, s, c] == obs_nhwc[b, 2r+py, 2s+px, c]
    xph = jnp.transpose(obs, (0, 2, 3, 1))
    xph = xph.reshape(B, H // 2, 2, W // 2, 2, C)
    xph = jnp.transpose(xph, (0, 2, 4, 1, 3, 5)).reshape(
        B * 4, H // 2, W // 2, C)

    act3 = action.reshape(B, 1, A)

    kernel, dims = _build_critic_kernel(num_layers, C, H, W, F, Hd)

    weights = (list(params['conv_w']) + list(params['conv_b']) + [
        params['fc_w'], params['fc_b'], params['ln_g'], params['ln_b'],
        params['q_w1f'], params['q_w1a'], params['q_b1'],
        params['q_w2_1'], params['q_w2_2'], params['q_b2_1'], params['q_b2_2'],
        params['q_w3_1'], params['q_w3_2'], params['q_b3_1'], params['q_b3_2'],
    ])

    def _const_spec(a):
        nd = a.ndim
        # Grid-invariant (resident) operand; constant index map.
        return pl.BlockSpec(a.shape, lambda i, _nd=nd: (0,) * _nd)

    in_specs = ([pl.BlockSpec((4, H // 2, W // 2, C), lambda i: (i, 0, 0, 0)),
                 pl.BlockSpec((1, 1, A), lambda i: (i, 0, 0))]
                + [_const_spec(a) for a in weights])

    q1, q2 = pl.pallas_call(
        kernel,
        grid=(B,),                      # one sample per step; >=2 steps keeps
        in_specs=in_specs,              # v7x's second TensorCore busy.
        out_specs=(pl.BlockSpec((1, 1, 1), lambda i: (i, 0, 0)),
                   pl.BlockSpec((1, 1, 1), lambda i: (i, 0, 0))),
        out_shape=(jax.ShapeDtypeStruct((B, 1, 1), jnp.float32),
                   jax.ShapeDtypeStruct((B, 1, 1), jnp.float32)),
        scratch_shapes=[pltpu.VMEM((dims[l][0], dims[l][1], F), jnp.float32)
                        for l in range(num_layers)],
        compiler_params=pltpu.CompilerParams(
            dimension_semantics=("parallel",)),
    )(xph, act3, *weights)
    return q1.reshape(B, 1), q2.reshape(B, 1)


# ------------------------- pure-JAX reference ----------------------------

def critic_forward_ref(params, obs, action):
    """Dense reference using the same (folded/permuted) parameters."""
    hp = jax.lax.Precision.HIGHEST
    x = jnp.transpose(obs.astype(jnp.float32), (0, 2, 3, 1))
    num_layers = len(params['conv_w'])
    for l in range(num_layers):
        stride = 2 if l == 0 else 1
        F = params['conv_b'][l].shape[1]
        w = params['conv_w'][l].reshape(3, 3, -1, F)
        x = jax.lax.conv_general_dilated(
            x, w, (stride, stride), 'VALID',
            dimension_numbers=('NHWC', 'HWIO', 'NHWC'), precision=hp)
        x = jnp.maximum(x + params['conv_b'][l].reshape(1, 1, 1, F), 0.0)
    h = x.reshape(x.shape[0], -1)
    y = jnp.dot(h, params['fc_w'], precision=hp) + params['fc_b']
    mean = jnp.mean(y, axis=-1, keepdims=True)
    var = jnp.mean(jnp.square(y - mean), axis=-1, keepdims=True)
    feat = (y - mean) * jax.lax.rsqrt(var + 1e-5) * params['ln_g'] \
        + params['ln_b']
    a = action.astype(jnp.float32)
    h1 = jnp.maximum(jnp.dot(feat, params['q_w1f'], precision=hp)
                     + jnp.dot(a, params['q_w1a'], precision=hp)
                     + params['q_b1'], 0.0)
    Hd = params['q_w2_1'].shape[0]
    h1a, h1b = h1[:, :Hd], h1[:, Hd:]
    h2a = jnp.maximum(jnp.dot(h1a, params['q_w2_1'], precision=hp)
                      + params['q_b2_1'], 0.0)
    h2b = jnp.maximum(jnp.dot(h1b, params['q_w2_2'], precision=hp)
                      + params['q_b2_2'], 0.0)
    q1 = jnp.dot(h2a, params['q_w3_1'], precision=hp) + params['q_b3_1']
    q2 = jnp.dot(h2b, params['q_w3_2'], precision=hp) + params['q_b3_2']
    return q1, q2


# --------------------------- parameter init ------------------------------

def _orthogonal(key, rows, cols, gain=1.0):
    """Deterministic analogue of nn.init.orthogonal_ for (rows, cols)."""
    a = jax.random.normal(key, (max(rows, cols), min(rows, cols)), jnp.float32)
    q, r = jnp.linalg.qr(a)
    q = q * jnp.sign(jnp.diagonal(r))
    if rows < cols:
        q = q.T
    return gain * q[:rows, :cols]


def init_critic_params(key, obs_shape, action_dim, hidden_dim, feature_dim,
                       num_layers, num_filters):
    C, H, W = obs_shape
    keys = jax.random.split(key, num_layers + 7)
    params = {}

    # Conv stack: 3x3, first stride 2, rest stride 1; weight_init -> zeros
    # except orthogonal(gain=sqrt(2)) at the center tap; bias zero.
    conv_w, conv_b = [], []
    in_c, h, w = C, H, W
    for l in range(num_layers):
        stride = 2 if l == 0 else 1
        center = _orthogonal(keys[l], num_filters, in_c, gain=math.sqrt(2.0))
        wt = jnp.zeros((num_filters, in_c, 3, 3), jnp.float32)
        wt = wt.at[:, :, 1, 1].set(center)
        # (Cout,Cin,kh,kw) -> (kh,kw,Cin,Cout) -> (9*Cin, Cout): row order
        # (dy, dx, c), matching the kernel's tap/channel loop.
        wmat = jnp.transpose(wt, (2, 3, 1, 0)).reshape(9 * in_c, num_filters)
        if l == 0:
            wmat = wmat / 255.0      # fold obs/255. normalization (exact)
        conv_w.append(wmat)
        conv_b.append(jnp.zeros((1, num_filters), jnp.float32))
        h = (h - 3) // stride + 1
        w = (w - 3) // stride + 1
        in_c = num_filters
    params['conv_w'] = conv_w
    params['conv_b'] = conv_b
    flat_dim = num_filters * h * w

    # Encoder fc (orthogonal, bias 0): rows permuted from torch's NCHW
    # flatten order to the kernel's NHWC order.
    fc_t = _orthogonal(keys[num_layers], feature_dim, flat_dim)   # (F, CHW)
    fc_chw = fc_t.T.reshape(num_filters, h, w, feature_dim)
    params['fc_w'] = jnp.transpose(fc_chw, (1, 2, 0, 3)).reshape(
        flat_dim, feature_dim)
    params['fc_b'] = jnp.zeros((1, feature_dim), jnp.float32)
    params['ln_g'] = jnp.ones((1, feature_dim), jnp.float32)
    params['ln_b'] = jnp.zeros((1, feature_dim), jnp.float32)

    # Two Q heads: W1 stacked column-wise (dense), W2/W3 kept per-head dense.
    in_dim = feature_dim + action_dim
    Hd = hidden_dim
    kq = keys[num_layers + 1:]
    q1w1 = _orthogonal(kq[0], Hd, in_dim).T          # (in_dim, Hd)
    q2w1 = _orthogonal(kq[1], Hd, in_dim).T
    W1 = jnp.concatenate([q1w1, q2w1], axis=1)       # (in_dim, 2Hd)
    params['q_w1f'] = W1[:feature_dim, :]
    params['q_w1a'] = W1[feature_dim:, :]
    params['q_b1'] = jnp.zeros((1, 2 * Hd), jnp.float32)

    params['q_w2_1'] = _orthogonal(kq[2], Hd, Hd).T
    params['q_w2_2'] = _orthogonal(kq[3], Hd, Hd).T
    params['q_b2_1'] = jnp.zeros((1, Hd), jnp.float32)
    params['q_b2_2'] = jnp.zeros((1, Hd), jnp.float32)
    params['q_w3_1'] = _orthogonal(kq[4], 1, Hd).T   # (Hd, 1)
    params['q_w3_2'] = _orthogonal(kq[5], 1, Hd).T
    params['q_b3_1'] = jnp.zeros((1, 1), jnp.float32)
    params['q_b3_2'] = jnp.zeros((1, 1), jnp.float32)
    return params


# --------------------------------- main -----------------------------------

if __name__ == "__main__":
    obs_shape = (4, 16, 16)        # (C, H, W)
    action_shape = (6,)
    hidden_dim = 32
    encoder_feature_dim = 32
    num_layers = 2
    num_filters = 8
    batch = 2

    key = jax.random.PRNGKey(0)
    k_params, k_obs, k_act = jax.random.split(key, 3)

    params = init_critic_params(k_params, obs_shape, action_shape[0],
                                hidden_dim, encoder_feature_dim,
                                num_layers, num_filters)

    obs = jax.random.uniform(k_obs, (batch,) + obs_shape, jnp.float32,
                             minval=0.0, maxval=255.0)
    action = jax.random.uniform(k_act, (batch, action_shape[0]), jnp.float32,
                                minval=-1.0, maxval=1.0)

    fwd = jax.jit(critic_forward)
    q1, q2 = fwd(params, obs, action)
    jax.block_until_ready((q1, q2))

    # Pure-JAX reference check (same parameters, dense convs/matmuls).
    q1_ref, q2_ref = jax.jit(critic_forward_ref)(params, obs, action)
    jax.block_until_ready((q1_ref, q2_ref))

    assert q1.shape == (batch, 1) and q2.shape == (batch, 1)
    assert bool(jnp.all(jnp.isfinite(q1))) and bool(jnp.all(jnp.isfinite(q2)))
    assert bool(jnp.allclose(q1, q1_ref, rtol=5e-4, atol=5e-4))
    assert bool(jnp.allclose(q2, q2_ref, rtol=5e-4, atol=5e-4))
    print("KERNEL_OK")
</pallas_src>

<mosaic_0001>
module attributes {stable_mosaic.version = 11 : i64} {
  func.func @kernel(%arg0: i32, %arg1: memref<4x8x8x4xf32, #tpu.memory_space<vmem>>, %arg2: memref<1x1x6xf32, #tpu.memory_space<vmem>>, %arg3: memref<36x8xf32, #tpu.memory_space<vmem>>, %arg4: memref<72x8xf32, #tpu.memory_space<vmem>>, %arg5: memref<1x8xf32, #tpu.memory_space<vmem>>, %arg6: memref<1x8xf32, #tpu.memory_space<vmem>>, %arg7: memref<200x32xf32, #tpu.memory_space<vmem>>, %arg8: memref<1x32xf32, #tpu.memory_space<vmem>>, %arg9: memref<1x32xf32, #tpu.memory_space<vmem>>, %arg10: memref<1x32xf32, #tpu.memory_space<vmem>>, %arg11: memref<32x64xf32, #tpu.memory_space<vmem>>, %arg12: memref<6x64xf32, #tpu.memory_space<vmem>>, %arg13: memref<1x64xf32, #tpu.memory_space<vmem>>, %arg14: memref<32x32xf32, #tpu.memory_space<vmem>>, %arg15: memref<32x32xf32, #tpu.memory_space<vmem>>, %arg16: memref<1x32xf32, #tpu.memory_space<vmem>>, %arg17: memref<1x32xf32, #tpu.memory_space<vmem>>, %arg18: memref<32x1xf32, #tpu.memory_space<vmem>>, %arg19: memref<32x1xf32, #tpu.memory_space<vmem>>, %arg20: memref<1x1xf32, #tpu.memory_space<vmem>>, %arg21: memref<1x1xf32, #tpu.memory_space<vmem>>, %arg22: memref<1x1x1xf32, #tpu.memory_space<vmem>>, %arg23: memref<1x1x1xf32, #tpu.memory_space<vmem>>, %arg24: memref<7x7x8xf32, #tpu.memory_space<vmem>>, %arg25: memref<5x5x8xf32, #tpu.memory_space<vmem>>) attributes {dimension_semantics = [#tpu.dimension_semantics<parallel>], iteration_bounds = array<i64: 2>, scalar_prefetch = 0 : i64, scratch_operands = 2 : i64, tpu.core_type = #tpu.core_type<tc>, window_params = [{transform_indices = @transform_0, window_bounds = array<i64: 4, 8, 8, 4>}, {transform_indices = @transform_1, window_bounds = array<i64: 1, 1, 6>}, {pipeline_mode = #tpu.pipeline_mode<synchronous>, transform_indices = @transform_2, window_bounds = array<i64: 36, 8>}, {pipeline_mode = #tpu.pipeline_mode<synchronous>, transform_indices = @transform_3, window_bounds = array<i64: 72, 8>}, {pipeline_mode = #tpu.pipeline_mode<synchronous>, transform_indices = @transform_4, window_bounds = array<i64: 1, 8>}, {pipeline_mode = #tpu.pipeline_mode<synchronous>, transform_indices = @transform_5, window_bounds = array<i64: 1, 8>}, {pipeline_mode = #tpu.pipeline_mode<synchronous>, transform_indices = @transform_6, window_bounds = array<i64: 200, 32>}, {pipeline_mode = #tpu.pipeline_mode<synchronous>, transform_indices = @transform_7, window_bounds = array<i64: 1, 32>}, {pipeline_mode = #tpu.pipeline_mode<synchronous>, transform_indices = @transform_8, window_bounds = array<i64: 1, 32>}, {pipeline_mode = #tpu.pipeline_mode<synchronous>, transform_indices = @transform_9, window_bounds = array<i64: 1, 32>}, {pipeline_mode = #tpu.pipeline_mode<synchronous>, transform_indices = @transform_10, window_bounds = array<i64: 32, 64>}, {pipeline_mode = #tpu.pipeline_mode<synchronous>, transform_indices = @transform_11, window_bounds = array<i64: 6, 64>}, {pipeline_mode = #tpu.pipeline_mode<synchronous>, transform_indices = @transform_12, window_bounds = array<i64: 1, 64>}, {pipeline_mode = #tpu.pipeline_mode<synchronous>, transform_indices = @transform_13, window_bounds = array<i64: 32, 32>}, {pipeline_mode = #tpu.pipeline_mode<synchronous>, transform_indices = @transform_14, window_bounds = array<i64: 32, 32>}, {pipeline_mode = #tpu.pipeline_mode<synchronous>, transform_indices = @transform_15, window_bounds = array<i64: 1, 32>}, {pipeline_mode = #tpu.pipeline_mode<synchronous>, transform_indices = @transform_16, window_bounds = array<i64: 1, 32>}, {pipeline_mode = #tpu.pipeline_mode<synchronous>, transform_indices = @transform_17, window_bounds = array<i64: 32, 1>}, {pipeline_mode = #tpu.pipeline_mode<synchronous>, transform_indices = @transform_18, window_bounds = array<i64: 32, 1>}, {pipeline_mode = #tpu.pipeline_mode<synchronous>, transform_indices = @transform_19, window_bounds = array<i64: 1, 1>}, {pipeline_mode = #tpu.pipeline_mode<synchronous>, transform_indices = @transform_20, window_bounds = array<i64: 1, 1>}, {transform_indices = @transform_21, window_bounds = array<i64: 1, 1, 1>}, {transform_indices = @transform_22, window_bounds = array<i64: 1, 1, 1>}]} {
    %cst = arith.constant 0.000000e+00 : f32
    %0 = vector.broadcast %cst : f32 to vector<7x7x8xf32>
    %c0 = arith.constant 0 : index
    %c0_0 = arith.constant 0 : index
    %1 = vector.load %arg5[%c0, %c0_0] : memref<1x8xf32, #tpu.memory_space<vmem>>, vector<1x8xf32>
    %2 = vector.shape_cast %1 : vector<1x8xf32> to vector<1x1x8xf32>
    %3 = vector.broadcast %2 : vector<1x1x8xf32> to vector<7x7x8xf32>
    %4 = arith.addf %0, %3 : vector<7x7x8xf32>
    %c0_1 = arith.constant 0 : index
    %c0_2 = arith.constant 0 : index
    %c0_3 = arith.constant 0 : index
    %c0_4 = arith.constant 0 : index
    %5 = vector.load %arg1[%c0_1, %c0_2, %c0_3, %c0_4] : memref<4x8x8x4xf32, #tpu.memory_space<vmem>>, vector<1x7x7x4xf32>
    %6 = vector.shape_cast %5 : vector<1x7x7x4xf32> to vector<7x7x4xf32>
    %7 = vector.extract_strided_slice %6 {offsets = [0, 0, 0], sizes = [7, 7, 1], strides = [1, 1, 1]} : vector<7x7x4xf32> to vector<7x7x1xf32>
    %c0_5 = arith.constant 0 : index
    %c0_6 = arith.constant 0 : index
    %8 = vector.load %arg3[%c0_5, %c0_6] : memref<36x8xf32, #tpu.memory_space<vmem>>, vector<1x8xf32>
    %9 = vector.shape_cast %8 : vector<1x8xf32> to vector<1x1x8xf32>
    %10 = vector.broadcast %7 : vector<7x7x1xf32> to vector<7x7x8xf32>
    %11 = vector.broadcast %9 : vector<1x1x8xf32> to vector<7x7x8xf32>
    %12 = arith.mulf %10, %11 : vector<7x7x8xf32>
    %13 = arith.addf %4, %12 : vector<7x7x8xf32>
    %14 = vector.extract_strided_slice %6 {offsets = [0, 0, 1], sizes = [7, 7, 1], strides = [1, 1, 1]} : vector<7x7x4xf32> to vector<7x7x1xf32>
    %c1 = arith.constant 1 : index
    %c0_7 = arith.constant 0 : index
    %15 = vector.load %arg3[%c1, %c0_7] : memref<36x8xf32, #tpu.memory_space<vmem>>, vector<1x8xf32>
    %16 = vector.shape_cast %15 : vector<1x8xf32> to vector<1x1x8xf32>
    %17 = vector.broadcast %14 : vector<7x7x1xf32> to vector<7x7x8xf32>
    %18 = vector.broadcast %16 : vector<1x1x8xf32> to vector<7x7x8xf32>
    %19 = arith.mulf %17, %18 : vector<7x7x8xf32>
    %20 = arith.addf %13, %19 : vector<7x7x8xf32>
    %21 = vector.extract_strided_slice %6 {offsets = [0, 0, 2], sizes = [7, 7, 1], strides = [1, 1, 1]} : vector<7x7x4xf32> to vector<7x7x1xf32>
    %c2 = arith.constant 2 : index
    %c0_8 = arith.constant 0 : index
    %22 = vector.load %arg3[%c2, %c0_8] : memref<36x8xf32, #tpu.memory_space<vmem>>, vector<1x8xf32>
    %23 = vector.shape_cast %22 : vector<1x8xf32> to vector<1x1x8xf32>
    %24 = vector.broadcast %21 : vector<7x7x1xf32> to vector<7x7x8xf32>
    %25 = vector.broadcast %23 : vector<1x1x8xf32> to vector<7x7x8xf32>
    %26 = arith.mulf %24, %25 : vector<7x7x8xf32>
    %27 = arith.addf %20, %26 : vector<7x7x8xf32>
    %28 = vector.extract_strided_slice %6 {offsets = [0, 0, 3], sizes = [7, 7, 1], strides = [1, 1, 1]} : vector<7x7x4xf32> to vector<7x7x1xf32>
    %c3 = arith.constant 3 : index
    %c0_9 = arith.constant 0 : index
    %29 = vector.load %arg3[%c3, %c0_9] : memref<36x8xf32, #tpu.memory_space<vmem>>, vector<1x8xf32>
    %30 = vector.shape_cast %29 : vector<1x8xf32> to vector<1x1x8xf32>
    %31 = vector.broadcast %28 : vector<7x7x1xf32> to vector<7x7x8xf32>
    %32 = vector.broadcast %30 : vector<1x1x8xf32> to vector<7x7x8xf32>
    %33 = arith.mulf %31, %32 : vector<7x7x8xf32>
    %34 = arith.addf %27, %33 : vector<7x7x8xf32>
    %c1_10 = arith.constant 1 : index
    %c0_11 = arith.constant 0 : index
    %c0_12 = arith.constant 0 : index
    %c0_13 = arith.constant 0 : index
    %35 = vector.load %arg1[%c1_10, %c0_11, %c0_12, %c0_13] : memref<4x8x8x4xf32, #tpu.memory_space<vmem>>, vector<1x7x7x4xf32>
    %36 = vector.shape_cast %35 : vector<1x7x7x4xf32> to vector<7x7x4xf32>
    %37 = vector.extract_strided_slice %36 {offsets = [0, 0, 0], sizes = [7, 7, 1], strides = [1, 1, 1]} : vector<7x7x4xf32> to vector<7x7x1xf32>
    %c4 = arith.constant 4 : index
    %c0_14 = arith.constant 0 : index
    %38 = vector.load %arg3[%c4, %c0_14] : memref<36x8xf32, #tpu.memory_space<vmem>>, vector<1x8xf32>
    %39 = vector.shape_cast %38 : vector<1x8xf32> to vector<1x1x8xf32>
    %40 = vector.broadcast %37 : vector<7x7x1xf32> to vector<7x7x8xf32>
    %41 = vector.broadcast %39 : vector<1x1x8xf32> to vector<7x7x8xf32>
    %42 = arith.mulf %40, %41 : vector<7x7x8xf32>
    %43 = arith.addf %34, %42 : vector<7x7x8xf32>
    %44 = vector.extract_strided_slice %36 {offsets = [0, 0, 1], sizes = [7, 7, 1], strides = [1, 1, 1]} : vector<7x7x4xf32> to vector<7x7x1xf32>
    %c5 = arith.constant 5 : index
    %c0_15 = arith.constant 0 : index
    %45 = vector.load %arg3[%c5, %c0_15] : memref<36x8xf32, #tpu.memory_space<vmem>>, vector<1x8xf32>
    %46 = vector.shape_cast %45 : vector<1x8xf32> to vector<1x1x8xf32>
    %47 = vector.broadcast %44 : vector<7x7x1xf32> to vector<7x7x8xf32>
    %48 = vector.broadcast %46 : vector<1x1x8xf32> to vector<7x7x8xf32>
    %49 = arith.mulf %47, %48 : vector<7x7x8xf32>
    %50 = arith.addf %43, %49 : vector<7x7x8xf32>
    %51 = vector.extract_strided_slice %36 {offsets = [0, 0, 2], sizes = [7, 7, 1], strides = [1, 1, 1]} : vector<7x7x4xf32> to vector<7x7x1xf32>
    %c6 = arith.constant 6 : index
    %c0_16 = arith.constant 0 : index
    %52 = vector.load %arg3[%c6, %c0_16] : memref<36x8xf32, #tpu.memory_space<vmem>>, vector<1x8xf32>
    %53 = vector.shape_cast %52 : vector<1x8xf32> to vector<1x1x8xf32>
    %54 = vector.broadcast %51 : vector<7x7x1xf32> to vector<7x7x8xf32>
    %55 = vector.broadcast %53 : vector<1x1x8xf32> to vector<7x7x8xf32>
    %56 = arith.mulf %54, %55 : vector<7x7x8xf32>
    %57 = arith.addf %50, %56 : vector<7x7x8xf32>
    %58 = vector.extract_strided_slice %36 {offsets = [0, 0, 3], sizes = [7, 7, 1], strides = [1, 1, 1]} : vector<7x7x4xf32> to vector<7x7x1xf32>
    %c7 = arith.constant 7 : index
    %c0_17 = arith.constant 0 : index
    %59 = vector.load %arg3[%c7, %c0_17] : memref<36x8xf32, #tpu.memory_space<vmem>>, vector<1x8xf32>
    %60 = vector.shape_cast %59 : vector<1x8xf32> to vector<1x1x8xf32>
    %61 = vector.broadcast %58 : vector<7x7x1xf32> to vector<7x7x8xf32>
    %62 = vector.broadcast %60 : vector<1x1x8xf32> to vector<7x7x8xf32>
    %63 = arith.mulf %61, %62 : vector<7x7x8xf32>
    %64 = arith.addf %57, %63 : vector<7x7x8xf32>
    %c0_18 = arith.constant 0 : index
    %c0_19 = arith.constant 0 : index
    %c1_20 = arith.constant 1 : index
    %c0_21 = arith.constant 0 : index
    %65 = vector.load %arg1[%c0_18, %c0_19, %c1_20, %c0_21] : memref<4x8x8x4xf32, #tpu.memory_space<vmem>>, vector<1x7x7x4xf32>
    %66 = vector.shape_cast %65 : vector<1x7x7x4xf32> to vector<7x7x4xf32>
    %67 = vector.extract_strided_slice %66 {offsets = [0, 0, 0], sizes = [7, 7, 1], strides = [1, 1, 1]} : vector<7x7x4xf32> to vector<7x7x1xf32>
    %c8 = arith.constant 8 : index
    %c0_22 = arith.constant 0 : index
    %68 = vector.load %arg3[%c8, %c0_22] : memref<36x8xf32, #tpu.memory_space<vmem>>, vector<1x8xf32>
    %69 = vector.shape_cast %68 : vector<1x8xf32> to vector<1x1x8xf32>
    %70 = vector.broadcast %67 : vector<7x7x1xf32> to vector<7x7x8xf32>
    %71 = vector.broadcast %69 : vector<1x1x8xf32> to vector<7x7x8xf32>
    %72 = arith.mulf %70, %71 : vector<7x7x8xf32>
    %73 = arith.addf %64, %72 : vector<7x7x8xf32>
    %74 = vector.extract_strided_slice %66 {offsets = [0, 0, 1], sizes = [7, 7, 1], strides = [1, 1, 1]} : vector<7x7x4xf32> to vector<7x7x1xf32>
    %c9 = arith.constant 9 : index
    %c0_23 = arith.constant 0 : index
    %75 = vector.load %arg3[%c9, %c0_23] : memref<36x8xf32, #tpu.memory_space<vmem>>, vector<1x8xf32>
    %76 = vector.shape_cast %75 : vector<1x8xf32> to vector<1x1x8xf32>
    %77 = vector.broadcast %74 : vector<7x7x1xf32> to vector<7x7x8xf32>
    %78 = vector.broadcast %76 : vector<1x1x8xf32> to vector<7x7x8xf32>
    %79 = arith.mulf %77, %78 : vector<7x7x8xf32>
    %80 = arith.addf %73, %79 : vector<7x7x8xf32>
    %81 = vector.extract_strided_slice %66 {offsets = [0, 0, 2], sizes = [7, 7, 1], strides = [1, 1, 1]} : vector<7x7x4xf32> to vector<7x7x1xf32>
    %c10 = arith.constant 10 : index
    %c0_24 = arith.constant 0 : index
    %82 = vector.load %arg3[%c10, %c0_24] : memref<36x8xf32, #tpu.memory_space<vmem>>, vector<1x8xf32>
    %83 = vector.shape_cast %82 : vector<1x8xf32> to vector<1x1x8xf32>
    %84 = vector.broadcast %81 : vector<7x7x1xf32> to vector<7x7x8xf32>
    %85 = vector.broadcast %83 : vector<1x1x8xf32> to vector<7x7x8xf32>
    %86 = arith.mulf %84, %85 : vector<7x7x8xf32>
    %87 = arith.addf %80, %86 : vector<7x7x8xf32>
    %88 = vector.extract_strided_slice %66 {offsets = [0, 0, 3], sizes = [7, 7, 1], strides = [1, 1, 1]} : vector<7x7x4xf32> to vector<7x7x1xf32>
    %c11 = arith.constant 11 : index
    %c0_25 = arith.constant 0 : index
    %89 = vector.load %arg3[%c11, %c0_25] : memref<36x8xf32, #tpu.memory_space<vmem>>, vector<1x8xf32>
    %90 = vector.shape_cast %89 : vector<1x8xf32> to vector<1x1x8xf32>
    %91 = vector.broadcast %88 : vector<7x7x1xf32> to vector<7x7x8xf32>
    %92 = vector.broadcast %90 : vector<1x1x8xf32> to vector<7x7x8xf32>
    %93 = arith.mulf %91, %92 : vector<7x7x8xf32>
    %94 = arith.addf %87, %93 : vector<7x7x8xf32>
    %c2_26 = arith.constant 2 : index
    %c0_27 = arith.constant 0 : index
    %c0_28 = arith.constant 0 : index
    %c0_29 = arith.constant 0 : index
    %95 = vector.load %arg1[%c2_26, %c0_27, %c0_28, %c0_29] : memref<4x8x8x4xf32, #tpu.memory_space<vmem>>, vector<1x7x7x4xf32>
    %96 = vector.shape_cast %95 : vector<1x7x7x4xf32> to vector<7x7x4xf32>
    %97 = vector.extract_strided_slice %96 {offsets = [0, 0, 0], sizes = [7, 7, 1], strides = [1, 1, 1]} : vector<7x7x4xf32> to vector<7x7x1xf32>
    %c12 = arith.constant 12 : index
    %c0_30 = arith.constant 0 : index
    %98 = vector.load %arg3[%c12, %c0_30] : memref<36x8xf32, #tpu.memory_space<vmem>>, vector<1x8xf32>
    %99 = vector.shape_cast %98 : vector<1x8xf32> to vector<1x1x8xf32>
    %100 = vector.broadcast %97 : vector<7x7x1xf32> to vector<7x7x8xf32>
    %101 = vector.broadcast %99 : vector<1x1x8xf32> to vector<7x7x8xf32>
    %102 = arith.mulf %100, %101 : vector<7x7x8xf32>
    %103 = arith.addf %94, %102 : vector<7x7x8xf32>
    %104 = vector.extract_strided_slice %96 {offsets = [0, 0, 1], sizes = [7, 7, 1], strides = [1, 1, 1]} : vector<7x7x4xf32> to vector<7x7x1xf32>
    %c13 = arith.constant 13 : index
    %c0_31 = arith.constant 0 : index
    %105 = vector.load %arg3[%c13, %c0_31] : memref<36x8xf32, #tpu.memory_space<vmem>>, vector<1x8xf32>
    %106 = vector.shape_cast %105 : vector<1x8xf32> to vector<1x1x8xf32>
    %107 = vector.broadcast %104 : vector<7x7x1xf32> to vector<7x7x8xf32>
    %108 = vector.broadcast %106 : vector<1x1x8xf32> to vector<7x7x8xf32>
    %109 = arith.mulf %107, %108 : vector<7x7x8xf32>
    %110 = arith.addf %103, %109 : vector<7x7x8xf32>
    %111 = vector.extract_strided_slice %96 {offsets = [0, 0, 2], sizes = [7, 7, 1], strides = [1, 1, 1]} : vector<7x7x4xf32> to vector<7x7x1xf32>
    %c14 = arith.constant 14 : index
    %c0_32 = arith.constant 0 : index
    %112 = vector.load %arg3[%c14, %c0_32] : memref<36x8xf32, #tpu.memory_space<vmem>>, vector<1x8xf32>
    %113 = vector.shape_cast %112 : vector<1x8xf32> to vector<1x1x8xf32>
    %114 = vector.broadcast %111 : vector<7x7x1xf32> to vector<7x7x8xf32>
    %115 = vector.broadcast %113 : vector<1x1x8xf32> to vector<7x7x8xf32>
    %116 = arith.mulf %114, %115 : vector<7x7x8xf32>
    %117 = arith.addf %110, %116 : vector<7x7x8xf32>
    %118 = vector.extract_strided_slice %96 {offsets = [0, 0, 3], sizes = [7, 7, 1], strides = [1, 1, 1]} : vector<7x7x4xf32> to vector<7x7x1xf32>
    %c15 = arith.constant 15 : index
    %c0_33 = arith.constant 0 : index
    %119 = vector.load %arg3[%c15, %c0_33] : memref<36x8xf32, #tpu.memory_space<vmem>>, vector<1x8xf32>
    %120 = vector.shape_cast %119 : vector<1x8xf32> to vector<1x1x8xf32>
    %121 = vector.broadcast %118 : vector<7x7x1xf32> to vector<7x7x8xf32>
    %122 = vector.broadcast %120 : vector<1x1x8xf32> to vector<7x7x8xf32>
    %123 = arith.mulf %121, %122 : vector<7x7x8xf32>
    %124 = arith.addf %117, %123 : vector<7x7x8xf32>
    %c3_34 = arith.constant 3 : index
    %c0_35 = arith.constant 0 : index
    %c0_36 = arith.constant 0 : index
    %c0_37 = arith.constant 0 : index
    %125 = vector.load %arg1[%c3_34, %c0_35, %c0_36, %c0_37] : memref<4x8x8x4xf32, #tpu.memory_space<vmem>>, vector<1x7x7x4xf32>
    %126 = vector.shape_cast %125 : vector<1x7x7x4xf32> to vector<7x7x4xf32>
    %127 = vector.extract_strided_slice %126 {offsets = [0, 0, 0], sizes = [7, 7, 1], strides = [1, 1, 1]} : vector<7x7x4xf32> to vector<7x7x1xf32>
    %c16 = arith.constant 16 : index
    %c0_38 = arith.constant 0 : index
    %128 = vector.load %arg3[%c16, %c0_38] : memref<36x8xf32, #tpu.memory_space<vmem>>, vector<1x8xf32>
    %129 = vector.shape_cast %128 : vector<1x8xf32> to vector<1x1x8xf32>
    %130 = vector.broadcast %127 : vector<7x7x1xf32> to vector<7x7x8xf32>
    %131 = vector.broadcast %129 : vector<1x1x8xf32> to vector<7x7x8xf32>
    %132 = arith.mulf %130, %131 : vector<7x7x8xf32>
    %133 = arith.addf %124, %132 : vector<7x7x8xf32>
    %134 = vector.extract_strided_slice %126 {offsets = [0, 0, 1], sizes = [7, 7, 1], strides = [1, 1, 1]} : vector<7x7x4xf32> to vector<7x7x1xf32>
    %c17 = arith.constant 17 : index
    %c0_39 = arith.constant 0 : index
    %135 = vector.load %arg3[%c17, %c0_39] : memref<36x8xf32, #tpu.memory_space<vmem>>, vector<1x8xf32>
    %136 = vector.shape_cast %135 : vector<1x8xf32> to vector<1x1x8xf32>
    %137 = vector.broadcast %134 : vector<7x7x1xf32> to vector<7x7x8xf32>
    %138 = vector.broadcast %136 : vector<1x1x8xf32> to vector<7x7x8xf32>
    %139 = arith.mulf %137, %138 : vector<7x7x8xf32>
    %140 = arith.addf %133, %139 : vector<7x7x8xf32>
    %141 = vector.extract_strided_slice %126 {offsets = [0, 0, 2], sizes = [7, 7, 1], strides = [1, 1, 1]} : vector<7x7x4xf32> to vector<7x7x1xf32>
    %c18 = arith.constant 18 : index
    %c0_40 = arith.constant 0 : index
    %142 = vector.load %arg3[%c18, %c0_40] : memref<36x8xf32, #tpu.memory_space<vmem>>, vector<1x8xf32>
    %143 = vector.shape_cast %142 : vector<1x8xf32> to vector<1x1x8xf32>
    %144 = vector.broadcast %141 : vector<7x7x1xf32> to vector<7x7x8xf32>
    %145 = vector.broadcast %143 : vector<1x1x8xf32> to vector<7x7x8xf32>
    %146 = arith.mulf %144, %145 : vector<7x7x8xf32>
    %147 = arith.addf %140, %146 : vector<7x7x8xf32>
    %148 = vector.extract_strided_slice %126 {offsets = [0, 0, 3], sizes = [7, 7, 1], strides = [1, 1, 1]} : vector<7x7x4xf32> to vector<7x7x1xf32>
    %c19 = arith.constant 19 : index
    %c0_41 = arith.constant 0 : index
    %149 = vector.load %arg3[%c19, %c0_41] : memref<36x8xf32, #tpu.memory_space<vmem>>, vector<1x8xf32>
    %150 = vector.shape_cast %149 : vector<1x8xf32> to vector<1x1x8xf32>
    %151 = vector.broadcast %148 : vector<7x7x1xf32> to vector<7x7x8xf32>
    %152 = vector.broadcast %150 : vector<1x1x8xf32> to vector<7x7x8xf32>
    %153 = arith.mulf %151, %152 : vector<7x7x8xf32>
    %154 = arith.addf %147, %153 : vector<7x7x8xf32>
    %c2_42 = arith.constant 2 : index
    %c0_43 = arith.constant 0 : index
    %c1_44 = arith.constant 1 : index
    %c0_45 = arith.constant 0 : index
    %155 = vector.load %arg1[%c2_42, %c0_43, %c1_44, %c0_45] : memref<4x8x8x4xf32, #tpu.memory_space<vmem>>, vector<1x7x7x4xf32>
    %156 = vector.shape_cast %155 : vector<1x7x7x4xf32> to vector<7x7x4xf32>
    %157 = vector.extract_strided_slice %156 {offsets = [0, 0, 0], sizes = [7, 7, 1], strides = [1, 1, 1]} : vector<7x7x4xf32> to vector<7x7x1xf32>
    %c20 = arith.constant 20 : index
    %c0_46 = arith.constant 0 : index
    %158 = vector.load %arg3[%c20, %c0_46] : memref<36x8xf32, #tpu.memory_space<vmem>>, vector<1x8xf32>
    %159 = vector.shape_cast %158 : vector<1x8xf32> to vector<1x1x8xf32>
    %160 = vector.broadcast %157 : vector<7x7x1xf32> to vector<7x7x8xf32>
    %161 = vector.broadcast %159 : vector<1x1x8xf32> to vector<7x7x8xf32>
    %162 = arith.mulf %160, %161 : vector<7x7x8xf32>
    %163 = arith.addf %154, %162 : vector<7x7x8xf32>
    %164 = vector.extract_strided_slice %156 {offsets = [0, 0, 1], sizes = [7, 7, 1], strides = [1, 1, 1]} : vector<7x7x4xf32> to vector<7x7x1xf32>
    %c21 = arith.constant 21 : index
    %c0_47 = arith.constant 0 : index
    %165 = vector.load %arg3[%c21, %c0_47] : memref<36x8xf32, #tpu.memory_space<vmem>>, vector<1x8xf32>
    %166 = vector.shape_cast %165 : vector<1x8xf32> to vector<1x1x8xf32>
    %167 = vector.broadcast %164 : vector<7x7x1xf32> to vector<7x7x8xf32>
    %168 = vector.broadcast %166 : vector<1x1x8xf32> to vector<7x7x8xf32>
    %169 = arith.mulf %167, %168 : vector<7x7x8xf32>
    %170 = arith.addf %163, %169 : vector<7x7x8xf32>
    %171 = vector.extract_strided_slice %156 {offsets = [0, 0, 2], sizes = [7, 7, 1], strides = [1, 1, 1]} : vector<7x7x4xf32> to vector<7x7x1xf32>
    %c22 = arith.constant 22 : index
    %c0_48 = arith.constant 0 : index
    %172 = vector.load %arg3[%c22, %c0_48] : memref<36x8xf32, #tpu.memory_space<vmem>>, vector<1x8xf32>
    %173 = vector.shape_cast %172 : vector<1x8xf32> to vector<1x1x8xf32>
    %174 = vector.broadcast %171 : vector<7x7x1xf32> to vector<7x7x8xf32>
    %175 = vector.broadcast %173 : vector<1x1x8xf32> to vector<7x7x8xf32>
    %176 = arith.mulf %174, %175 : vector<7x7x8xf32>
    %177 = arith.addf %170, %176 : vector<7x7x8xf32>
    %178 = vector.extract_strided_slice %156 {offsets = [0, 0, 3], sizes = [7, 7, 1], strides = [1, 1, 1]} : vector<7x7x4xf32> to vector<7x7x1xf32>
    %c23 = arith.constant 23 : index
    %c0_49 = arith.constant 0 : index
    %179 = vector.load %arg3[%c23, %c0_49] : memref<36x8xf32, #tpu.memory_space<vmem>>, vector<1x8xf32>
    %180 = vector.shape_cast %179 : vector<1x8xf32> to vector<1x1x8xf32>
    %181 = vector.broadcast %178 : vector<7x7x1xf32> to vector<7x7x8xf32>
    %182 = vector.broadcast %180 : vector<1x1x8xf32> to vector<7x7x8xf32>
    %183 = arith.mulf %181, %182 : vector<7x7x8xf32>
    %184 = arith.addf %177, %183 : vector<7x7x8xf32>
    %c0_50 = arith.constant 0 : index
    %c1_51 = arith.constant 1 : index
    %c0_52 = arith.constant 0 : index
    %c0_53 = arith.constant 0 : index
    %185 = vector.load %arg1[%c0_50, %c1_51, %c0_52, %c0_53] : memref<4x8x8x4xf32, #tpu.memory_space<vmem>>, vector<1x7x7x4xf32>
    %186 = vector.shape_cast %185 : vector<1x7x7x4xf32> to vector<7x7x4xf32>
    %187 = vector.extract_strided_slice %186 {offsets = [0, 0, 0], sizes = [7, 7, 1], strides = [1, 1, 1]} : vector<7x7x4xf32> to vector<7x7x1xf32>
    %c24 = arith.constant 24 : index
    %c0_54 = arith.constant 0 : index
    %188 = vector.load %arg3[%c24, %c0_54] : memref<36x8xf32, #tpu.memory_space<vmem>>, vector<1x8xf32>
    %189 = vector.shape_cast %188 : vector<1x8xf32> to vector<1x1x8xf32>
    %190 = vector.broadcast %187 : vector<7x7x1xf32> to vector<7x7x8xf32>
    %191 = vector.broadcast %189 : vector<1x1x8xf32> to vector<7x7x8xf32>
    %192 = arith.mulf %190, %191 : vector<7x7x8xf32>
    %193 = arith.addf %184, %192 : vector<7x7x8xf32>
    %194 = vector.extract_strided_slice %186 {offsets = [0, 0, 1], sizes = [7, 7, 1], strides = [1, 1, 1]} : vector<7x7x4xf32> to vector<7x7x1xf32>
    %c25 = arith.constant 25 : index
    %c0_55 = arith.constant 0 : index
    %195 = vector.load %arg3[%c25, %c0_55] : memref<36x8xf32, #tpu.memory_space<vmem>>, vector<1x8xf32>
    %196 = vector.shape_cast %195 : vector<1x8xf32> to vector<1x1x8xf32>
    %197 = vector.broadcast %194 : vector<7x7x1xf32> to vector<7x7x8xf32>
    %198 = vector.broadcast %196 : vector<1x1x8xf32> to vector<7x7x8xf32>
    %199 = arith.mulf %197, %198 : vector<7x7x8xf32>
    %200 = arith.addf %193, %199 : vector<7x7x8xf32>
    %201 = vector.extract_strided_slice %186 {offsets = [0, 0, 2], sizes = [7, 7, 1], strides = [1, 1, 1]} : vector<7x7x4xf32> to vector<7x7x1xf32>
    %c26 = arith.constant 26 : index
    %c0_56 = arith.constant 0 : index
    %202 = vector.load %arg3[%c26, %c0_56] : memref<36x8xf32, #tpu.memory_space<vmem>>, vector<1x8xf32>
    %203 = vector.shape_cast %202 : vector<1x8xf32> to vector<1x1x8xf32>
    %204 = vector.broadcast %201 : vector<7x7x1xf32> to vector<7x7x8xf32>
    %205 = vector.broadcast %203 : vector<1x1x8xf32> to vector<7x7x8xf32>
    %206 = arith.mulf %204, %205 : vector<7x7x8xf32>
    %207 = arith.addf %200, %206 : vector<7x7x8xf32>
    %208 = vector.extract_strided_slice %186 {offsets = [0, 0, 3], sizes = [7, 7, 1], strides = [1, 1, 1]} : vector<7x7x4xf32> to vector<7x7x1xf32>
    %c27 = arith.constant 27 : index
    %c0_57 = arith.constant 0 : index
    %209 = vector.load %arg3[%c27, %c0_57] : memref<36x8xf32, #tpu.memory_space<vmem>>, vector<1x8xf32>
    %210 = vector.shape_cast %209 : vector<1x8xf32> to vector<1x1x8xf32>
    %211 = vector.broadcast %208 : vector<7x7x1xf32> to vector<7x7x8xf32>
    %212 = vector.broadcast %210 : vector<1x1x8xf32> to vector<7x7x8xf32>
    %213 = arith.mulf %211, %212 : vector<7x7x8xf32>
    %214 = arith.addf %207, %213 : vector<7x7x8xf32>
    %c1_58 = arith.constant 1 : index
    %c1_59 = arith.constant 1 : index
    %c0_60 = arith.constant 0 : index
    %c0_61 = arith.constant 0 : index
    %215 = vector.load %arg1[%c1_58, %c1_59, %c0_60, %c0_61] : memref<4x8x8x4xf32, #tpu.memory_space<vmem>>, vector<1x7x7x4xf32>
    %216 = vector.shape_cast %215 : vector<1x7x7x4xf32> to vector<7x7x4xf32>
    %217 = vector.extract_strided_slice %216 {offsets = [0, 0, 0], sizes = [7, 7, 1], strides = [1, 1, 1]} : vector<7x7x4xf32> to vector<7x7x1xf32>
    %c28 = arith.constant 28 : index
    %c0_62 = arith.constant 0 : index
    %218 = vector.load %arg3[%c28, %c0_62] : memref<36x8xf32, #tpu.memory_space<vmem>>, vector<1x8xf32>
    %219 = vector.shape_cast %218 : vector<1x8xf32> to vector<1x1x8xf32>
    %220 = vector.broadcast %217 : vector<7x7x1xf32> to vector<7x7x8xf32>
    %221 = vector.broadcast %219 : vector<1x1x8xf32> to vector<7x7x8xf32>
    %222 = arith.mulf %220, %221 : vector<7x7x8xf32>
    %223 = arith.addf %214, %222 : vector<7x7x8xf32>
    %224 = vector.extract_strided_slice %216 {offsets = [0, 0, 1], sizes = [7, 7, 1], strides = [1, 1, 1]} : vector<7x7x4xf32> to vector<7x7x1xf32>
    %c29 = arith.constant 29 : index
    %c0_63 = arith.constant 0 : index
    %225 = vector.load %arg3[%c29, %c0_63] : memref<36x8xf32, #tpu.memory_space<vmem>>, vector<1x8xf32>
    %226 = vector.shape_cast %225 : vector<1x8xf32> to vector<1x1x8xf32>
    %227 = vector.broadcast %224 : vector<7x7x1xf32> to vector<7x7x8xf32>
    %228 = vector.broadcast %226 : vector<1x1x8xf32> to vector<7x7x8xf32>
    %229 = arith.mulf %227, %228 : vector<7x7x8xf32>
    %230 = arith.addf %223, %229 : vector<7x7x8xf32>
    %231 = vector.extract_strided_slice %216 {offsets = [0, 0, 2], sizes = [7, 7, 1], strides = [1, 1, 1]} : vector<7x7x4xf32> to vector<7x7x1xf32>
    %c30 = arith.constant 30 : index
    %c0_64 = arith.constant 0 : index
    %232 = vector.load %arg3[%c30, %c0_64] : memref<36x8xf32, #tpu.memory_space<vmem>>, vector<1x8xf32>
    %233 = vector.shape_cast %232 : vector<1x8xf32> to vector<1x1x8xf32>
    %234 = vector.broadcast %231 : vector<7x7x1xf32> to vector<7x7x8xf32>
    %235 = vector.broadcast %233 : vector<1x1x8xf32> to vector<7x7x8xf32>
    %236 = arith.mulf %234, %235 : vector<7x7x8xf32>
    %237 = arith.addf %230, %236 : vector<7x7x8xf32>
    %238 = vector.extract_strided_slice %216 {offsets = [0, 0, 3], sizes = [7, 7, 1], strides = [1, 1, 1]} : vector<7x7x4xf32> to vector<7x7x1xf32>
    %c31 = arith.constant 31 : index
    %c0_65 = arith.constant 0 : index
    %239 = vector.load %arg3[%c31, %c0_65] : memref<36x8xf32, #tpu.memory_space<vmem>>, vector<1x8xf32>
    %240 = vector.shape_cast %239 : vector<1x8xf32> to vector<1x1x8xf32>
    %241 = vector.broadcast %238 : vector<7x7x1xf32> to vector<7x7x8xf32>
    %242 = vector.broadcast %240 : vector<1x1x8xf32> to vector<7x7x8xf32>
    %243 = arith.mulf %241, %242 : vector<7x7x8xf32>
    %244 = arith.addf %237, %243 : vector<7x7x8xf32>
    %c0_66 = arith.constant 0 : index
    %c1_67 = arith.constant 1 : index
    %c1_68 = arith.constant 1 : index
    %c0_69 = arith.constant 0 : index
    %245 = vector.load %arg1[%c0_66, %c1_67, %c1_68, %c0_69] : memref<4x8x8x4xf32, #tpu.memory_space<vmem>>, vector<1x7x7x4xf32>
    %246 = vector.shape_cast %245 : vector<1x7x7x4xf32> to vector<7x7x4xf32>
    %247 = vector.extract_strided_slice %246 {offsets = [0, 0, 0], sizes = [7, 7, 1], strides = [1, 1, 1]} : vector<7x7x4xf32> to vector<7x7x1xf32>
    %c32 = arith.constant 32 : index
    %c0_70 = arith.constant 0 : index
    %248 = vector.load %arg3[%c32, %c0_70] : memref<36x8xf32, #tpu.memory_space<vmem>>, vector<1x8xf32>
    %249 = vector.shape_cast %248 : vector<1x8xf32> to vector<1x1x8xf32>
    %250 = vector.broadcast %247 : vector<7x7x1xf32> to vector<7x7x8xf32>
    %251 = vector.broadcast %249 : vector<1x1x8xf32> to vector<7x7x8xf32>
    %252 = arith.mulf %250, %251 : vector<7x7x8xf32>
    %253 = arith.addf %244, %252 : vector<7x7x8xf32>
    %254 = vector.extract_strided_slice %246 {offsets = [0, 0, 1], sizes = [7, 7, 1], strides = [1, 1, 1]} : vector<7x7x4xf32> to vector<7x7x1xf32>
    %c33 = arith.constant 33 : index
    %c0_71 = arith.constant 0 : index
    %255 = vector.load %arg3[%c33, %c0_71] : memref<36x8xf32, #tpu.memory_space<vmem>>, vector<1x8xf32>
    %256 = vector.shape_cast %255 : vector<1x8xf32> to vector<1x1x8xf32>
    %257 = vector.broadcast %254 : vector<7x7x1xf32> to vector<7x7x8xf32>
    %258 = vector.broadcast %256 : vector<1x1x8xf32> to vector<7x7x8xf32>
    %259 = arith.mulf %257, %258 : vector<7x7x8xf32>
    %260 = arith.addf %253, %259 : vector<7x7x8xf32>
    %261 = vector.extract_strided_slice %246 {offsets = [0, 0, 2], sizes = [7, 7, 1], strides = [1, 1, 1]} : vector<7x7x4xf32> to vector<7x7x1xf32>
    %c34 = arith.constant 34 : index
    %c0_72 = arith.constant 0 : index
    %262 = vector.load %arg3[%c34, %c0_72] : memref<36x8xf32, #tpu.memory_space<vmem>>, vector<1x8xf32>
    %263 = vector.shape_cast %262 : vector<1x8xf32> to vector<1x1x8xf32>
    %264 = vector.broadcast %261 : vector<7x7x1xf32> to vector<7x7x8xf32>
    %265 = vector.broadcast %263 : vector<1x1x8xf32> to vector<7x7x8xf32>
    %266 = arith.mulf %264, %265 : vector<7x7x8xf32>
    %267 = arith.addf %260, %266 : vector<7x7x8xf32>
    %268 = vector.extract_strided_slice %246 {offsets = [0, 0, 3], sizes = [7, 7, 1], strides = [1, 1, 1]} : vector<7x7x4xf32> to vector<7x7x1xf32>
    %c35 = arith.constant 35 : index
    %c0_73 = arith.constant 0 : index
    %269 = vector.load %arg3[%c35, %c0_73] : memref<36x8xf32, #tpu.memory_space<vmem>>, vector<1x8xf32>
    %270 = vector.shape_cast %269 : vector<1x8xf32> to vector<1x1x8xf32>
    %271 = vector.broadcast %268 : vector<7x7x1xf32> to vector<7x7x8xf32>
    %272 = vector.broadcast %270 : vector<1x1x8xf32> to vector<7x7x8xf32>
    %273 = arith.mulf %271, %272 : vector<7x7x8xf32>
    %274 = arith.addf %267, %273 : vector<7x7x8xf32>
    %cst_74 = arith.constant 0.000000e+00 : f32
    %275 = vector.broadcast %cst_74 : f32 to vector<7x7x8xf32>
    %276 = arith.maximumf %274, %275 : vector<7x7x8xf32>
    %c0_75 = arith.constant 0 : index
    %c0_76 = arith.constant 0 : index
    %c0_77 = arith.constant 0 : index
    %277 = vector.load %arg24[%c0_75, %c0_76, %c0_77] : memref<7x7x8xf32, #tpu.memory_space<vmem>>, vector<7x7x8xf32>
    tpu.vector_store %arg24[%c0_75, %c0_76, %c0_77], %276 {strides = array<i32>} : memref<7x7x8xf32, #tpu.memory_space<vmem>>, vector<7x7x8xf32>,
    %cst_78 = arith.constant 0.000000e+00 : f32
    %278 = vector.broadcast %cst_78 : f32 to vector<5x5x8xf32>
    %c0_79 = arith.constant 0 : index
    %c0_80 = arith.constant 0 : index
    %279 = vector.load %arg6[%c0_79, %c0_80] : memref<1x8xf32, #tpu.memory_space<vmem>>, vector<1x8xf32>
    %280 = vector.shape_cast %279 : vector<1x8xf32> to vector<1x1x8xf32>
    %281 = vector.broadcast %280 : vector<1x1x8xf32> to vector<5x5x8xf32>
    %282 = arith.addf %278, %281 : vector<5x5x8xf32>
    %c0_81 = arith.constant 0 : index
    %c0_82 = arith.constant 0 : index
    %c0_83 = arith.constant 0 : index
    %283 = vector.load %arg24[%c0_81, %c0_82, %c0_83] : memref<7x7x8xf32, #tpu.memory_space<vmem>>, vector<5x5x8xf32>
    %284 = vector.extract_strided_slice %283 {offsets = [0, 0, 0], sizes = [5, 5, 1], strides = [1, 1, 1]} : vector<5x5x8xf32> to vector<5x5x1xf32>
    %c0_84 = arith.constant 0 : index
    %c0_85 = arith.constant 0 : index
    %285 = vector.load %arg4[%c0_84, %c0_85] : memref<72x8xf32, #tpu.memory_space<vmem>>, vector<1x8xf32>
    %286 = vector.shape_cast %285 : vector<1x8xf32> to vector<1x1x8xf32>
    %287 = vector.broadcast %284 : vector<5x5x1xf32> to vector<5x5x8xf32>
    %288 = vector.broadcast %286 : vector<1x1x8xf32> to vector<5x5x8xf32>
    %289 = arith.mulf %287, %288 : vector<5x5x8xf32>
    %290 = arith.addf %282, %289 : vector<5x5x8xf32>
    %291 = vector.extract_strided_slice %283 {offsets = [0, 0, 1], sizes = [5, 5, 1], strides = [1, 1, 1]} : vector<5x5x8xf32> to vector<5x5x1xf32>
    %c1_86 = arith.constant 1 : index
    %c0_87 = arith.constant 0 : index
    %292 = vector.load %arg4[%c1_86, %c0_87] : memref<72x8xf32, #tpu.memory_space<vmem>>, vector<1x8xf32>
    %293 = vector.shape_cast %292 : vector<1x8xf32> to vector<1x1x8xf32>
    %294 = vector.broadcast %291 : vector<5x5x1xf32> to vector<5x5x8xf32>
    %295 = vector.broadcast %293 : vector<1x1x8xf32> to vector<5x5x8xf32>
    %296 = arith.mulf %294, %295 : vector<5x5x8xf32>
    %297 = arith.addf %290, %296 : vector<5x5x8xf32>
    %298 = vector.extract_strided_slice %283 {offsets = [0, 0, 2], sizes = [5, 5, 1], strides = [1, 1, 1]} : vector<5x5x8xf32> to vector<5x5x1xf32>
    %c2_88 = arith.constant 2 : index
    %c0_89 = arith.constant 0 : index
    %299 = vector.load %arg4[%c2_88, %c0_89] : memref<72x8xf32, #tpu.memory_space<vmem>>, vector<1x8xf32>
    %300 = vector.shape_cast %299 : vector<1x8xf32> to vector<1x1x8xf32>
    %301 = vector.broadcast %298 : vector<5x5x1xf32> to vector<5x5x8xf32>
    %302 = vector.broadcast %300 : vector<1x1x8xf32> to vector<5x5x8xf32>
    %303 = arith.mulf %301, %302 : vector<5x5x8xf32>
    %304 = arith.addf %297, %303 : vector<5x5x8xf32>
    %305 = vector.extract_strided_slice %283 {offsets = [0, 0, 3], sizes = [5, 5, 1], strides = [1, 1, 1]} : vector<5x5x8xf32> to vector<5x5x1xf32>
    %c3_90 = arith.constant 3 : index
    %c0_91 = arith.constant 0 : index
    %306 = vector.load %arg4[%c3_90, %c0_91] : memref<72x8xf32, #tpu.memory_space<vmem>>, vector<1x8xf32>
    %307 = vector.shape_cast %306 : vector<1x8xf32> to vector<1x1x8xf32>
    %308 = vector.broadcast %305 : vector<5x5x1xf32> to vector<5x5x8xf32>
    %309 = vector.broadcast %307 : vector<1x1x8xf32> to vector<5x5x8xf32>
    %310 = arith.mulf %308, %309 : vector<5x5x8xf32>
    %311 = arith.addf %304, %310 : vector<5x5x8xf32>
    %312 = vector.extract_strided_slice %283 {offsets = [0, 0, 4], sizes = [5, 5, 1], strides = [1, 1, 1]} : vector<5x5x8xf32> to vector<5x5x1xf32>
    %c4_92 = arith.constant 4 : index
    %c0_93 = arith.constant 0 : index
    %313 = vector.load %arg4[%c4_92, %c0_93] : memref<72x8xf32, #tpu.memory_space<vmem>>, vector<1x8xf32>
    %314 = vector.shape_cast %313 : vector<1x8xf32> to vector<1x1x8xf32>
    %315 = vector.broadcast %312 : vector<5x5x1xf32> to vector<5x5x8xf32>
    %316 = vector.broadcast %314 : vector<1x1x8xf32> to vector<5x5x8xf32>
    %317 = arith.mulf %315, %316 : vector<5x5x8xf32>
    %318 = arith.addf %311, %317 : vector<5x5x8xf32>
    %319 = vector.extract_strided_slice %283 {offsets = [0, 0, 5], sizes = [5, 5, 1], strides = [1, 1, 1]} : vector<5x5x8xf32> to vector<5x5x1xf32>
    %c5_94 = arith.constant 5 : index
    %c0_95 = arith.constant 0 : index
    %320 = vector.load %arg4[%c5_94, %c0_95] : memref<72x8xf32, #tpu.memory_space<vmem>>, vector<1x8xf32>
    %321 = vector.shape_cast %320 : vector<1x8xf32> to vector<1x1x8xf32>
    %322 = vector.broadcast %319 : vector<5x5x1xf32> to vector<5x5x8xf32>
    %323 = vector.broadcast %321 : vector<1x1x8xf32> to vector<5x5x8xf32>
    %324 = arith.mulf %322, %323 : vector<5x5x8xf32>
    %325 = arith.addf %318, %324 : vector<5x5x8xf32>
    %326 = vector.extract_strided_slice %283 {offsets = [0, 0, 6], sizes = [5, 5, 1], strides = [1, 1, 1]} : vector<5x5x8xf32> to vector<5x5x1xf32>
    %c6_96 = arith.constant 6 : index
    %c0_97 = arith.constant 0 : index
    %327 = vector.load %arg4[%c6_96, %c0_97] : memref<72x8xf32, #tpu.memory_space<vmem>>, vector<1x8xf32>
    %328 = vector.shape_cast %327 : vector<1x8xf32> to vector<1x1x8xf32>
    %329 = vector.broadcast %326 : vector<5x5x1xf32> to vector<5x5x8xf32>
    %330 = vector.broadcast %328 : vector<1x1x8xf32> to vector<5x5x8xf32>
    %331 = arith.mulf %329, %330 : vector<5x5x8xf32>
    %332 = arith.addf %325, %331 : vector<5x5x8xf32>
    %333 = vector.extract_strided_slice %283 {offsets = [0, 0, 7], sizes = [5, 5, 1], strides = [1, 1, 1]} : vector<5x5x8xf32> to vector<5x5x1xf32>
    %c7_98 = arith.constant 7 : index
    %c0_99 = arith.constant 0 : index
    %334 = vector.load %arg4[%c7_98, %c0_99] : memref<72x8xf32, #tpu.memory_space<vmem>>, vector<1x8xf32>
    %335 = vector.shape_cast %334 : vector<1x8xf32> to vector<1x1x8xf32>
    %336 = vector.broadcast %333 : vector<5x5x1xf32> to vector<5x5x8xf32>
    %337 = vector.broadcast %335 : vector<1x1x8xf32> to vector<5x5x8xf32>
    %338 = arith.mulf %336, %337 : vector<5x5x8xf32>
    %339 = arith.addf %332, %338 : vector<5x5x8xf32>
    %c0_100 = arith.constant 0 : index
    %c1_101 = arith.constant 1 : index
    %c0_102 = arith.constant 0 : index
    %340 = vector.load %arg24[%c0_100, %c1_101, %c0_102] : memref<7x7x8xf32, #tpu.memory_space<vmem>>, vector<5x5x8xf32>
    %341 = vector.extract_strided_slice %340 {offsets = [0, 0, 0], sizes = [5, 5, 1], strides = [1, 1, 1]} : vector<5x5x8xf32> to vector<5x5x1xf32>
    %c8_103 = arith.constant 8 : index
    %c0_104 = arith.constant 0 : index
    %342 = vector.load %arg4[%c8_103, %c0_104] : memref<72x8xf32, #tpu.memory_space<vmem>>, vector<1x8xf32>
    %343 = vector.shape_cast %342 : vector<1x8xf32> to vector<1x1x8xf32>
    %344 = vector.broadcast %341 : vector<5x5x1xf32> to vector<5x5x8xf32>
    %345 = vector.broadcast %343 : vector<1x1x8xf32> to vector<5x5x8xf32>
    %346 = arith.mulf %344, %345 : vector<5x5x8xf32>
    %347 = arith.addf %339, %346 : vector<5x5x8xf32>
    %348 = vector.extract_strided_slice %340 {offsets = [0, 0, 1], sizes = [5, 5, 1], strides = [1, 1, 1]} : vector<5x5x8xf32> to vector<5x5x1xf32>
    %c9_105 = arith.constant 9 : index
    %c0_106 = arith.constant 0 : index
    %349 = vector.load %arg4[%c9_105, %c0_106] : memref<72x8xf32, #tpu.memory_space<vmem>>, vector<1x8xf32>
    %350 = vector.shape_cast %349 : vector<1x8xf32> to vector<1x1x8xf32>
    %351 = vector.broadcast %348 : vector<5x5x1xf32> to vector<5x5x8xf32>
    %352 = vector.broadcast %350 : vector<1x1x8xf32> to vector<5x5x8xf32>
    %353 = arith.mulf %351, %352 : vector<5x5x8xf32>
    %354 = arith.addf %347, %353 : vector<5x5x8xf32>
    %355 = vector.extract_strided_slice %340 {offsets = [0, 0, 2], sizes = [5, 5, 1], strides = [1, 1, 1]} : vector<5x5x8xf32> to vector<5x5x1xf32>
    %c10_107 = arith.constant 10 : index
    %c0_108 = arith.constant 0 : index
    %356 = vector.load %arg4[%c10_107, %c0_108] : memref<72x8xf32, #tpu.memory_space<vmem>>, vector<1x8xf32>
    %357 = vector.shape_cast %356 : vector<1x8xf32> to vector<1x1x8xf32>
    %358 = vector.broadcast %355 : vector<5x5x1xf32> to vector<5x5x8xf32>
    %359 = vector.broadcast %357 : vector<1x1x8xf32> to vector<5x5x8xf32>
    %360 = arith.mulf %358, %359 : vector<5x5x8xf32>
    %361 = arith.addf %354, %360 : vector<5x5x8xf32>
    %362 = vector.extract_strided_slice %340 {offsets = [0, 0, 3], sizes = [5, 5, 1], strides = [1, 1, 1]} : vector<5x5x8xf32> to vector<5x5x1xf32>
    %c11_109 = arith.constant 11 : index
    %c0_110 = arith.constant 0 : index
    %363 = vector.load %arg4[%c11_109, %c0_110] : memref<72x8xf32, #tpu.memory_space<vmem>>, vector<1x8xf32>
    %364 = vector.shape_cast %363 : vector<1x8xf32> to vector<1x1x8xf32>
    %365 = vector.broadcast %362 : vector<5x5x1xf32> to vector<5x5x8xf32>
    %366 = vector.broadcast %364 : vector<1x1x8xf32> to vector<5x5x8xf32>
    %367 = arith.mulf %365, %366 : vector<5x5x8xf32>
    %368 = arith.addf %361, %367 : vector<5x5x8xf32>
    %369 = vector.extract_strided_slice %340 {offsets = [0, 0, 4], sizes = [5, 5, 1], strides = [1, 1, 1]} : vector<5x5x8xf32> to vector<5x5x1xf32>
    %c12_111 = arith.constant 12 : index
    %c0_112 = arith.constant 0 : index
    %370 = vector.load %arg4[%c12_111, %c0_112] : memref<72x8xf32, #tpu.memory_space<vmem>>, vector<1x8xf32>
    %371 = vector.shape_cast %370 : vector<1x8xf32> to vector<1x1x8xf32>
    %372 = vector.broadcast %369 : vector<5x5x1xf32> to vector<5x5x8xf32>
    %373 = vector.broadcast %371 : vector<1x1x8xf32> to vector<5x5x8xf32>
    %374 = arith.mulf %372, %373 : vector<5x5x8xf32>
    %375 = arith.addf %368, %374 : vector<5x5x8xf32>
    %376 = vector.extract_strided_slice %340 {offsets = [0, 0, 5], sizes = [5, 5, 1], strides = [1, 1, 1]} : vector<5x5x8xf32> to vector<5x5x1xf32>
    %c13_113 = arith.constant 13 : index
    %c0_114 = arith.constant 0 : index
    %377 = vector.load %arg4[%c13_113, %c0_114] : memref<72x8xf32, #tpu.memory_space<vmem>>, vector<1x8xf32>
    %378 = vector.shape_cast %377 : vector<1x8xf32> to vector<1x1x8xf32>
    %379 = vector.broadcast %376 : vector<5x5x1xf32> to vector<5x5x8xf32>
    %380 = vector.broadcast %378 : vector<1x1x8xf32> to vector<5x5x8xf32>
    %381 = arith.mulf %379, %380 : vector<5x5x8xf32>
    %382 = arith.addf %375, %381 : vector<5x5x8xf32>
    %383 = vector.extract_strided_slice %340 {offsets = [0, 0, 6], sizes = [5, 5, 1], strides = [1, 1, 1]} : vector<5x5x8xf32> to vector<5x5x1xf32>
    %c14_115 = arith.constant 14 : index
    %c0_116 = arith.constant 0 : index
    %384 = vector.load %arg4[%c14_115, %c0_116] : memref<72x8xf32, #tpu.memory_space<vmem>>, vector<1x8xf32>
    %385 = vector.shape_cast %384 : vector<1x8xf32> to vector<1x1x8xf32>
    %386 = vector.broadcast %383 : vector<5x5x1xf32> to vector<5x5x8xf32>
    %387 = vector.broadcast %385 : vector<1x1x8xf32> to vector<5x5x8xf32>
    %388 = arith.mulf %386, %387 : vector<5x5x8xf32>
    %389 = arith.addf %382, %388 : vector<5x5x8xf32>
    %390 = vector.extract_strided_slice %340 {offsets = [0, 0, 7], sizes = [5, 5, 1], strides = [1, 1, 1]} : vector<5x5x8xf32> to vector<5x5x1xf32>
    %c15_117 = arith.constant 15 : index
    %c0_118 = arith.constant 0 : index
    %391 = vector.load %arg4[%c15_117, %c0_118] : memref<72x8xf32, #tpu.memory_space<vmem>>, vector<1x8xf32>
    %392 = vector.shape_cast %391 : vector<1x8xf32> to vector<1x1x8xf32>
    %393 = vector.broadcast %390 : vector<5x5x1xf32> to vector<5x5x8xf32>
    %394 = vector.broadcast %392 : vector<1x1x8xf32> to vector<5x5x8xf32>
    %395 = arith.mulf %393, %394 : vector<5x5x8xf32>
    %396 = arith.addf %389, %395 : vector<5x5x8xf32>
    %c0_119 = arith.constant 0 : index
    %c2_120 = arith.constant 2 : index
    %c0_121 = arith.constant 0 : index
    %397 = vector.load %arg24[%c0_119, %c2_120, %c0_121] : memref<7x7x8xf32, #tpu.memory_space<vmem>>, vector<5x5x8xf32>
    %398 = vector.extract_strided_slice %397 {offsets = [0, 0, 0], sizes = [5, 5, 1], strides = [1, 1, 1]} : vector<5x5x8xf32> to vector<5x5x1xf32>
    %c16_122 = arith.constant 16 : index
    %c0_123 = arith.constant 0 : index
    %399 = vector.load %arg4[%c16_122, %c0_123] : memref<72x8xf32, #tpu.memory_space<vmem>>, vector<1x8xf32>
    %400 = vector.shape_cast %399 : vector<1x8xf32> to vector<1x1x8xf32>
    %401 = vector.broadcast %398 : vector<5x5x1xf32> to vector<5x5x8xf32>
    %402 = vector.broadcast %400 : vector<1x1x8xf32> to vector<5x5x8xf32>
    %403 = arith.mulf %401, %402 : vector<5x5x8xf32>
    %404 = arith.addf %396, %403 : vector<5x5x8xf32>
    %405 = vector.extract_strided_slice %397 {offsets = [0, 0, 1], sizes = [5, 5, 1], strides = [1, 1, 1]} : vector<5x5x8xf32> to vector<5x5x1xf32>
    %c17_124 = arith.constant 17 : index
    %c0_125 = arith.constant 0 : index
    %406 = vector.load %arg4[%c17_124, %c0_125] : memref<72x8xf32, #tpu.memory_space<vmem>>, vector<1x8xf32>
    %407 = vector.shape_cast %406 : vector<1x8xf32> to vector<1x1x8xf32>
    %408 = vector.broadcast %405 : vector<5x5x1xf32> to vector<5x5x8xf32>
    %409 = vector.broadcast %407 : vector<1x1x8xf32> to vector<5x5x8xf32>
    %410 = arith.mulf %408, %409 : vector<5x5x8xf32>
    %411 = arith.addf %404, %410 : vector<5x5x8xf32>
    %412 = vector.extract_strided_slice %397 {offsets = [0, 0, 2], sizes = [5, 5, 1], strides = [1, 1, 1]} : vector<5x5x8xf32> to vector<5x5x1xf32>
    %c18_126 = arith.constant 18 : index
    %c0_127 = arith.constant 0 : index
    %413 = vector.load %arg4[%c18_126, %c0_127] : memref<72x8xf32, #tpu.memory_space<vmem>>, vector<1x8xf32>
    %414 = vector.shape_cast %413 : vector<1x8xf32> to vector<1x1x8xf32>
    %415 = vector.broadcast %412 : vector<5x5x1xf32> to vector<5x5x8xf32>
    %416 = vector.broadcast %414 : vector<1x1x8xf32> to vector<5x5x8xf32>
    %417 = arith.mulf %415, %416 : vector<5x5x8xf32>
    %418 = arith.addf %411, %417 : vector<5x5x8xf32>
    %419 = vector.extract_strided_slice %397 {offsets = [0, 0, 3], sizes = [5, 5, 1], strides = [1, 1, 1]} : vector<5x5x8xf32> to vector<5x5x1xf32>
    %c19_128 = arith.constant 19 : index
    %c0_129 = arith.constant 0 : index
    %420 = vector.load %arg4[%c19_128, %c0_129] : memref<72x8xf32, #tpu.memory_space<vmem>>, vector<1x8xf32>
    %421 = vector.shape_cast %420 : vector<1x8xf32> to vector<1x1x8xf32>
    %422 = vector.broadcast %419 : vector<5x5x1xf32> to vector<5x5x8xf32>
    %423 = vector.broadcast %421 : vector<1x1x8xf32> to vector<5x5x8xf32>
    %424 = arith.mulf %422, %423 : vector<5x5x8xf32>
    %425 = arith.addf %418, %424 : vector<5x5x8xf32>
    %426 = vector.extract_strided_slice %397 {offsets = [0, 0, 4], sizes = [5, 5, 1], strides = [1, 1, 1]} : vector<5x5x8xf32> to vector<5x5x1xf32>
    %c20_130 = arith.constant 20 : index
    %c0_131 = arith.constant 0 : index
    %427 = vector.load %arg4[%c20_130, %c0_131] : memref<72x8xf32, #tpu.memory_space<vmem>>, vector<1x8xf32>
    %428 = vector.shape_cast %427 : vector<1x8xf32> to vector<1x1x8xf32>
    %429 = vector.broadcast %426 : vector<5x5x1xf32> to vector<5x5x8xf32>
    %430 = vector.broadcast %428 : vector<1x1x8xf32> to vector<5x5x8xf32>
    %431 = arith.mulf %429, %430 : vector<5x5x8xf32>
    %432 = arith.addf %425, %431 : vector<5x5x8xf32>
    %433 = vector.extract_strided_slice %397 {offsets = [0, 0, 5], sizes = [5, 5, 1], strides = [1, 1, 1]} : vector<5x5x8xf32> to vector<5x5x1xf32>
    %c21_132 = arith.constant 21 : index
    %c0_133 = arith.constant 0 : index
    %434 = vector.load %arg4[%c21_132, %c0_133] : memref<72x8xf32, #tpu.memory_space<vmem>>, vector<1x8xf32>
    %435 = vector.shape_cast %434 : vector<1x8xf32> to vector<1x1x8xf32>
    %436 = vector.broadcast %433 : vector<5x5x1xf32> to vector<5x5x8xf32>
    %437 = vector.broadcast %435 : vector<1x1x8xf32> to vector<5x5x8xf32>
    %438 = arith.mulf %436, %437 : vector<5x5x8xf32>
    %439 = arith.addf %432, %438 : vector<5x5x8xf32>
    %440 = vector.extract_strided_slice %397 {offsets = [0, 0, 6], sizes = [5, 5, 1], strides = [1, 1, 1]} : vector<5x5x8xf32> to vector<5x5x1xf32>
    %c22_134 = arith.constant 22 : index
    %c0_135 = arith.constant 0 : index
    %441 = vector.load %arg4[%c22_134, %c0_135] : memref<72x8xf32, #tpu.memory_space<vmem>>, vector<1x8xf32>
    %442 = vector.shape_cast %441 : vector<1x8xf32> to vector<1x1x8xf32>
    %443 = vector.broadcast %440 : vector<5x5x1xf32> to vector<5x5x8xf32>
    %444 = vector.broadcast %442 : vector<1x1x8xf32> to vector<5x5x8xf32>
    %445 = arith.mulf %443, %444 : vector<5x5x8xf32>
    %446 = arith.addf %439, %445 : vector<5x5x8xf32>
    %447 = vector.extract_strided_slice %397 {offsets = [0, 0, 7], sizes = [5, 5, 1], strides = [1, 1, 1]} : vector<5x5x8xf32> to vector<5x5x1xf32>
    %c23_136 = arith.constant 23 : index
    %c0_137 = arith.constant 0 : index
    %448 = vector.load %arg4[%c23_136, %c0_137] : memref<72x8xf32, #tpu.memory_space<vmem>>, vector<1x8xf32>
    %449 = vector.shape_cast %448 : vector<1x8xf32> to vector<1x1x8xf32>
    %450 = vector.broadcast %447 : vector<5x5x1xf32> to vector<5x5x8xf32>
    %451 = vector.broadcast %449 : vector<1x1x8xf32> to vector<5x5x8xf32>
    %452 = arith.mulf %450, %451 : vector<5x5x8xf32>
    %453 = arith.addf %446, %452 : vector<5x5x8xf32>
    %c1_138 = arith.constant 1 : index
    %c0_139 = arith.constant 0 : index
    %c0_140 = arith.constant 0 : index
    %454 = vector.load %arg24[%c1_138, %c0_139, %c0_140] : memref<7x7x8xf32, #tpu.memory_space<vmem>>, vector<5x5x8xf32>
    %455 = vector.extract_strided_slice %454 {offsets = [0, 0, 0], sizes = [5, 5, 1], strides = [1, 1, 1]} : vector<5x5x8xf32> to vector<5x5x1xf32>
    %c24_141 = arith.constant 24 : index
    %c0_142 = arith.constant 0 : index
    %456 = vector.load %arg4[%c24_141, %c0_142] : memref<72x8xf32, #tpu.memory_space<vmem>>, vector<1x8xf32>
    %457 = vector.shape_cast %456 : vector<1x8xf32> to vector<1x1x8xf32>
    %458 = vector.broadcast %455 : vector<5x5x1xf32> to vector<5x5x8xf32>
    %459 = vector.broadcast %457 : vector<1x1x8xf32> to vector<5x5x8xf32>
    %460 = arith.mulf %458, %459 : vector<5x5x8xf32>
    %461 = arith.addf %453, %460 : vector<5x5x8xf32>
    %462 = vector.extract_strided_slice %454 {offsets = [0, 0, 1], sizes = [5, 5, 1], strides = [1, 1, 1]} : vector<5x5x8xf32> to vector<5x5x1xf32>
    %c25_143 = arith.constant 25 : index
    %c0_144 = arith.constant 0 : index
    %463 = vector.load %arg4[%c25_143, %c0_144] : memref<72x8xf32, #tpu.memory_space<vmem>>, vector<1x8xf32>
    %464 = vector.shape_cast %463 : vector<1x8xf32> to vector<1x1x8xf32>
    %465 = vector.broadcast %462 : vector<5x5x1xf32> to vector<5x5x8xf32>
    %466 = vector.broadcast %464 : vector<1x1x8xf32> to vector<5x5x8xf32>
    %467 = arith.mulf %465, %466 : vector<5x5x8xf32>
    %468 = arith.addf %461, %467 : vector<5x5x8xf32>
    %469 = vector.extract_strided_slice %454 {offsets = [0, 0, 2], sizes = [5, 5, 1], strides = [1, 1, 1]} : vector<5x5x8xf32> to vector<5x5x1xf32>
    %c26_145 = arith.constant 26 : index
    %c0_146 = arith.constant 0 : index
    %470 = vector.load %arg4[%c26_145, %c0_146] : memref<72x8xf32, #tpu.memory_space<vmem>>, vector<1x8xf32>
    %471 = vector.shape_cast %470 : vector<1x8xf32> to vector<1x1x8xf32>
    %472 = vector.broadcast %469 : vector<5x5x1xf32> to vector<5x5x8xf32>
    %473 = vector.broadcast %471 : vector<1x1x8xf32> to vector<5x5x8xf32>
    %474 = arith.mulf %472, %473 : vector<5x5x8xf32>
    %475 = arith.addf %468, %474 : vector<5x5x8xf32>
    %476 = vector.extract_strided_slice %454 {offsets = [0, 0, 3], sizes = [5, 5, 1], strides = [1, 1, 1]} : vector<5x5x8xf32> to vector<5x5x1xf32>
    %c27_147 = arith.constant 27 : index
    %c0_148 = arith.constant 0 : index
    %477 = vector.load %arg4[%c27_147, %c0_148] : memref<72x8xf32, #tpu.memory_space<vmem>>, vector<1x8xf32>
    %478 = vector.shape_cast %477 : vector<1x8xf32> to vector<1x1x8xf32>
    %479 = vector.broadcast %476 : vector<5x5x1xf32> to vector<5x5x8xf32>
    %480 = vector.broadcast %478 : vector<1x1x8xf32> to vector<5x5x8xf32>
    %481 = arith.mulf %479, %480 : vector<5x5x8xf32>
    %482 = arith.addf %475, %481 : vector<5x5x8xf32>
    %483 = vector.extract_strided_slice %454 {offsets = [0, 0, 4], sizes = [5, 5, 1], strides = [1, 1, 1]} : vector<5x5x8xf32> to vector<5x5x1xf32>
    %c28_149 = arith.constant 28 : index
    %c0_150 = arith.constant 0 : index
    %484 = vector.load %arg4[%c28_149, %c0_150] : memref<72x8xf32, #tpu.memory_space<vmem>>, vector<1x8xf32>
    %485 = vector.shape_cast %484 : vector<1x8xf32> to vector<1x1x8xf32>
    %486 = vector.broadcast %483 : vector<5x5x1xf32> to vector<5x5x8xf32>
    %487 = vector.broadcast %485 : vector<1x1x8xf32> to vector<5x5x8xf32>
    %488 = arith.mulf %486, %487 : vector<5x5x8xf32>
    %489 = arith.addf %482, %488 : vector<5x5x8xf32>
    %490 = vector.extract_strided_slice %454 {offsets = [0, 0, 5], sizes = [5, 5, 1], strides = [1, 1, 1]} : vector<5x5x8xf32> to vector<5x5x1xf32>
    %c29_151 = arith.constant 29 : index
    %c0_152 = arith.constant 0 : index
    %491 = vector.load %arg4[%c29_151, %c0_152] : memref<72x8xf32, #tpu.memory_space<vmem>>, vector<1x8xf32>
    %492 = vector.shape_cast %491 : vector<1x8xf32> to vector<1x1x8xf32>
    %493 = vector.broadcast %490 : vector<5x5x1xf32> to vector<5x5x8xf32>
    %494 = vector.broadcast %492 : vector<1x1x8xf32> to vector<5x5x8xf32>
    %495 = arith.mulf %493, %494 : vector<5x5x8xf32>
    %496 = arith.addf %489, %495 : vector<5x5x8xf32>
    %497 = vector.extract_strided_slice %454 {offsets = [0, 0, 6], sizes = [5, 5, 1], strides = [1, 1, 1]} : vector<5x5x8xf32> to vector<5x5x1xf32>
    %c30_153 = arith.constant 30 : index
    %c0_154 = arith.constant 0 : index
    %498 = vector.load %arg4[%c30_153, %c0_154] : memref<72x8xf32, #tpu.memory_space<vmem>>, vector<1x8xf32>
    %499 = vector.shape_cast %498 : vector<1x8xf32> to vector<1x1x8xf32>
    %500 = vector.broadcast %497 : vector<5x5x1xf32> to vector<5x5x8xf32>
    %501 = vector.broadcast %499 : vector<1x1x8xf32> to vector<5x5x8xf32>
    %502 = arith.mulf %500, %501 : vector<5x5x8xf32>
    %503 = arith.addf %496, %502 : vector<5x5x8xf32>
    %504 = vector.extract_strided_slice %454 {offsets = [0, 0, 7], sizes = [5, 5, 1], strides = [1, 1, 1]} : vector<5x5x8xf32> to vector<5x5x1xf32>
    %c31_155 = arith.constant 31 : index
    %c0_156 = arith.constant 0 : index
    %505 = vector.load %arg4[%c31_155, %c0_156] : memref<72x8xf32, #tpu.memory_space<vmem>>, vector<1x8xf32>
    %506 = vector.shape_cast %505 : vector<1x8xf32> to vector<1x1x8xf32>
    %507 = vector.broadcast %504 : vector<5x5x1xf32> to vector<5x5x8xf32>
    %508 = vector.broadcast %506 : vector<1x1x8xf32> to vector<5x5x8xf32>
    %509 = arith.mulf %507, %508 : vector<5x5x8xf32>
    %510 = arith.addf %503, %509 : vector<5x5x8xf32>
    %c1_157 = arith.constant 1 : index
    %c1_158 = arith.constant 1 : index
    %c0_159 = arith.constant 0 : index
    %511 = vector.load %arg24[%c1_157, %c1_158, %c0_159] : memref<7x7x8xf32, #tpu.memory_space<vmem>>, vector<5x5x8xf32>
    %512 = vector.extract_strided_slice %511 {offsets = [0, 0, 0], sizes = [5, 5, 1], strides = [1, 1, 1]} : vector<5x5x8xf32> to vector<5x5x1xf32>
    %c32_160 = arith.constant 32 : index
    %c0_161 = arith.constant 0 : index
    %513 = vector.load %arg4[%c32_160, %c0_161] : memref<72x8xf32, #tpu.memory_space<vmem>>, vector<1x8xf32>
    %514 = vector.shape_cast %513 : vector<1x8xf32> to vector<1x1x8xf32>
    %515 = vector.broadcast %512 : vector<5x5x1xf32> to vector<5x5x8xf32>
    %516 = vector.broadcast %514 : vector<1x1x8xf32> to vector<5x5x8xf32>
    %517 = arith.mulf %515, %516 : vector<5x5x8xf32>
    %518 = arith.addf %510, %517 : vector<5x5x8xf32>
    %519 = vector.extract_strided_slice %511 {offsets = [0, 0, 1], sizes = [5, 5, 1], strides = [1, 1, 1]} : vector<5x5x8xf32> to vector<5x5x1xf32>
    %c33_162 = arith.constant 33 : index
    %c0_163 = arith.constant 0 : index
    %520 = vector.load %arg4[%c33_162, %c0_163] : memref<72x8xf32, #tpu.memory_space<vmem>>, vector<1x8xf32>
    %521 = vector.shape_cast %520 : vector<1x8xf32> to vector<1x1x8xf32>
    %522 = vector.broadcast %519 : vector<5x5x1xf32> to vector<5x5x8xf32>
    %523 = vector.broadcast %521 : vector<1x1x8xf32> to vector<5x5x8xf32>
    %524 = arith.mulf %522, %523 : vector<5x5x8xf32>
    %525 = arith.addf %518, %524 : vector<5x5x8xf32>
    %526 = vector.extract_strided_slice %511 {offsets = [0, 0, 2], sizes = [5, 5, 1], strides = [1, 1, 1]} : vector<5x5x8xf32> to vector<5x5x1xf32>
    %c34_164 = arith.constant 34 : index
    %c0_165 = arith.constant 0 : index
    %527 = vector.load %arg4[%c34_164, %c0_165] : memref<72x8xf32, #tpu.memory_space<vmem>>, vector<1x8xf32>
    %528 = vector.shape_cast %527 : vector<1x8xf32> to vector<1x1x8xf32>
    %529 = vector.broadcast %526 : vector<5x5x1xf32> to vector<5x5x8xf32>
    %530 = vector.broadcast %528 : vector<1x1x8xf32> to vector<5x5x8xf32>
    %531 = arith.mulf %529, %530 : vector<5x5x8xf32>
    %532 = arith.addf %525, %531 : vector<5x5x8xf32>
    %533 = vector.extract_strided_slice %511 {offsets = [0, 0, 3], sizes = [5, 5, 1], strides = [1, 1, 1]} : vector<5x5x8xf32> to vector<5x5x1xf32>
    %c35_166 = arith.constant 35 : index
    %c0_167 = arith.constant 0 : index
    %534 = vector.load %arg4[%c35_166, %c0_167] : memref<72x8xf32, #tpu.memory_space<vmem>>, vector<1x8xf32>
    %535 = vector.shape_cast %534 : vector<1x8xf32> to vector<1x1x8xf32>
    %536 = vector.broadcast %533 : vector<5x5x1xf32> to vector<5x5x8xf32>
    %537 = vector.broadcast %535 : vector<1x1x8xf32> to vector<5x5x8xf32>
    %538 = arith.mulf %536, %537 : vector<5x5x8xf32>
    %539 = arith.addf %532, %538 : vector<5x5x8xf32>
    %540 = vector.extract_strided_slice %511 {offsets = [0, 0, 4], sizes = [5, 5, 1], strides = [1, 1, 1]} : vector<5x5x8xf32> to vector<5x5x1xf32>
    %c36 = arith.constant 36 : index
    %c0_168 = arith.constant 0 : index
    %541 = vector.load %arg4[%c36, %c0_168] : memref<72x8xf32, #tpu.memory_space<vmem>>, vector<1x8xf32>
    %542 = vector.shape_cast %541 : vector<1x8xf32> to vector<1x1x8xf32>
    %543 = vector.broadcast %540 : vector<5x5x1xf32> to vector<5x5x8xf32>
    %544 = vector.broadcast %542 : vector<1x1x8xf32> to vector<5x5x8xf32>
    %545 = arith.mulf %543, %544 : vector<5x5x8xf32>
    %546 = arith.addf %539, %545 : vector<5x5x8xf32>
    %547 = vector.extract_strided_slice %511 {offsets = [0, 0, 5], sizes = [5, 5, 1], strides = [1, 1, 1]} : vector<5x5x8xf32> to vector<5x5x1xf32>
    %c37 = arith.constant 37 : index
    %c0_169 = arith.constant 0 : index
    %548 = vector.load %arg4[%c37, %c0_169] : memref<72x8xf32, #tpu.memory_space<vmem>>, vector<1x8xf32>
    %549 = vector.shape_cast %548 : vector<1x8xf32> to vector<1x1x8xf32>
    %550 = vector.broadcast %547 : vector<5x5x1xf32> to vector<5x5x8xf32>
    %551 = vector.broadcast %549 : vector<1x1x8xf32> to vector<5x5x8xf32>
    %552 = arith.mulf %550, %551 : vector<5x5x8xf32>
    %553 = arith.addf %546, %552 : vector<5x5x8xf32>
    %554 = vector.extract_strided_slice %511 {offsets = [0, 0, 6], sizes = [5, 5, 1], strides = [1, 1, 1]} : vector<5x5x8xf32> to vector<5x5x1xf32>
    %c38 = arith.constant 38 : index
    %c0_170 = arith.constant 0 : index
    %555 = vector.load %arg4[%c38, %c0_170] : memref<72x8xf32, #tpu.memory_space<vmem>>, vector<1x8xf32>
    %556 = vector.shape_cast %555 : vector<1x8xf32> to vector<1x1x8xf32>
    %557 = vector.broadcast %554 : vector<5x5x1xf32> to vector<5x5x8xf32>
    %558 = vector.broadcast %556 : vector<1x1x8xf32> to vector<5x5x8xf32>
    %559 = arith.mulf %557, %558 : vector<5x5x8xf32>
    %560 = arith.addf %553, %559 : vector<5x5x8xf32>
    %561 = vector.extract_strided_slice %511 {offsets = [0, 0, 7], sizes = [5, 5, 1], strides = [1, 1, 1]} : vector<5x5x8xf32> to vector<5x5x1xf32>
    %c39 = arith.constant 39 : index
    %c0_171 = arith.constant 0 : index
    %562 = vector.load %arg4[%c39, %c0_171] : memref<72x8xf32, #tpu.memory_space<vmem>>, vector<1x8xf32>
    %563 = vector.shape_cast %562 : vector<1x8xf32> to vector<1x1x8xf32>
    %564 = vector.broadcast %561 : vector<5x5x1xf32> to vector<5x5x8xf32>
    %565 = vector.broadcast %563 : vector<1x1x8xf32> to vector<5x5x8xf32>
    %566 = arith.mulf %564, %565 : vector<5x5x8xf32>
    %567 = arith.addf %560, %566 : vector<5x5x8xf32>
    %c1_172 = arith.constant 1 : index
    %c2_173 = arith.constant 2 : index
    %c0_174 = arith.constant 0 : index
    %568 = vector.load %arg24[%c1_172, %c2_173, %c0_174] : memref<7x7x8xf32, #tpu.memory_space<vmem>>, vector<5x5x8xf32>
    %569 = vector.extract_strided_slice %568 {offsets = [0, 0, 0], sizes = [5, 5, 1], strides = [1, 1, 1]} : vector<5x5x8xf32> to vector<5x5x1xf32>
    %c40 = arith.constant 40 : index
    %c0_175 = arith.constant 0 : index
    %570 = vector.load %arg4[%c40, %c0_175] : memref<72x8xf32, #tpu.memory_space<vmem>>, vector<1x8xf32>
    %571 = vector.shape_cast %570 : vector<1x8xf32> to vector<1x1x8xf32>
    %572 = vector.broadcast %569 : vector<5x5x1xf32> to vector<5x5x8xf32>
    %573 = vector.broadcast %571 : vector<1x1x8xf32> to vector<5x5x8xf32>
    %574 = arith.mulf %572, %573 : vector<5x5x8xf32>
    %575 = arith.addf %567, %574 : vector<5x5x8xf32>
    %576 = vector.extract_strided_slice %568 {offsets = [0, 0, 1], sizes = [5, 5, 1], strides = [1, 1, 1]} : vector<5x5x8xf32> to vector<5x5x1xf32>
    %c41 = arith.constant 41 : index
    %c0_176 = arith.constant 0 : index
    %577 = vector.load %arg4[%c41, %c0_176] : memref<72x8xf32, #tpu.memory_space<vmem>>, vector<1x8xf32>
    %578 = vector.shape_cast %577 : vector<1x8xf32> to vector<1x1x8xf32>
    %579 = vector.broadcast %576 : vector<5x5x1xf32> to vector<5x5x8xf32>
    %580 = vector.broadcast %578 : vector<1x1x8xf32> to vector<5x5x8xf32>
    %581 = arith.mulf %579, %580 : vector<5x5x8xf32>
    %582 = arith.addf %575, %581 : vector<5x5x8xf32>
    %583 = vector.extract_strided_slice %568 {offsets = [0, 0, 2], sizes = [5, 5, 1], strides = [1, 1, 1]} : vector<5x5x8xf32> to vector<5x5x1xf32>
    %c42 = arith.constant 42 : index
    %c0_177 = arith.constant 0 : index
    %584 = vector.load %arg4[%c42, %c0_177] : memref<72x8xf32, #tpu.memory_space<vmem>>, vector<1x8xf32>
    %585 = vector.shape_cast %584 : vector<1x8xf32> to vector<1x1x8xf32>
    %586 = vector.broadcast %583 : vector<5x5x1xf32> to vector<5x5x8xf32>
    %587 = vector.broadcast %585 : vector<1x1x8xf32> to vector<5x5x8xf32>
    %588 = arith.mulf %586, %587 : vector<5x5x8xf32>
    %589 = arith.addf %582, %588 : vector<5x5x8xf32>
    %590 = vector.extract_strided_slice %568 {offsets = [0, 0, 3], sizes = [5, 5, 1], strides = [1, 1, 1]} : vector<5x5x8xf32> to vector<5x5x1xf32>
    %c43 = arith.constant 43 : index
    %c0_178 = arith.constant 0 : index
    %591 = vector.load %arg4[%c43, %c0_178] : memref<72x8xf32, #tpu.memory_space<vmem>>, vector<1x8xf32>
    %592 = vector.shape_cast %591 : vector<1x8xf32> to vector<1x1x8xf32>
    %593 = vector.broadcast %590 : vector<5x5x1xf32> to vector<5x5x8xf32>
    %594 = vector.broadcast %592 : vector<1x1x8xf32> to vector<5x5x8xf32>
    %595 = arith.mulf %593, %594 : vector<5x5x8xf32>
    %596 = arith.addf %589, %595 : vector<5x5x8xf32>
    %597 = vector.extract_strided_slice %568 {offsets = [0, 0, 4], sizes = [5, 5, 1], strides = [1, 1, 1]} : vector<5x5x8xf32> to vector<5x5x1xf32>
    %c44 = arith.constant 44 : index
    %c0_179 = arith.constant 0 : index
    %598 = vector.load %arg4[%c44, %c0_179] : memref<72x8xf32, #tpu.memory_space<vmem>>, vector<1x8xf32>
    %599 = vector.shape_cast %598 : vector<1x8xf32> to vector<1x1x8xf32>
    %600 = vector.broadcast %597 : vector<5x5x1xf32> to vector<5x5x8xf32>
    %601 = vector.broadcast %599 : vector<1x1x8xf32> to vector<5x5x8xf32>
    %602 = arith.mulf %600, %601 : vector<5x5x8xf32>
    %603 = arith.addf %596, %602 : vector<5x5x8xf32>
    %604 = vector.extract_strided_slice %568 {offsets = [0, 0, 5], sizes = [5, 5, 1], strides = [1, 1, 1]} : vector<5x5x8xf32> to vector<5x5x1xf32>
    %c45 = arith.constant 45 : index
    %c0_180 = arith.constant 0 : index
    %605 = vector.load %arg4[%c45, %c0_180] : memref<72x8xf32, #tpu.memory_space<vmem>>, vector<1x8xf32>
    %606 = vector.shape_cast %605 : vector<1x8xf32> to vector<1x1x8xf32>
    %607 = vector.broadcast %604 : vector<5x5x1xf32> to vector<5x5x8xf32>
    %608 = vector.broadcast %606 : vector<1x1x8xf32> to vector<5x5x8xf32>
    %609 = arith.mulf %607, %608 : vector<5x5x8xf32>
    %610 = arith.addf %603, %609 : vector<5x5x8xf32>
    %611 = vector.extract_strided_slice %568 {offsets = [0, 0, 6], sizes = [5, 5, 1], strides = [1, 1, 1]} : vector<5x5x8xf32> to vector<5x5x1xf32>
    %c46 = arith.constant 46 : index
    %c0_181 = arith.constant 0 : index
    %612 = vector.load %arg4[%c46, %c0_181] : memref<72x8xf32, #tpu.memory_space<vmem>>, vector<1x8xf32>
    %613 = vector.shape_cast %612 : vector<1x8xf32> to vector<1x1x8xf32>
    %614 = vector.broadcast %611 : vector<5x5x1xf32> to vector<5x5x8xf32>
    %615 = vector.broadcast %613 : vector<1x1x8xf32> to vector<5x5x8xf32>
    %616 = arith.mulf %614, %615 : vector<5x5x8xf32>
    %617 = arith.addf %610, %616 : vector<5x5x8xf32>
    %618 = vector.extract_strided_slice %568 {offsets = [0, 0, 7], sizes = [5, 5, 1], strides = [1, 1, 1]} : vector<5x5x8xf32> to vector<5x5x1xf32>
    %c47 = arith.constant 47 : index
    %c0_182 = arith.constant 0 : index
    %619 = vector.load %arg4[%c47, %c0_182] : memref<72x8xf32, #tpu.memory_space<vmem>>, vector<1x8xf32>
    %620 = vector.shape_cast %619 : vector<1x8xf32> to vector<1x1x8xf32>
    %621 = vector.broadcast %618 : vector<5x5x1xf32> to vector<5x5x8xf32>
    %622 = vector.broadcast %620 : vector<1x1x8xf32> to vector<5x5x8xf32>
    %623 = arith.mulf %621, %622 : vector<5x5x8xf32>
    %624 = arith.addf %617, %623 : vector<5x5x8xf32>
    %c2_183 = arith.constant 2 : index
    %c0_184 = arith.constant 0 : index
    %c0_185 = arith.constant 0 : index
    %625 = vector.load %arg24[%c2_183, %c0_184, %c0_185] : memref<7x7x8xf32, #tpu.memory_space<vmem>>, vector<5x5x8xf32>
    %626 = vector.extract_strided_slice %625 {offsets = [0, 0, 0], sizes = [5, 5, 1], strides = [1, 1, 1]} : vector<5x5x8xf32> to vector<5x5x1xf32>
    %c48 = arith.constant 48 : index
    %c0_186 = arith.constant 0 : index
    %627 = vector.load %arg4[%c48, %c0_186] : memref<72x8xf32, #tpu.memory_space<vmem>>, vector<1x8xf32>
    %628 = vector.shape_cast %627 : vector<1x8xf32> to vector<1x1x8xf32>
    %629 = vector.broadcast %626 : vector<5x5x1xf32> to vector<5x5x8xf32>
    %630 = vector.broadcast %628 : vector<1x1x8xf32> to vector<5x5x8xf32>
    %631 = arith.mulf %629, %630 : vector<5x5x8xf32>
    %632 = arith.addf %624, %631 : vector<5x5x8xf32>
    %633 = vector.extract_strided_slice %625 {offsets = [0, 0, 1], sizes = [5, 5, 1], strides = [1, 1, 1]} : vector<5x5x8xf32> to vector<5x5x1xf32>
    %c49 = arith.constant 49 : index
    %c0_187 = arith.constant 0 : index
    %634 = vector.load %arg4[%c49, %c0_187] : memref<72x8xf32, #tpu.memory_space<vmem>>, vector<1x8xf32>
    %635 = vector.shape_cast %634 : vector<1x8xf32> to vector<1x1x8xf32>
    %636 = vector.broadcast %633 : vector<5x5x1xf32> to vector<5x5x8xf32>
    %637 = vector.broadcast %635 : vector<1x1x8xf32> to vector<5x5x8xf32>
    %638 = arith.mulf %636, %637 : vector<5x5x8xf32>
    %639 = arith.addf %632, %638 : vector<5x5x8xf32>
    %640 = vector.extract_strided_slice %625 {offsets = [0, 0, 2], sizes = [5, 5, 1], strides = [1, 1, 1]} : vector<5x5x8xf32> to vector<5x5x1xf32>
    %c50 = arith.constant 50 : index
    %c0_188 = arith.constant 0 : index
    %641 = vector.load %arg4[%c50, %c0_188] : memref<72x8xf32, #tpu.memory_space<vmem>>, vector<1x8xf32>
    %642 = vector.shape_cast %641 : vector<1x8xf32> to vector<1x1x8xf32>
    %643 = vector.broadcast %640 : vector<5x5x1xf32> to vector<5x5x8xf32>
    %644 = vector.broadcast %642 : vector<1x1x8xf32> to vector<5x5x8xf32>
    %645 = arith.mulf %643, %644 : vector<5x5x8xf32>
    %646 = arith.addf %639, %645 : vector<5x5x8xf32>
    %647 = vector.extract_strided_slice %625 {offsets = [0, 0, 3], sizes = [5, 5, 1], strides = [1, 1, 1]} : vector<5x5x8xf32> to vector<5x5x1xf32>
    %c51 = arith.constant 51 : index
    %c0_189 = arith.constant 0 : index
    %648 = vector.load %arg4[%c51, %c0_189] : memref<72x8xf32, #tpu.memory_space<vmem>>, vector<1x8xf32>
    %649 = vector.shape_cast %648 : vector<1x8xf32> to vector<1x1x8xf32>
    %650 = vector.broadcast %647 : vector<5x5x1xf32> to vector<5x5x8xf32>
    %651 = vector.broadcast %649 : vector<1x1x8xf32> to vector<5x5x8xf32>
    %652 = arith.mulf %650, %651 : vector<5x5x8xf32>
    %653 = arith.addf %646, %652 : vector<5x5x8xf32>
    %654 = vector.extract_strided_slice %625 {offsets = [0, 0, 4], sizes = [5, 5, 1], strides = [1, 1, 1]} : vector<5x5x8xf32> to vector<5x5x1xf32>
    %c52 = arith.constant 52 : index
    %c0_190 = arith.constant 0 : index
    %655 = vector.load %arg4[%c52, %c0_190] : memref<72x8xf32, #tpu.memory_space<vmem>>, vector<1x8xf32>
    %656 = vector.shape_cast %655 : vector<1x8xf32> to vector<1x1x8xf32>
    %657 = vector.broadcast %654 : vector<5x5x1xf32> to vector<5x5x8xf32>
    %658 = vector.broadcast %656 : vector<1x1x8xf32> to vector<5x5x8xf32>
    %659 = arith.mulf %657, %658 : vector<5x5x8xf32>
    %660 = arith.addf %653, %659 : vector<5x5x8xf32>
    %661 = vector.extract_strided_slice %625 {offsets = [0, 0, 5], sizes = [5, 5, 1], strides = [1, 1, 1]} : vector<5x5x8xf32> to vector<5x5x1xf32>
    %c53 = arith.constant 53 : index
    %c0_191 = arith.constant 0 : index
    %662 = vector.load %arg4[%c53, %c0_191] : memref<72x8xf32, #tpu.memory_space<vmem>>, vector<1x8xf32>
    %663 = vector.shape_cast %662 : vector<1x8xf32> to vector<1x1x8xf32>
    %664 = vector.broadcast %661 : vector<5x5x1xf32> to vector<5x5x8xf32>
    %665 = vector.broadcast %663 : vector<1x1x8xf32> to vector<5x5x8xf32>
    %666 = arith.mulf %664, %665 : vector<5x5x8xf32>
    %667 = arith.addf %660, %666 : vector<5x5x8xf32>
    %668 = vector.extract_strided_slice %625 {offsets = [0, 0, 6], sizes = [5, 5, 1], strides = [1, 1, 1]} : vector<5x5x8xf32> to vector<5x5x1xf32>
    %c54 = arith.constant 54 : index
    %c0_192 = arith.constant 0 : index
    %669 = vector.load %arg4[%c54, %c0_192] : memref<72x8xf32, #tpu.memory_space<vmem>>, vector<1x8xf32>
    %670 = vector.shape_cast %669 : vector<1x8xf32> to vector<1x1x8xf32>
    %671 = vector.broadcast %668 : vector<5x5x1xf32> to vector<5x5x8xf32>
    %672 = vector.broadcast %670 : vector<1x1x8xf32> to vector<5x5x8xf32>
    %673 = arith.mulf %671, %672 : vector<5x5x8xf32>
    %674 = arith.addf %667, %673 : vector<5x5x8xf32>
    %675 = vector.extract_strided_slice %625 {offsets = [0, 0, 7], sizes = [5, 5, 1], strides = [1, 1, 1]} : vector<5x5x8xf32> to vector<5x5x1xf32>
    %c55 = arith.constant 55 : index
    %c0_193 = arith.constant 0 : index
    %676 = vector.load %arg4[%c55, %c0_193] : memref<72x8xf32, #tpu.memory_space<vmem>>, vector<1x8xf32>
    %677 = vector.shape_cast %676 : vector<1x8xf32> to vector<1x1x8xf32>
    %678 = vector.broadcast %675 : vector<5x5x1xf32> to vector<5x5x8xf32>
    %679 = vector.broadcast %677 : vector<1x1x8xf32> to vector<5x5x8xf32>
    %680 = arith.mulf %678, %679 : vector<5x5x8xf32>
    %681 = arith.addf %674, %680 : vector<5x5x8xf32>
    %c2_194 = arith.constant 2 : index
    %c1_195 = arith.constant 1 : index
    %c0_196 = arith.constant 0 : index
    %682 = vector.load %arg24[%c2_194, %c1_195, %c0_196] : memref<7x7x8xf32, #tpu.memory_space<vmem>>, vector<5x5x8xf32>
    %683 = vector.extract_strided_slice %682 {offsets = [0, 0, 0], sizes = [5, 5, 1], strides = [1, 1, 1]} : vector<5x5x8xf32> to vector<5x5x1xf32>
    %c56 = arith.constant 56 : index
    %c0_197 = arith.constant 0 : index
    %684 = vector.load %arg4[%c56, %c0_197] : memref<72x8xf32, #tpu.memory_space<vmem>>, vector<1x8xf32>
    %685 = vector.shape_cast %684 : vector<1x8xf32> to vector<1x1x8xf32>
    %686 = vector.broadcast %683 : vector<5x5x1xf32> to vector<5x5x8xf32>
    %687 = vector.broadcast %685 : vector<1x1x8xf32> to vector<5x5x8xf32>
    %688 = arith.mulf %686, %687 : vector<5x5x8xf32>
    %689 = arith.addf %681, %688 : vector<5x5x8xf32>
    %690 = vector.extract_strided_slice %682 {offsets = [0, 0, 1], sizes = [5, 5, 1], strides = [1, 1, 1]} : vector<5x5x8xf32> to vector<5x5x1xf32>
    %c57 = arith.constant 57 : index
    %c0_198 = arith.constant 0 : index
    %691 = vector.load %arg4[%c57, %c0_198] : memref<72x8xf32, #tpu.memory_space<vmem>>, vector<1x8xf32>
    %692 = vector.shape_cast %691 : vector<1x8xf32> to vector<1x1x8xf32>
    %693 = vector.broadcast %690 : vector<5x5x1xf32> to vector<5x5x8xf32>
    %694 = vector.broadcast %692 : vector<1x1x8xf32> to vector<5x5x8xf32>
    %695 = arith.mulf %693, %694 : vector<5x5x8xf32>
    %696 = arith.addf %689, %695 : vector<5x5x8xf32>
    %697 = vector.extract_strided_slice %682 {offsets = [0, 0, 2], sizes = [5, 5, 1], strides = [1, 1, 1]} : vector<5x5x8xf32> to vector<5x5x1xf32>
    %c58 = arith.constant 58 : index
    %c0_199 = arith.constant 0 : index
    %698 = vector.load %arg4[%c58, %c0_199] : memref<72x8xf32, #tpu.memory_space<vmem>>, vector<1x8xf32>
    %699 = vector.shape_cast %698 : vector<1x8xf32> to vector<1x1x8xf32>
    %700 = vector.broadcast %697 : vector<5x5x1xf32> to vector<5x5x8xf32>
    %701 = vector.broadcast %699 : vector<1x1x8xf32> to vector<5x5x8xf32>
    %702 = arith.mulf %700, %701 : vector<5x5x8xf32>
    %703 = arith.addf %696, %702 : vector<5x5x8xf32>
    %704 = vector.extract_strided_slice %682 {offsets = [0, 0, 3], sizes = [5, 5, 1], strides = [1, 1, 1]} : vector<5x5x8xf32> to vector<5x5x1xf32>
    %c59 = arith.constant 59 : index
    %c0_200 = arith.constant 0 : index
    %705 = vector.load %arg4[%c59, %c0_200] : memref<72x8xf32, #tpu.memory_space<vmem>>, vector<1x8xf32>
    %706 = vector.shape_cast %705 : vector<1x8xf32> to vector<1x1x8xf32>
    %707 = vector.broadcast %704 : vector<5x5x1xf32> to vector<5x5x8xf32>
    %708 = vector.broadcast %706 : vector<1x1x8xf32> to vector<5x5x8xf32>
    %709 = arith.mulf %707, %708 : vector<5x5x8xf32>
    %710 = arith.addf %703, %709 : vector<5x5x8xf32>
    %711 = vector.extract_strided_slice %682 {offsets = [0, 0, 4], sizes = [5, 5, 1], strides = [1, 1, 1]} : vector<5x5x8xf32> to vector<5x5x1xf32>
    %c60 = arith.constant 60 : index
    %c0_201 = arith.constant 0 : index
    %712 = vector.load %arg4[%c60, %c0_201] : memref<72x8xf32, #tpu.memory_space<vmem>>, vector<1x8xf32>
    %713 = vector.shape_cast %712 : vector<1x8xf32> to vector<1x1x8xf32>
    %714 = vector.broadcast %711 : vector<5x5x1xf32> to vector<5x5x8xf32>
    %715 = vector.broadcast %713 : vector<1x1x8xf32> to vector<5x5x8xf32>
    %716 = arith.mulf %714, %715 : vector<5x5x8xf32>
    %717 = arith.addf %710, %716 : vector<5x5x8xf32>
    %718 = vector.extract_strided_slice %682 {offsets = [0, 0, 5], sizes = [5, 5, 1], strides = [1, 1, 1]} : vector<5x5x8xf32> to vector<5x5x1xf32>
    %c61 = arith.constant 61 : index
    %c0_202 = arith.constant 0 : index
    %719 = vector.load %arg4[%c61, %c0_202] : memref<72x8xf32, #tpu.memory_space<vmem>>, vector<1x8xf32>
    %720 = vector.shape_cast %719 : vector<1x8xf32> to vector<1x1x8xf32>
    %721 = vector.broadcast %718 : vector<5x5x1xf32> to vector<5x5x8xf32>
    %722 = vector.broadcast %720 : vector<1x1x8xf32> to vector<5x5x8xf32>
    %723 = arith.mulf %721, %722 : vector<5x5x8xf32>
    %724 = arith.addf %717, %723 : vector<5x5x8xf32>
    %725 = vector.extract_strided_slice %682 {offsets = [0, 0, 6], sizes = [5, 5, 1], strides = [1, 1, 1]} : vector<5x5x8xf32> to vector<5x5x1xf32>
    %c62 = arith.constant 62 : index
    %c0_203 = arith.constant 0 : index
    %726 = vector.load %arg4[%c62, %c0_203] : memref<72x8xf32, #tpu.memory_space<vmem>>, vector<1x8xf32>
    %727 = vector.shape_cast %726 : vector<1x8xf32> to vector<1x1x8xf32>
    %728 = vector.broadcast %725 : vector<5x5x1xf32> to vector<5x5x8xf32>
    %729 = vector.broadcast %727 : vector<1x1x8xf32> to vector<5x5x8xf32>
    %730 = arith.mulf %728, %729 : vector<5x5x8xf32>
    %731 = arith.addf %724, %730 : vector<5x5x8xf32>
    %732 = vector.extract_strided_slice %682 {offsets = [0, 0, 7], sizes = [5, 5, 1], strides = [1, 1, 1]} : vector<5x5x8xf32> to vector<5x5x1xf32>
    %c63 = arith.constant 63 : index
    %c0_204 = arith.constant 0 : index
    %733 = vector.load %arg4[%c63, %c0_204] : memref<72x8xf32, #tpu.memory_space<vmem>>, vector<1x8xf32>
    %734 = vector.shape_cast %733 : vector<1x8xf32> to vector<1x1x8xf32>
    %735 = vector.broadcast %732 : vector<5x5x1xf32> to vector<5x5x8xf32>
    %736 = vector.broadcast %734 : vector<1x1x8xf32> to vector<5x5x8xf32>
    %737 = arith.mulf %735, %736 : vector<5x5x8xf32>
    %738 = arith.addf %731, %737 : vector<5x5x8xf32>
    %c2_205 = arith.constant 2 : index
    %c2_206 = arith.constant 2 : index
    %c0_207 = arith.constant 0 : index
    %739 = vector.load %arg24[%c2_205, %c2_206, %c0_207] : memref<7x7x8xf32, #tpu.memory_space<vmem>>, vector<5x5x8xf32>
    %740 = vector.extract_strided_slice %739 {offsets = [0, 0, 0], sizes = [5, 5, 1], strides = [1, 1, 1]} : vector<5x5x8xf32> to vector<5x5x1xf32>
    %c64 = arith.constant 64 : index
    %c0_208 = arith.constant 0 : index
    %741 = vector.load %arg4[%c64, %c0_208] : memref<72x8xf32, #tpu.memory_space<vmem>>, vector<1x8xf32>
    %742 = vector.shape_cast %741 : vector<1x8xf32> to vector<1x1x8xf32>
    %743 = vector.broadcast %740 : vector<5x5x1xf32> to vector<5x5x8xf32>
    %744 = vector.broadcast %742 : vector<1x1x8xf32> to vector<5x5x8xf32>
    %745 = arith.mulf %743, %744 : vector<5x5x8xf32>
    %746 = arith.addf %738, %745 : vector<5x5x8xf32>
    %747 = vector.extract_strided_slice %739 {offsets = [0, 0, 1], sizes = [5, 5, 1], strides = [1, 1, 1]} : vector<5x5x8xf32> to vector<5x5x1xf32>
    %c65 = arith.constant 65 : index
    %c0_209 = arith.constant 0 : index
    %748 = vector.load %arg4[%c65, %c0_209] : memref<72x8xf32, #tpu.memory_space<vmem>>, vector<1x8xf32>
    %749 = vector.shape_cast %748 : vector<1x8xf32> to vector<1x1x8xf32>
    %750 = vector.broadcast %747 : vector<5x5x1xf32> to vector<5x5x8xf32>
    %751 = vector.broadcast %749 : vector<1x1x8xf32> to vector<5x5x8xf32>
    %752 = arith.mulf %750, %751 : vector<5x5x8xf32>
    %753 = arith.addf %746, %752 : vector<5x5x8xf32>
    %754 = vector.extract_strided_slice %739 {offsets = [0, 0, 2], sizes = [5, 5, 1], strides = [1, 1, 1]} : vector<5x5x8xf32> to vector<5x5x1xf32>
    %c66 = arith.constant 66 : index
    %c0_210 = arith.constant 0 : index
    %755 = vector.load %arg4[%c66, %c0_210] : memref<72x8xf32, #tpu.memory_space<vmem>>, vector<1x8xf32>
    %756 = vector.shape_cast %755 : vector<1x8xf32> to vector<1x1x8xf32>
    %757 = vector.broadcast %754 : vector<5x5x1xf32> to vector<5x5x8xf32>
    %758 = vector.broadcast %756 : vector<1x1x8xf32> to vector<5x5x8xf32>
    %759 = arith.mulf %757, %758 : vector<5x5x8xf32>
    %760 = arith.addf %753, %759 : vector<5x5x8xf32>
    %761 = vector.extract_strided_slice %739 {offsets = [0, 0, 3], sizes = [5, 5, 1], strides = [1, 1, 1]} : vector<5x5x8xf32> to vector<5x5x1xf32>
    %c67 = arith.constant 67 : index
    %c0_211 = arith.constant 0 : index
    %762 = vector.load %arg4[%c67, %c0_211] : memref<72x8xf32, #tpu.memory_space<vmem>>, vector<1x8xf32>
    %763 = vector.shape_cast %762 : vector<1x8xf32> to vector<1x1x8xf32>
    %764 = vector.broadcast %761 : vector<5x5x1xf32> to vector<5x5x8xf32>
    %765 = vector.broadcast %763 : vector<1x1x8xf32> to vector<5x5x8xf32>
    %766 = arith.mulf %764, %765 : vector<5x5x8xf32>
    %767 = arith.addf %760, %766 : vector<5x5x8xf32>
    %768 = vector.extract_strided_slice %739 {offsets = [0, 0, 4], sizes = [5, 5, 1], strides = [1, 1, 1]} : vector<5x5x8xf32> to vector<5x5x1xf32>
    %c68 = arith.constant 68 : index
    %c0_212 = arith.constant 0 : index
    %769 = vector.load %arg4[%c68, %c0_212] : memref<72x8xf32, #tpu.memory_space<vmem>>, vector<1x8xf32>
    %770 = vector.shape_cast %769 : vector<1x8xf32> to vector<1x1x8xf32>
    %771 = vector.broadcast %768 : vector<5x5x1xf32> to vector<5x5x8xf32>
    %772 = vector.broadcast %770 : vector<1x1x8xf32> to vector<5x5x8xf32>
    %773 = arith.mulf %771, %772 : vector<5x5x8xf32>
    %774 = arith.addf %767, %773 : vector<5x5x8xf32>
    %775 = vector.extract_strided_slice %739 {offsets = [0, 0, 5], sizes = [5, 5, 1], strides = [1, 1, 1]} : vector<5x5x8xf32> to vector<5x5x1xf32>
    %c69 = arith.constant 69 : index
    %c0_213 = arith.constant 0 : index
    %776 = vector.load %arg4[%c69, %c0_213] : memref<72x8xf32, #tpu.memory_space<vmem>>, vector<1x8xf32>
    %777 = vector.shape_cast %776 : vector<1x8xf32> to vector<1x1x8xf32>
    %778 = vector.broadcast %775 : vector<5x5x1xf32> to vector<5x5x8xf32>
    %779 = vector.broadcast %777 : vector<1x1x8xf32> to vector<5x5x8xf32>
    %780 = arith.mulf %778, %779 : vector<5x5x8xf32>
    %781 = arith.addf %774, %780 : vector<5x5x8xf32>
    %782 = vector.extract_strided_slice %739 {offsets = [0, 0, 6], sizes = [5, 5, 1], strides = [1, 1, 1]} : vector<5x5x8xf32> to vector<5x5x1xf32>
    %c70 = arith.constant 70 : index
    %c0_214 = arith.constant 0 : index
    %783 = vector.load %arg4[%c70, %c0_214] : memref<72x8xf32, #tpu.memory_space<vmem>>, vector<1x8xf32>
    %784 = vector.shape_cast %783 : vector<1x8xf32> to vector<1x1x8xf32>
    %785 = vector.broadcast %782 : vector<5x5x1xf32> to vector<5x5x8xf32>
    %786 = vector.broadcast %784 : vector<1x1x8xf32> to vector<5x5x8xf32>
    %787 = arith.mulf %785, %786 : vector<5x5x8xf32>
    %788 = arith.addf %781, %787 : vector<5x5x8xf32>
    %789 = vector.extract_strided_slice %739 {offsets = [0, 0, 7], sizes = [5, 5, 1], strides = [1, 1, 1]} : vector<5x5x8xf32> to vector<5x5x1xf32>
    %c71 = arith.constant 71 : index
    %c0_215 = arith.constant 0 : index
    %790 = vector.load %arg4[%c71, %c0_215] : memref<72x8xf32, #tpu.memory_space<vmem>>, vector<1x8xf32>
    %791 = vector.shape_cast %790 : vector<1x8xf32> to vector<1x1x8xf32>
    %792 = vector.broadcast %789 : vector<5x5x1xf32> to vector<5x5x8xf32>
    %793 = vector.broadcast %791 : vector<1x1x8xf32> to vector<5x5x8xf32>
    %794 = arith.mulf %792, %793 : vector<5x5x8xf32>
    %795 = arith.addf %788, %794 : vector<5x5x8xf32>
    %cst_216 = arith.constant 0.000000e+00 : f32
    %796 = vector.broadcast %cst_216 : f32 to vector<5x5x8xf32>
    %797 = arith.maximumf %795, %796 : vector<5x5x8xf32>
    %c0_217 = arith.constant 0 : index
    %c0_218 = arith.constant 0 : index
    %c0_219 = arith.constant 0 : index
    %798 = vector.load %arg25[%c0_217, %c0_218, %c0_219] : memref<5x5x8xf32, #tpu.memory_space<vmem>>, vector<5x5x8xf32>
    tpu.vector_store %arg25[%c0_217, %c0_218, %c0_219], %797 {strides = array<i32>} : memref<5x5x8xf32, #tpu.memory_space<vmem>>, vector<5x5x8xf32>,
    %c0_220 = arith.constant 0 : index
    %c0_221 = arith.constant 0 : index
    %799 = vector.load %arg8[%c0_220, %c0_221] : memref<1x32xf32, #tpu.memory_space<vmem>>, vector<1x32xf32>
    %c0_222 = arith.constant 0 : index
    %c0_223 = arith.constant 0 : index
    %c0_224 = arith.constant 0 : index
    %800 = vector.load %arg25[%c0_222, %c0_223, %c0_224] : memref<5x5x8xf32, #tpu.memory_space<vmem>>, vector<1x1x8xf32>
    %801 = vector.shape_cast %800 : vector<1x1x8xf32> to vector<1x8xf32>
    %c0_225 = arith.constant 0 : index
    %c0_226 = arith.constant 0 : index
    %802 = vector.load %arg7[%c0_225, %c0_226] : memref<200x32xf32, #tpu.memory_space<vmem>>, vector<8x32xf32>
    %cst_227 = arith.constant dense<0.000000e+00> : vector<1x32xf32>
    %803 = tpu.matmul %801, %802, %cst_227 {dimension_numbers = #tpu.dot_dimension_numbers<[1], [0], [0], [1], [0, 0, 1, 1], [], []>} : vector<1x8xf32>, vector<8x32xf32>, vector<1x32xf32> -> vector<1x32xf32>
    %804 = arith.addf %799, %803 : vector<1x32xf32>
    %c0_228 = arith.constant 0 : index
    %c1_229 = arith.constant 1 : index
    %c0_230 = arith.constant 0 : index
    %805 = vector.load %arg25[%c0_228, %c1_229, %c0_230] : memref<5x5x8xf32, #tpu.memory_space<vmem>>, vector<1x1x8xf32>
    %806 = vector.shape_cast %805 : vector<1x1x8xf32> to vector<1x8xf32>
    %c8_231 = arith.constant 8 : index
    %c0_232 = arith.constant 0 : index
    %807 = vector.load %arg7[%c8_231, %c0_232] : memref<200x32xf32, #tpu.memory_space<vmem>>, vector<8x32xf32>
    %cst_233 = arith.constant dense<0.000000e+00> : vector<1x32xf32>
    %808 = tpu.matmul %806, %807, %cst_233 {dimension_numbers = #tpu.dot_dimension_numbers<[1], [0], [0], [1], [0, 0, 1, 1], [], []>} : vector<1x8xf32>, vector<8x32xf32>, vector<1x32xf32> -> vector<1x32xf32>
    %809 = arith.addf %804, %808 : vector<1x32xf32>
    %c0_234 = arith.constant 0 : index
    %c2_235 = arith.constant 2 : index
    %c0_236 = arith.constant 0 : index
    %810 = vector.load %arg25[%c0_234, %c2_235, %c0_236] : memref<5x5x8xf32, #tpu.memory_space<vmem>>, vector<1x1x8xf32>
    %811 = vector.shape_cast %810 : vector<1x1x8xf32> to vector<1x8xf32>
    %c16_237 = arith.constant 16 : index
    %c0_238 = arith.constant 0 : index
    %812 = vector.load %arg7[%c16_237, %c0_238] : memref<200x32xf32, #tpu.memory_space<vmem>>, vector<8x32xf32>
    %cst_239 = arith.constant dense<0.000000e+00> : vector<1x32xf32>
    %813 = tpu.matmul %811, %812, %cst_239 {dimension_numbers = #tpu.dot_dimension_numbers<[1], [0], [0], [1], [0, 0, 1, 1], [], []>} : vector<1x8xf32>, vector<8x32xf32>, vector<1x32xf32> -> vector<1x32xf32>
    %814 = arith.addf %809, %813 : vector<1x32xf32>
    %c0_240 = arith.constant 0 : index
    %c3_241 = arith.constant 3 : index
    %c0_242 = arith.constant 0 : index
    %815 = vector.load %arg25[%c0_240, %c3_241, %c0_242] : memref<5x5x8xf32, #tpu.memory_space<vmem>>, vector<1x1x8xf32>
    %816 = vector.shape_cast %815 : vector<1x1x8xf32> to vector<1x8xf32>
    %c24_243 = arith.constant 24 : index
    %c0_244 = arith.constant 0 : index
    %817 = vector.load %arg7[%c24_243, %c0_244] : memref<200x32xf32, #tpu.memory_space<vmem>>, vector<8x32xf32>
    %cst_245 = arith.constant dense<0.000000e+00> : vector<1x32xf32>
    %818 = tpu.matmul %816, %817, %cst_245 {dimension_numbers = #tpu.dot_dimension_numbers<[1], [0], [0], [1], [0, 0, 1, 1], [], []>} : vector<1x8xf32>, vector<8x32xf32>, vector<1x32xf32> -> vector<1x32xf32>
    %819 = arith.addf %814, %818 : vector<1x32xf32>
    %c0_246 = arith.constant 0 : index
    %c4_247 = arith.constant 4 : index
    %c0_248 = arith.constant 0 : index
    %820 = vector.load %arg25[%c0_246, %c4_247, %c0_248] : memref<5x5x8xf32, #tpu.memory_space<vmem>>, vector<1x1x8xf32>
    %821 = vector.shape_cast %820 : vector<1x1x8xf32> to vector<1x8xf32>
    %c32_249 = arith.constant 32 : index
    %c0_250 = arith.constant 0 : index
    %822 = vector.load %arg7[%c32_249, %c0_250] : memref<200x32xf32, #tpu.memory_space<vmem>>, vector<8x32xf32>
    %cst_251 = arith.constant dense<0.000000e+00> : vector<1x32xf32>
    %823 = tpu.matmul %821, %822, %cst_251 {dimension_numbers = #tpu.dot_dimension_numbers<[1], [0], [0], [1], [0, 0, 1, 1], [], []>} : vector<1x8xf32>, vector<8x32xf32>, vector<1x32xf32> -> vector<1x32xf32>
    %824 = arith.addf %819, %823 : vector<1x32xf32>
    %c1_252 = arith.constant 1 : index
    %c0_253 = arith.constant 0 : index
    %c0_254 = arith.constant 0 : index
    %825 = vector.load %arg25[%c1_252, %c0_253, %c0_254] : memref<5x5x8xf32, #tpu.memory_space<vmem>>, vector<1x1x8xf32>
    %826 = vector.shape_cast %825 : vector<1x1x8xf32> to vector<1x8xf32>
    %c40_255 = arith.constant 40 : index
    %c0_256 = arith.constant 0 : index
    %827 = vector.load %arg7[%c40_255, %c0_256] : memref<200x32xf32, #tpu.memory_space<vmem>>, vector<8x32xf32>
    %cst_257 = arith.constant dense<0.000000e+00> : vector<1x32xf32>
    %828 = tpu.matmul %826, %827, %cst_257 {dimension_numbers = #tpu.dot_dimension_numbers<[1], [0], [0], [1], [0, 0, 1, 1], [], []>} : vector<1x8xf32>, vector<8x32xf32>, vector<1x32xf32> -> vector<1x32xf32>
    %829 = arith.addf %824, %828 : vector<1x32xf32>
    %c1_258 = arith.constant 1 : index
    %c1_259 = arith.constant 1 : index
    %c0_260 = arith.constant 0 : index
    %830 = vector.load %arg25[%c1_258, %c1_259, %c0_260] : memref<5x5x8xf32, #tpu.memory_space<vmem>>, vector<1x1x8xf32>
    %831 = vector.shape_cast %830 : vector<1x1x8xf32> to vector<1x8xf32>
    %c48_261 = arith.constant 48 : index
    %c0_262 = arith.constant 0 : index
    %832 = vector.load %arg7[%c48_261, %c0_262] : memref<200x32xf32, #tpu.memory_space<vmem>>, vector<8x32xf32>
    %cst_263 = arith.constant dense<0.000000e+00> : vector<1x32xf32>
    %833 = tpu.matmul %831, %832, %cst_263 {dimension_numbers = #tpu.dot_dimension_numbers<[1], [0], [0], [1], [0, 0, 1, 1], [], []>} : vector<1x8xf32>, vector<8x32xf32>, vector<1x32xf32> -> vector<1x32xf32>
    %834 = arith.addf %829, %833 : vector<1x32xf32>
    %c1_264 = arith.constant 1 : index
    %c2_265 = arith.constant 2 : index
    %c0_266 = arith.constant 0 : index
    %835 = vector.load %arg25[%c1_264, %c2_265, %c0_266] : memref<5x5x8xf32, #tpu.memory_space<vmem>>, vector<1x1x8xf32>
    %836 = vector.shape_cast %835 : vector<1x1x8xf32> to vector<1x8xf32>
    %c56_267 = arith.constant 56 : index
    %c0_268 = arith.constant 0 : index
    %837 = vector.load %arg7[%c56_267, %c0_268] : memref<200x32xf32, #tpu.memory_space<vmem>>, vector<8x32xf32>
    %cst_269 = arith.constant dense<0.000000e+00> : vector<1x32xf32>
    %838 = tpu.matmul %836, %837, %cst_269 {dimension_numbers = #tpu.dot_dimension_numbers<[1], [0], [0], [1], [0, 0, 1, 1], [], []>} : vector<1x8xf32>, vector<8x32xf32>, vector<1x32xf32> -> vector<1x32xf32>
    %839 = arith.addf %834, %838 : vector<1x32xf32>
    %c1_270 = arith.constant 1 : index
    %c3_271 = arith.constant 3 : index
    %c0_272 = arith.constant 0 : index
    %840 = vector.load %arg25[%c1_270, %c3_271, %c0_272] : memref<5x5x8xf32, #tpu.memory_space<vmem>>, vector<1x1x8xf32>
    %841 = vector.shape_cast %840 : vector<1x1x8xf32> to vector<1x8xf32>
    %c64_273 = arith.constant 64 : index
    %c0_274 = arith.constant 0 : index
    %842 = vector.load %arg7[%c64_273, %c0_274] : memref<200x32xf32, #tpu.memory_space<vmem>>, vector<8x32xf32>
    %cst_275 = arith.constant dense<0.000000e+00> : vector<1x32xf32>
    %843 = tpu.matmul %841, %842, %cst_275 {dimension_numbers = #tpu.dot_dimension_numbers<[1], [0], [0], [1], [0, 0, 1, 1], [], []>} : vector<1x8xf32>, vector<8x32xf32>, vector<1x32xf32> -> vector<1x32xf32>
    %844 = arith.addf %839, %843 : vector<1x32xf32>
    %c1_276 = arith.constant 1 : index
    %c4_277 = arith.constant 4 : index
    %c0_278 = arith.constant 0 : index
    %845 = vector.load %arg25[%c1_276, %c4_277, %c0_278] : memref<5x5x8xf32, #tpu.memory_space<vmem>>, vector<1x1x8xf32>
    %846 = vector.shape_cast %845 : vector<1x1x8xf32> to vector<1x8xf32>
    %c72 = arith.constant 72 : index
    %c0_279 = arith.constant 0 : index
    %847 = vector.load %arg7[%c72, %c0_279] : memref<200x32xf32, #tpu.memory_space<vmem>>, vector<8x32xf32>
    %cst_280 = arith.constant dense<0.000000e+00> : vector<1x32xf32>
    %848 = tpu.matmul %846, %847, %cst_280 {dimension_numbers = #tpu.dot_dimension_numbers<[1], [0], [0], [1], [0, 0, 1, 1], [], []>} : vector<1x8xf32>, vector<8x32xf32>, vector<1x32xf32> -> vector<1x32xf32>
    %849 = arith.addf %844, %848 : vector<1x32xf32>
    %c2_281 = arith.constant 2 : index
    %c0_282 = arith.constant 0 : index
    %c0_283 = arith.constant 0 : index
    %850 = vector.load %arg25[%c2_281, %c0_282, %c0_283] : memref<5x5x8xf32, #tpu.memory_space<vmem>>, vector<1x1x8xf32>
    %851 = vector.shape_cast %850 : vector<1x1x8xf32> to vector<1x8xf32>
    %c80 = arith.constant 80 : index
    %c0_284 = arith.constant 0 : index
    %852 = vector.load %arg7[%c80, %c0_284] : memref<200x32xf32, #tpu.memory_space<vmem>>, vector<8x32xf32>
    %cst_285 = arith.constant dense<0.000000e+00> : vector<1x32xf32>
    %853 = tpu.matmul %851, %852, %cst_285 {dimension_numbers = #tpu.dot_dimension_numbers<[1], [0], [0], [1], [0, 0, 1, 1], [], []>} : vector<1x8xf32>, vector<8x32xf32>, vector<1x32xf32> -> vector<1x32xf32>
    %854 = arith.addf %849, %853 : vector<1x32xf32>
    %c2_286 = arith.constant 2 : index
    %c1_287 = arith.constant 1 : index
    %c0_288 = arith.constant 0 : index
    %855 = vector.load %arg25[%c2_286, %c1_287, %c0_288] : memref<5x5x8xf32, #tpu.memory_space<vmem>>, vector<1x1x8xf32>
    %856 = vector.shape_cast %855 : vector<1x1x8xf32> to vector<1x8xf32>
    %c88 = arith.constant 88 : index
    %c0_289 = arith.constant 0 : index
    %857 = vector.load %arg7[%c88, %c0_289] : memref<200x32xf32, #tpu.memory_space<vmem>>, vector<8x32xf32>
    %cst_290 = arith.constant dense<0.000000e+00> : vector<1x32xf32>
    %858 = tpu.matmul %856, %857, %cst_290 {dimension_numbers = #tpu.dot_dimension_numbers<[1], [0], [0], [1], [0, 0, 1, 1], [], []>} : vector<1x8xf32>, vector<8x32xf32>, vector<1x32xf32> -> vector<1x32xf32>
    %859 = arith.addf %854, %858 : vector<1x32xf32>
    %c2_291 = arith.constant 2 : index
    %c2_292 = arith.constant 2 : index
    %c0_293 = arith.constant 0 : index
    %860 = vector.load %arg25[%c2_291, %c2_292, %c0_293] : memref<5x5x8xf32, #tpu.memory_space<vmem>>, vector<1x1x8xf32>
    %861 = vector.shape_cast %860 : vector<1x1x8xf32> to vector<1x8xf32>
    %c96 = arith.constant 96 : index
    %c0_294 = arith.constant 0 : index
    %862 = vector.load %arg7[%c96, %c0_294] : memref<200x32xf32, #tpu.memory_space<vmem>>, vector<8x32xf32>
    %cst_295 = arith.constant dense<0.000000e+00> : vector<1x32xf32>
    %863 = tpu.matmul %861, %862, %cst_295 {dimension_numbers = #tpu.dot_dimension_numbers<[1], [0], [0], [1], [0, 0, 1, 1], [], []>} : vector<1x8xf32>, vector<8x32xf32>, vector<1x32xf32> -> vector<1x32xf32>
    %864 = arith.addf %859, %863 : vector<1x32xf32>
    %c2_296 = arith.constant 2 : index
    %c3_297 = arith.constant 3 : index
    %c0_298 = arith.constant 0 : index
    %865 = vector.load %arg25[%c2_296, %c3_297, %c0_298] : memref<5x5x8xf32, #tpu.memory_space<vmem>>, vector<1x1x8xf32>
    %866 = vector.shape_cast %865 : vector<1x1x8xf32> to vector<1x8xf32>
    %c104 = arith.constant 104 : index
    %c0_299 = arith.constant 0 : index
    %867 = vector.load %arg7[%c104, %c0_299] : memref<200x32xf32, #tpu.memory_space<vmem>>, vector<8x32xf32>
    %cst_300 = arith.constant dense<0.000000e+00> : vector<1x32xf32>
    %868 = tpu.matmul %866, %867, %cst_300 {dimension_numbers = #tpu.dot_dimension_numbers<[1], [0], [0], [1], [0, 0, 1, 1], [], []>} : vector<1x8xf32>, vector<8x32xf32>, vector<1x32xf32> -> vector<1x32xf32>
    %869 = arith.addf %864, %868 : vector<1x32xf32>
    %c2_301 = arith.constant 2 : index
    %c4_302 = arith.constant 4 : index
    %c0_303 = arith.constant 0 : index
    %870 = vector.load %arg25[%c2_301, %c4_302, %c0_303] : memref<5x5x8xf32, #tpu.memory_space<vmem>>, vector<1x1x8xf32>
    %871 = vector.shape_cast %870 : vector<1x1x8xf32> to vector<1x8xf32>
    %c112 = arith.constant 112 : index
    %c0_304 = arith.constant 0 : index
    %872 = vector.load %arg7[%c112, %c0_304] : memref<200x32xf32, #tpu.memory_space<vmem>>, vector<8x32xf32>
    %cst_305 = arith.constant dense<0.000000e+00> : vector<1x32xf32>
    %873 = tpu.matmul %871, %872, %cst_305 {dimension_numbers = #tpu.dot_dimension_numbers<[1], [0], [0], [1], [0, 0, 1, 1], [], []>} : vector<1x8xf32>, vector<8x32xf32>, vector<1x32xf32> -> vector<1x32xf32>
    %874 = arith.addf %869, %873 : vector<1x32xf32>
    %c3_306 = arith.constant 3 : index
    %c0_307 = arith.constant 0 : index
    %c0_308 = arith.constant 0 : index
    %875 = vector.load %arg25[%c3_306, %c0_307, %c0_308] : memref<5x5x8xf32, #tpu.memory_space<vmem>>, vector<1x1x8xf32>
    %876 = vector.shape_cast %875 : vector<1x1x8xf32> to vector<1x8xf32>
    %c120 = arith.constant 120 : index
    %c0_309 = arith.constant 0 : index
    %877 = vector.load %arg7[%c120, %c0_309] : memref<200x32xf32, #tpu.memory_space<vmem>>, vector<8x32xf32>
    %cst_310 = arith.constant dense<0.000000e+00> : vector<1x32xf32>
    %878 = tpu.matmul %876, %877, %cst_310 {dimension_numbers = #tpu.dot_dimension_numbers<[1], [0], [0], [1], [0, 0, 1, 1], [], []>} : vector<1x8xf32>, vector<8x32xf32>, vector<1x32xf32> -> vector<1x32xf32>
    %879 = arith.addf %874, %878 : vector<1x32xf32>
    %c3_311 = arith.constant 3 : index
    %c1_312 = arith.constant 1 : index
    %c0_313 = arith.constant 0 : index
    %880 = vector.load %arg25[%c3_311, %c1_312, %c0_313] : memref<5x5x8xf32, #tpu.memory_space<vmem>>, vector<1x1x8xf32>
    %881 = vector.shape_cast %880 : vector<1x1x8xf32> to vector<1x8xf32>
    %c128 = arith.constant 128 : index
    %c0_314 = arith.constant 0 : index
    %882 = vector.load %arg7[%c128, %c0_314] : memref<200x32xf32, #tpu.memory_space<vmem>>, vector<8x32xf32>
    %cst_315 = arith.constant dense<0.000000e+00> : vector<1x32xf32>
    %883 = tpu.matmul %881, %882, %cst_315 {dimension_numbers = #tpu.dot_dimension_numbers<[1], [0], [0], [1], [0, 0, 1, 1], [], []>} : vector<1x8xf32>, vector<8x32xf32>, vector<1x32xf32> -> vector<1x32xf32>
    %884 = arith.addf %879, %883 : vector<1x32xf32>
    %c3_316 = arith.constant 3 : index
    %c2_317 = arith.constant 2 : index
    %c0_318 = arith.constant 0 : index
    %885 = vector.load %arg25[%c3_316, %c2_317, %c0_318] : memref<5x5x8xf32, #tpu.memory_space<vmem>>, vector<1x1x8xf32>
    %886 = vector.shape_cast %885 : vector<1x1x8xf32> to vector<1x8xf32>
    %c136 = arith.constant 136 : index
    %c0_319 = arith.constant 0 : index
    %887 = vector.load %arg7[%c136, %c0_319] : memref<200x32xf32, #tpu.memory_space<vmem>>, vector<8x32xf32>
    %cst_320 = arith.constant dense<0.000000e+00> : vector<1x32xf32>
    %888 = tpu.matmul %886, %887, %cst_320 {dimension_numbers = #tpu.dot_dimension_numbers<[1], [0], [0], [1], [0, 0, 1, 1], [], []>} : vector<1x8xf32>, vector<8x32xf32>, vector<1x32xf32> -> vector<1x32xf32>
    %889 = arith.addf %884, %888 : vector<1x32xf32>
    %c3_321 = arith.constant 3 : index
    %c3_322 = arith.constant 3 : index
    %c0_323 = arith.constant 0 : index
    %890 = vector.load %arg25[%c3_321, %c3_322, %c0_323] : memref<5x5x8xf32, #tpu.memory_space<vmem>>, vector<1x1x8xf32>
    %891 = vector.shape_cast %890 : vector<1x1x8xf32> to vector<1x8xf32>
    %c144 = arith.constant 144 : index
    %c0_324 = arith.constant 0 : index
    %892 = vector.load %arg7[%c144, %c0_324] : memref<200x32xf32, #tpu.memory_space<vmem>>, vector<8x32xf32>
    %cst_325 = arith.constant dense<0.000000e+00> : vector<1x32xf32>
    %893 = tpu.matmul %891, %892, %cst_325 {dimension_numbers = #tpu.dot_dimension_numbers<[1], [0], [0], [1], [0, 0, 1, 1], [], []>} : vector<1x8xf32>, vector<8x32xf32>, vector<1x32xf32> -> vector<1x32xf32>
    %894 = arith.addf %889, %893 : vector<1x32xf32>
    %c3_326 = arith.constant 3 : index
    %c4_327 = arith.constant 4 : index
    %c0_328 = arith.constant 0 : index
    %895 = vector.load %arg25[%c3_326, %c4_327, %c0_328] : memref<5x5x8xf32, #tpu.memory_space<vmem>>, vector<1x1x8xf32>
    %896 = vector.shape_cast %895 : vector<1x1x8xf32> to vector<1x8xf32>
    %c152 = arith.constant 152 : index
    %c0_329 = arith.constant 0 : index
    %897 = vector.load %arg7[%c152, %c0_329] : memref<200x32xf32, #tpu.memory_space<vmem>>, vector<8x32xf32>
    %cst_330 = arith.constant dense<0.000000e+00> : vector<1x32xf32>
    %898 = tpu.matmul %896, %897, %cst_330 {dimension_numbers = #tpu.dot_dimension_numbers<[1], [0], [0], [1], [0, 0, 1, 1], [], []>} : vector<1x8xf32>, vector<8x32xf32>, vector<1x32xf32> -> vector<1x32xf32>
    %899 = arith.addf %894, %898 : vector<1x32xf32>
    %c4_331 = arith.constant 4 : index
    %c0_332 = arith.constant 0 : index
    %c0_333 = arith.constant 0 : index
    %900 = vector.load %arg25[%c4_331, %c0_332, %c0_333] : memref<5x5x8xf32, #tpu.memory_space<vmem>>, vector<1x1x8xf32>
    %901 = vector.shape_cast %900 : vector<1x1x8xf32> to vector<1x8xf32>
    %c160 = arith.constant 160 : index
    %c0_334 = arith.constant 0 : index
    %902 = vector.load %arg7[%c160, %c0_334] : memref<200x32xf32, #tpu.memory_space<vmem>>, vector<8x32xf32>
    %cst_335 = arith.constant dense<0.000000e+00> : vector<1x32xf32>
    %903 = tpu.matmul %901, %902, %cst_335 {dimension_numbers = #tpu.dot_dimension_numbers<[1], [0], [0], [1], [0, 0, 1, 1], [], []>} : vector<1x8xf32>, vector<8x32xf32>, vector<1x32xf32> -> vector<1x32xf32>
    %904 = arith.addf %899, %903 : vector<1x32xf32>
    %c4_336 = arith.constant 4 : index
    %c1_337 = arith.constant 1 : index
    %c0_338 = arith.constant 0 : index
    %905 = vector.load %arg25[%c4_336, %c1_337, %c0_338] : memref<5x5x8xf32, #tpu.memory_space<vmem>>, vector<1x1x8xf32>
    %906 = vector.shape_cast %905 : vector<1x1x8xf32> to vector<1x8xf32>
    %c168 = arith.constant 168 : index
    %c0_339 = arith.constant 0 : index
    %907 = vector.load %arg7[%c168, %c0_339] : memref<200x32xf32, #tpu.memory_space<vmem>>, vector<8x32xf32>
    %cst_340 = arith.constant dense<0.000000e+00> : vector<1x32xf32>
    %908 = tpu.matmul %906, %907, %cst_340 {dimension_numbers = #tpu.dot_dimension_numbers<[1], [0], [0], [1], [0, 0, 1, 1], [], []>} : vector<1x8xf32>, vector<8x32xf32>, vector<1x32xf32> -> vector<1x32xf32>
    %909 = arith.addf %904, %908 : vector<1x32xf32>
    %c4_341 = arith.constant 4 : index
    %c2_342 = arith.constant 2 : index
    %c0_343 = arith.constant 0 : index
    %910 = vector.load %arg25[%c4_341, %c2_342, %c0_343] : memref<5x5x8xf32, #tpu.memory_space<vmem>>, vector<1x1x8xf32>
    %911 = vector.shape_cast %910 : vector<1x1x8xf32> to vector<1x8xf32>
    %c176 = arith.constant 176 : index
    %c0_344 = arith.constant 0 : index
    %912 = vector.load %arg7[%c176, %c0_344] : memref<200x32xf32, #tpu.memory_space<vmem>>, vector<8x32xf32>
    %cst_345 = arith.constant dense<0.000000e+00> : vector<1x32xf32>
    %913 = tpu.matmul %911, %912, %cst_345 {dimension_numbers = #tpu.dot_dimension_numbers<[1], [0], [0], [1], [0, 0, 1, 1], [], []>} : vector<1x8xf32>, vector<8x32xf32>, vector<1x32xf32> -> vector<1x32xf32>
    %914 = arith.addf %909, %913 : vector<1x32xf32>
    %c4_346 = arith.constant 4 : index
    %c3_347 = arith.constant 3 : index
    %c0_348 = arith.constant 0 : index
    %915 = vector.load %arg25[%c4_346, %c3_347, %c0_348] : memref<5x5x8xf32, #tpu.memory_space<vmem>>, vector<1x1x8xf32>
    %916 = vector.shape_cast %915 : vector<1x1x8xf32> to vector<1x8xf32>
    %c184 = arith.constant 184 : index
    %c0_349 = arith.constant 0 : index
    %917 = vector.load %arg7[%c184, %c0_349] : memref<200x32xf32, #tpu.memory_space<vmem>>, vector<8x32xf32>
    %cst_350 = arith.constant dense<0.000000e+00> : vector<1x32xf32>
    %918 = tpu.matmul %916, %917, %cst_350 {dimension_numbers = #tpu.dot_dimension_numbers<[1], [0], [0], [1], [0, 0, 1, 1], [], []>} : vector<1x8xf32>, vector<8x32xf32>, vector<1x32xf32> -> vector<1x32xf32>
    %919 = arith.addf %914, %918 : vector<1x32xf32>
    %c4_351 = arith.constant 4 : index
    %c4_352 = arith.constant 4 : index
    %c0_353 = arith.constant 0 : index
    %920 = vector.load %arg25[%c4_351, %c4_352, %c0_353] : memref<5x5x8xf32, #tpu.memory_space<vmem>>, vector<1x1x8xf32>
    %921 = vector.shape_cast %920 : vector<1x1x8xf32> to vector<1x8xf32>
    %c192 = arith.constant 192 : index
    %c0_354 = arith.constant 0 : index
    %922 = vector.load %arg7[%c192, %c0_354] : memref<200x32xf32, #tpu.memory_space<vmem>>, vector<8x32xf32>
    %cst_355 = arith.constant dense<0.000000e+00> : vector<1x32xf32>
    %923 = tpu.matmul %921, %922, %cst_355 {dimension_numbers = #tpu.dot_dimension_numbers<[1], [0], [0], [1], [0, 0, 1, 1], [], []>} : vector<1x8xf32>, vector<8x32xf32>, vector<1x32xf32> -> vector<1x32xf32>
    %924 = arith.addf %919, %923 : vector<1x32xf32>
    %cst_356 = arith.constant dense<0.000000e+00> : vector<1xf32>
    %925 = vector.multi_reduction <add>, %924, %cst_356 [1] : vector<1x32xf32> to vector<1xf32>
    %926 = vector.shape_cast %925 : vector<1xf32> to vector<1x1xf32>
    %cst_357 = arith.constant 3.200000e+01 : f32
    %927 = vector.broadcast %cst_357 : f32 to vector<1x1xf32>
    %928 = arith.divf %926, %927 : vector<1x1xf32>
    %929 = vector.broadcast %928 : vector<1x1xf32> to vector<1x32xf32>
    %930 = arith.subf %924, %929 : vector<1x32xf32>
    %931 = arith.mulf %930, %930 : vector<1x32xf32>
    %cst_358 = arith.constant dense<0.000000e+00> : vector<1xf32>
    %932 = vector.multi_reduction <add>, %931, %cst_358 [1] : vector<1x32xf32> to vector<1xf32>
    %933 = vector.shape_cast %932 : vector<1xf32> to vector<1x1xf32>
    %cst_359 = arith.constant 3.200000e+01 : f32
    %934 = vector.broadcast %cst_359 : f32 to vector<1x1xf32>
    %935 = arith.divf %933, %934 : vector<1x1xf32>
    %936 = vector.broadcast %928 : vector<1x1xf32> to vector<1x32xf32>
    %937 = arith.subf %924, %936 : vector<1x32xf32>
    %cst_360 = arith.constant 9.99999974E-6 : f32
    %938 = vector.broadcast %cst_360 : f32 to vector<1x1xf32>
    %939 = arith.addf %935, %938 : vector<1x1xf32>
    %940 = math.rsqrt %939 : vector<1x1xf32>
    %941 = vector.broadcast %940 : vector<1x1xf32> to vector<1x32xf32>
    %942 = arith.mulf %937, %941 : vector<1x32xf32>
    %c0_361 = arith.constant 0 : index
    %c0_362 = arith.constant 0 : index
    %943 = vector.load %arg9[%c0_361, %c0_362] : memref<1x32xf32, #tpu.memory_space<vmem>>, vector<1x32xf32>
    %944 = arith.mulf %942, %943 : vector<1x32xf32>
    %c0_363 = arith.constant 0 : index
    %c0_364 = arith.constant 0 : index
    %945 = vector.load %arg10[%c0_363, %c0_364] : memref<1x32xf32, #tpu.memory_space<vmem>>, vector<1x32xf32>
    %946 = arith.addf %944, %945 : vector<1x32xf32>
    %c0_365 = arith.constant 0 : index
    %c0_366 = arith.constant 0 : index
    %c0_367 = arith.constant 0 : index
    %947 = vector.load %arg2[%c0_365, %c0_366, %c0_367] : memref<1x1x6xf32, #tpu.memory_space<vmem>>, vector<1x1x6xf32>
    %948 = vector.shape_cast %947 : vector<1x1x6xf32> to vector<1x6xf32>
    %c0_368 = arith.constant 0 : index
    %c0_369 = arith.constant 0 : index
    %949 = vector.load %arg11[%c0_368, %c0_369] : memref<32x64xf32, #tpu.memory_space<vmem>>, vector<32x64xf32>
    %cst_370 = arith.constant dense<0.000000e+00> : vector<1x64xf32>
    %950 = tpu.matmul %946, %949, %cst_370 {dimension_numbers = #tpu.dot_dimension_numbers<[1], [0], [0], [1], [0, 0, 1, 1], [], []>} : vector<1x32xf32>, vector<32x64xf32>, vector<1x64xf32> -> vector<1x64xf32>
    %c0_371 = arith.constant 0 : index
    %c0_372 = arith.constant 0 : index
    %951 = vector.load %arg12[%c0_371, %c0_372] : memref<6x64xf32, #tpu.memory_space<vmem>>, vector<6x64xf32>
    %cst_373 = arith.constant dense<0.000000e+00> : vector<1x64xf32>
    %952 = tpu.matmul %948, %951, %cst_373 {dimension_numbers = #tpu.dot_dimension_numbers<[1], [0], [0], [1], [0, 0, 1, 1], [], []>} : vector<1x6xf32>, vector<6x64xf32>, vector<1x64xf32> -> vector<1x64xf32>
    %953 = arith.addf %950, %952 : vector<1x64xf32>
    %c0_374 = arith.constant 0 : index
    %c0_375 = arith.constant 0 : index
    %954 = vector.load %arg13[%c0_374, %c0_375] : memref<1x64xf32, #tpu.memory_space<vmem>>, vector<1x64xf32>
    %955 = arith.addf %953, %954 : vector<1x64xf32>
    %cst_376 = arith.constant 0.000000e+00 : f32
    %956 = vector.broadcast %cst_376 : f32 to vector<1x64xf32>
    %957 = arith.maximumf %955, %956 : vector<1x64xf32>
    %958 = vector.extract_strided_slice %957 {offsets = [0, 0], sizes = [1, 32], strides = [1, 1]} : vector<1x64xf32> to vector<1x32xf32>
    %959 = vector.extract_strided_slice %957 {offsets = [0, 32], sizes = [1, 32], strides = [1, 1]} : vector<1x64xf32> to vector<1x32xf32>
    %c0_377 = arith.constant 0 : index
    %c0_378 = arith.constant 0 : index
    %960 = vector.load %arg14[%c0_377, %c0_378] : memref<32x32xf32, #tpu.memory_space<vmem>>, vector<32x32xf32>
    %cst_379 = arith.constant dense<0.000000e+00> : vector<1x32xf32>
    %961 = tpu.matmul %958, %960, %cst_379 {dimension_numbers = #tpu.dot_dimension_numbers<[1], [0], [0], [1], [0, 0, 1, 1], [], []>} : vector<1x32xf32>, vector<32x32xf32>, vector<1x32xf32> -> vector<1x32xf32>
    %c0_380 = arith.constant 0 : index
    %c0_381 = arith.constant 0 : index
    %962 = vector.load %arg16[%c0_380, %c0_381] : memref<1x32xf32, #tpu.memory_space<vmem>>, vector<1x32xf32>
    %963 = arith.addf %961, %962 : vector<1x32xf32>
    %cst_382 = arith.constant 0.000000e+00 : f32
    %964 = vector.broadcast %cst_382 : f32 to vector<1x32xf32>
    %965 = arith.maximumf %963, %964 : vector<1x32xf32>
    %c0_383 = arith.constant 0 : index
    %c0_384 = arith.constant 0 : index
    %966 = vector.load %arg15[%c0_383, %c0_384] : memref<32x32xf32, #tpu.memory_space<vmem>>, vector<32x32xf32>
    %cst_385 = arith.constant dense<0.000000e+00> : vector<1x32xf32>
    %967 = tpu.matmul %959, %966, %cst_385 {dimension_numbers = #tpu.dot_dimension_numbers<[1], [0], [0], [1], [0, 0, 1, 1], [], []>} : vector<1x32xf32>, vector<32x32xf32>, vector<1x32xf32> -> vector<1x32xf32>
    %c0_386 = arith.constant 0 : index
    %c0_387 = arith.constant 0 : index
    %968 = vector.load %arg17[%c0_386, %c0_387] : memref<1x32xf32, #tpu.memory_space<vmem>>, vector<1x32xf32>
    %969 = arith.addf %967, %968 : vector<1x32xf32>
    %cst_388 = arith.constant 0.000000e+00 : f32
    %970 = vector.broadcast %cst_388 : f32 to vector<1x32xf32>
    %971 = arith.maximumf %969, %970 : vector<1x32xf32>
    %c0_389 = arith.constant 0 : index
    %c0_390 = arith.constant 0 : index
    %972 = vector.load %arg18[%c0_389, %c0_390] : memref<32x1xf32, #tpu.memory_space<vmem>>, vector<32x1xf32>
    %cst_391 = arith.constant dense<0.000000e+00> : vector<1x1xf32>
    %973 = tpu.matmul %965, %972, %cst_391 {dimension_numbers = #tpu.dot_dimension_numbers<[1], [0], [0], [1], [0, 0, 1, 1], [], []>} : vector<1x32xf32>, vector<32x1xf32>, vector<1x1xf32> -> vector<1x1xf32>
    %c0_392 = arith.constant 0 : index
    %c0_393 = arith.constant 0 : index
    %974 = vector.load %arg20[%c0_392, %c0_393] : memref<1x1xf32, #tpu.memory_space<vmem>>, vector<1x1xf32>
    %975 = arith.addf %973, %974 : vector<1x1xf32>
    %c0_394 = arith.constant 0 : index
    %c0_395 = arith.constant 0 : index
    %c0_396 = arith.constant 0 : index
    %976 = vector.load %arg22[%c0_394, %c0_395, %c0_396] : memref<1x1x1xf32, #tpu.memory_space<vmem>>, vector<1x1x1xf32>
    %977 = vector.shape_cast %976 : vector<1x1x1xf32> to vector<1x1xf32>
    %978 = vector.shape_cast %975 : vector<1x1xf32> to vector<1x1x1xf32>
    tpu.vector_store %arg22[%c0_394, %c0_395, %c0_396], %978 {strides = array<i32>} : memref<1x1x1xf32, #tpu.memory_space<vmem>>, vector<1x1x1xf32>,
    %c0_397 = arith.constant 0 : index
    %c0_398 = arith.constant 0 : index
    %979 = vector.load %arg19[%c0_397, %c0_398] : memref<32x1xf32, #tpu.memory_space<vmem>>, vector<32x1xf32>
    %cst_399 = arith.constant dense<0.000000e+00> : vector<1x1xf32>
    %980 = tpu.matmul %971, %979, %cst_399 {dimension_numbers = #tpu.dot_dimension_numbers<[1], [0], [0], [1], [0, 0, 1, 1], [], []>} : vector<1x32xf32>, vector<32x1xf32>, vector<1x1xf32> -> vector<1x1xf32>
    %c0_400 = arith.constant 0 : index
    %c0_401 = arith.constant 0 : index
    %981 = vector.load %arg21[%c0_400, %c0_401] : memref<1x1xf32, #tpu.memory_space<vmem>>, vector<1x1xf32>
    %982 = arith.addf %980, %981 : vector<1x1xf32>
    %c0_402 = arith.constant 0 : index
    %c0_403 = arith.constant 0 : index
    %c0_404 = arith.constant 0 : index
    %983 = vector.load %arg23[%c0_402, %c0_403, %c0_404] : memref<1x1x1xf32, #tpu.memory_space<vmem>>, vector<1x1x1xf32>
    %984 = vector.shape_cast %983 : vector<1x1x1xf32> to vector<1x1xf32>
    %985 = vector.shape_cast %982 : vector<1x1xf32> to vector<1x1x1xf32>
    tpu.vector_store %arg23[%c0_402, %c0_403, %c0_404], %985 {strides = array<i32>} : memref<1x1x1xf32, #tpu.memory_space<vmem>>, vector<1x1x1xf32>,
    return
  }
  func.func @transform_0(%arg0: i32) -> (i32, i32, i32, i32) {
    %c0_i32 = arith.constant 0 : i32
    %c0_i32_0 = arith.constant 0 : i32
    %c0_i32_1 = arith.constant 0 : i32
    %c0_i32_2 = arith.constant 0 : i32
    return %arg0, %c0_i32, %c0_i32_0, %c0_i32_1 : i32, i32, i32, i32
  }
  func.func @transform_1(%arg0: i32) -> (i32, i32, i32) {
    %c0_i32 = arith.constant 0 : i32
    %c0_i32_0 = arith.constant 0 : i32
    %c0_i32_1 = arith.constant 0 : i32
    return %arg0, %c0_i32, %c0_i32_0 : i32, i32, i32
  }
  func.func @transform_2(%arg0: i32) -> (i32, i32) {
    %c0_i32 = arith.constant 0 : i32
    %c0_i32_0 = arith.constant 0 : i32
    %c0_i32_1 = arith.constant 0 : i32
    return %c0_i32, %c0_i32_0 : i32, i32
  }
  func.func @transform_3(%arg0: i32) -> (i32, i32) {
    %c0_i32 = arith.constant 0 : i32
    %c0_i32_0 = arith.constant 0 : i32
    %c0_i32_1 = arith.constant 0 : i32
    return %c0_i32, %c0_i32_0 : i32, i32
  }
  func.func @transform_4(%arg0: i32) -> (i32, i32) {
    %c0_i32 = arith.constant 0 : i32
    %c0_i32_0 = arith.constant 0 : i32
    %c0_i32_1 = arith.constant 0 : i32
    return %c0_i32, %c0_i32_0 : i32, i32
  }
  func.func @transform_5(%arg0: i32) -> (i32, i32) {
    %c0_i32 = arith.constant 0 : i32
    %c0_i32_0 = arith.constant 0 : i32
    %c0_i32_1 = arith.constant 0 : i32
    return %c0_i32, %c0_i32_0 : i32, i32
  }
  func.func @transform_6(%arg0: i32) -> (i32, i32) {
    %c0_i32 = arith.constant 0 : i32
    %c0_i32_0 = arith.constant 0 : i32
    %c0_i32_1 = arith.constant 0 : i32
    return %c0_i32, %c0_i32_0 : i32, i32
  }
  func.func @transform_7(%arg0: i32) -> (i32, i32) {
    %c0_i32 = arith.constant 0 : i32
    %c0_i32_0 = arith.constant 0 : i32
    %c0_i32_1 = arith.constant 0 : i32
    return %c0_i32, %c0_i32_0 : i32, i32
  }
  func.func @transform_8(%arg0: i32) -> (i32, i32) {
    %c0_i32 = arith.constant 0 : i32
    %c0_i32_0 = arith.constant 0 : i32
    %c0_i32_1 = arith.constant 0 : i32
    return %c0_i32, %c0_i32_0 : i32, i32
  }
  func.func @transform_9(%arg0: i32) -> (i32, i32) {
    %c0_i32 = arith.constant 0 : i32
    %c0_i32_0 = arith.constant 0 : i32
    %c0_i32_1 = arith.constant 0 : i32
    return %c0_i32, %c0_i32_0 : i32, i32
  }
  func.func @transform_10(%arg0: i32) -> (i32, i32) {
    %c0_i32 = arith.constant 0 : i32
    %c0_i32_0 = arith.constant 0 : i32
    %c0_i32_1 = arith.constant 0 : i32
    return %c0_i32, %c0_i32_0 : i32, i32
  }
  func.func @transform_11(%arg0: i32) -> (i32, i32) {
    %c0_i32 = arith.constant 0 : i32
    %c0_i32_0 = arith.constant 0 : i32
    %c0_i32_1 = arith.constant 0 : i32
    return %c0_i32, %c0_i32_0 : i32, i32
  }
  func.func @transform_12(%arg0: i32) -> (i32, i32) {
    %c0_i32 = arith.constant 0 : i32
    %c0_i32_0 = arith.constant 0 : i32
    %c0_i32_1 = arith.constant 0 : i32
    return %c0_i32, %c0_i32_0 : i32, i32
  }
  func.func @transform_13(%arg0: i32) -> (i32, i32) {
    %c0_i32 = arith.constant 0 : i32
    %c0_i32_0 = arith.constant 0 : i32
    %c0_i32_1 = arith.constant 0 : i32
    return %c0_i32, %c0_i32_0 : i32, i32
  }
  func.func @transform_14(%arg0: i32) -> (i32, i32) {
    %c0_i32 = arith.constant 0 : i32
    %c0_i32_0 = arith.constant 0 : i32
    %c0_i32_1 = arith.constant 0 : i32
    return %c0_i32, %c0_i32_0 : i32, i32
  }
  func.func @transform_15(%arg0: i32) -> (i32, i32) {
    %c0_i32 = arith.constant 0 : i32
    %c0_i32_0 = arith.constant 0 : i32
    %c0_i32_1 = arith.constant 0 : i32
    return %c0_i32, %c0_i32_0 : i32, i32
  }
  func.func @transform_16(%arg0: i32) -> (i32, i32) {
    %c0_i32 = arith.constant 0 : i32
    %c0_i32_0 = arith.constant 0 : i32
    %c0_i32_1 = arith.constant 0 : i32
    return %c0_i32, %c0_i32_0 : i32, i32
  }
  func.func @transform_17(%arg0: i32) -> (i32, i32) {
    %c0_i32 = arith.constant 0 : i32
    %c0_i32_0 = arith.constant 0 : i32
    %c0_i32_1 = arith.constant 0 : i32
    return %c0_i32, %c0_i32_0 : i32, i32
  }
  func.func @transform_18(%arg0: i32) -> (i32, i32) {
    %c0_i32 = arith.constant 0 : i32
    %c0_i32_0 = arith.constant 0 : i32
    %c0_i32_1 = arith.constant 0 : i32
    return %c0_i32, %c0_i32_0 : i32, i32
  }
  func.func @transform_19(%arg0: i32) -> (i32, i32) {
    %c0_i32 = arith.constant 0 : i32
    %c0_i32_0 = arith.constant 0 : i32
    %c0_i32_1 = arith.constant 0 : i32
    return %c0_i32, %c0_i32_0 : i32, i32
  }
  func.func @transform_20(%arg0: i32) -> (i32, i32) {
    %c0_i32 = arith.constant 0 : i32
    %c0_i32_0 = arith.constant 0 : i32
    %c0_i32_1 = arith.constant 0 : i32
    return %c0_i32, %c0_i32_0 : i32, i32
  }
  func.func @transform_21(%arg0: i32) -> (i32, i32, i32) {
    %c0_i32 = arith.constant 0 : i32
    %c0_i32_0 = arith.constant 0 : i32
    %c0_i32_1 = arith.constant 0 : i32
    return %arg0, %c0_i32, %c0_i32_0 : i32, i32, i32
  }
  func.func @transform_22(%arg0: i32) -> (i32, i32, i32) {
    %c0_i32 = arith.constant 0 : i32
    %c0_i32_0 = arith.constant 0 : i32
    %c0_i32_1 = arith.constant 0 : i32
    return %arg0, %c0_i32, %c0_i32_0 : i32, i32, i32
  }
}

</mosaic_0001>

<llo_original>
// kernel: critic_forward.1
$region0: #{critic_forward.1}
  #allocation0 [shape = 'u32[]', space=smem, size = 0x4, offset = 0x4, fixed_abs, tag = 'smem constant byte address 0x4 - core index']
  #allocation1 [shape = 'u32[144,128]{1,0:T(1,128)}', space=vmem, size = 0x12000, scoped, tag = 'internal scratch']
  #allocation2 [shape = 'f32[7,7,8]{2,1,0:T(8,128)}', space=vmem, size = 0x7000, scoped, tag = 'scratch operand']
  #allocation3 [shape = 'f32[5,5,8]{2,1,0:T(8,128)}', space=vmem, size = 0x5000, scoped, tag = 'scratch operand']
  #allocation4 [shape = 'f32[1,1]{1,0:T(1,128)S(1)}', space=vmem, size = 0x200, scoped, tag = 'scoped memory for critic_forward.1']
  #allocation5 [shape = 'f32[1,1]{1,0:T(1,128)S(1)}', space=vmem, size = 0x200, scoped, tag = 'scoped memory for critic_forward.1']
  %s0 = inlined_call_operand.vmem [shape: f32[8,8,8,4], index: 0, kind: input, shape index: {}]
  %s1 = inlined_call_operand.vmem [shape: f32[2,1,6], index: 1, kind: input, shape index: {}]
  %s2 = inlined_call_operand.vmem [shape: f32[36,8], index: 2, kind: input, shape index: {}]
  %s3 = inlined_call_operand.vmem [shape: f32[72,8], index: 3, kind: input, shape index: {}]
  %s4 = inlined_call_operand.vmem [shape: f32[1,8], index: 4, kind: input, shape index: {}]
  %s5 = inlined_call_operand.vmem [shape: f32[1,8], index: 5, kind: input, shape index: {}]
  %s6 = inlined_call_operand.vmem [shape: f32[200,32], index: 6, kind: input, shape index: {}]
  %s7 = inlined_call_operand.vmem [shape: f32[1,32], index: 7, kind: input, shape index: {}]
  %s8 = inlined_call_operand.vmem [shape: f32[1,32], index: 8, kind: input, shape index: {}]
  %s9 = inlined_call_operand.vmem [shape: f32[1,32], index: 9, kind: input, shape index: {}]
  %s10 = inlined_call_operand.vmem [shape: f32[32,64], index: 10, kind: input, shape index: {}]
  %s11 = inlined_call_operand.vmem [shape: f32[6,64], index: 11, kind: input, shape index: {}]
  %s12 = inlined_call_operand.vmem [shape: f32[1,64], index: 12, kind: input, shape index: {}]
  %s13 = inlined_call_operand.vmem [shape: f32[32,32], index: 13, kind: input, shape index: {}]
  %s14 = inlined_call_operand.vmem [shape: f32[32,32], index: 14, kind: input, shape index: {}]
  %s15 = inlined_call_operand.vmem [shape: f32[1,32], index: 15, kind: input, shape index: {}]
  %s16 = inlined_call_operand.vmem [shape: f32[1,32], index: 16, kind: input, shape index: {}]
  %s17 = inlined_call_operand.vmem [shape: f32[32,1], index: 17, kind: input, shape index: {}]
  %s18 = inlined_call_operand.vmem [shape: f32[32,1], index: 18, kind: input, shape index: {}]
  %s19 = inlined_call_operand.<no memory space> [shape: f32[1,1], index: 19, kind: input, shape index: {}]
  %s20 = inlined_call_operand.<no memory space> [shape: f32[1,1], index: 20, kind: input, shape index: {}]
  %s21 = inlined_call_operand.vmem [shape: f32[2,1,1], index: 21, kind: output, shape index: {0}]
  %s22 = inlined_call_operand.vmem [shape: f32[2,1,1], index: 22, kind: output, shape index: {1}]
  %23 = xla_tuple %s21, %s22
  %s24 = sld [smem:[#allocation0]]
  $region125: #{critic_forward.1} parent=0
    _
  %s26 = ssub.s32 1, %s24
  %s27 = scalar_select 0, %s26, %s24
  %v28 = vstv %s19
  %29 = vst [vmem:[#allocation4] sm:$0x1] %v28
  %v30 = vstv %s20
  %31 = vst [vmem:[#allocation5] sm:$0x1] %v30
  loop: start=0, step=1, limit=4
  $region2: #{critic_forward.1} parent=0 // loop_pre_header
    _
  $region3: #{critic_forward.1} parent=0 // loop_header
    %s33 = sphi 0, %s37
    %p34 = scmp.ge.s32.totalorder %s33, 4
    %s43 = sphi 0, %s45
    %s46 = sphi 0, %s43
    %s47 = sphi 0, %s46
    %s63 = sphi 0, %s47
    %s69 = sphi 0, %s71
    %s72 = sphi 0, %s69
    %s73 = sphi 0, %s72
    %s89 = sphi 0, %s73
    %s93 = sphi 0, %s93
    %s95 = sphi 0, %s93
    %s96 = sphi 0, %s95
    %s110 = sphi 0, %s96
    %s114 = sphi 0, %s114
    %s116 = sphi 0, %s114
    %s117 = sphi 0, %s116
    %s131 = sphi 0, %s117
    %s135 = sphi 0, %s135
    %s137 = sphi 0, %s135
    %s138 = sphi 0, %s137
    %s152 = sphi 0, %s138
    %s156 = sphi 0, %s156
    %s158 = sphi 0, %s156
    %s159 = sphi 0, %s158
    %s173 = sphi 0, %s159
    %s177 = sphi 0, %s177
    %s179 = sphi 0, %s177
    %s180 = sphi 0, %s179
    %s194 = sphi 0, %s180
    %s198 = sphi 0, %s198
    %s200 = sphi 0, %s198
    %s201 = sphi 0, %s200
    %s215 = sphi 0, %s201
    %s219 = sphi 0, %s219
    %s221 = sphi 0, %s219
    %s222 = sphi 0, %s221
    %s236 = sphi 0, %s222
    %s240 = sphi 0, %s240
    %s242 = sphi 0, %s240
    %s243 = sphi 0, %s242
    %s257 = sphi 0, %s243
    %s261 = sphi 0, %s261
    %s263 = sphi 0, %s261
    %s264 = sphi 0, %s263
    %s278 = sphi 0, %s264
    %s282 = sphi 0, %s282
    %s284 = sphi 0, %s282
    %s285 = sphi 0, %s284
    %s299 = sphi 0, %s285
    %s303 = sphi 0, %s303
    %s305 = sphi 0, %s303
    %s306 = sphi 0, %s305
    %s320 = sphi 0, %s306
    %s324 = sphi 0, %s324
    %s326 = sphi 0, %s324
    %s327 = sphi 0, %s326
    %s341 = sphi 0, %s327
    %s345 = sphi 0, %s345
    %s347 = sphi 0, %s345
    %s348 = sphi 0, %s347
    %s362 = sphi 0, %s348
    %s366 = sphi 0, %s366
    %s368 = sphi 0, %s366
    %s369 = sphi 0, %s368
    %s383 = sphi 0, %s369
    %s387 = sphi 0, %s387
    %s389 = sphi 0, %s387
    %s390 = sphi 0, %s389
    %s404 = sphi 0, %s390
    %s408 = sphi 0, %s408
    %s410 = sphi 0, %s408
    %s411 = sphi 0, %s410
    %s425 = sphi 0, %s411
    %s429 = sphi 0, %s429
    %s431 = sphi 0, %s429
    %s432 = sphi 0, %s431
    %s446 = sphi 0, %s432
    %s450 = sphi 0, %s450
    %s452 = sphi 0, %s450
    %s453 = sphi 0, %s452
    %s467 = sphi 0, %s453
    %s471 = sphi 0, %s471
    %s473 = sphi 0, %s471
    %s474 = sphi 0, %s473
    %s488 = sphi 0, %s474
    %s494 = sphi 0, %s496
    %s497 = sphi 0, %s494
    %s498 = sphi 0, %s497
    %s514 = sphi 0, %s498
    %s520 = sphi 0, %s522
    %s523 = sphi 0, %s520
    %s524 = sphi 0, %s523
    %s540 = sphi 0, %s524
  $region4: #{critic_forward.1} parent=0 // loop_header_branch
    %36 = sbr.rel (%p34) target = $region8
  $region5: #{critic_forward.1} parent=0 // loop_body
    %s38 = ssub.s32 %s33, 1
    %s39 = ssub.s32 %s33, 2
    %s40 = sadd.s32 %s33, 1
    %s41 = ssub.s32 %s33, %s40
    %p42 = scmp.eq.s32.totalorder %s41, 0
    %s44 = sadd.s32 %s43, 1
    %s45 = scalar_select %p42, %s43, %s44
    %p48 = pneg %p42
    %p49 = scmp.eq.s32.totalorder %s33, 1
    %p50 = por %p48, %p49
    %p51 = scmp.ne.s32.totalorder %s43, %s46
    %p52 = scmp.eq.s32.totalorder %s33, 0
    %p53 = por %p51, %p52
    %p54 = scmp.ne.s32.totalorder %s43, %s46
    %p55 = scmp.eq.s32.totalorder %s38, 1
    %p56 = por %p54, %p55
    %p57 = scmp.ne.s32.totalorder %s46, %s47
    %p58 = scmp.eq.s32.totalorder %s38, 0
    %p59 = por %p57, %p58
    %p60 = scmp.ne.s32.totalorder %s46, %s47
    %p61 = scmp.eq.s32.totalorder %s39, 1
    %p62 = por %p60, %p61
    %p64 = scmp.ne.s32.totalorder %s47, %s63
    %p65 = scmp.eq.s32.totalorder %s39, 0
    %p66 = por %p64, %p65
    %s67 = ssub.s32 %s33, %s40
    %p68 = scmp.eq.s32.totalorder %s67, 0
    %s70 = sadd.s32 %s69, 1
    %s71 = scalar_select %p68, %s69, %s70
    %p74 = pneg %p68
    %p75 = scmp.eq.s32.totalorder %s33, 1
    %p76 = por %p74, %p75
    %p77 = scmp.ne.s32.totalorder %s69, %s72
    %p78 = scmp.eq.s32.totalorder %s33, 0
    %p79 = por %p77, %p78
    %p80 = scmp.ne.s32.totalorder %s69, %s72
    %p81 = scmp.eq.s32.totalorder %s38, 1
    %p82 = por %p80, %p81
    %p83 = scmp.ne.s32.totalorder %s72, %s73
    %p84 = scmp.eq.s32.totalorder %s38, 0
    %p85 = por %p83, %p84
    %p86 = scmp.ne.s32.totalorder %s72, %s73
    %p87 = scmp.eq.s32.totalorder %s39, 1
    %p88 = por %p86, %p87
    %p90 = scmp.ne.s32.totalorder %s73, %s89
    %p91 = scmp.eq.s32.totalorder %s39, 0
    %p92 = por %p90, %p91
    %s94 = sadd.s32 %s93, 1
    %p97 = scmp.eq.s32.totalorder %s33, 1
    %p98 = scmp.ne.s32.totalorder %s93, %s95
    %p99 = scmp.eq.s32.totalorder %s33, 0
    %p100 = por %p98, %p99
    %p101 = scmp.ne.s32.totalorder %s93, %s95
    %p102 = scmp.eq.s32.totalorder %s38, 1
    %p103 = por %p101, %p102
    %p104 = scmp.ne.s32.totalorder %s95, %s96
    %p105 = scmp.eq.s32.totalorder %s38, 0
    %p106 = por %p104, %p105
    %p107 = scmp.ne.s32.totalorder %s95, %s96
    %p108 = scmp.eq.s32.totalorder %s39, 1
    %p109 = por %p107, %p108
    %p111 = scmp.ne.s32.totalorder %s96, %s110
    %p112 = scmp.eq.s32.totalorder %s39, 0
    %p113 = por %p111, %p112
    %s115 = sadd.s32 %s114, 1
    %p118 = scmp.eq.s32.totalorder %s33, 1
    %p119 = scmp.ne.s32.totalorder %s114, %s116
    %p120 = scmp.eq.s32.totalorder %s33, 0
    %p121 = por %p119, %p120
    %p122 = scmp.ne.s32.totalorder %s114, %s116
    %p123 = scmp.eq.s32.totalorder %s38, 1
    %p124 = por %p122, %p123
    %p125 = scmp.ne.s32.totalorder %s116, %s117
    %p126 = scmp.eq.s32.totalorder %s38, 0
    %p127 = por %p125, %p126
    %p128 = scmp.ne.s32.totalorder %s116, %s117
    %p129 = scmp.eq.s32.totalorder %s39, 1
    %p130 = por %p128, %p129
    %p132 = scmp.ne.s32.totalorder %s117, %s131
    %p133 = scmp.eq.s32.totalorder %s39, 0
    %p134 = por %p132, %p133
    %s136 = sadd.s32 %s135, 1
    %p139 = scmp.eq.s32.totalorder %s33, 1
    %p140 = scmp.ne.s32.totalorder %s135, %s137
    %p141 = scmp.eq.s32.totalorder %s33, 0
    %p142 = por %p140, %p141
    %p143 = scmp.ne.s32.totalorder %s135, %s137
    %p144 = scmp.eq.s32.totalorder %s38, 1
    %p145 = por %p143, %p144
    %p146 = scmp.ne.s32.totalorder %s137, %s138
    %p147 = scmp.eq.s32.totalorder %s38, 0
    %p148 = por %p146, %p147
    %p149 = scmp.ne.s32.totalorder %s137, %s138
    %p150 = scmp.eq.s32.totalorder %s39, 1
    %p151 = por %p149, %p150
    %p153 = scmp.ne.s32.totalorder %s138, %s152
    %p154 = scmp.eq.s32.totalorder %s39, 0
    %p155 = por %p153, %p154
    %s157 = sadd.s32 %s156, 1
    %p160 = scmp.eq.s32.totalorder %s33, 1
    %p161 = scmp.ne.s32.totalorder %s156, %s158
    %p162 = scmp.eq.s32.totalorder %s33, 0
    %p163 = por %p161, %p162
    %p164 = scmp.ne.s32.totalorder %s156, %s158
    %p165 = scmp.eq.s32.totalorder %s38, 1
    %p166 = por %p164, %p165
    %p167 = scmp.ne.s32.totalorder %s158, %s159
    %p168 = scmp.eq.s32.totalorder %s38, 0
    %p169 = por %p167, %p168
    %p170 = scmp.ne.s32.totalorder %s158, %s159
    %p171 = scmp.eq.s32.totalorder %s39, 1
    %p172 = por %p170, %p171
    %p174 = scmp.ne.s32.totalorder %s159, %s173
    %p175 = scmp.eq.s32.totalorder %s39, 0
    %p176 = por %p174, %p175
    %s178 = sadd.s32 %s177, 1
    %p181 = scmp.eq.s32.totalorder %s33, 1
    %p182 = scmp.ne.s32.totalorder %s177, %s179
    %p183 = scmp.eq.s32.totalorder %s33, 0
    %p184 = por %p182, %p183
    %p185 = scmp.ne.s32.totalorder %s177, %s179
    %p186 = scmp.eq.s32.totalorder %s38, 1
    %p187 = por %p185, %p186
    %p188 = scmp.ne.s32.totalorder %s179, %s180
    %p189 = scmp.eq.s32.totalorder %s38, 0
    %p190 = por %p188, %p189
    %p191 = scmp.ne.s32.totalorder %s179, %s180
    %p192 = scmp.eq.s32.totalorder %s39, 1
    %p193 = por %p191, %p192
    %p195 = scmp.ne.s32.totalorder %s180, %s194
    %p196 = scmp.eq.s32.totalorder %s39, 0
    %p197 = por %p195, %p196
    %s199 = sadd.s32 %s198, 1
    %p202 = scmp.eq.s32.totalorder %s33, 1
    %p203 = scmp.ne.s32.totalorder %s198, %s200
    %p204 = scmp.eq.s32.totalorder %s33, 0
    %p205 = por %p203, %p204
    %p206 = scmp.ne.s32.totalorder %s198, %s200
    %p207 = scmp.eq.s32.totalorder %s38, 1
    %p208 = por %p206, %p207
    %p209 = scmp.ne.s32.totalorder %s200, %s201
    %p210 = scmp.eq.s32.totalorder %s38, 0
    %p211 = por %p209, %p210
    %p212 = scmp.ne.s32.totalorder %s200, %s201
    %p213 = scmp.eq.s32.totalorder %s39, 1
    %p214 = por %p212, %p213
    %p216 = scmp.ne.s32.totalorder %s201, %s215
    %p217 = scmp.eq.s32.totalorder %s39, 0
    %p218 = por %p216, %p217
    %s220 = sadd.s32 %s219, 1
    %p223 = scmp.eq.s32.totalorder %s33, 1
    %p224 = scmp.ne.s32.totalorder %s219, %s221
    %p225 = scmp.eq.s32.totalorder %s33, 0
    %p226 = por %p224, %p225
    %p227 = scmp.ne.s32.totalorder %s219, %s221
    %p228 = scmp.eq.s32.totalorder %s38, 1
    %p229 = por %p227, %p228
    %p230 = scmp.ne.s32.totalorder %s221, %s222
    %p231 = scmp.eq.s32.totalorder %s38, 0
    %p232 = por %p230, %p231
    %p233 = scmp.ne.s32.totalorder %s221, %s222
    %p234 = scmp.eq.s32.totalorder %s39, 1
    %p235 = por %p233, %p234
    %p237 = scmp.ne.s32.totalorder %s222, %s236
    %p238 = scmp.eq.s32.totalorder %s39, 0
    %p239 = por %p237, %p238
    %s241 = sadd.s32 %s240, 1
    %p244 = scmp.eq.s32.totalorder %s33, 1
    %p245 = scmp.ne.s32.totalorder %s240, %s242
    %p246 = scmp.eq.s32.totalorder %s33, 0
    %p247 = por %p245, %p246
    %p248 = scmp.ne.s32.totalorder %s240, %s242
    %p249 = scmp.eq.s32.totalorder %s38, 1
    %p250 = por %p248, %p249
    %p251 = scmp.ne.s32.totalorder %s242, %s243
    %p252 = scmp.eq.s32.totalorder %s38, 0
    %p253 = por %p251, %p252
    %p254 = scmp.ne.s32.totalorder %s242, %s243
    %p255 = scmp.eq.s32.totalorder %s39, 1
    %p256 = por %p254, %p255
    %p258 = scmp.ne.s32.totalorder %s243, %s257
    %p259 = scmp.eq.s32.totalorder %s39, 0
    %p260 = por %p258, %p259
    %s262 = sadd.s32 %s261, 1
    %p265 = scmp.eq.s32.totalorder %s33, 1
    %p266 = scmp.ne.s32.totalorder %s261, %s263
    %p267 = scmp.eq.s32.totalorder %s33, 0
    %p268 = por %p266, %p267
    %p269 = scmp.ne.s32.totalorder %s261, %s263
    %p270 = scmp.eq.s32.totalorder %s38, 1
    %p271 = por %p269, %p270
    %p272 = scmp.ne.s32.totalorder %s263, %s264
    %p273 = scmp.eq.s32.totalorder %s38, 0
    %p274 = por %p272, %p273
    %p275 = scmp.ne.s32.totalorder %s263, %s264
    %p276 = scmp.eq.s32.totalorder %s39, 1
    %p277 = por %p275, %p276
    %p279 = scmp.ne.s32.totalorder %s264, %s278
    %p280 = scmp.eq.s32.totalorder %s39, 0
    %p281 = por %p279, %p280
    %s283 = sadd.s32 %s282, 1
    %p286 = scmp.eq.s32.totalorder %s33, 1
    %p287 = scmp.ne.s32.totalorder %s282, %s284
    %p288 = scmp.eq.s32.totalorder %s33, 0
    %p289 = por %p287, %p288
    %p290 = scmp.ne.s32.totalorder %s282, %s284
    %p291 = scmp.eq.s32.totalorder %s38, 1
    %p292 = por %p290, %p291
    %p293 = scmp.ne.s32.totalorder %s284, %s285
    %p294 = scmp.eq.s32.totalorder %s38, 0
    %p295 = por %p293, %p294
    %p296 = scmp.ne.s32.totalorder %s284, %s285
    %p297 = scmp.eq.s32.totalorder %s39, 1
    %p298 = por %p296, %p297
    %p300 = scmp.ne.s32.totalorder %s285, %s299
    %p301 = scmp.eq.s32.totalorder %s39, 0
    %p302 = por %p300, %p301
    %s304 = sadd.s32 %s303, 1
    %p307 = scmp.eq.s32.totalorder %s33, 1
    %p308 = scmp.ne.s32.totalorder %s303, %s305
    %p309 = scmp.eq.s32.totalorder %s33, 0
    %p310 = por %p308, %p309
    %p311 = scmp.ne.s32.totalorder %s303, %s305
    %p312 = scmp.eq.s32.totalorder %s38, 1
    %p313 = por %p311, %p312
    %p314 = scmp.ne.s32.totalorder %s305, %s306
    %p315 = scmp.eq.s32.totalorder %s38, 0
    %p316 = por %p314, %p315
    %p317 = scmp.ne.s32.totalorder %s305, %s306
    %p318 = scmp.eq.s32.totalorder %s39, 1
    %p319 = por %p317, %p318
    %p321 = scmp.ne.s32.totalorder %s306, %s320
    %p322 = scmp.eq.s32.totalorder %s39, 0
    %p323 = por %p321, %p322
    %s325 = sadd.s32 %s324, 1
    %p328 = scmp.eq.s32.totalorder %s33, 1
    %p329 = scmp.ne.s32.totalorder %s324, %s326
    %p330 = scmp.eq.s32.totalorder %s33, 0
    %p331 = por %p329, %p330
    %p332 = scmp.ne.s32.totalorder %s324, %s326
    %p333 = scmp.eq.s32.totalorder %s38, 1
    %p334 = por %p332, %p333
    %p335 = scmp.ne.s32.totalorder %s326, %s327
    %p336 = scmp.eq.s32.totalorder %s38, 0
    %p337 = por %p335, %p336
    %p338 = scmp.ne.s32.totalorder %s326, %s327
    %p339 = scmp.eq.s32.totalorder %s39, 1
    %p340 = por %p338, %p339
    %p342 = scmp.ne.s32.totalorder %s327, %s341
    %p343 = scmp.eq.s32.totalorder %s39, 0
    %p344 = por %p342, %p343
    %s346 = sadd.s32 %s345, 1
    %p349 = scmp.eq.s32.totalorder %s33, 1
    %p350 = scmp.ne.s32.totalorder %s345, %s347
    %p351 = scmp.eq.s32.totalorder %s33, 0
    %p352 = por %p350, %p351
    %p353 = scmp.ne.s32.totalorder %s345, %s347
    %p354 = scmp.eq.s32.totalorder %s38, 1
    %p355 = por %p353, %p354
    %p356 = scmp.ne.s32.totalorder %s347, %s348
    %p357 = scmp.eq.s32.totalorder %s38, 0
    %p358 = por %p356, %p357
    %p359 = scmp.ne.s32.totalorder %s347, %s348
    %p360 = scmp.eq.s32.totalorder %s39, 1
    %p361 = por %p359, %p360
    %p363 = scmp.ne.s32.totalorder %s348, %s362
    %p364 = scmp.eq.s32.totalorder %s39, 0
    %p365 = por %p363, %p364
    %s367 = sadd.s32 %s366, 1
    %p370 = scmp.eq.s32.totalorder %s33, 1
    %p371 = scmp.ne.s32.totalorder %s366, %s368
    %p372 = scmp.eq.s32.totalorder %s33, 0
    %p373 = por %p371, %p372
    %p374 = scmp.ne.s32.totalorder %s366, %s368
    %p375 = scmp.eq.s32.totalorder %s38, 1
    %p376 = por %p374, %p375
    %p377 = scmp.ne.s32.totalorder %s368, %s369
    %p378 = scmp.eq.s32.totalorder %s38, 0
    %p379 = por %p377, %p378
    %p380 = scmp.ne.s32.totalorder %s368, %s369
    %p381 = scmp.eq.s32.totalorder %s39, 1
    %p382 = por %p380, %p381
    %p384 = scmp.ne.s32.totalorder %s369, %s383
    %p385 = scmp.eq.s32.totalorder %s39, 0
    %p386 = por %p384, %p385
    %s388 = sadd.s32 %s387, 1
    %p391 = scmp.eq.s32.totalorder %s33, 1
    %p392 = scmp.ne.s32.totalorder %s387, %s389
    %p393 = scmp.eq.s32.totalorder %s33, 0
    %p394 = por %p392, %p393
    %p395 = scmp.ne.s32.totalorder %s387, %s389
    %p396 = scmp.eq.s32.totalorder %s38, 1
    %p397 = por %p395, %p396
    %p398 = scmp.ne.s32.totalorder %s389, %s390
    %p399 = scmp.eq.s32.totalorder %s38, 0
    %p400 = por %p398, %p399
    %p401 = scmp.ne.s32.totalorder %s389, %s390
    %p402 = scmp.eq.s32.totalorder %s39, 1
    %p403 = por %p401, %p402
    %p405 = scmp.ne.s32.totalorder %s390, %s404
    %p406 = scmp.eq.s32.totalorder %s39, 0
    %p407 = por %p405, %p406
    %s409 = sadd.s32 %s408, 1
    %p412 = scmp.eq.s32.totalorder %s33, 1
    %p413 = scmp.ne.s32.totalorder %s408, %s410
    %p414 = scmp.eq.s32.totalorder %s33, 0
    %p415 = por %p413, %p414
    %p416 = scmp.ne.s32.totalorder %s408, %s410
    %p417 = scmp.eq.s32.totalorder %s38, 1
    %p418 = por %p416, %p417
    %p419 = scmp.ne.s32.totalorder %s410, %s411
    %p420 = scmp.eq.s32.totalorder %s38, 0
    %p421 = por %p419, %p420
    %p422 = scmp.ne.s32.totalorder %s410, %s411
    %p423 = scmp.eq.s32.totalorder %s39, 1
    %p424 = por %p422, %p423
    %p426 = scmp.ne.s32.totalorder %s411, %s425
    %p427 = scmp.eq.s32.totalorder %s39, 0
    %p428 = por %p426, %p427
    %s430 = sadd.s32 %s429, 1
    %p433 = scmp.eq.s32.totalorder %s33, 1
    %p434 = scmp.ne.s32.totalorder %s429, %s431
    %p435 = scmp.eq.s32.totalorder %s33, 0
    %p436 = por %p434, %p435
    %p437 = scmp.ne.s32.totalorder %s429, %s431
    %p438 = scmp.eq.s32.totalorder %s38, 1
    %p439 = por %p437, %p438
    %p440 = scmp.ne.s32.totalorder %s431, %s432
    %p441 = scmp.eq.s32.totalorder %s38, 0
    %p442 = por %p440, %p441
    %p443 = scmp.ne.s32.totalorder %s431, %s432
    %p444 = scmp.eq.s32.totalorder %s39, 1
    %p445 = por %p443, %p444
    %p447 = scmp.ne.s32.totalorder %s432, %s446
    %p448 = scmp.eq.s32.totalorder %s39, 0
    %p449 = por %p447, %p448
    %s451 = sadd.s32 %s450, 1
    %p454 = scmp.eq.s32.totalorder %s33, 1
    %p455 = scmp.ne.s32.totalorder %s450, %s452
    %p456 = scmp.eq.s32.totalorder %s33, 0
    %p457 = por %p455, %p456
    %p458 = scmp.ne.s32.totalorder %s450, %s452
    %p459 = scmp.eq.s32.totalorder %s38, 1
    %p460 = por %p458, %p459
    %p461 = scmp.ne.s32.totalorder %s452, %s453
    %p462 = scmp.eq.s32.totalorder %s38, 0
    %p463 = por %p461, %p462
    %p464 = scmp.ne.s32.totalorder %s452, %s453
    %p465 = scmp.eq.s32.totalorder %s39, 1
    %p466 = por %p464, %p465
    %p468 = scmp.ne.s32.totalorder %s453, %s467
    %p469 = scmp.eq.s32.totalorder %s39, 0
    %p470 = por %p468, %p469
    %s472 = sadd.s32 %s471, 1
    %p475 = scmp.eq.s32.totalorder %s33, 1
    %p476 = scmp.ne.s32.totalorder %s471, %s473
    %p477 = scmp.eq.s32.totalorder %s33, 0
    %p478 = por %p476, %p477
    %p479 = scmp.ne.s32.totalorder %s471, %s473
    %p480 = scmp.eq.s32.totalorder %s38, 1
    %p481 = por %p479, %p480
    %p482 = scmp.ne.s32.totalorder %s473, %s474
    %p483 = scmp.eq.s32.totalorder %s38, 0
    %p484 = por %p482, %p483
    %p485 = scmp.ne.s32.totalorder %s473, %s474
    %p486 = scmp.eq.s32.totalorder %s39, 1
    %p487 = por %p485, %p486
    %p489 = scmp.ne.s32.totalorder %s474, %s488
    %p490 = scmp.eq.s32.totalorder %s39, 0
    %p491 = por %p489, %p490
    %s492 = ssub.s32 %s33, %s40
    %p493 = scmp.eq.s32.totalorder %s492, 0
    %s495 = sadd.s32 %s494, 1
    %s496 = scalar_select %p493, %s494, %s495
    %p499 = pneg %p493
    %p500 = scmp.eq.s32.totalorder %s33, 1
    %p501 = por %p499, %p500
    %p502 = scmp.ne.s32.totalorder %s494, %s497
    %p503 = scmp.eq.s32.totalorder %s33, 0
    %p504 = por %p502, %p503
    %p505 = scmp.ne.s32.totalorder %s494, %s497
    %p506 = scmp.eq.s32.totalorder %s38, 1
    %p507 = por %p505, %p506
    %p508 = scmp.ne.s32.totalorder %s497, %s498
    %p509 = scmp.eq.s32.totalorder %s38, 0
    %p510 = por %p508, %p509
    %p511 = scmp.ne.s32.totalorder %s497, %s498
    %p512 = scmp.eq.s32.totalorder %s39, 1
    %p513 = por %p511, %p512
    %p515 = scmp.ne.s32.totalorder %s498, %s514
    %p516 = scmp.eq.s32.totalorder %s39, 0
    %p517 = por %p515, %p516
    %s518 = ssub.s32 %s33, %s40
    %p519 = scmp.eq.s32.totalorder %s518, 0
    %s521 = sadd.s32 %s520, 1
    %s522 = scalar_select %p519, %s520, %s521
    %p525 = pneg %p519
    %p526 = scmp.eq.s32.totalorder %s33, 1
    %p527 = por %p525, %p526
    %p528 = scmp.ne.s32.totalorder %s520, %s523
    %p529 = scmp.eq.s32.totalorder %s33, 0
    %p530 = por %p528, %p529
    %p531 = scmp.ne.s32.totalorder %s520, %s523
    %p532 = scmp.eq.s32.totalorder %s38, 1
    %p533 = por %p531, %p532
    %p534 = scmp.ne.s32.totalorder %s523, %s524
    %p535 = scmp.eq.s32.totalorder %s38, 0
    %p536 = por %p534, %p535
    %p537 = scmp.ne.s32.totalorder %s523, %s524
    %p538 = scmp.eq.s32.totalorder %s39, 1
    %p539 = por %p537, %p538
    %p541 = scmp.ne.s32.totalorder %s524, %s540
    %p542 = scmp.eq.s32.totalorder %s39, 0
    %p543 = por %p541, %p542
    %p544 = scmp.le.s32.totalorder 1, %s33
    %p545 = scmp.lt.s32.totalorder %s33, 3
    %p546 = pnand %p544, %p545
    %p547 = pneg %p546
    // Predicated region
    $region9: #{critic_forward.1} parent=5 // pred_check
      _
    $region10: #{critic_forward.1} parent=5 // pred_check_branch
      %549 = sbr.rel (%p546) target = $region12
    $region11: #{critic_forward.1} parent=5 // pred_region
      %s550 = ssub.s32 %s33, 1
      // Predicated region
      $region13: #{critic_forward.1} parent=11 // pred_check
        %p551 = pneg %p106
      $region14: #{critic_forward.1} parent=11 // pred_check_branch
        %553 = sbr.rel (%p551) target = $region16
      $region15: #{critic_forward.1} parent=11 // pred_region
        _
      $region16: #{critic_forward.1} parent=11 // pred_fallthru
        _
      // Predicated region
      $region17: #{critic_forward.1} parent=11 // pred_check
        %p554 = pneg %p127
      $region18: #{critic_forward.1} parent=11 // pred_check_branch
        %556 = sbr.rel (%p554) target = $region20
      $region19: #{critic_forward.1} parent=11 // pred_region
        _
      $region20: #{critic_forward.1} parent=11 // pred_fallthru
        _
      // Predicated region
      $region21: #{critic_forward.1} parent=11 // pred_check
        %p557 = pneg %p148
      $region22: #{critic_forward.1} parent=11 // pred_check_branch
        %559 = sbr.rel (%p557) target = $region24
      $region23: #{critic_forward.1} parent=11 // pred_region
        _
      $region24: #{critic_forward.1} parent=11 // pred_fallthru
        _
      // Predicated region
      $region25: #{critic_forward.1} parent=11 // pred_check
        %p560 = pneg %p169
      $region26: #{critic_forward.1} parent=11 // pred_check_branch
        %562 = sbr.rel (%p560) target = $region28
      $region27: #{critic_forward.1} parent=11 // pred_region
        _
      $region28: #{critic_forward.1} parent=11 // pred_fallthru
        _
      // Predicated region
      $region29: #{critic_forward.1} parent=11 // pred_check
        %p563 = pneg %p190
      $region30: #{critic_forward.1} parent=11 // pred_check_branch
        %565 = sbr.rel (%p563) target = $region32
      $region31: #{critic_forward.1} parent=11 // pred_region
        _
      $region32: #{critic_forward.1} parent=11 // pred_fallthru
        _
      // Predicated region
      $region33: #{critic_forward.1} parent=11 // pred_check
        %p566 = pneg %p211
      $region34: #{critic_forward.1} parent=11 // pred_check_branch
        %568 = sbr.rel (%p566) target = $region36
      $region35: #{critic_forward.1} parent=11 // pred_region
        _
      $region36: #{critic_forward.1} parent=11 // pred_fallthru
        _
      // Predicated region
      $region37: #{critic_forward.1} parent=11 // pred_check
        %p569 = pneg %p232
      $region38: #{critic_forward.1} parent=11 // pred_check_branch
        %571 = sbr.rel (%p569) target = $region40
      $region39: #{critic_forward.1} parent=11 // pred_region
        _
      $region40: #{critic_forward.1} parent=11 // pred_fallthru
        _
      // Predicated region
      $region41: #{critic_forward.1} parent=11 // pred_check
        %p572 = pneg %p253
      $region42: #{critic_forward.1} parent=11 // pred_check_branch
        %574 = sbr.rel (%p572) target = $region44
      $region43: #{critic_forward.1} parent=11 // pred_region
        _
      $region44: #{critic_forward.1} parent=11 // pred_fallthru
        _
      // Predicated region
      $region45: #{critic_forward.1} parent=11 // pred_check
        %p575 = pneg %p274
      $region46: #{critic_forward.1} parent=11 // pred_check_branch
        %577 = sbr.rel (%p575) target = $region48
      $region47: #{critic_forward.1} parent=11 // pred_region
        _
      $region48: #{critic_forward.1} parent=11 // pred_fallthru
        _
      // Predicated region
      $region49: #{critic_forward.1} parent=11 // pred_check
        %p578 = pneg %p295
      $region50: #{critic_forward.1} parent=11 // pred_check_branch
        %580 = sbr.rel (%p578) target = $region52
      $region51: #{critic_forward.1} parent=11 // pred_region
        _
      $region52: #{critic_forward.1} parent=11 // pred_fallthru
        _
      // Predicated region
      $region53: #{critic_forward.1} parent=11 // pred_check
        %p581 = pneg %p316
      $region54: #{critic_forward.1} parent=11 // pred_check_branch
        %583 = sbr.rel (%p581) target = $region56
      $region55: #{critic_forward.1} parent=11 // pred_region
        _
      $region56: #{critic_forward.1} parent=11 // pred_fallthru
        _
      // Predicated region
      $region57: #{critic_forward.1} parent=11 // pred_check
        %p584 = pneg %p337
      $region58: #{critic_forward.1} parent=11 // pred_check_branch
        %586 = sbr.rel (%p584) target = $region60
      $region59: #{critic_forward.1} parent=11 // pred_region
        _
      $region60: #{critic_forward.1} parent=11 // pred_fallthru
        _
      // Predicated region
      $region61: #{critic_forward.1} parent=11 // pred_check
        %p587 = pneg %p358
      $region62: #{critic_forward.1} parent=11 // pred_check_branch
        %589 = sbr.rel (%p587) target = $region64
      $region63: #{critic_forward.1} parent=11 // pred_region
        _
      $region64: #{critic_forward.1} parent=11 // pred_fallthru
        _
      // Predicated region
      $region65: #{critic_forward.1} parent=11 // pred_check
        %p590 = pneg %p379
      $region66: #{critic_forward.1} parent=11 // pred_check_branch
        %592 = sbr.rel (%p590) target = $region68
      $region67: #{critic_forward.1} parent=11 // pred_region
        _
      $region68: #{critic_forward.1} parent=11 // pred_fallthru
        _
      // Predicated region
      $region69: #{critic_forward.1} parent=11 // pred_check
        %p593 = pneg %p400
      $region70: #{critic_forward.1} parent=11 // pred_check_branch
        %595 = sbr.rel (%p593) target = $region72
      $region71: #{critic_forward.1} parent=11 // pred_region
        _
      $region72: #{critic_forward.1} parent=11 // pred_fallthru
        _
      // Predicated region
      $region73: #{critic_forward.1} parent=11 // pred_check
        %p596 = pneg %p421
      $region74: #{critic_forward.1} parent=11 // pred_check_branch
        %598 = sbr.rel (%p596) target = $region76
      $region75: #{critic_forward.1} parent=11 // pred_region
        _
      $region76: #{critic_forward.1} parent=11 // pred_fallthru
        _
      // Predicated region
      $region77: #{critic_forward.1} parent=11 // pred_check
        %p599 = pneg %p442
      $region78: #{critic_forward.1} parent=11 // pred_check_branch
        %601 = sbr.rel (%p599) target = $region80
      $region79: #{critic_forward.1} parent=11 // pred_region
        _
      $region80: #{critic_forward.1} parent=11 // pred_fallthru
        _
      // Predicated region
      $region81: #{critic_forward.1} parent=11 // pred_check
        %p602 = pneg %p463
      $region82: #{critic_forward.1} parent=11 // pred_check_branch
        %604 = sbr.rel (%p602) target = $region84
      $region83: #{critic_forward.1} parent=11 // pred_region
        _
      $region84: #{critic_forward.1} parent=11 // pred_fallthru
        _
      // Predicated region
      $region85: #{critic_forward.1} parent=11 // pred_check
        %p605 = pneg %p484
      $region86: #{critic_forward.1} parent=11 // pred_check_branch
        %607 = sbr.rel (%p605) target = $region88
      $region87: #{critic_forward.1} parent=11 // pred_region
        _
      $region88: #{critic_forward.1} parent=11 // pred_fallthru
        _
    $region12: #{critic_forward.1} parent=5 // pred_fallthru
      _
    %p608 = scmp.lt.s32.totalorder %s33, 2
    // Predicated region
    $region89: #{critic_forward.1} parent=5 // pred_check
      %p609 = pneg %p608
    $region90: #{critic_forward.1} parent=5 // pred_check_branch
      %611 = sbr.rel (%p609) target = $region92
    $region91: #{critic_forward.1} parent=5 // pred_region
      // Predicated region
      $region93: #{critic_forward.1} parent=91 // pred_check
        %p612 = pneg %p53
      $region94: #{critic_forward.1} parent=91 // pred_check_branch
        %614 = sbr.rel (%p612) target = $region96
      $region95: #{critic_forward.1} parent=91 // pred_region
        %s615 = smul.u32 4, %s33
        %p616 = scmp.lt.s32.totalorder %s615, 7
        %s617 = scalar_select %p616, %s615, 7
        %s618 = smul.addr %s617, 8
        %s619 = smul.addr %s618, 8
        %s620 = scalar_lea.vmem %s0, %s619
        %s621 = smul.u32 4, %s33
      $region96: #{critic_forward.1} parent=91 // pred_fallthru
        _
      // Predicated region
      $region97: #{critic_forward.1} parent=91 // pred_check
        %p622 = pneg %p79
      $region98: #{critic_forward.1} parent=91 // pred_check_branch
        %624 = sbr.rel (%p622) target = $region100
      $region99: #{critic_forward.1} parent=91 // pred_region
        %p625 = scmp.lt.s32.totalorder %s33, 1
        %s626 = scalar_select %p625, %s33, 1
        %s627 = scalar_lea.vmem %s1, %s626
      $region100: #{critic_forward.1} parent=91 // pred_fallthru
        _
    $region92: #{critic_forward.1} parent=5 // pred_fallthru
      _
    %p628 = scmp.le.s32.totalorder 1, %s33
    %p629 = scmp.lt.s32.totalorder %s33, 3
    %p630 = pnand %p628, %p629
    %p631 = pneg %p630
    // Predicated region
    $region101: #{critic_forward.1} parent=5 // pred_check
      _
    $region102: #{critic_forward.1} parent=5 // pred_check_branch
      %633 = sbr.rel (%p630) target = $region104
    $region103: #{critic_forward.1} parent=5 // pred_region
      %s634 = ssub.s32 %s33, 1
      %s635 = smul.u32 4, %s38
      %p636 = scmp.lt.s32.totalorder %s635, 7
      %s637 = scalar_select %p636, %s635, 7
      %s638 = smul.addr %s637, 8
      %s639 = smul.addr %s638, 8
      %s640 = scalar_lea.vmem %s0, %s639
      %p641 = pneg %p59
      %p642 = pneg %p56
      %p643 = scmp.lt.s32.totalorder %s38, 1
      %s644 = scalar_select %p643, %s38, 1
      %s645 = scalar_lea.vmem %s1, %s644
      %p646 = pneg %p85
      %p647 = pneg %p82
      %p648 = pneg %p106
      %p649 = pneg %p103
      %p650 = pneg %p127
      %p651 = pneg %p124
      %p652 = pneg %p148
      %p653 = pneg %p145
      %p654 = pneg %p169
      %p655 = pneg %p166
      %p656 = pneg %p190
      %p657 = pneg %p187
      %p658 = pneg %p211
      %p659 = pneg %p208
      %p660 = pneg %p232
      %p661 = pneg %p229
      %p662 = pneg %p253
      %p663 = pneg %p250
      %p664 = pneg %p274
      %p665 = pneg %p271
      %p666 = pneg %p295
      %p667 = pneg %p292
      %p668 = pneg %p316
      %p669 = pneg %p313
      %p670 = pneg %p337
      %p671 = pneg %p334
      %p672 = pneg %p358
      %p673 = pneg %p355
      %p674 = pneg %p379
      %p675 = pneg %p376
      %p676 = pneg %p400
      %p677 = pneg %p397
      %p678 = pneg %p421
      %p679 = pneg %p418
      %p680 = pneg %p442
      %p681 = pneg %p439
      %p682 = pneg %p463
      %p683 = pneg %p460
      %p684 = pneg %p484
      %p685 = pneg %p481
      %p686 = pneg %p510
      %p687 = pneg %p507
      %p688 = scmp.lt.s32.totalorder %s38, 1
      %s689 = scalar_select %p688, %s38, 1
      %s690 = scalar_lea.vmem %s21, %s689
      %p691 = pneg %p536
      %p692 = pneg %p533
      %p693 = scmp.lt.s32.totalorder %s38, 1
      %s694 = scalar_select %p693, %s38, 1
      %s695 = scalar_lea.vmem %s22, %s694
      %s696 = smul.u32 4, %s38
      %p697 = scmp.lt.s32.totalorder %s696, 7
      %s698 = scalar_select %p697, %s696, 7
      %s699 = smul.addr %s698, 8
      %s700 = smul.addr %s699, 8
      %s701 = scalar_lea.vmem %s0, %s700
      %s702 = smul.u32 4, %s38
      %p703 = scmp.lt.s32.totalorder %s38, 1
      %s704 = scalar_select %p703, %s38, 1
      %s705 = scalar_lea.vmem %s1, %s704
      %p706 = scmp.lt.s32.totalorder %s38, 1
      %s707 = scalar_select %p706, %s38, 1
      %s708 = scalar_lea.vmem %s21, %s707
      %p709 = scmp.lt.s32.totalorder %s38, 1
      %s710 = scalar_select %p709, %s38, 1
      %s711 = scalar_lea.vmem %s22, %s710
      %v712 = vld [vmem:[%s4] sm:$0x1]
      %v714 = vlaneseq
      %v715 = vshrl.u32 %v714, 7
      %v716 = vsub.s32 0, %v715
      %v717 = vrot.slane %v712, %v716
      %v719 = vadd.f32 %v717, 0.0
      %v720 = vld [vmem:[%s701] sm:$0x7f]
      %v721 = vld [vmem:[%s701 + $0x8] sm:$0x7f]
      %v722 = vld [vmem:[%s701 + $0x10] sm:$0x7f]
      %v723 = vld [vmem:[%s701 + $0x18] sm:$0x7f]
      %v724 = vld [vmem:[%s701 + $0x20] sm:$0x7f]
      %v725 = vld [vmem:[%s701 + $0x28] sm:$0x7f]
      %v726 = vld [vmem:[%s701 + $0x30] sm:$0x7f]
      %v727 = vld [vmem:[%s2] sm:$0x1]
      %729 = vset.pattern.permute.xlu0 0
      %730 = vperm.xlu0 %729, %v720
      %v731 = vpop.permute.xlu0 %730
      %734 = vset.pattern.permute.xlu0 0
      %735 = vperm.xlu0 %734, %v721
      %v736 = vpop.permute.xlu0 %735
      %739 = vset.pattern.permute.xlu0 0
      %740 = vperm.xlu0 %739, %v722
      %v741 = vpop.permute.xlu0 %740
      %744 = vset.pattern.permute.xlu0 0
      %745 = vperm.xlu0 %744, %v723
      %v746 = vpop.permute.xlu0 %745
      %749 = vset.pattern.permute.xlu0 0
      %750 = vperm.xlu0 %749, %v724
      %v751 = vpop.permute.xlu0 %750
      %754 = vset.pattern.permute.xlu0 0
      %755 = vperm.xlu0 %754, %v725
      %v756 = vpop.permute.xlu0 %755
      %759 = vset.pattern.permute.xlu0 0
      %760 = vperm.xlu0 %759, %v726
      %v761 = vpop.permute.xlu0 %760
      %v763 = vlaneseq
      %v764 = vshrl.u32 %v763, 7
      %v765 = vsub.s32 0, %v764
      %v766 = vrot.slane %v727, %v765
      %v767 = vmul.f32 %v731, %v766
      %v768 = vmul.f32 %v736, %v766
      %v769 = vmul.f32 %v741, %v766
      %v770 = vmul.f32 %v746, %v766
      %v771 = vmul.f32 %v751, %v766
      %v772 = vmul.f32 %v756, %v766
      %v773 = vmul.f32 %v761, %v766
      %v774 = vadd.f32 %v719, %v767
      %v775 = vadd.f32 %v719, %v768
      %v776 = vadd.f32 %v719, %v769
      %v777 = vadd.f32 %v719, %v770
      %v778 = vadd.f32 %v719, %v771
      %v779 = vadd.f32 %v719, %v772
      %v780 = vadd.f32 %v719, %v773
      %v781 = vld [vmem:[%s2 + $0x1] sm:$0x1]
      %782 = vset.pattern.permute.xlu0 1
      %783 = vperm.xlu0 %782, %v720
      %v784 = vpop.permute.xlu0 %783
      %786 = vset.pattern.permute.xlu0 1
      %787 = vperm.xlu0 %786, %v721
      %v788 = vpop.permute.xlu0 %787
      %790 = vset.pattern.permute.xlu0 1
      %791 = vperm.xlu0 %790, %v722
      %v792 = vpop.permute.xlu0 %791
      %794 = vset.pattern.permute.xlu0 1
      %795 = vperm.xlu0 %794, %v723
      %v796 = vpop.permute.xlu0 %795
      %798 = vset.pattern.permute.xlu0 1
      %799 = vperm.xlu0 %798, %v724
      %v800 = vpop.permute.xlu0 %799
      %802 = vset.pattern.permute.xlu0 1
      %803 = vperm.xlu0 %802, %v725
      %v804 = vpop.permute.xlu0 %803
      %806 = vset.pattern.permute.xlu0 1
      %807 = vperm.xlu0 %806, %v726
      %v808 = vpop.permute.xlu0 %807
      %v810 = vlaneseq
      %v811 = vshrl.u32 %v810, 7
      %v812 = vsub.s32 0, %v811
      %v813 = vrot.slane %v781, %v812
      %v814 = vmul.f32 %v784, %v813
      %v815 = vmul.f32 %v788, %v813
      %v816 = vmul.f32 %v792, %v813
      %v817 = vmul.f32 %v796, %v813
      %v818 = vmul.f32 %v800, %v813
      %v819 = vmul.f32 %v804, %v813
      %v820 = vmul.f32 %v808, %v813
      %v821 = vadd.f32 %v774, %v814
      %v822 = vadd.f32 %v775, %v815
      %v823 = vadd.f32 %v776, %v816
      %v824 = vadd.f32 %v777, %v817
      %v825 = vadd.f32 %v778, %v818
      %v826 = vadd.f32 %v779, %v819
      %v827 = vadd.f32 %v780, %v820
      %v828 = vld [vmem:[%s2 + $0x2] sm:$0x1]
      %829 = vset.pattern.permute.xlu0 2
      %830 = vperm.xlu0 %829, %v720
      %v831 = vpop.permute.xlu0 %830
      %833 = vset.pattern.permute.xlu0 2
      %834 = vperm.xlu0 %833, %v721
      %v835 = vpop.permute.xlu0 %834
      %837 = vset.pattern.permute.xlu0 2
      %838 = vperm.xlu0 %837, %v722
      %v839 = vpop.permute.xlu0 %838
      %841 = vset.pattern.permute.xlu0 2
      %842 = vperm.xlu0 %841, %v723
      %v843 = vpop.permute.xlu0 %842
      %845 = vset.pattern.permute.xlu0 2
      %846 = vperm.xlu0 %845, %v724
      %v847 = vpop.permute.xlu0 %846
      %849 = vset.pattern.permute.xlu0 2
      %850 = vperm.xlu0 %849, %v725
      %v851 = vpop.permute.xlu0 %850
      %853 = vset.pattern.permute.xlu0 2
      %854 = vperm.xlu0 %853, %v726
      %v855 = vpop.permute.xlu0 %854
      %v857 = vlaneseq
      %v858 = vshrl.u32 %v857, 7
      %v859 = vsub.s32 0, %v858
      %v860 = vrot.slane %v828, %v859
      %v861 = vmul.f32 %v831, %v860
      %v862 = vmul.f32 %v835, %v860
      %v863 = vmul.f32 %v839, %v860
      %v864 = vmul.f32 %v843, %v860
      %v865 = vmul.f32 %v847, %v860
      %v866 = vmul.f32 %v851, %v860
      %v867 = vmul.f32 %v855, %v860
      %v868 = vadd.f32 %v821, %v861
      %v869 = vadd.f32 %v822, %v862
      %v870 = vadd.f32 %v823, %v863
      %v871 = vadd.f32 %v824, %v864
      %v872 = vadd.f32 %v825, %v865
      %v873 = vadd.f32 %v826, %v866
      %v874 = vadd.f32 %v827, %v867
      %v875 = vld [vmem:[%s2 + $0x3] sm:$0x1]
      %876 = vset.pattern.permute.xlu0 3
      %877 = vperm.xlu0 %876, %v720
      %v878 = vpop.permute.xlu0 %877
      %880 = vset.pattern.permute.xlu0 3
      %881 = vperm.xlu0 %880, %v721
      %v882 = vpop.permute.xlu0 %881
      %884 = vset.pattern.permute.xlu0 3
      %885 = vperm.xlu0 %884, %v722
      %v886 = vpop.permute.xlu0 %885
      %888 = vset.pattern.permute.xlu0 3
      %889 = vperm.xlu0 %888, %v723
      %v890 = vpop.permute.xlu0 %889
      %892 = vset.pattern.permute.xlu0 3
      %893 = vperm.xlu0 %892, %v724
      %v894 = vpop.permute.xlu0 %893
      %896 = vset.pattern.permute.xlu0 3
      %897 = vperm.xlu0 %896, %v725
      %v898 = vpop.permute.xlu0 %897
      %900 = vset.pattern.permute.xlu0 3
      %901 = vperm.xlu0 %900, %v726
      %v902 = vpop.permute.xlu0 %901
      %v904 = vlaneseq
      %v905 = vshrl.u32 %v904, 7
      %v906 = vsub.s32 0, %v905
      %v907 = vrot.slane %v875, %v906
      %v908 = vmul.f32 %v878, %v907
      %v909 = vmul.f32 %v882, %v907
      %v910 = vmul.f32 %v886, %v907
      %v911 = vmul.f32 %v890, %v907
      %v912 = vmul.f32 %v894, %v907
      %v913 = vmul.f32 %v898, %v907
      %v914 = vmul.f32 %v902, %v907
      %v915 = vadd.f32 %v868, %v908
      %v916 = vadd.f32 %v869, %v909
      %v917 = vadd.f32 %v870, %v910
      %v918 = vadd.f32 %v871, %v911
      %v919 = vadd.f32 %v872, %v912
      %v920 = vadd.f32 %v873, %v913
      %v921 = vadd.f32 %v874, %v914
      %s922 = scalar_lea.vmem %s701, 64
      %v923 = vld [vmem:[%s922] sm:$0x7f]
      %v924 = vld [vmem:[%s922 + $0x8] sm:$0x7f]
      %v925 = vld [vmem:[%s922 + $0x10] sm:$0x7f]
      %v926 = vld [vmem:[%s922 + $0x18] sm:$0x7f]
      %v927 = vld [vmem:[%s922 + $0x20] sm:$0x7f]
      %v928 = vld [vmem:[%s922 + $0x28] sm:$0x7f]
      %v929 = vld [vmem:[%s922 + $0x30] sm:$0x7f]
      %v930 = vld [vmem:[%s2 + $0x4] sm:$0x1]
      %932 = vset.pattern.permute.xlu0 0
      %933 = vperm.xlu0 %932, %v923
      %v934 = vpop.permute.xlu0 %933
      %937 = vset.pattern.permute.xlu0 0
      %938 = vperm.xlu0 %937, %v924
      %v939 = vpop.permute.xlu0 %938
      %942 = vset.pattern.permute.xlu0 0
      %943 = vperm.xlu0 %942, %v925
      %v944 = vpop.permute.xlu0 %943
      %947 = vset.pattern.permute.xlu0 0
      %948 = vperm.xlu0 %947, %v926
      %v949 = vpop.permute.xlu0 %948
      %952 = vset.pattern.permute.xlu0 0
      %953 = vperm.xlu0 %952, %v927
      %v954 = vpop.permute.xlu0 %953
      %957 = vset.pattern.permute.xlu0 0
      %958 = vperm.xlu0 %957, %v928
      %v959 = vpop.permute.xlu0 %958
      %962 = vset.pattern.permute.xlu0 0
      %963 = vperm.xlu0 %962, %v929
      %v964 = vpop.permute.xlu0 %963
      %v966 = vlaneseq
      %v967 = vshrl.u32 %v966, 7
      %v968 = vsub.s32 0, %v967
      %v969 = vrot.slane %v930, %v968
      %v970 = vmul.f32 %v934, %v969
      %v971 = vmul.f32 %v939, %v969
      %v972 = vmul.f32 %v944, %v969
      %v973 = vmul.f32 %v949, %v969
      %v974 = vmul.f32 %v954, %v969
      %v975 = vmul.f32 %v959, %v969
      %v976 = vmul.f32 %v964, %v969
      %v977 = vadd.f32 %v915, %v970
      %v978 = vadd.f32 %v916, %v971
      %v979 = vadd.f32 %v917, %v972
      %v980 = vadd.f32 %v918, %v973
      %v981 = vadd.f32 %v919, %v974
      %v982 = vadd.f32 %v920, %v975
      %v983 = vadd.f32 %v921, %v976
      %v984 = vld [vmem:[%s2 + $0x5] sm:$0x1]
      %985 = vset.pattern.permute.xlu0 1
      %986 = vperm.xlu0 %985, %v923
      %v987 = vpop.permute.xlu0 %986
      %989 = vset.pattern.permute.xlu0 1
      %990 = vperm.xlu0 %989, %v924
      %v991 = vpop.permute.xlu0 %990
      %993 = vset.pattern.permute.xlu0 1
      %994 = vperm.xlu0 %993, %v925
      %v995 = vpop.permute.xlu0 %994
      %997 = vset.pattern.permute.xlu0 1
      %998 = vperm.xlu0 %997, %v926
      %v999 = vpop.permute.xlu0 %998
      %1001 = vset.pattern.permute.xlu0 1
      %1002 = vperm.xlu0 %1001, %v927
      %v1003 = vpop.permute.xlu0 %1002
      %1005 = vset.pattern.permute.xlu0 1
      %1006 = vperm.xlu0 %1005, %v928
      %v1007 = vpop.permute.xlu0 %1006
      %1009 = vset.pattern.permute.xlu0 1
      %1010 = vperm.xlu0 %1009, %v929
      %v1011 = vpop.permute.xlu0 %1010
      %v1013 = vlaneseq
      %v1014 = vshrl.u32 %v1013, 7
      %v1015 = vsub.s32 0, %v1014
      %v1016 = vrot.slane %v984, %v1015
      %v1017 = vmul.f32 %v987, %v1016
      %v1018 = vmul.f32 %v991, %v1016
      %v1019 = vmul.f32 %v995, %v1016
      %v1020 = vmul.f32 %v999, %v1016
      %v1021 = vmul.f32 %v1003, %v1016
      %v1022 = vmul.f32 %v1007, %v1016
      %v1023 = vmul.f32 %v1011, %v1016
      %v1024 = vadd.f32 %v977, %v1017
      %v1025 = vadd.f32 %v978, %v1018
      %v1026 = vadd.f32 %v979, %v1019
      %v1027 = vadd.f32 %v980, %v1020
      %v1028 = vadd.f32 %v981, %v1021
      %v1029 = vadd.f32 %v982, %v1022
      %v1030 = vadd.f32 %v983, %v1023
      %v1031 = vld [vmem:[%s2 + $0x6] sm:$0x1]
      %1032 = vset.pattern.permute.xlu0 2
      %1033 = vperm.xlu0 %1032, %v923
      %v1034 = vpop.permute.xlu0 %1033
      %1036 = vset.pattern.permute.xlu0 2
      %1037 = vperm.xlu0 %1036, %v924
      %v1038 = vpop.permute.xlu0 %1037
      %1040 = vset.pattern.permute.xlu0 2
      %1041 = vperm.xlu0 %1040, %v925
      %v1042 = vpop.permute.xlu0 %1041
      %1044 = vset.pattern.permute.xlu0 2
      %1045 = vperm.xlu0 %1044, %v926
      %v1046 = vpop.permute.xlu0 %1045
      %1048 = vset.pattern.permute.xlu0 2
      %1049 = vperm.xlu0 %1048, %v927
      %v1050 = vpop.permute.xlu0 %1049
      %1052 = vset.pattern.permute.xlu0 2
      %1053 = vperm.xlu0 %1052, %v928
      %v1054 = vpop.permute.xlu0 %1053
      %1056 = vset.pattern.permute.xlu0 2
      %1057 = vperm.xlu0 %1056, %v929
      %v1058 = vpop.permute.xlu0 %1057
      %v1060 = vlaneseq
      %v1061 = vshrl.u32 %v1060, 7
      %v1062 = vsub.s32 0, %v1061
      %v1063 = vrot.slane %v1031, %v1062
      %v1064 = vmul.f32 %v1034, %v1063
      %v1065 = vmul.f32 %v1038, %v1063
      %v1066 = vmul.f32 %v1042, %v1063
      %v1067 = vmul.f32 %v1046, %v1063
      %v1068 = vmul.f32 %v1050, %v1063
      %v1069 = vmul.f32 %v1054, %v1063
      %v1070 = vmul.f32 %v1058, %v1063
      %v1071 = vadd.f32 %v1024, %v1064
      %v1072 = vadd.f32 %v1025, %v1065
      %v1073 = vadd.f32 %v1026, %v1066
      %v1074 = vadd.f32 %v1027, %v1067
      %v1075 = vadd.f32 %v1028, %v1068
      %v1076 = vadd.f32 %v1029, %v1069
      %v1077 = vadd.f32 %v1030, %v1070
      %v1078 = vld [vmem:[%s2 + $0x7] sm:$0x1]
      %1079 = vset.pattern.permute.xlu0 3
      %1080 = vperm.xlu0 %1079, %v923
      %v1081 = vpop.permute.xlu0 %1080
      %1083 = vset.pattern.permute.xlu0 3
      %1084 = vperm.xlu0 %1083, %v924
      %v1085 = vpop.permute.xlu0 %1084
      %1087 = vset.pattern.permute.xlu0 3
      %1088 = vperm.xlu0 %1087, %v925
      %v1089 = vpop.permute.xlu0 %1088
      %1091 = vset.pattern.permute.xlu0 3
      %1092 = vperm.xlu0 %1091, %v926
      %v1093 = vpop.permute.xlu0 %1092
      %1095 = vset.pattern.permute.xlu0 3
      %1096 = vperm.xlu0 %1095, %v927
      %v1097 = vpop.permute.xlu0 %1096
      %1099 = vset.pattern.permute.xlu0 3
      %1100 = vperm.xlu0 %1099, %v928
      %v1101 = vpop.permute.xlu0 %1100
      %1103 = vset.pattern.permute.xlu0 3
      %1104 = vperm.xlu0 %1103, %v929
      %v1105 = vpop.permute.xlu0 %1104
      %v1107 = vlaneseq
      %v1108 = vshrl.u32 %v1107, 7
      %v1109 = vsub.s32 0, %v1108
      %v1110 = vrot.slane %v1078, %v1109
      %v1111 = vmul.f32 %v1081, %v1110
      %v1112 = vmul.f32 %v1085, %v1110
      %v1113 = vmul.f32 %v1089, %v1110
      %v1114 = vmul.f32 %v1093, %v1110
      %v1115 = vmul.f32 %v1097, %v1110
      %v1116 = vmul.f32 %v1101, %v1110
      %v1117 = vmul.f32 %v1105, %v1110
      %v1118 = vadd.f32 %v1071, %v1111
      %v1119 = vadd.f32 %v1072, %v1112
      %v1120 = vadd.f32 %v1073, %v1113
      %v1121 = vadd.f32 %v1074, %v1114
      %v1122 = vadd.f32 %v1075, %v1115
      %v1123 = vadd.f32 %v1076, %v1116
      %v1124 = vadd.f32 %v1077, %v1117
      %v1125 = vld [vmem:[%s701 + $0x1] sm:$0x7f]
      %v1126 = vld [vmem:[%s701 + $0x9] sm:$0x7f]
      %v1127 = vld [vmem:[%s701 + $0x11] sm:$0x7f]
      %v1128 = vld [vmem:[%s701 + $0x19] sm:$0x7f]
      %v1129 = vld [vmem:[%s701 + $0x21] sm:$0x7f]
      %v1130 = vld [vmem:[%s701 + $0x29] sm:$0x7f]
      %v1131 = vld [vmem:[%s701 + $0x31] sm:$0x7f]
      %v1132 = vld [vmem:[%s2 + $0x8] sm:$0x1]
      %1134 = vset.pattern.permute.xlu0 0
      %1135 = vperm.xlu0 %1134, %v1125
      %v1136 = vpop.permute.xlu0 %1135
      %1139 = vset.pattern.permute.xlu0 0
      %1140 = vperm.xlu0 %1139, %v1126
      %v1141 = vpop.permute.xlu0 %1140
      %1144 = vset.pattern.permute.xlu0 0
      %1145 = vperm.xlu0 %1144, %v1127
      %v1146 = vpop.permute.xlu0 %1145
      %1149 = vset.pattern.permute.xlu0 0
      %1150 = vperm.xlu0 %1149, %v1128
      %v1151 = vpop.permute.xlu0 %1150
      %1154 = vset.pattern.permute.xlu0 0
      %1155 = vperm.xlu0 %1154, %v1129
      %v1156 = vpop.permute.xlu0 %1155
      %1159 = vset.pattern.permute.xlu0 0
      %1160 = vperm.xlu0 %1159, %v1130
      %v1161 = vpop.permute.xlu0 %1160
      %1164 = vset.pattern.permute.xlu0 0
      %1165 = vperm.xlu0 %1164, %v1131
      %v1166 = vpop.permute.xlu0 %1165
      %v1168 = vlaneseq
      %v1169 = vshrl.u32 %v1168, 7
      %v1170 = vsub.s32 0, %v1169
      %v1171 = vrot.slane %v1132, %v1170
      %v1172 = vmul.f32 %v1136, %v1171
      %v1173 = vmul.f32 %v1141, %v1171
      %v1174 = vmul.f32 %v1146, %v1171
      %v1175 = vmul.f32 %v1151, %v1171
      %v1176 = vmul.f32 %v1156, %v1171
      %v1177 = vmul.f32 %v1161, %v1171
      %v1178 = vmul.f32 %v1166, %v1171
      %v1179 = vadd.f32 %v1118, %v1172
      %v1180 = vadd.f32 %v1119, %v1173
      %v1181 = vadd.f32 %v1120, %v1174
      %v1182 = vadd.f32 %v1121, %v1175
      %v1183 = vadd.f32 %v1122, %v1176
      %v1184 = vadd.f32 %v1123, %v1177
      %v1185 = vadd.f32 %v1124, %v1178
      %v1186 = vld [vmem:[%s2 + $0x9] sm:$0x1]
      %1187 = vset.pattern.permute.xlu0 1
      %1188 = vperm.xlu0 %1187, %v1125
      %v1189 = vpop.permute.xlu0 %1188
      %1191 = vset.pattern.permute.xlu0 1
      %1192 = vperm.xlu0 %1191, %v1126
      %v1193 = vpop.permute.xlu0 %1192
      %1195 = vset.pattern.permute.xlu0 1
      %1196 = vperm.xlu0 %1195, %v1127
      %v1197 = vpop.permute.xlu0 %1196
      %1199 = vset.pattern.permute.xlu0 1
      %1200 = vperm.xlu0 %1199, %v1128
      %v1201 = vpop.permute.xlu0 %1200
      %1203 = vset.pattern.permute.xlu0 1
      %1204 = vperm.xlu0 %1203, %v1129
      %v1205 = vpop.permute.xlu0 %1204
      %1207 = vset.pattern.permute.xlu0 1
      %1208 = vperm.xlu0 %1207, %v1130
      %v1209 = vpop.permute.xlu0 %1208
      %1211 = vset.pattern.permute.xlu0 1
      %1212 = vperm.xlu0 %1211, %v1131
      %v1213 = vpop.permute.xlu0 %1212
      %v1215 = vlaneseq
      %v1216 = vshrl.u32 %v1215, 7
      %v1217 = vsub.s32 0, %v1216
      %v1218 = vrot.slane %v1186, %v1217
      %v1219 = vmul.f32 %v1189, %v1218
      %v1220 = vmul.f32 %v1193, %v1218
      %v1221 = vmul.f32 %v1197, %v1218
      %v1222 = vmul.f32 %v1201, %v1218
      %v1223 = vmul.f32 %v1205, %v1218
      %v1224 = vmul.f32 %v1209, %v1218
      %v1225 = vmul.f32 %v1213, %v1218
      %v1226 = vadd.f32 %v1179, %v1219
      %v1227 = vadd.f32 %v1180, %v1220
      %v1228 = vadd.f32 %v1181, %v1221
      %v1229 = vadd.f32 %v1182, %v1222
      %v1230 = vadd.f32 %v1183, %v1223
      %v1231 = vadd.f32 %v1184, %v1224
      %v1232 = vadd.f32 %v1185, %v1225
      %v1233 = vld [vmem:[%s2 + $0xa] sm:$0x1]
      %1234 = vset.pattern.permute.xlu0 2
      %1235 = vperm.xlu0 %1234, %v1125
      %v1236 = vpop.permute.xlu0 %1235
      %1238 = vset.pattern.permute.xlu0 2
      %1239 = vperm.xlu0 %1238, %v1126
      %v1240 = vpop.permute.xlu0 %1239
      %1242 = vset.pattern.permute.xlu0 2
      %1243 = vperm.xlu0 %1242, %v1127
      %v1244 = vpop.permute.xlu0 %1243
      %1246 = vset.pattern.permute.xlu0 2
      %1247 = vperm.xlu0 %1246, %v1128
      %v1248 = vpop.permute.xlu0 %1247
      %1250 = vset.pattern.permute.xlu0 2
      %1251 = vperm.xlu0 %1250, %v1129
      %v1252 = vpop.permute.xlu0 %1251
      %1254 = vset.pattern.permute.xlu0 2
      %1255 = vperm.xlu0 %1254, %v1130
      %v1256 = vpop.permute.xlu0 %1255
      %1258 = vset.pattern.permute.xlu0 2
      %1259 = vperm.xlu0 %1258, %v1131
      %v1260 = vpop.permute.xlu0 %1259
      %v1262 = vlaneseq
      %v1263 = vshrl.u32 %v1262, 7
      %v1264 = vsub.s32 0, %v1263
      %v1265 = vrot.slane %v1233, %v1264
      %v1266 = vmul.f32 %v1236, %v1265
      %v1267 = vmul.f32 %v1240, %v1265
      %v1268 = vmul.f32 %v1244, %v1265
      %v1269 = vmul.f32 %v1248, %v1265
      %v1270 = vmul.f32 %v1252, %v1265
      %v1271 = vmul.f32 %v1256, %v1265
      %v1272 = vmul.f32 %v1260, %v1265
      %v1273 = vadd.f32 %v1226, %v1266
      %v1274 = vadd.f32 %v1227, %v1267
      %v1275 = vadd.f32 %v1228, %v1268
      %v1276 = vadd.f32 %v1229, %v1269
      %v1277 = vadd.f32 %v1230, %v1270
      %v1278 = vadd.f32 %v1231, %v1271
      %v1279 = vadd.f32 %v1232, %v1272
      %v1280 = vld [vmem:[%s2 + $0xb] sm:$0x1]
      %1281 = vset.pattern.permute.xlu0 3
      %1282 = vperm.xlu0 %1281, %v1125
      %v1283 = vpop.permute.xlu0 %1282
      %1285 = vset.pattern.permute.xlu0 3
      %1286 = vperm.xlu0 %1285, %v1126
      %v1287 = vpop.permute.xlu0 %1286
      %1289 = vset.pattern.permute.xlu0 3
      %1290 = vperm.xlu0 %1289, %v1127
      %v1291 = vpop.permute.xlu0 %1290
      %1293 = vset.pattern.permute.xlu0 3
      %1294 = vperm.xlu0 %1293, %v1128
      %v1295 = vpop.permute.xlu0 %1294
      %1297 = vset.pattern.permute.xlu0 3
      %1298 = vperm.xlu0 %1297, %v1129
      %v1299 = vpop.permute.xlu0 %1298
      %1301 = vset.pattern.permute.xlu0 3
      %1302 = vperm.xlu0 %1301, %v1130
      %v1303 = vpop.permute.xlu0 %1302
      %1305 = vset.pattern.permute.xlu0 3
      %1306 = vperm.xlu0 %1305, %v1131
      %v1307 = vpop.permute.xlu0 %1306
      %v1309 = vlaneseq
      %v1310 = vshrl.u32 %v1309, 7
      %v1311 = vsub.s32 0, %v1310
      %v1312 = vrot.slane %v1280, %v1311
      %v1313 = vmul.f32 %v1283, %v1312
      %v1314 = vmul.f32 %v1287, %v1312
      %v1315 = vmul.f32 %v1291, %v1312
      %v1316 = vmul.f32 %v1295, %v1312
      %v1317 = vmul.f32 %v1299, %v1312
      %v1318 = vmul.f32 %v1303, %v1312
      %v1319 = vmul.f32 %v1307, %v1312
      %v1320 = vadd.f32 %v1273, %v1313
      %v1321 = vadd.f32 %v1274, %v1314
      %v1322 = vadd.f32 %v1275, %v1315
      %v1323 = vadd.f32 %v1276, %v1316
      %v1324 = vadd.f32 %v1277, %v1317
      %v1325 = vadd.f32 %v1278, %v1318
      %v1326 = vadd.f32 %v1279, %v1319
      %s1327 = scalar_lea.vmem %s701, 128
      %v1328 = vld [vmem:[%s1327] sm:$0x7f]
      %v1329 = vld [vmem:[%s1327 + $0x8] sm:$0x7f]
      %v1330 = vld [vmem:[%s1327 + $0x10] sm:$0x7f]
      %v1331 = vld [vmem:[%s1327 + $0x18] sm:$0x7f]
      %v1332 = vld [vmem:[%s1327 + $0x20] sm:$0x7f]
      %v1333 = vld [vmem:[%s1327 + $0x28] sm:$0x7f]
      %v1334 = vld [vmem:[%s1327 + $0x30] sm:$0x7f]
      %v1335 = vld [vmem:[%s2 + $0xc] sm:$0x1]
      %1337 = vset.pattern.permute.xlu0 0
      %1338 = vperm.xlu0 %1337, %v1328
      %v1339 = vpop.permute.xlu0 %1338
      %1342 = vset.pattern.permute.xlu0 0
      %1343 = vperm.xlu0 %1342, %v1329
      %v1344 = vpop.permute.xlu0 %1343
      %1347 = vset.pattern.permute.xlu0 0
      %1348 = vperm.xlu0 %1347, %v1330
      %v1349 = vpop.permute.xlu0 %1348
      %1352 = vset.pattern.permute.xlu0 0
      %1353 = vperm.xlu0 %1352, %v1331
      %v1354 = vpop.permute.xlu0 %1353
      %1357 = vset.pattern.permute.xlu0 0
      %1358 = vperm.xlu0 %1357, %v1332
      %v1359 = vpop.permute.xlu0 %1358
      %1362 = vset.pattern.permute.xlu0 0
      %1363 = vperm.xlu0 %1362, %v1333
      %v1364 = vpop.permute.xlu0 %1363
      %1367 = vset.pattern.permute.xlu0 0
      %1368 = vperm.xlu0 %1367, %v1334
      %v1369 = vpop.permute.xlu0 %1368
      %v1371 = vlaneseq
      %v1372 = vshrl.u32 %v1371, 7
      %v1373 = vsub.s32 0, %v1372
      %v1374 = vrot.slane %v1335, %v1373
      %v1375 = vmul.f32 %v1339, %v1374
      %v1376 = vmul.f32 %v1344, %v1374
      %v1377 = vmul.f32 %v1349, %v1374
      %v1378 = vmul.f32 %v1354, %v1374
      %v1379 = vmul.f32 %v1359, %v1374
      %v1380 = vmul.f32 %v1364, %v1374
      %v1381 = vmul.f32 %v1369, %v1374
      %v1382 = vadd.f32 %v1320, %v1375
      %v1383 = vadd.f32 %v1321, %v1376
      %v1384 = vadd.f32 %v1322, %v1377
      %v1385 = vadd.f32 %v1323, %v1378
      %v1386 = vadd.f32 %v1324, %v1379
      %v1387 = vadd.f32 %v1325, %v1380
      %v1388 = vadd.f32 %v1326, %v1381
      %v1389 = vld [vmem:[%s2 + $0xd] sm:$0x1]
      %1390 = vset.pattern.permute.xlu0 1
      %1391 = vperm.xlu0 %1390, %v1328
      %v1392 = vpop.permute.xlu0 %1391
      %1394 = vset.pattern.permute.xlu0 1
      %1395 = vperm.xlu0 %1394, %v1329
      %v1396 = vpop.permute.xlu0 %1395
      %1398 = vset.pattern.permute.xlu0 1
      %1399 = vperm.xlu0 %1398, %v1330
      %v1400 = vpop.permute.xlu0 %1399
      %1402 = vset.pattern.permute.xlu0 1
      %1403 = vperm.xlu0 %1402, %v1331
      %v1404 = vpop.permute.xlu0 %1403
      %1406 = vset.pattern.permute.xlu0 1
      %1407 = vperm.xlu0 %1406, %v1332
      %v1408 = vpop.permute.xlu0 %1407
      %1410 = vset.pattern.permute.xlu0 1
      %1411 = vperm.xlu0 %1410, %v1333
      %v1412 = vpop.permute.xlu0 %1411
      %1414 = vset.pattern.permute.xlu0 1
      %1415 = vperm.xlu0 %1414, %v1334
      %v1416 = vpop.permute.xlu0 %1415
      %v1418 = vlaneseq
      %v1419 = vshrl.u32 %v1418, 7
      %v1420 = vsub.s32 0, %v1419
      %v1421 = vrot.slane %v1389, %v1420
      %v1422 = vmul.f32 %v1392, %v1421
      %v1423 = vmul.f32 %v1396, %v1421
      %v1424 = vmul.f32 %v1400, %v1421
      %v1425 = vmul.f32 %v1404, %v1421
      %v1426 = vmul.f32 %v1408, %v1421
      %v1427 = vmul.f32 %v1412, %v1421
      %v1428 = vmul.f32 %v1416, %v1421
      %v1429 = vadd.f32 %v1382, %v1422
      %v1430 = vadd.f32 %v1383, %v1423
      %v1431 = vadd.f32 %v1384, %v1424
      %v1432 = vadd.f32 %v1385, %v1425
      %v1433 = vadd.f32 %v1386, %v1426
      %v1434 = vadd.f32 %v1387, %v1427
      %v1435 = vadd.f32 %v1388, %v1428
      %v1436 = vld [vmem:[%s2 + $0xe] sm:$0x1]
      %1437 = vset.pattern.permute.xlu0 2
      %1438 = vperm.xlu0 %1437, %v1328
      %v1439 = vpop.permute.xlu0 %1438
      %1441 = vset.pattern.permute.xlu0 2
      %1442 = vperm.xlu0 %1441, %v1329
      %v1443 = vpop.permute.xlu0 %1442
      %1445 = vset.pattern.permute.xlu0 2
      %1446 = vperm.xlu0 %1445, %v1330
      %v1447 = vpop.permute.xlu0 %1446
      %1449 = vset.pattern.permute.xlu0 2
      %1450 = vperm.xlu0 %1449, %v1331
      %v1451 = vpop.permute.xlu0 %1450
      %1453 = vset.pattern.permute.xlu0 2
      %1454 = vperm.xlu0 %1453, %v1332
      %v1455 = vpop.permute.xlu0 %1454
      %1457 = vset.pattern.permute.xlu0 2
      %1458 = vperm.xlu0 %1457, %v1333
      %v1459 = vpop.permute.xlu0 %1458
      %1461 = vset.pattern.permute.xlu0 2
      %1462 = vperm.xlu0 %1461, %v1334
      %v1463 = vpop.permute.xlu0 %1462
      %v1465 = vlaneseq
      %v1466 = vshrl.u32 %v1465, 7
      %v1467 = vsub.s32 0, %v1466
      %v1468 = vrot.slane %v1436, %v1467
      %v1469 = vmul.f32 %v1439, %v1468
      %v1470 = vmul.f32 %v1443, %v1468
      %v1471 = vmul.f32 %v1447, %v1468
      %v1472 = vmul.f32 %v1451, %v1468
      %v1473 = vmul.f32 %v1455, %v1468
      %v1474 = vmul.f32 %v1459, %v1468
      %v1475 = vmul.f32 %v1463, %v1468
      %v1476 = vadd.f32 %v1429, %v1469
      %v1477 = vadd.f32 %v1430, %v1470
      %v1478 = vadd.f32 %v1431, %v1471
      %v1479 = vadd.f32 %v1432, %v1472
      %v1480 = vadd.f32 %v1433, %v1473
      %v1481 = vadd.f32 %v1434, %v1474
      %v1482 = vadd.f32 %v1435, %v1475
      %v1483 = vld [vmem:[%s2 + $0xf] sm:$0x1]
      %1484 = vset.pattern.permute.xlu0 3
      %1485 = vperm.xlu0 %1484, %v1328
      %v1486 = vpop.permute.xlu0 %1485
      %1488 = vset.pattern.permute.xlu0 3
      %1489 = vperm.xlu0 %1488, %v1329
      %v1490 = vpop.permute.xlu0 %1489
      %1492 = vset.pattern.permute.xlu0 3
      %1493 = vperm.xlu0 %1492, %v1330
      %v1494 = vpop.permute.xlu0 %1493
      %1496 = vset.pattern.permute.xlu0 3
      %1497 = vperm.xlu0 %1496, %v1331
      %v1498 = vpop.permute.xlu0 %1497
      %1500 = vset.pattern.permute.xlu0 3
      %1501 = vperm.xlu0 %1500, %v1332
      %v1502 = vpop.permute.xlu0 %1501
      %1504 = vset.pattern.permute.xlu0 3
      %1505 = vperm.xlu0 %1504, %v1333
      %v1506 = vpop.permute.xlu0 %1505
      %1508 = vset.pattern.permute.xlu0 3
      %1509 = vperm.xlu0 %1508, %v1334
      %v1510 = vpop.permute.xlu0 %1509
      %v1512 = vlaneseq
      %v1513 = vshrl.u32 %v1512, 7
      %v1514 = vsub.s32 0, %v1513
      %v1515 = vrot.slane %v1483, %v1514
      %v1516 = vmul.f32 %v1486, %v1515
      %v1517 = vmul.f32 %v1490, %v1515
      %v1518 = vmul.f32 %v1494, %v1515
      %v1519 = vmul.f32 %v1498, %v1515
      %v1520 = vmul.f32 %v1502, %v1515
      %v1521 = vmul.f32 %v1506, %v1515
      %v1522 = vmul.f32 %v1510, %v1515
      %v1523 = vadd.f32 %v1476, %v1516
      %v1524 = vadd.f32 %v1477, %v1517
      %v1525 = vadd.f32 %v1478, %v1518
      %v1526 = vadd.f32 %v1479, %v1519
      %v1527 = vadd.f32 %v1480, %v1520
      %v1528 = vadd.f32 %v1481, %v1521
      %v1529 = vadd.f32 %v1482, %v1522
      %s1530 = scalar_lea.vmem %s701, 192
      %v1531 = vld [vmem:[%s1530] sm:$0x7f]
      %v1532 = vld [vmem:[%s1530 + $0x8] sm:$0x7f]
      %v1533 = vld [vmem:[%s1530 + $0x10] sm:$0x7f]
      %v1534 = vld [vmem:[%s1530 + $0x18] sm:$0x7f]
      %v1535 = vld [vmem:[%s1530 + $0x20] sm:$0x7f]
      %v1536 = vld [vmem:[%s1530 + $0x28] sm:$0x7f]
      %v1537 = vld [vmem:[%s1530 + $0x30] sm:$0x7f]
      %v1538 = vld [vmem:[%s2 + $0x10] sm:$0x1]
      %1540 = vset.pattern.permute.xlu0 0
      %1541 = vperm.xlu0 %1540, %v1531
      %v1542 = vpop.permute.xlu0 %1541
      %1545 = vset.pattern.permute.xlu0 0
      %1546 = vperm.xlu0 %1545, %v1532
      %v1547 = vpop.permute.xlu0 %1546
      %1550 = vset.pattern.permute.xlu0 0
      %1551 = vperm.xlu0 %1550, %v1533
      %v1552 = vpop.permute.xlu0 %1551
      %1555 = vset.pattern.permute.xlu0 0
      %1556 = vperm.xlu0 %1555, %v1534
      %v1557 = vpop.permute.xlu0 %1556
      %1560 = vset.pattern.permute.xlu0 0
      %1561 = vperm.xlu0 %1560, %v1535
      %v1562 = vpop.permute.xlu0 %1561
      %1565 = vset.pattern.permute.xlu0 0
      %1566 = vperm.xlu0 %1565, %v1536
      %v1567 = vpop.permute.xlu0 %1566
      %1570 = vset.pattern.permute.xlu0 0
      %1571 = vperm.xlu0 %1570, %v1537
      %v1572 = vpop.permute.xlu0 %1571
      %v1574 = vlaneseq
      %v1575 = vshrl.u32 %v1574, 7
      %v1576 = vsub.s32 0, %v1575
      %v1577 = vrot.slane %v1538, %v1576
      %v1578 = vmul.f32 %v1542, %v1577
      %v1579 = vmul.f32 %v1547, %v1577
      %v1580 = vmul.f32 %v1552, %v1577
      %v1581 = vmul.f32 %v1557, %v1577
      %v1582 = vmul.f32 %v1562, %v1577
      %v1583 = vmul.f32 %v1567, %v1577
      %v1584 = vmul.f32 %v1572, %v1577
      %v1585 = vadd.f32 %v1523, %v1578
      %v1586 = vadd.f32 %v1524, %v1579
      %v1587 = vadd.f32 %v1525, %v1580
      %v1588 = vadd.f32 %v1526, %v1581
      %v1589 = vadd.f32 %v1527, %v1582
      %v1590 = vadd.f32 %v1528, %v1583
      %v1591 = vadd.f32 %v1529, %v1584
      %v1592 = vld [vmem:[%s2 + $0x11] sm:$0x1]
      %1593 = vset.pattern.permute.xlu0 1
      %1594 = vperm.xlu0 %1593, %v1531
      %v1595 = vpop.permute.xlu0 %1594
      %1597 = vset.pattern.permute.xlu0 1
      %1598 = vperm.xlu0 %1597, %v1532
      %v1599 = vpop.permute.xlu0 %1598
      %1601 = vset.pattern.permute.xlu0 1
      %1602 = vperm.xlu0 %1601, %v1533
      %v1603 = vpop.permute.xlu0 %1602
      %1605 = vset.pattern.permute.xlu0 1
      %1606 = vperm.xlu0 %1605, %v1534
      %v1607 = vpop.permute.xlu0 %1606
      %1609 = vset.pattern.permute.xlu0 1
      %1610 = vperm.xlu0 %1609, %v1535
      %v1611 = vpop.permute.xlu0 %1610
      %1613 = vset.pattern.permute.xlu0 1
      %1614 = vperm.xlu0 %1613, %v1536
      %v1615 = vpop.permute.xlu0 %1614
      %1617 = vset.pattern.permute.xlu0 1
      %1618 = vperm.xlu0 %1617, %v1537
      %v1619 = vpop.permute.xlu0 %1618
      %v1621 = vlaneseq
      %v1622 = vshrl.u32 %v1621, 7
      %v1623 = vsub.s32 0, %v1622
      %v1624 = vrot.slane %v1592, %v1623
      %v1625 = vmul.f32 %v1595, %v1624
      %v1626 = vmul.f32 %v1599, %v1624
      %v1627 = vmul.f32 %v1603, %v1624
      %v1628 = vmul.f32 %v1607, %v1624
      %v1629 = vmul.f32 %v1611, %v1624
      %v1630 = vmul.f32 %v1615, %v1624
      %v1631 = vmul.f32 %v1619, %v1624
      %v1632 = vadd.f32 %v1585, %v1625
      %v1633 = vadd.f32 %v1586, %v1626
      %v1634 = vadd.f32 %v1587, %v1627
      %v1635 = vadd.f32 %v1588, %v1628
      %v1636 = vadd.f32 %v1589, %v1629
      %v1637 = vadd.f32 %v1590, %v1630
      %v1638 = vadd.f32 %v1591, %v1631
      %v1639 = vld [vmem:[%s2 + $0x12] sm:$0x1]
      %1640 = vset.pattern.permute.xlu0 2
      %1641 = vperm.xlu0 %1640, %v1531
      %v1642 = vpop.permute.xlu0 %1641
      %1644 = vset.pattern.permute.xlu0 2
      %1645 = vperm.xlu0 %1644, %v1532
      %v1646 = vpop.permute.xlu0 %1645
      %1648 = vset.pattern.permute.xlu0 2
      %1649 = vperm.xlu0 %1648, %v1533
      %v1650 = vpop.permute.xlu0 %1649
      %1652 = vset.pattern.permute.xlu0 2
      %1653 = vperm.xlu0 %1652, %v1534
      %v1654 = vpop.permute.xlu0 %1653
      %1656 = vset.pattern.permute.xlu0 2
      %1657 = vperm.xlu0 %1656, %v1535
      %v1658 = vpop.permute.xlu0 %1657
      %1660 = vset.pattern.permute.xlu0 2
      %1661 = vperm.xlu0 %1660, %v1536
      %v1662 = vpop.permute.xlu0 %1661
      %1664 = vset.pattern.permute.xlu0 2
      %1665 = vperm.xlu0 %1664, %v1537
      %v1666 = vpop.permute.xlu0 %1665
      %v1668 = vlaneseq
      %v1669 = vshrl.u32 %v1668, 7
      %v1670 = vsub.s32 0, %v1669
      %v1671 = vrot.slane %v1639, %v1670
      %v1672 = vmul.f32 %v1642, %v1671
      %v1673 = vmul.f32 %v1646, %v1671
      %v1674 = vmul.f32 %v1650, %v1671
      %v1675 = vmul.f32 %v1654, %v1671
      %v1676 = vmul.f32 %v1658, %v1671
      %v1677 = vmul.f32 %v1662, %v1671
      %v1678 = vmul.f32 %v1666, %v1671
      %v1679 = vadd.f32 %v1632, %v1672
      %v1680 = vadd.f32 %v1633, %v1673
      %v1681 = vadd.f32 %v1634, %v1674
      %v1682 = vadd.f32 %v1635, %v1675
      %v1683 = vadd.f32 %v1636, %v1676
      %v1684 = vadd.f32 %v1637, %v1677
      %v1685 = vadd.f32 %v1638, %v1678
      %v1686 = vld [vmem:[%s2 + $0x13] sm:$0x1]
      %1687 = vset.pattern.permute.xlu0 3
      %1688 = vperm.xlu0 %1687, %v1531
      %v1689 = vpop.permute.xlu0 %1688
      %1691 = vset.pattern.permute.xlu0 3
      %1692 = vperm.xlu0 %1691, %v1532
      %v1693 = vpop.permute.xlu0 %1692
      %1695 = vset.pattern.permute.xlu0 3
      %1696 = vperm.xlu0 %1695, %v1533
      %v1697 = vpop.permute.xlu0 %1696
      %1699 = vset.pattern.permute.xlu0 3
      %1700 = vperm.xlu0 %1699, %v1534
      %v1701 = vpop.permute.xlu0 %1700
      %1703 = vset.pattern.permute.xlu0 3
      %1704 = vperm.xlu0 %1703, %v1535
      %v1705 = vpop.permute.xlu0 %1704
      %1707 = vset.pattern.permute.xlu0 3
      %1708 = vperm.xlu0 %1707, %v1536
      %v1709 = vpop.permute.xlu0 %1708
      %1711 = vset.pattern.permute.xlu0 3
      %1712 = vperm.xlu0 %1711, %v1537
      %v1713 = vpop.permute.xlu0 %1712
      %v1715 = vlaneseq
      %v1716 = vshrl.u32 %v1715, 7
      %v1717 = vsub.s32 0, %v1716
      %v1718 = vrot.slane %v1686, %v1717
      %v1719 = vmul.f32 %v1689, %v1718
      %v1720 = vmul.f32 %v1693, %v1718
      %v1721 = vmul.f32 %v1697, %v1718
      %v1722 = vmul.f32 %v1701, %v1718
      %v1723 = vmul.f32 %v1705, %v1718
      %v1724 = vmul.f32 %v1709, %v1718
      %v1725 = vmul.f32 %v1713, %v1718
      %v1726 = vadd.f32 %v1679, %v1719
      %v1727 = vadd.f32 %v1680, %v1720
      %v1728 = vadd.f32 %v1681, %v1721
      %v1729 = vadd.f32 %v1682, %v1722
      %v1730 = vadd.f32 %v1683, %v1723
      %v1731 = vadd.f32 %v1684, %v1724
      %v1732 = vadd.f32 %v1685, %v1725
      %v1733 = vld [vmem:[%s1327 + $0x1] sm:$0x7f]
      %v1734 = vld [vmem:[%s1327 + $0x9] sm:$0x7f]
      %v1735 = vld [vmem:[%s1327 + $0x11] sm:$0x7f]
      %v1736 = vld [vmem:[%s1327 + $0x19] sm:$0x7f]
      %v1737 = vld [vmem:[%s1327 + $0x21] sm:$0x7f]
      %v1738 = vld [vmem:[%s1327 + $0x29] sm:$0x7f]
      %v1739 = vld [vmem:[%s1327 + $0x31] sm:$0x7f]
      %v1740 = vld [vmem:[%s2 + $0x14] sm:$0x1]
      %1742 = vset.pattern.permute.xlu0 0
      %1743 = vperm.xlu0 %1742, %v1733
      %v1744 = vpop.permute.xlu0 %1743
      %1747 = vset.pattern.permute.xlu0 0
      %1748 = vperm.xlu0 %1747, %v1734
      %v1749 = vpop.permute.xlu0 %1748
      %1752 = vset.pattern.permute.xlu0 0
      %1753 = vperm.xlu0 %1752, %v1735
      %v1754 = vpop.permute.xlu0 %1753
      %1757 = vset.pattern.permute.xlu0 0
      %1758 = vperm.xlu0 %1757, %v1736
      %v1759 = vpop.permute.xlu0 %1758
      %1762 = vset.pattern.permute.xlu0 0
      %1763 = vperm.xlu0 %1762, %v1737
      %v1764 = vpop.permute.xlu0 %1763
      %1767 = vset.pattern.permute.xlu0 0
      %1768 = vperm.xlu0 %1767, %v1738
      %v1769 = vpop.permute.xlu0 %1768
      %1772 = vset.pattern.permute.xlu0 0
      %1773 = vperm.xlu0 %1772, %v1739
      %v1774 = vpop.permute.xlu0 %1773
      %v1776 = vlaneseq
      %v1777 = vshrl.u32 %v1776, 7
      %v1778 = vsub.s32 0, %v1777
      %v1779 = vrot.slane %v1740, %v1778
      %v1780 = vmul.f32 %v1744, %v1779
      %v1781 = vmul.f32 %v1749, %v1779
      %v1782 = vmul.f32 %v1754, %v1779
      %v1783 = vmul.f32 %v1759, %v1779
      %v1784 = vmul.f32 %v1764, %v1779
      %v1785 = vmul.f32 %v1769, %v1779
      %v1786 = vmul.f32 %v1774, %v1779
      %v1787 = vadd.f32 %v1726, %v1780
      %v1788 = vadd.f32 %v1727, %v1781
      %v1789 = vadd.f32 %v1728, %v1782
      %v1790 = vadd.f32 %v1729, %v1783
      %v1791 = vadd.f32 %v1730, %v1784
      %v1792 = vadd.f32 %v1731, %v1785
      %v1793 = vadd.f32 %v1732, %v1786
      %v1794 = vld [vmem:[%s2 + $0x15] sm:$0x1]
      %1795 = vset.pattern.permute.xlu0 1
      %1796 = vperm.xlu0 %1795, %v1733
      %v1797 = vpop.permute.xlu0 %1796
      %1799 = vset.pattern.permute.xlu0 1
      %1800 = vperm.xlu0 %1799, %v1734
      %v1801 = vpop.permute.xlu0 %1800
      %1803 = vset.pattern.permute.xlu0 1
      %1804 = vperm.xlu0 %1803, %v1735
      %v1805 = vpop.permute.xlu0 %1804
      %1807 = vset.pattern.permute.xlu0 1
      %1808 = vperm.xlu0 %1807, %v1736
      %v1809 = vpop.permute.xlu0 %1808
      %1811 = vset.pattern.permute.xlu0 1
      %1812 = vperm.xlu0 %1811, %v1737
      %v1813 = vpop.permute.xlu0 %1812
      %1815 = vset.pattern.permute.xlu0 1
      %1816 = vperm.xlu0 %1815, %v1738
      %v1817 = vpop.permute.xlu0 %1816
      %1819 = vset.pattern.permute.xlu0 1
      %1820 = vperm.xlu0 %1819, %v1739
      %v1821 = vpop.permute.xlu0 %1820
      %v1823 = vlaneseq
      %v1824 = vshrl.u32 %v1823, 7
      %v1825 = vsub.s32 0, %v1824
      %v1826 = vrot.slane %v1794, %v1825
      %v1827 = vmul.f32 %v1797, %v1826
      %v1828 = vmul.f32 %v1801, %v1826
      %v1829 = vmul.f32 %v1805, %v1826
      %v1830 = vmul.f32 %v1809, %v1826
      %v1831 = vmul.f32 %v1813, %v1826
      %v1832 = vmul.f32 %v1817, %v1826
      %v1833 = vmul.f32 %v1821, %v1826
      %v1834 = vadd.f32 %v1787, %v1827
      %v1835 = vadd.f32 %v1788, %v1828
      %v1836 = vadd.f32 %v1789, %v1829
      %v1837 = vadd.f32 %v1790, %v1830
      %v1838 = vadd.f32 %v1791, %v1831
      %v1839 = vadd.f32 %v1792, %v1832
      %v1840 = vadd.f32 %v1793, %v1833
      %v1841 = vld [vmem:[%s2 + $0x16] sm:$0x1]
      %1842 = vset.pattern.permute.xlu0 2
      %1843 = vperm.xlu0 %1842, %v1733
      %v1844 = vpop.permute.xlu0 %1843
      %1846 = vset.pattern.permute.xlu0 2
      %1847 = vperm.xlu0 %1846, %v1734
      %v1848 = vpop.permute.xlu0 %1847
      %1850 = vset.pattern.permute.xlu0 2
      %1851 = vperm.xlu0 %1850, %v1735
      %v1852 = vpop.permute.xlu0 %1851
      %1854 = vset.pattern.permute.xlu0 2
      %1855 = vperm.xlu0 %1854, %v1736
      %v1856 = vpop.permute.xlu0 %1855
      %1858 = vset.pattern.permute.xlu0 2
      %1859 = vperm.xlu0 %1858, %v1737
      %v1860 = vpop.permute.xlu0 %1859
      %1862 = vset.pattern.permute.xlu0 2
      %1863 = vperm.xlu0 %1862, %v1738
      %v1864 = vpop.permute.xlu0 %1863
      %1866 = vset.pattern.permute.xlu0 2
      %1867 = vperm.xlu0 %1866, %v1739
      %v1868 = vpop.permute.xlu0 %1867
      %v1870 = vlaneseq
      %v1871 = vshrl.u32 %v1870, 7
      %v1872 = vsub.s32 0, %v1871
      %v1873 = vrot.slane %v1841, %v1872
      %v1874 = vmul.f32 %v1844, %v1873
      %v1875 = vmul.f32 %v1848, %v1873
      %v1876 = vmul.f32 %v1852, %v1873
      %v1877 = vmul.f32 %v1856, %v1873
      %v1878 = vmul.f32 %v1860, %v1873
      %v1879 = vmul.f32 %v1864, %v1873
      %v1880 = vmul.f32 %v1868, %v1873
      %v1881 = vadd.f32 %v1834, %v1874
      %v1882 = vadd.f32 %v1835, %v1875
      %v1883 = vadd.f32 %v1836, %v1876
      %v1884 = vadd.f32 %v1837, %v1877
      %v1885 = vadd.f32 %v1838, %v1878
      %v1886 = vadd.f32 %v1839, %v1879
      %v1887 = vadd.f32 %v1840, %v1880
      %v1888 = vld [vmem:[%s2 + $0x17] sm:$0x1]
      %1889 = vset.pattern.permute.xlu0 3
      %1890 = vperm.xlu0 %1889, %v1733
      %v1891 = vpop.permute.xlu0 %1890
      %1893 = vset.pattern.permute.xlu0 3
      %1894 = vperm.xlu0 %1893, %v1734
      %v1895 = vpop.permute.xlu0 %1894
      %1897 = vset.pattern.permute.xlu0 3
      %1898 = vperm.xlu0 %1897, %v1735
      %v1899 = vpop.permute.xlu0 %1898
      %1901 = vset.pattern.permute.xlu0 3
      %1902 = vperm.xlu0 %1901, %v1736
      %v1903 = vpop.permute.xlu0 %1902
      %1905 = vset.pattern.permute.xlu0 3
      %1906 = vperm.xlu0 %1905, %v1737
      %v1907 = vpop.permute.xlu0 %1906
      %1909 = vset.pattern.permute.xlu0 3
      %1910 = vperm.xlu0 %1909, %v1738
      %v1911 = vpop.permute.xlu0 %1910
      %1913 = vset.pattern.permute.xlu0 3
      %1914 = vperm.xlu0 %1913, %v1739
      %v1915 = vpop.permute.xlu0 %1914
      %v1917 = vlaneseq
      %v1918 = vshrl.u32 %v1917, 7
      %v1919 = vsub.s32 0, %v1918
      %v1920 = vrot.slane %v1888, %v1919
      %v1921 = vmul.f32 %v1891, %v1920
      %v1922 = vmul.f32 %v1895, %v1920
      %v1923 = vmul.f32 %v1899, %v1920
      %v1924 = vmul.f32 %v1903, %v1920
      %v1925 = vmul.f32 %v1907, %v1920
      %v1926 = vmul.f32 %v1911, %v1920
      %v1927 = vmul.f32 %v1915, %v1920
      %v1928 = vadd.f32 %v1881, %v1921
      %v1929 = vadd.f32 %v1882, %v1922
      %v1930 = vadd.f32 %v1883, %v1923
      %v1931 = vadd.f32 %v1884, %v1924
      %v1932 = vadd.f32 %v1885, %v1925
      %v1933 = vadd.f32 %v1886, %v1926
      %v1934 = vadd.f32 %v1887, %v1927
      %s1935 = scalar_lea.vmem %s701, 8
      %v1936 = vld [vmem:[%s1935] sm:$0x7f]
      %v1937 = vld [vmem:[%s1935 + $0x8] sm:$0x7f]
      %v1938 = vld [vmem:[%s1935 + $0x10] sm:$0x7f]
      %v1939 = vld [vmem:[%s1935 + $0x18] sm:$0x7f]
      %v1940 = vld [vmem:[%s1935 + $0x20] sm:$0x7f]
      %v1941 = vld [vmem:[%s1935 + $0x28] sm:$0x7f]
      %v1942 = vld [vmem:[%s1935 + $0x30] sm:$0x7f]
      %v1943 = vld [vmem:[%s2 + $0x18] sm:$0x1]
      %1945 = vset.pattern.permute.xlu0 0
      %1946 = vperm.xlu0 %1945, %v1936
      %v1947 = vpop.permute.xlu0 %1946
      %1950 = vset.pattern.permute.xlu0 0
      %1951 = vperm.xlu0 %1950, %v1937
      %v1952 = vpop.permute.xlu0 %1951
      %1955 = vset.pattern.permute.xlu0 0
      %1956 = vperm.xlu0 %1955, %v1938
      %v1957 = vpop.permute.xlu0 %1956
      %1960 = vset.pattern.permute.xlu0 0
      %1961 = vperm.xlu0 %1960, %v1939
      %v1962 = vpop.permute.xlu0 %1961
      %1965 = vset.pattern.permute.xlu0 0
      %1966 = vperm.xlu0 %1965, %v1940
      %v1967 = vpop.permute.xlu0 %1966
      %1970 = vset.pattern.permute.xlu0 0
      %1971 = vperm.xlu0 %1970, %v1941
      %v1972 = vpop.permute.xlu0 %1971
      %1975 = vset.pattern.permute.xlu0 0
      %1976 = vperm.xlu0 %1975, %v1942
      %v1977 = vpop.permute.xlu0 %1976
      %v1979 = vlaneseq
      %v1980 = vshrl.u32 %v1979, 7
      %v1981 = vsub.s32 0, %v1980
      %v1982 = vrot.slane %v1943, %v1981
      %v1983 = vmul.f32 %v1947, %v1982
      %v1984 = vmul.f32 %v1952, %v1982
      %v1985 = vmul.f32 %v1957, %v1982
      %v1986 = vmul.f32 %v1962, %v1982
      %v1987 = vmul.f32 %v1967, %v1982
      %v1988 = vmul.f32 %v1972, %v1982
      %v1989 = vmul.f32 %v1977, %v1982
      %v1990 = vadd.f32 %v1928, %v1983
      %v1991 = vadd.f32 %v1929, %v1984
      %v1992 = vadd.f32 %v1930, %v1985
      %v1993 = vadd.f32 %v1931, %v1986
      %v1994 = vadd.f32 %v1932, %v1987
      %v1995 = vadd.f32 %v1933, %v1988
      %v1996 = vadd.f32 %v1934, %v1989
      %v1997 = vld [vmem:[%s2 + $0x19] sm:$0x1]
      %1998 = vset.pattern.permute.xlu0 1
      %1999 = vperm.xlu0 %1998, %v1936
      %v2000 = vpop.permute.xlu0 %1999
      %2002 = vset.pattern.permute.xlu0 1
      %2003 = vperm.xlu0 %2002, %v1937
      %v2004 = vpop.permute.xlu0 %2003
      %2006 = vset.pattern.permute.xlu0 1
      %2007 = vperm.xlu0 %2006, %v1938
      %v2008 = vpop.permute.xlu0 %2007
      %2010 = vset.pattern.permute.xlu0 1
      %2011 = vperm.xlu0 %2010, %v1939
      %v2012 = vpop.permute.xlu0 %2011
      %2014 = vset.pattern.permute.xlu0 1
      %2015 = vperm.xlu0 %2014, %v1940
      %v2016 = vpop.permute.xlu0 %2015
      %2018 = vset.pattern.permute.xlu0 1
      %2019 = vperm.xlu0 %2018, %v1941
      %v2020 = vpop.permute.xlu0 %2019
      %2022 = vset.pattern.permute.xlu0 1
      %2023 = vperm.xlu0 %2022, %v1942
      %v2024 = vpop.permute.xlu0 %2023
      %v2026 = vlaneseq
      %v2027 = vshrl.u32 %v2026, 7
      %v2028 = vsub.s32 0, %v2027
      %v2029 = vrot.slane %v1997, %v2028
      %v2030 = vmul.f32 %v2000, %v2029
      %v2031 = vmul.f32 %v2004, %v2029
      %v2032 = vmul.f32 %v2008, %v2029
      %v2033 = vmul.f32 %v2012, %v2029
      %v2034 = vmul.f32 %v2016, %v2029
      %v2035 = vmul.f32 %v2020, %v2029
      %v2036 = vmul.f32 %v2024, %v2029
      %v2037 = vadd.f32 %v1990, %v2030
      %v2038 = vadd.f32 %v1991, %v2031
      %v2039 = vadd.f32 %v1992, %v2032
      %v2040 = vadd.f32 %v1993, %v2033
      %v2041 = vadd.f32 %v1994, %v2034
      %v2042 = vadd.f32 %v1995, %v2035
      %v2043 = vadd.f32 %v1996, %v2036
      %v2044 = vld [vmem:[%s2 + $0x1a] sm:$0x1]
      %2045 = vset.pattern.permute.xlu0 2
      %2046 = vperm.xlu0 %2045, %v1936
      %v2047 = vpop.permute.xlu0 %2046
      %2049 = vset.pattern.permute.xlu0 2
      %2050 = vperm.xlu0 %2049, %v1937
      %v2051 = vpop.permute.xlu0 %2050
      %2053 = vset.pattern.permute.xlu0 2
      %2054 = vperm.xlu0 %2053, %v1938
      %v2055 = vpop.permute.xlu0 %2054
      %2057 = vset.pattern.permute.xlu0 2
      %2058 = vperm.xlu0 %2057, %v1939
      %v2059 = vpop.permute.xlu0 %2058
      %2061 = vset.pattern.permute.xlu0 2
      %2062 = vperm.xlu0 %2061, %v1940
      %v2063 = vpop.permute.xlu0 %2062
      %2065 = vset.pattern.permute.xlu0 2
      %2066 = vperm.xlu0 %2065, %v1941
      %v2067 = vpop.permute.xlu0 %2066
      %2069 = vset.pattern.permute.xlu0 2
      %2070 = vperm.xlu0 %2069, %v1942
      %v2071 = vpop.permute.xlu0 %2070
      %v2073 = vlaneseq
      %v2074 = vshrl.u32 %v2073, 7
      %v2075 = vsub.s32 0, %v2074
      %v2076 = vrot.slane %v2044, %v2075
      %v2077 = vmul.f32 %v2047, %v2076
      %v2078 = vmul.f32 %v2051, %v2076
      %v2079 = vmul.f32 %v2055, %v2076
      %v2080 = vmul.f32 %v2059, %v2076
      %v2081 = vmul.f32 %v2063, %v2076
      %v2082 = vmul.f32 %v2067, %v2076
      %v2083 = vmul.f32 %v2071, %v2076
      %v2084 = vadd.f32 %v2037, %v2077
      %v2085 = vadd.f32 %v2038, %v2078
      %v2086 = vadd.f32 %v2039, %v2079
      %v2087 = vadd.f32 %v2040, %v2080
      %v2088 = vadd.f32 %v2041, %v2081
      %v2089 = vadd.f32 %v2042, %v2082
      %v2090 = vadd.f32 %v2043, %v2083
      %v2091 = vld [vmem:[%s2 + $0x1b] sm:$0x1]
      %2092 = vset.pattern.permute.xlu0 3
      %2093 = vperm.xlu0 %2092, %v1936
      %v2094 = vpop.permute.xlu0 %2093
      %2096 = vset.pattern.permute.xlu0 3
      %2097 = vperm.xlu0 %2096, %v1937
      %v2098 = vpop.permute.xlu0 %2097
      %2100 = vset.pattern.permute.xlu0 3
      %2101 = vperm.xlu0 %2100, %v1938
      %v2102 = vpop.permute.xlu0 %2101
      %2104 = vset.pattern.permute.xlu0 3
      %2105 = vperm.xlu0 %2104, %v1939
      %v2106 = vpop.permute.xlu0 %2105
      %2108 = vset.pattern.permute.xlu0 3
      %2109 = vperm.xlu0 %2108, %v1940
      %v2110 = vpop.permute.xlu0 %2109
      %2112 = vset.pattern.permute.xlu0 3
      %2113 = vperm.xlu0 %2112, %v1941
      %v2114 = vpop.permute.xlu0 %2113
      %2116 = vset.pattern.permute.xlu0 3
      %2117 = vperm.xlu0 %2116, %v1942
      %v2118 = vpop.permute.xlu0 %2117
      %v2120 = vlaneseq
      %v2121 = vshrl.u32 %v2120, 7
      %v2122 = vsub.s32 0, %v2121
      %v2123 = vrot.slane %v2091, %v2122
      %v2124 = vmul.f32 %v2094, %v2123
      %v2125 = vmul.f32 %v2098, %v2123
      %v2126 = vmul.f32 %v2102, %v2123
      %v2127 = vmul.f32 %v2106, %v2123
      %v2128 = vmul.f32 %v2110, %v2123
      %v2129 = vmul.f32 %v2114, %v2123
      %v2130 = vmul.f32 %v2118, %v2123
      %v2131 = vadd.f32 %v2084, %v2124
      %v2132 = vadd.f32 %v2085, %v2125
      %v2133 = vadd.f32 %v2086, %v2126
      %v2134 = vadd.f32 %v2087, %v2127
      %v2135 = vadd.f32 %v2088, %v2128
      %v2136 = vadd.f32 %v2089, %v2129
      %v2137 = vadd.f32 %v2090, %v2130
      %s2138 = scalar_lea.vmem %s701, 72
      %v2139 = vld [vmem:[%s2138] sm:$0x7f]
      %v2140 = vld [vmem:[%s2138 + $0x8] sm:$0x7f]
      %v2141 = vld [vmem:[%s2138 + $0x10] sm:$0x7f]
      %v2142 = vld [vmem:[%s2138 + $0x18] sm:$0x7f]
      %v2143 = vld [vmem:[%s2138 + $0x20] sm:$0x7f]
      %v2144 = vld [vmem:[%s2138 + $0x28] sm:$0x7f]
      %v2145 = vld [vmem:[%s2138 + $0x30] sm:$0x7f]
      %v2146 = vld [vmem:[%s2 + $0x1c] sm:$0x1]
      %2148 = vset.pattern.permute.xlu0 0
      %2149 = vperm.xlu0 %2148, %v2139
      %v2150 = vpop.permute.xlu0 %2149
      %2153 = vset.pattern.permute.xlu0 0
      %2154 = vperm.xlu0 %2153, %v2140
      %v2155 = vpop.permute.xlu0 %2154
      %2158 = vset.pattern.permute.xlu0 0
      %2159 = vperm.xlu0 %2158, %v2141
      %v2160 = vpop.permute.xlu0 %2159
      %2163 = vset.pattern.permute.xlu0 0
      %2164 = vperm.xlu0 %2163, %v2142
      %v2165 = vpop.permute.xlu0 %2164
      %2168 = vset.pattern.permute.xlu0 0
      %2169 = vperm.xlu0 %2168, %v2143
      %v2170 = vpop.permute.xlu0 %2169
      %2173 = vset.pattern.permute.xlu0 0
      %2174 = vperm.xlu0 %2173, %v2144
      %v2175 = vpop.permute.xlu0 %2174
      %2178 = vset.pattern.permute.xlu0 0
      %2179 = vperm.xlu0 %2178, %v2145
      %v2180 = vpop.permute.xlu0 %2179
      %v2182 = vlaneseq
      %v2183 = vshrl.u32 %v2182, 7
      %v2184 = vsub.s32 0, %v2183
      %v2185 = vrot.slane %v2146, %v2184
      %v2186 = vmul.f32 %v2150, %v2185
      %v2187 = vmul.f32 %v2155, %v2185
      %v2188 = vmul.f32 %v2160, %v2185
      %v2189 = vmul.f32 %v2165, %v2185
      %v2190 = vmul.f32 %v2170, %v2185
      %v2191 = vmul.f32 %v2175, %v2185
      %v2192 = vmul.f32 %v2180, %v2185
      %v2193 = vadd.f32 %v2131, %v2186
      %v2194 = vadd.f32 %v2132, %v2187
      %v2195 = vadd.f32 %v2133, %v2188
      %v2196 = vadd.f32 %v2134, %v2189
      %v2197 = vadd.f32 %v2135, %v2190
      %v2198 = vadd.f32 %v2136, %v2191
      %v2199 = vadd.f32 %v2137, %v2192
      %v2200 = vld [vmem:[%s2 + $0x1d] sm:$0x1]
      %2201 = vset.pattern.permute.xlu0 1
      %2202 = vperm.xlu0 %2201, %v2139
      %v2203 = vpop.permute.xlu0 %2202
      %2205 = vset.pattern.permute.xlu0 1
      %2206 = vperm.xlu0 %2205, %v2140
      %v2207 = vpop.permute.xlu0 %2206
      %2209 = vset.pattern.permute.xlu0 1
      %2210 = vperm.xlu0 %2209, %v2141
      %v2211 = vpop.permute.xlu0 %2210
      %2213 = vset.pattern.permute.xlu0 1
      %2214 = vperm.xlu0 %2213, %v2142
      %v2215 = vpop.permute.xlu0 %2214
      %2217 = vset.pattern.permute.xlu0 1
      %2218 = vperm.xlu0 %2217, %v2143
      %v2219 = vpop.permute.xlu0 %2218
      %2221 = vset.pattern.permute.xlu0 1
      %2222 = vperm.xlu0 %2221, %v2144
      %v2223 = vpop.permute.xlu0 %2222
      %2225 = vset.pattern.permute.xlu0 1
      %2226 = vperm.xlu0 %2225, %v2145
      %v2227 = vpop.permute.xlu0 %2226
      %v2229 = vlaneseq
      %v2230 = vshrl.u32 %v2229, 7
      %v2231 = vsub.s32 0, %v2230
      %v2232 = vrot.slane %v2200, %v2231
      %v2233 = vmul.f32 %v2203, %v2232
      %v2234 = vmul.f32 %v2207, %v2232
      %v2235 = vmul.f32 %v2211, %v2232
      %v2236 = vmul.f32 %v2215, %v2232
      %v2237 = vmul.f32 %v2219, %v2232
      %v2238 = vmul.f32 %v2223, %v2232
      %v2239 = vmul.f32 %v2227, %v2232
      %v2240 = vadd.f32 %v2193, %v2233
      %v2241 = vadd.f32 %v2194, %v2234
      %v2242 = vadd.f32 %v2195, %v2235
      %v2243 = vadd.f32 %v2196, %v2236
      %v2244 = vadd.f32 %v2197, %v2237
      %v2245 = vadd.f32 %v2198, %v2238
      %v2246 = vadd.f32 %v2199, %v2239
      %v2247 = vld [vmem:[%s2 + $0x1e] sm:$0x1]
      %2248 = vset.pattern.permute.xlu0 2
      %2249 = vperm.xlu0 %2248, %v2139
      %v2250 = vpop.permute.xlu0 %2249
      %2252 = vset.pattern.permute.xlu0 2
      %2253 = vperm.xlu0 %2252, %v2140
      %v2254 = vpop.permute.xlu0 %2253
      %2256 = vset.pattern.permute.xlu0 2
      %2257 = vperm.xlu0 %2256, %v2141
      %v2258 = vpop.permute.xlu0 %2257
      %2260 = vset.pattern.permute.xlu0 2
      %2261 = vperm.xlu0 %2260, %v2142
      %v2262 = vpop.permute.xlu0 %2261
      %2264 = vset.pattern.permute.xlu0 2
      %2265 = vperm.xlu0 %2264, %v2143
      %v2266 = vpop.permute.xlu0 %2265
      %2268 = vset.pattern.permute.xlu0 2
      %2269 = vperm.xlu0 %2268, %v2144
      %v2270 = vpop.permute.xlu0 %2269
      %2272 = vset.pattern.permute.xlu0 2
      %2273 = vperm.xlu0 %2272, %v2145
      %v2274 = vpop.permute.xlu0 %2273
      %v2276 = vlaneseq
      %v2277 = vshrl.u32 %v2276, 7
      %v2278 = vsub.s32 0, %v2277
      %v2279 = vrot.slane %v2247, %v2278
      %v2280 = vmul.f32 %v2250, %v2279
      %v2281 = vmul.f32 %v2254, %v2279
      %v2282 = vmul.f32 %v2258, %v2279
      %v2283 = vmul.f32 %v2262, %v2279
      %v2284 = vmul.f32 %v2266, %v2279
      %v2285 = vmul.f32 %v2270, %v2279
      %v2286 = vmul.f32 %v2274, %v2279
      %v2287 = vadd.f32 %v2240, %v2280
      %v2288 = vadd.f32 %v2241, %v2281
      %v2289 = vadd.f32 %v2242, %v2282
      %v2290 = vadd.f32 %v2243, %v2283
      %v2291 = vadd.f32 %v2244, %v2284
      %v2292 = vadd.f32 %v2245, %v2285
      %v2293 = vadd.f32 %v2246, %v2286
      %v2294 = vld [vmem:[%s2 + $0x1f] sm:$0x1]
      %2295 = vset.pattern.permute.xlu0 3
      %2296 = vperm.xlu0 %2295, %v2139
      %v2297 = vpop.permute.xlu0 %2296
      %2299 = vset.pattern.permute.xlu0 3
      %2300 = vperm.xlu0 %2299, %v2140
      %v2301 = vpop.permute.xlu0 %2300
      %2303 = vset.pattern.permute.xlu0 3
      %2304 = vperm.xlu0 %2303, %v2141
      %v2305 = vpop.permute.xlu0 %2304
      %2307 = vset.pattern.permute.xlu0 3
      %2308 = vperm.xlu0 %2307, %v2142
      %v2309 = vpop.permute.xlu0 %2308
      %2311 = vset.pattern.permute.xlu0 3
      %2312 = vperm.xlu0 %2311, %v2143
      %v2313 = vpop.permute.xlu0 %2312
      %2315 = vset.pattern.permute.xlu0 3
      %2316 = vperm.xlu0 %2315, %v2144
      %v2317 = vpop.permute.xlu0 %2316
      %2319 = vset.pattern.permute.xlu0 3
      %2320 = vperm.xlu0 %2319, %v2145
      %v2321 = vpop.permute.xlu0 %2320
      %v2323 = vlaneseq
      %v2324 = vshrl.u32 %v2323, 7
      %v2325 = vsub.s32 0, %v2324
      %v2326 = vrot.slane %v2294, %v2325
      %v2327 = vmul.f32 %v2297, %v2326
      %v2328 = vmul.f32 %v2301, %v2326
      %v2329 = vmul.f32 %v2305, %v2326
      %v2330 = vmul.f32 %v2309, %v2326
      %v2331 = vmul.f32 %v2313, %v2326
      %v2332 = vmul.f32 %v2317, %v2326
      %v2333 = vmul.f32 %v2321, %v2326
      %v2334 = vadd.f32 %v2287, %v2327
      %v2335 = vadd.f32 %v2288, %v2328
      %v2336 = vadd.f32 %v2289, %v2329
      %v2337 = vadd.f32 %v2290, %v2330
      %v2338 = vadd.f32 %v2291, %v2331
      %v2339 = vadd.f32 %v2292, %v2332
      %v2340 = vadd.f32 %v2293, %v2333
      %v2341 = vld [vmem:[%s1935 + $0x1] sm:$0x7f]
      %v2342 = vld [vmem:[%s1935 + $0x9] sm:$0x7f]
      %v2343 = vld [vmem:[%s1935 + $0x11] sm:$0x7f]
      %v2344 = vld [vmem:[%s1935 + $0x19] sm:$0x7f]
      %v2345 = vld [vmem:[%s1935 + $0x21] sm:$0x7f]
      %v2346 = vld [vmem:[%s1935 + $0x29] sm:$0x7f]
      %v2347 = vld [vmem:[%s1935 + $0x31] sm:$0x7f]
      %v2348 = vld [vmem:[%s2 + $0x20] sm:$0x1]
      %2350 = vset.pattern.permute.xlu0 0
      %2351 = vperm.xlu0 %2350, %v2341
      %v2352 = vpop.permute.xlu0 %2351
      %2355 = vset.pattern.permute.xlu0 0
      %2356 = vperm.xlu0 %2355, %v2342
      %v2357 = vpop.permute.xlu0 %2356
      %2360 = vset.pattern.permute.xlu0 0
      %2361 = vperm.xlu0 %2360, %v2343
      %v2362 = vpop.permute.xlu0 %2361
      %2365 = vset.pattern.permute.xlu0 0
      %2366 = vperm.xlu0 %2365, %v2344
      %v2367 = vpop.permute.xlu0 %2366
      %2370 = vset.pattern.permute.xlu0 0
      %2371 = vperm.xlu0 %2370, %v2345
      %v2372 = vpop.permute.xlu0 %2371
      %2375 = vset.pattern.permute.xlu0 0
      %2376 = vperm.xlu0 %2375, %v2346
      %v2377 = vpop.permute.xlu0 %2376
      %2380 = vset.pattern.permute.xlu0 0
      %2381 = vperm.xlu0 %2380, %v2347
      %v2382 = vpop.permute.xlu0 %2381
      %v2384 = vlaneseq
      %v2385 = vshrl.u32 %v2384, 7
      %v2386 = vsub.s32 0, %v2385
      %v2387 = vrot.slane %v2348, %v2386
      %v2388 = vmul.f32 %v2352, %v2387
      %v2389 = vmul.f32 %v2357, %v2387
      %v2390 = vmul.f32 %v2362, %v2387
      %v2391 = vmul.f32 %v2367, %v2387
      %v2392 = vmul.f32 %v2372, %v2387
      %v2393 = vmul.f32 %v2377, %v2387
      %v2394 = vmul.f32 %v2382, %v2387
      %v2395 = vadd.f32 %v2334, %v2388
      %v2396 = vadd.f32 %v2335, %v2389
      %v2397 = vadd.f32 %v2336, %v2390
      %v2398 = vadd.f32 %v2337, %v2391
      %v2399 = vadd.f32 %v2338, %v2392
      %v2400 = vadd.f32 %v2339, %v2393
      %v2401 = vadd.f32 %v2340, %v2394
      %v2402 = vld [vmem:[%s2 + $0x21] sm:$0x1]
      %2403 = vset.pattern.permute.xlu0 1
      %2404 = vperm.xlu0 %2403, %v2341
      %v2405 = vpop.permute.xlu0 %2404
      %2407 = vset.pattern.permute.xlu0 1
      %2408 = vperm.xlu0 %2407, %v2342
      %v2409 = vpop.permute.xlu0 %2408
      %2411 = vset.pattern.permute.xlu0 1
      %2412 = vperm.xlu0 %2411, %v2343
      %v2413 = vpop.permute.xlu0 %2412
      %2415 = vset.pattern.permute.xlu0 1
      %2416 = vperm.xlu0 %2415, %v2344
      %v2417 = vpop.permute.xlu0 %2416
      %2419 = vset.pattern.permute.xlu0 1
      %2420 = vperm.xlu0 %2419, %v2345
      %v2421 = vpop.permute.xlu0 %2420
      %2423 = vset.pattern.permute.xlu0 1
      %2424 = vperm.xlu0 %2423, %v2346
      %v2425 = vpop.permute.xlu0 %2424
      %2427 = vset.pattern.permute.xlu0 1
      %2428 = vperm.xlu0 %2427, %v2347
      %v2429 = vpop.permute.xlu0 %2428
      %v2431 = vlaneseq
      %v2432 = vshrl.u32 %v2431, 7
      %v2433 = vsub.s32 0, %v2432
      %v2434 = vrot.slane %v2402, %v2433
      %v2435 = vmul.f32 %v2405, %v2434
      %v2436 = vmul.f32 %v2409, %v2434
      %v2437 = vmul.f32 %v2413, %v2434
      %v2438 = vmul.f32 %v2417, %v2434
      %v2439 = vmul.f32 %v2421, %v2434
      %v2440 = vmul.f32 %v2425, %v2434
      %v2441 = vmul.f32 %v2429, %v2434
      %v2442 = vadd.f32 %v2395, %v2435
      %v2443 = vadd.f32 %v2396, %v2436
      %v2444 = vadd.f32 %v2397, %v2437
      %v2445 = vadd.f32 %v2398, %v2438
      %v2446 = vadd.f32 %v2399, %v2439
      %v2447 = vadd.f32 %v2400, %v2440
      %v2448 = vadd.f32 %v2401, %v2441
      %v2449 = vld [vmem:[%s2 + $0x22] sm:$0x1]
      %2450 = vset.pattern.permute.xlu0 2
      %2451 = vperm.xlu0 %2450, %v2341
      %v2452 = vpop.permute.xlu0 %2451
      %2454 = vset.pattern.permute.xlu0 2
      %2455 = vperm.xlu0 %2454, %v2342
      %v2456 = vpop.permute.xlu0 %2455
      %2458 = vset.pattern.permute.xlu0 2
      %2459 = vperm.xlu0 %2458, %v2343
      %v2460 = vpop.permute.xlu0 %2459
      %2462 = vset.pattern.permute.xlu0 2
      %2463 = vperm.xlu0 %2462, %v2344
      %v2464 = vpop.permute.xlu0 %2463
      %2466 = vset.pattern.permute.xlu0 2
      %2467 = vperm.xlu0 %2466, %v2345
      %v2468 = vpop.permute.xlu0 %2467
      %2470 = vset.pattern.permute.xlu0 2
      %2471 = vperm.xlu0 %2470, %v2346
      %v2472 = vpop.permute.xlu0 %2471
      %2474 = vset.pattern.permute.xlu0 2
      %2475 = vperm.xlu0 %2474, %v2347
      %v2476 = vpop.permute.xlu0 %2475
      %v2478 = vlaneseq
      %v2479 = vshrl.u32 %v2478, 7
      %v2480 = vsub.s32 0, %v2479
      %v2481 = vrot.slane %v2449, %v2480
      %v2482 = vmul.f32 %v2452, %v2481
      %v2483 = vmul.f32 %v2456, %v2481
      %v2484 = vmul.f32 %v2460, %v2481
      %v2485 = vmul.f32 %v2464, %v2481
      %v2486 = vmul.f32 %v2468, %v2481
      %v2487 = vmul.f32 %v2472, %v2481
      %v2488 = vmul.f32 %v2476, %v2481
      %v2489 = vadd.f32 %v2442, %v2482
      %v2490 = vadd.f32 %v2443, %v2483
      %v2491 = vadd.f32 %v2444, %v2484
      %v2492 = vadd.f32 %v2445, %v2485
      %v2493 = vadd.f32 %v2446, %v2486
      %v2494 = vadd.f32 %v2447, %v2487
      %v2495 = vadd.f32 %v2448, %v2488
      %v2496 = vld [vmem:[%s2 + $0x23] sm:$0x1]
      %2497 = vset.pattern.permute.xlu0 3
      %2498 = vperm.xlu0 %2497, %v2341
      %v2499 = vpop.permute.xlu0 %2498
      %2501 = vset.pattern.permute.xlu0 3
      %2502 = vperm.xlu0 %2501, %v2342
      %v2503 = vpop.permute.xlu0 %2502
      %2505 = vset.pattern.permute.xlu0 3
      %2506 = vperm.xlu0 %2505, %v2343
      %v2507 = vpop.permute.xlu0 %2506
      %2509 = vset.pattern.permute.xlu0 3
      %2510 = vperm.xlu0 %2509, %v2344
      %v2511 = vpop.permute.xlu0 %2510
      %2513 = vset.pattern.permute.xlu0 3
      %2514 = vperm.xlu0 %2513, %v2345
      %v2515 = vpop.permute.xlu0 %2514
      %2517 = vset.pattern.permute.xlu0 3
      %2518 = vperm.xlu0 %2517, %v2346
      %v2519 = vpop.permute.xlu0 %2518
      %2521 = vset.pattern.permute.xlu0 3
      %2522 = vperm.xlu0 %2521, %v2347
      %v2523 = vpop.permute.xlu0 %2522
      %v2525 = vlaneseq
      %v2526 = vshrl.u32 %v2525, 7
      %v2527 = vsub.s32 0, %v2526
      %v2528 = vrot.slane %v2496, %v2527
      %v2529 = vmul.f32 %v2499, %v2528
      %v2530 = vmul.f32 %v2503, %v2528
      %v2531 = vmul.f32 %v2507, %v2528
      %v2532 = vmul.f32 %v2511, %v2528
      %v2533 = vmul.f32 %v2515, %v2528
      %v2534 = vmul.f32 %v2519, %v2528
      %v2535 = vmul.f32 %v2523, %v2528
      %v2536 = vadd.f32 %v2489, %v2529
      %v2537 = vadd.f32 %v2490, %v2530
      %v2538 = vadd.f32 %v2491, %v2531
      %v2539 = vadd.f32 %v2492, %v2532
      %v2540 = vadd.f32 %v2493, %v2533
      %v2541 = vadd.f32 %v2494, %v2534
      %v2542 = vadd.f32 %v2495, %v2535
      %v2543 = vmax.f32 %v2536, 0.0
      %v2544 = vmax.f32 %v2537, 0.0
      %v2545 = vmax.f32 %v2538, 0.0
      %v2546 = vmax.f32 %v2539, 0.0
      %v2547 = vmax.f32 %v2540, 0.0
      %v2548 = vmax.f32 %v2541, 0.0
      %v2549 = vmax.f32 %v2542, 0.0
      %vm2550 = vcmask 63488
      %2551 = vst.msk [vmem:[#allocation2] sm:$0x7f] %vm2550, %v2543
      %2552 = vst.msk [vmem:[#allocation2 + $0x8] sm:$0x7f] %vm2550, %v2544
      %2553 = vst.msk [vmem:[#allocation2 + $0x10] sm:$0x7f] %vm2550, %v2545
      %2554 = vst.msk [vmem:[#allocation2 + $0x18] sm:$0x7f] %vm2550, %v2546
      %2555 = vst.msk [vmem:[#allocation2 + $0x20] sm:$0x7f] %vm2550, %v2547
      %2556 = vst.msk [vmem:[#allocation2 + $0x28] sm:$0x7f] %vm2550, %v2548
      %2557 = vst.msk [vmem:[#allocation2 + $0x30] sm:$0x7f] %vm2550, %v2549
      %v2558 = vld [vmem:[%s5] sm:$0x1]
      %v2560 = vlaneseq
      %v2561 = vshrl.u32 %v2560, 7
      %v2562 = vsub.s32 0, %v2561
      %v2563 = vrot.slane %v2558, %v2562
      %v2565 = vadd.f32 %v2563, 0.0
      %v2566 = vld [vmem:[#allocation2] sm:$0x1f]
      %v2567 = vld [vmem:[#allocation2 + $0x8] sm:$0x1f]
      %v2568 = vld [vmem:[#allocation2 + $0x10] sm:$0x1f]
      %v2569 = vld [vmem:[#allocation2 + $0x18] sm:$0x1f]
      %v2570 = vld [vmem:[#allocation2 + $0x20] sm:$0x1f]
      %v2571 = vld [vmem:[%s3] sm:$0x1]
      %2573 = vset.pattern.permute.xlu0 0
      %2574 = vperm.xlu0 %2573, %v2566
      %v2575 = vpop.permute.xlu0 %2574
      %2578 = vset.pattern.permute.xlu0 0
      %2579 = vperm.xlu0 %2578, %v2567
      %v2580 = vpop.permute.xlu0 %2579
      %2583 = vset.pattern.permute.xlu0 0
      %2584 = vperm.xlu0 %2583, %v2568
      %v2585 = vpop.permute.xlu0 %2584
      %2588 = vset.pattern.permute.xlu0 0
      %2589 = vperm.xlu0 %2588, %v2569
      %v2590 = vpop.permute.xlu0 %2589
      %2593 = vset.pattern.permute.xlu0 0
      %2594 = vperm.xlu0 %2593, %v2570
      %v2595 = vpop.permute.xlu0 %2594
      %v2597 = vlaneseq
      %v2598 = vshrl.u32 %v2597, 7
      %v2599 = vsub.s32 0, %v2598
      %v2600 = vrot.slane %v2571, %v2599
      %v2601 = vmul.f32 %v2575, %v2600
      %v2602 = vmul.f32 %v2580, %v2600
      %v2603 = vmul.f32 %v2585, %v2600
      %v2604 = vmul.f32 %v2590, %v2600
      %v2605 = vmul.f32 %v2595, %v2600
      %v2606 = vadd.f32 %v2565, %v2601
      %v2607 = vadd.f32 %v2565, %v2602
      %v2608 = vadd.f32 %v2565, %v2603
      %v2609 = vadd.f32 %v2565, %v2604
      %v2610 = vadd.f32 %v2565, %v2605
      %v2611 = vld [vmem:[%s3 + $0x1] sm:$0x1]
      %2612 = vset.pattern.permute.xlu0 1
      %2613 = vperm.xlu0 %2612, %v2566
      %v2614 = vpop.permute.xlu0 %2613
      %2616 = vset.pattern.permute.xlu0 1
      %2617 = vperm.xlu0 %2616, %v2567
      %v2618 = vpop.permute.xlu0 %2617
      %2620 = vset.pattern.permute.xlu0 1
      %2621 = vperm.xlu0 %2620, %v2568
      %v2622 = vpop.permute.xlu0 %2621
      %2624 = vset.pattern.permute.xlu0 1
      %2625 = vperm.xlu0 %2624, %v2569
      %v2626 = vpop.permute.xlu0 %2625
      %2628 = vset.pattern.permute.xlu0 1
      %2629 = vperm.xlu0 %2628, %v2570
      %v2630 = vpop.permute.xlu0 %2629
      %v2632 = vlaneseq
      %v2633 = vshrl.u32 %v2632, 7
      %v2634 = vsub.s32 0, %v2633
      %v2635 = vrot.slane %v2611, %v2634
      %v2636 = vmul.f32 %v2614, %v2635
      %v2637 = vmul.f32 %v2618, %v2635
      %v2638 = vmul.f32 %v2622, %v2635
      %v2639 = vmul.f32 %v2626, %v2635
      %v2640 = vmul.f32 %v2630, %v2635
      %v2641 = vadd.f32 %v2606, %v2636
      %v2642 = vadd.f32 %v2607, %v2637
      %v2643 = vadd.f32 %v2608, %v2638
      %v2644 = vadd.f32 %v2609, %v2639
      %v2645 = vadd.f32 %v2610, %v2640
      %v2646 = vld [vmem:[%s3 + $0x2] sm:$0x1]
      %2647 = vset.pattern.permute.xlu0 2
      %2648 = vperm.xlu0 %2647, %v2566
      %v2649 = vpop.permute.xlu0 %2648
      %2651 = vset.pattern.permute.xlu0 2
      %2652 = vperm.xlu0 %2651, %v2567
      %v2653 = vpop.permute.xlu0 %2652
      %2655 = vset.pattern.permute.xlu0 2
      %2656 = vperm.xlu0 %2655, %v2568
      %v2657 = vpop.permute.xlu0 %2656
      %2659 = vset.pattern.permute.xlu0 2
      %2660 = vperm.xlu0 %2659, %v2569
      %v2661 = vpop.permute.xlu0 %2660
      %2663 = vset.pattern.permute.xlu0 2
      %2664 = vperm.xlu0 %2663, %v2570
      %v2665 = vpop.permute.xlu0 %2664
      %v2667 = vlaneseq
      %v2668 = vshrl.u32 %v2667, 7
      %v2669 = vsub.s32 0, %v2668
      %v2670 = vrot.slane %v2646, %v2669
      %v2671 = vmul.f32 %v2649, %v2670
      %v2672 = vmul.f32 %v2653, %v2670
      %v2673 = vmul.f32 %v2657, %v2670
      %v2674 = vmul.f32 %v2661, %v2670
      %v2675 = vmul.f32 %v2665, %v2670
      %v2676 = vadd.f32 %v2641, %v2671
      %v2677 = vadd.f32 %v2642, %v2672
      %v2678 = vadd.f32 %v2643, %v2673
      %v2679 = vadd.f32 %v2644, %v2674
      %v2680 = vadd.f32 %v2645, %v2675
      %v2681 = vld [vmem:[%s3 + $0x3] sm:$0x1]
      %2682 = vset.pattern.permute.xlu0 3
      %2683 = vperm.xlu0 %2682, %v2566
      %v2684 = vpop.permute.xlu0 %2683
      %2686 = vset.pattern.permute.xlu0 3
      %2687 = vperm.xlu0 %2686, %v2567
      %v2688 = vpop.permute.xlu0 %2687
      %2690 = vset.pattern.permute.xlu0 3
      %2691 = vperm.xlu0 %2690, %v2568
      %v2692 = vpop.permute.xlu0 %2691
      %2694 = vset.pattern.permute.xlu0 3
      %2695 = vperm.xlu0 %2694, %v2569
      %v2696 = vpop.permute.xlu0 %2695
      %2698 = vset.pattern.permute.xlu0 3
      %2699 = vperm.xlu0 %2698, %v2570
      %v2700 = vpop.permute.xlu0 %2699
      %v2702 = vlaneseq
      %v2703 = vshrl.u32 %v2702, 7
      %v2704 = vsub.s32 0, %v2703
      %v2705 = vrot.slane %v2681, %v2704
      %v2706 = vmul.f32 %v2684, %v2705
      %v2707 = vmul.f32 %v2688, %v2705
      %v2708 = vmul.f32 %v2692, %v2705
      %v2709 = vmul.f32 %v2696, %v2705
      %v2710 = vmul.f32 %v2700, %v2705
      %v2711 = vadd.f32 %v2676, %v2706
      %v2712 = vadd.f32 %v2677, %v2707
      %v2713 = vadd.f32 %v2678, %v2708
      %v2714 = vadd.f32 %v2679, %v2709
      %v2715 = vadd.f32 %v2680, %v2710
      %v2716 = vld [vmem:[%s3 + $0x4] sm:$0x1]
      %2717 = vset.pattern.permute.xlu0 4
      %2718 = vperm.xlu0 %2717, %v2566
      %v2719 = vpop.permute.xlu0 %2718
      %2721 = vset.pattern.permute.xlu0 4
      %2722 = vperm.xlu0 %2721, %v2567
      %v2723 = vpop.permute.xlu0 %2722
      %2725 = vset.pattern.permute.xlu0 4
      %2726 = vperm.xlu0 %2725, %v2568
      %v2727 = vpop.permute.xlu0 %2726
      %2729 = vset.pattern.permute.xlu0 4
      %2730 = vperm.xlu0 %2729, %v2569
      %v2731 = vpop.permute.xlu0 %2730
      %2733 = vset.pattern.permute.xlu0 4
      %2734 = vperm.xlu0 %2733, %v2570
      %v2735 = vpop.permute.xlu0 %2734
      %v2737 = vlaneseq
      %v2738 = vshrl.u32 %v2737, 7
      %v2739 = vsub.s32 0, %v2738
      %v2740 = vrot.slane %v2716, %v2739
      %v2741 = vmul.f32 %v2719, %v2740
      %v2742 = vmul.f32 %v2723, %v2740
      %v2743 = vmul.f32 %v2727, %v2740
      %v2744 = vmul.f32 %v2731, %v2740
      %v2745 = vmul.f32 %v2735, %v2740
      %v2746 = vadd.f32 %v2711, %v2741
      %v2747 = vadd.f32 %v2712, %v2742
      %v2748 = vadd.f32 %v2713, %v2743
      %v2749 = vadd.f32 %v2714, %v2744
      %v2750 = vadd.f32 %v2715, %v2745
      %v2751 = vld [vmem:[%s3 + $0x5] sm:$0x1]
      %2752 = vset.pattern.permute.xlu0 5
      %2753 = vperm.xlu0 %2752, %v2566
      %v2754 = vpop.permute.xlu0 %2753
      %2756 = vset.pattern.permute.xlu0 5
      %2757 = vperm.xlu0 %2756, %v2567
      %v2758 = vpop.permute.xlu0 %2757
      %2760 = vset.pattern.permute.xlu0 5
      %2761 = vperm.xlu0 %2760, %v2568
      %v2762 = vpop.permute.xlu0 %2761
      %2764 = vset.pattern.permute.xlu0 5
      %2765 = vperm.xlu0 %2764, %v2569
      %v2766 = vpop.permute.xlu0 %2765
      %2768 = vset.pattern.permute.xlu0 5
      %2769 = vperm.xlu0 %2768, %v2570
      %v2770 = vpop.permute.xlu0 %2769
      %v2772 = vlaneseq
      %v2773 = vshrl.u32 %v2772, 7
      %v2774 = vsub.s32 0, %v2773
      %v2775 = vrot.slane %v2751, %v2774
      %v2776 = vmul.f32 %v2754, %v2775
      %v2777 = vmul.f32 %v2758, %v2775
      %v2778 = vmul.f32 %v2762, %v2775
      %v2779 = vmul.f32 %v2766, %v2775
      %v2780 = vmul.f32 %v2770, %v2775
      %v2781 = vadd.f32 %v2746, %v2776
      %v2782 = vadd.f32 %v2747, %v2777
      %v2783 = vadd.f32 %v2748, %v2778
      %v2784 = vadd.f32 %v2749, %v2779
      %v2785 = vadd.f32 %v2750, %v2780
      %v2786 = vld [vmem:[%s3 + $0x6] sm:$0x1]
      %2787 = vset.pattern.permute.xlu0 6
      %2788 = vperm.xlu0 %2787, %v2566
      %v2789 = vpop.permute.xlu0 %2788
      %2791 = vset.pattern.permute.xlu0 6
      %2792 = vperm.xlu0 %2791, %v2567
      %v2793 = vpop.permute.xlu0 %2792
      %2795 = vset.pattern.permute.xlu0 6
      %2796 = vperm.xlu0 %2795, %v2568
      %v2797 = vpop.permute.xlu0 %2796
      %2799 = vset.pattern.permute.xlu0 6
      %2800 = vperm.xlu0 %2799, %v2569
      %v2801 = vpop.permute.xlu0 %2800
      %2803 = vset.pattern.permute.xlu0 6
      %2804 = vperm.xlu0 %2803, %v2570
      %v2805 = vpop.permute.xlu0 %2804
      %v2807 = vlaneseq
      %v2808 = vshrl.u32 %v2807, 7
      %v2809 = vsub.s32 0, %v2808
      %v2810 = vrot.slane %v2786, %v2809
      %v2811 = vmul.f32 %v2789, %v2810
      %v2812 = vmul.f32 %v2793, %v2810
      %v2813 = vmul.f32 %v2797, %v2810
      %v2814 = vmul.f32 %v2801, %v2810
      %v2815 = vmul.f32 %v2805, %v2810
      %v2816 = vadd.f32 %v2781, %v2811
      %v2817 = vadd.f32 %v2782, %v2812
      %v2818 = vadd.f32 %v2783, %v2813
      %v2819 = vadd.f32 %v2784, %v2814
      %v2820 = vadd.f32 %v2785, %v2815
      %v2821 = vld [vmem:[%s3 + $0x7] sm:$0x1]
      %2822 = vset.pattern.permute.xlu0 7
      %2823 = vperm.xlu0 %2822, %v2566
      %v2824 = vpop.permute.xlu0 %2823
      %2826 = vset.pattern.permute.xlu0 7
      %2827 = vperm.xlu0 %2826, %v2567
      %v2828 = vpop.permute.xlu0 %2827
      %2830 = vset.pattern.permute.xlu0 7
      %2831 = vperm.xlu0 %2830, %v2568
      %v2832 = vpop.permute.xlu0 %2831
      %2834 = vset.pattern.permute.xlu0 7
      %2835 = vperm.xlu0 %2834, %v2569
      %v2836 = vpop.permute.xlu0 %2835
      %2838 = vset.pattern.permute.xlu0 7
      %2839 = vperm.xlu0 %2838, %v2570
      %v2840 = vpop.permute.xlu0 %2839
      %v2842 = vlaneseq
      %v2843 = vshrl.u32 %v2842, 7
      %v2844 = vsub.s32 0, %v2843
      %v2845 = vrot.slane %v2821, %v2844
      %v2846 = vmul.f32 %v2824, %v2845
      %v2847 = vmul.f32 %v2828, %v2845
      %v2848 = vmul.f32 %v2832, %v2845
      %v2849 = vmul.f32 %v2836, %v2845
      %v2850 = vmul.f32 %v2840, %v2845
      %v2851 = vadd.f32 %v2816, %v2846
      %v2852 = vadd.f32 %v2817, %v2847
      %v2853 = vadd.f32 %v2818, %v2848
      %v2854 = vadd.f32 %v2819, %v2849
      %v2855 = vadd.f32 %v2820, %v2850
      %v2856 = vld [vmem:[#allocation2 + $0x1] sm:$0x1f]
      %v2857 = vld [vmem:[#allocation2 + $0x9] sm:$0x1f]
      %v2858 = vld [vmem:[#allocation2 + $0x11] sm:$0x1f]
      %v2859 = vld [vmem:[#allocation2 + $0x19] sm:$0x1f]
      %v2860 = vld [vmem:[#allocation2 + $0x21] sm:$0x1f]
      %v2861 = vld [vmem:[%s3 + $0x8] sm:$0x1]
      %2863 = vset.pattern.permute.xlu0 0
      %2864 = vperm.xlu0 %2863, %v2856
      %v2865 = vpop.permute.xlu0 %2864
      %2868 = vset.pattern.permute.xlu0 0
      %2869 = vperm.xlu0 %2868, %v2857
      %v2870 = vpop.permute.xlu0 %2869
      %2873 = vset.pattern.permute.xlu0 0
      %2874 = vperm.xlu0 %2873, %v2858
      %v2875 = vpop.permute.xlu0 %2874
      %2878 = vset.pattern.permute.xlu0 0
      %2879 = vperm.xlu0 %2878, %v2859
      %v2880 = vpop.permute.xlu0 %2879
      %2883 = vset.pattern.permute.xlu0 0
      %2884 = vperm.xlu0 %2883, %v2860
      %v2885 = vpop.permute.xlu0 %2884
      %v2887 = vlaneseq
      %v2888 = vshrl.u32 %v2887, 7
      %v2889 = vsub.s32 0, %v2888
      %v2890 = vrot.slane %v2861, %v2889
      %v2891 = vmul.f32 %v2865, %v2890
      %v2892 = vmul.f32 %v2870, %v2890
      %v2893 = vmul.f32 %v2875, %v2890
      %v2894 = vmul.f32 %v2880, %v2890
      %v2895 = vmul.f32 %v2885, %v2890
      %v2896 = vadd.f32 %v2851, %v2891
      %v2897 = vadd.f32 %v2852, %v2892
      %v2898 = vadd.f32 %v2853, %v2893
      %v2899 = vadd.f32 %v2854, %v2894
      %v2900 = vadd.f32 %v2855, %v2895
      %v2901 = vld [vmem:[%s3 + $0x9] sm:$0x1]
      %2902 = vset.pattern.permute.xlu0 1
      %2903 = vperm.xlu0 %2902, %v2856
      %v2904 = vpop.permute.xlu0 %2903
      %2906 = vset.pattern.permute.xlu0 1
      %2907 = vperm.xlu0 %2906, %v2857
      %v2908 = vpop.permute.xlu0 %2907
      %2910 = vset.pattern.permute.xlu0 1
      %2911 = vperm.xlu0 %2910, %v2858
      %v2912 = vpop.permute.xlu0 %2911
      %2914 = vset.pattern.permute.xlu0 1
      %2915 = vperm.xlu0 %2914, %v2859
      %v2916 = vpop.permute.xlu0 %2915
      %2918 = vset.pattern.permute.xlu0 1
      %2919 = vperm.xlu0 %2918, %v2860
      %v2920 = vpop.permute.xlu0 %2919
      %v2922 = vlaneseq
      %v2923 = vshrl.u32 %v2922, 7
      %v2924 = vsub.s32 0, %v2923
      %v2925 = vrot.slane %v2901, %v2924
      %v2926 = vmul.f32 %v2904, %v2925
      %v2927 = vmul.f32 %v2908, %v2925
      %v2928 = vmul.f32 %v2912, %v2925
      %v2929 = vmul.f32 %v2916, %v2925
      %v2930 = vmul.f32 %v2920, %v2925
      %v2931 = vadd.f32 %v2896, %v2926
      %v2932 = vadd.f32 %v2897, %v2927
      %v2933 = vadd.f32 %v2898, %v2928
      %v2934 = vadd.f32 %v2899, %v2929
      %v2935 = vadd.f32 %v2900, %v2930
      %v2936 = vld [vmem:[%s3 + $0xa] sm:$0x1]
      %2937 = vset.pattern.permute.xlu0 2
      %2938 = vperm.xlu0 %2937, %v2856
      %v2939 = vpop.permute.xlu0 %2938
      %2941 = vset.pattern.permute.xlu0 2
      %2942 = vperm.xlu0 %2941, %v2857
      %v2943 = vpop.permute.xlu0 %2942
      %2945 = vset.pattern.permute.xlu0 2
      %2946 = vperm.xlu0 %2945, %v2858
      %v2947 = vpop.permute.xlu0 %2946
      %2949 = vset.pattern.permute.xlu0 2
      %2950 = vperm.xlu0 %2949, %v2859
      %v2951 = vpop.permute.xlu0 %2950
      %2953 = vset.pattern.permute.xlu0 2
      %2954 = vperm.xlu0 %2953, %v2860
      %v2955 = vpop.permute.xlu0 %2954
      %v2957 = vlaneseq
      %v2958 = vshrl.u32 %v2957, 7
      %v2959 = vsub.s32 0, %v2958
      %v2960 = vrot.slane %v2936, %v2959
      %v2961 = vmul.f32 %v2939, %v2960
      %v2962 = vmul.f32 %v2943, %v2960
      %v2963 = vmul.f32 %v2947, %v2960
      %v2964 = vmul.f32 %v2951, %v2960
      %v2965 = vmul.f32 %v2955, %v2960
      %v2966 = vadd.f32 %v2931, %v2961
      %v2967 = vadd.f32 %v2932, %v2962
      %v2968 = vadd.f32 %v2933, %v2963
      %v2969 = vadd.f32 %v2934, %v2964
      %v2970 = vadd.f32 %v2935, %v2965
      %v2971 = vld [vmem:[%s3 + $0xb] sm:$0x1]
      %2972 = vset.pattern.permute.xlu0 3
      %2973 = vperm.xlu0 %2972, %v2856
      %v2974 = vpop.permute.xlu0 %2973
      %2976 = vset.pattern.permute.xlu0 3
      %2977 = vperm.xlu0 %2976, %v2857
      %v2978 = vpop.permute.xlu0 %2977
      %2980 = vset.pattern.permute.xlu0 3
      %2981 = vperm.xlu0 %2980, %v2858
      %v2982 = vpop.permute.xlu0 %2981
      %2984 = vset.pattern.permute.xlu0 3
      %2985 = vperm.xlu0 %2984, %v2859
      %v2986 = vpop.permute.xlu0 %2985
      %2988 = vset.pattern.permute.xlu0 3
      %2989 = vperm.xlu0 %2988, %v2860
      %v2990 = vpop.permute.xlu0 %2989
      %v2992 = vlaneseq
      %v2993 = vshrl.u32 %v2992, 7
      %v2994 = vsub.s32 0, %v2993
      %v2995 = vrot.slane %v2971, %v2994
      %v2996 = vmul.f32 %v2974, %v2995
      %v2997 = vmul.f32 %v2978, %v2995
      %v2998 = vmul.f32 %v2982, %v2995
      %v2999 = vmul.f32 %v2986, %v2995
      %v3000 = vmul.f32 %v2990, %v2995
      %v3001 = vadd.f32 %v2966, %v2996
      %v3002 = vadd.f32 %v2967, %v2997
      %v3003 = vadd.f32 %v2968, %v2998
      %v3004 = vadd.f32 %v2969, %v2999
      %v3005 = vadd.f32 %v2970, %v3000
      %v3006 = vld [vmem:[%s3 + $0xc] sm:$0x1]
      %3007 = vset.pattern.permute.xlu0 4
      %3008 = vperm.xlu0 %3007, %v2856
      %v3009 = vpop.permute.xlu0 %3008
      %3011 = vset.pattern.permute.xlu0 4
      %3012 = vperm.xlu0 %3011, %v2857
      %v3013 = vpop.permute.xlu0 %3012
      %3015 = vset.pattern.permute.xlu0 4
      %3016 = vperm.xlu0 %3015, %v2858
      %v3017 = vpop.permute.xlu0 %3016
      %3019 = vset.pattern.permute.xlu0 4
      %3020 = vperm.xlu0 %3019, %v2859
      %v3021 = vpop.permute.xlu0 %3020
      %3023 = vset.pattern.permute.xlu0 4
      %3024 = vperm.xlu0 %3023, %v2860
      %v3025 = vpop.permute.xlu0 %3024
      %v3027 = vlaneseq
      %v3028 = vshrl.u32 %v3027, 7
      %v3029 = vsub.s32 0, %v3028
      %v3030 = vrot.slane %v3006, %v3029
      %v3031 = vmul.f32 %v3009, %v3030
      %v3032 = vmul.f32 %v3013, %v3030
      %v3033 = vmul.f32 %v3017, %v3030
      %v3034 = vmul.f32 %v3021, %v3030
      %v3035 = vmul.f32 %v3025, %v3030
      %v3036 = vadd.f32 %v3001, %v3031
      %v3037 = vadd.f32 %v3002, %v3032
      %v3038 = vadd.f32 %v3003, %v3033
      %v3039 = vadd.f32 %v3004, %v3034
      %v3040 = vadd.f32 %v3005, %v3035
      %v3041 = vld [vmem:[%s3 + $0xd] sm:$0x1]
      %3042 = vset.pattern.permute.xlu0 5
      %3043 = vperm.xlu0 %3042, %v2856
      %v3044 = vpop.permute.xlu0 %3043
      %3046 = vset.pattern.permute.xlu0 5
      %3047 = vperm.xlu0 %3046, %v2857
      %v3048 = vpop.permute.xlu0 %3047
      %3050 = vset.pattern.permute.xlu0 5
      %3051 = vperm.xlu0 %3050, %v2858
      %v3052 = vpop.permute.xlu0 %3051
      %3054 = vset.pattern.permute.xlu0 5
      %3055 = vperm.xlu0 %3054, %v2859
      %v3056 = vpop.permute.xlu0 %3055
      %3058 = vset.pattern.permute.xlu0 5
      %3059 = vperm.xlu0 %3058, %v2860
      %v3060 = vpop.permute.xlu0 %3059
      %v3062 = vlaneseq
      %v3063 = vshrl.u32 %v3062, 7
      %v3064 = vsub.s32 0, %v3063
      %v3065 = vrot.slane %v3041, %v3064
      %v3066 = vmul.f32 %v3044, %v3065
      %v3067 = vmul.f32 %v3048, %v3065
      %v3068 = vmul.f32 %v3052, %v3065
      %v3069 = vmul.f32 %v3056, %v3065
      %v3070 = vmul.f32 %v3060, %v3065
      %v3071 = vadd.f32 %v3036, %v3066
      %v3072 = vadd.f32 %v3037, %v3067
      %v3073 = vadd.f32 %v3038, %v3068
      %v3074 = vadd.f32 %v3039, %v3069
      %v3075 = vadd.f32 %v3040, %v3070
      %v3076 = vld [vmem:[%s3 + $0xe] sm:$0x1]
      %3077 = vset.pattern.permute.xlu0 6
      %3078 = vperm.xlu0 %3077, %v2856
      %v3079 = vpop.permute.xlu0 %3078
      %3081 = vset.pattern.permute.xlu0 6
      %3082 = vperm.xlu0 %3081, %v2857
      %v3083 = vpop.permute.xlu0 %3082
      %3085 = vset.pattern.permute.xlu0 6
      %3086 = vperm.xlu0 %3085, %v2858
      %v3087 = vpop.permute.xlu0 %3086
      %3089 = vset.pattern.permute.xlu0 6
      %3090 = vperm.xlu0 %3089, %v2859
      %v3091 = vpop.permute.xlu0 %3090
      %3093 = vset.pattern.permute.xlu0 6
      %3094 = vperm.xlu0 %3093, %v2860
      %v3095 = vpop.permute.xlu0 %3094
      %v3097 = vlaneseq
      %v3098 = vshrl.u32 %v3097, 7
      %v3099 = vsub.s32 0, %v3098
      %v3100 = vrot.slane %v3076, %v3099
      %v3101 = vmul.f32 %v3079, %v3100
      %v3102 = vmul.f32 %v3083, %v3100
      %v3103 = vmul.f32 %v3087, %v3100
      %v3104 = vmul.f32 %v3091, %v3100
      %v3105 = vmul.f32 %v3095, %v3100
      %v3106 = vadd.f32 %v3071, %v3101
      %v3107 = vadd.f32 %v3072, %v3102
      %v3108 = vadd.f32 %v3073, %v3103
      %v3109 = vadd.f32 %v3074, %v3104
      %v3110 = vadd.f32 %v3075, %v3105
      %v3111 = vld [vmem:[%s3 + $0xf] sm:$0x1]
      %3112 = vset.pattern.permute.xlu0 7
      %3113 = vperm.xlu0 %3112, %v2856
      %v3114 = vpop.permute.xlu0 %3113
      %3116 = vset.pattern.permute.xlu0 7
      %3117 = vperm.xlu0 %3116, %v2857
      %v3118 = vpop.permute.xlu0 %3117
      %3120 = vset.pattern.permute.xlu0 7
      %3121 = vperm.xlu0 %3120, %v2858
      %v3122 = vpop.permute.xlu0 %3121
      %3124 = vset.pattern.permute.xlu0 7
      %3125 = vperm.xlu0 %3124, %v2859
      %v3126 = vpop.permute.xlu0 %3125
      %3128 = vset.pattern.permute.xlu0 7
      %3129 = vperm.xlu0 %3128, %v2860
      %v3130 = vpop.permute.xlu0 %3129
      %v3132 = vlaneseq
      %v3133 = vshrl.u32 %v3132, 7
      %v3134 = vsub.s32 0, %v3133
      %v3135 = vrot.slane %v3111, %v3134
      %v3136 = vmul.f32 %v3114, %v3135
      %v3137 = vmul.f32 %v3118, %v3135
      %v3138 = vmul.f32 %v3122, %v3135
      %v3139 = vmul.f32 %v3126, %v3135
      %v3140 = vmul.f32 %v3130, %v3135
      %v3141 = vadd.f32 %v3106, %v3136
      %v3142 = vadd.f32 %v3107, %v3137
      %v3143 = vadd.f32 %v3108, %v3138
      %v3144 = vadd.f32 %v3109, %v3139
      %v3145 = vadd.f32 %v3110, %v3140
      %v3146 = vld [vmem:[#allocation2 + $0x2] sm:$0x1f]
      %v3147 = vld [vmem:[#allocation2 + $0xa] sm:$0x1f]
      %v3148 = vld [vmem:[#allocation2 + $0x12] sm:$0x1f]
      %v3149 = vld [vmem:[#allocation2 + $0x1a] sm:$0x1f]
      %v3150 = vld [vmem:[#allocation2 + $0x22] sm:$0x1f]
      %v3151 = vld [vmem:[%s3 + $0x10] sm:$0x1]
      %3153 = vset.pattern.permute.xlu0 0
      %3154 = vperm.xlu0 %3153, %v3146
      %v3155 = vpop.permute.xlu0 %3154
      %3158 = vset.pattern.permute.xlu0 0
      %3159 = vperm.xlu0 %3158, %v3147
      %v3160 = vpop.permute.xlu0 %3159
      %3163 = vset.pattern.permute.xlu0 0
      %3164 = vperm.xlu0 %3163, %v3148
      %v3165 = vpop.permute.xlu0 %3164
      %3168 = vset.pattern.permute.xlu0 0
      %3169 = vperm.xlu0 %3168, %v3149
      %v3170 = vpop.permute.xlu0 %3169
      %3173 = vset.pattern.permute.xlu0 0
      %3174 = vperm.xlu0 %3173, %v3150
      %v3175 = vpop.permute.xlu0 %3174
      %v3177 = vlaneseq
      %v3178 = vshrl.u32 %v3177, 7
      %v3179 = vsub.s32 0, %v3178
      %v3180 = vrot.slane %v3151, %v3179
      %v3181 = vmul.f32 %v3155, %v3180
      %v3182 = vmul.f32 %v3160, %v3180
      %v3183 = vmul.f32 %v3165, %v3180
      %v3184 = vmul.f32 %v3170, %v3180
      %v3185 = vmul.f32 %v3175, %v3180
      %v3186 = vadd.f32 %v3141, %v3181
      %v3187 = vadd.f32 %v3142, %v3182
      %v3188 = vadd.f32 %v3143, %v3183
      %v3189 = vadd.f32 %v3144, %v3184
      %v3190 = vadd.f32 %v3145, %v3185
      %v3191 = vld [vmem:[%s3 + $0x11] sm:$0x1]
      %3192 = vset.pattern.permute.xlu0 1
      %3193 = vperm.xlu0 %3192, %v3146
      %v3194 = vpop.permute.xlu0 %3193
      %3196 = vset.pattern.permute.xlu0 1
      %3197 = vperm.xlu0 %3196, %v3147
      %v3198 = vpop.permute.xlu0 %3197
      %3200 = vset.pattern.permute.xlu0 1
      %3201 = vperm.xlu0 %3200, %v3148
      %v3202 = vpop.permute.xlu0 %3201
      %3204 = vset.pattern.permute.xlu0 1
      %3205 = vperm.xlu0 %3204, %v3149
      %v3206 = vpop.permute.xlu0 %3205
      %3208 = vset.pattern.permute.xlu0 1
      %3209 = vperm.xlu0 %3208, %v3150
      %v3210 = vpop.permute.xlu0 %3209
      %v3212 = vlaneseq
      %v3213 = vshrl.u32 %v3212, 7
      %v3214 = vsub.s32 0, %v3213
      %v3215 = vrot.slane %v3191, %v3214
      %v3216 = vmul.f32 %v3194, %v3215
      %v3217 = vmul.f32 %v3198, %v3215
      %v3218 = vmul.f32 %v3202, %v3215
      %v3219 = vmul.f32 %v3206, %v3215
      %v3220 = vmul.f32 %v3210, %v3215
      %v3221 = vadd.f32 %v3186, %v3216
      %v3222 = vadd.f32 %v3187, %v3217
      %v3223 = vadd.f32 %v3188, %v3218
      %v3224 = vadd.f32 %v3189, %v3219
      %v3225 = vadd.f32 %v3190, %v3220
      %v3226 = vld [vmem:[%s3 + $0x12] sm:$0x1]
      %3227 = vset.pattern.permute.xlu0 2
      %3228 = vperm.xlu0 %3227, %v3146
      %v3229 = vpop.permute.xlu0 %3228
      %3231 = vset.pattern.permute.xlu0 2
      %3232 = vperm.xlu0 %3231, %v3147
      %v3233 = vpop.permute.xlu0 %3232
      %3235 = vset.pattern.permute.xlu0 2
      %3236 = vperm.xlu0 %3235, %v3148
      %v3237 = vpop.permute.xlu0 %3236
      %3239 = vset.pattern.permute.xlu0 2
      %3240 = vperm.xlu0 %3239, %v3149
      %v3241 = vpop.permute.xlu0 %3240
      %3243 = vset.pattern.permute.xlu0 2
      %3244 = vperm.xlu0 %3243, %v3150
      %v3245 = vpop.permute.xlu0 %3244
      %v3247 = vlaneseq
      %v3248 = vshrl.u32 %v3247, 7
      %v3249 = vsub.s32 0, %v3248
      %v3250 = vrot.slane %v3226, %v3249
      %v3251 = vmul.f32 %v3229, %v3250
      %v3252 = vmul.f32 %v3233, %v3250
      %v3253 = vmul.f32 %v3237, %v3250
      %v3254 = vmul.f32 %v3241, %v3250
      %v3255 = vmul.f32 %v3245, %v3250
      %v3256 = vadd.f32 %v3221, %v3251
      %v3257 = vadd.f32 %v3222, %v3252
      %v3258 = vadd.f32 %v3223, %v3253
      %v3259 = vadd.f32 %v3224, %v3254
      %v3260 = vadd.f32 %v3225, %v3255
      %v3261 = vld [vmem:[%s3 + $0x13] sm:$0x1]
      %3262 = vset.pattern.permute.xlu0 3
      %3263 = vperm.xlu0 %3262, %v3146
      %v3264 = vpop.permute.xlu0 %3263
      %3266 = vset.pattern.permute.xlu0 3
      %3267 = vperm.xlu0 %3266, %v3147
      %v3268 = vpop.permute.xlu0 %3267
      %3270 = vset.pattern.permute.xlu0 3
      %3271 = vperm.xlu0 %3270, %v3148
      %v3272 = vpop.permute.xlu0 %3271
      %3274 = vset.pattern.permute.xlu0 3
      %3275 = vperm.xlu0 %3274, %v3149
      %v3276 = vpop.permute.xlu0 %3275
      %3278 = vset.pattern.permute.xlu0 3
      %3279 = vperm.xlu0 %3278, %v3150
      %v3280 = vpop.permute.xlu0 %3279
      %v3282 = vlaneseq
      %v3283 = vshrl.u32 %v3282, 7
      %v3284 = vsub.s32 0, %v3283
      %v3285 = vrot.slane %v3261, %v3284
      %v3286 = vmul.f32 %v3264, %v3285
      %v3287 = vmul.f32 %v3268, %v3285
      %v3288 = vmul.f32 %v3272, %v3285
      %v3289 = vmul.f32 %v3276, %v3285
      %v3290 = vmul.f32 %v3280, %v3285
      %v3291 = vadd.f32 %v3256, %v3286
      %v3292 = vadd.f32 %v3257, %v3287
      %v3293 = vadd.f32 %v3258, %v3288
      %v3294 = vadd.f32 %v3259, %v3289
      %v3295 = vadd.f32 %v3260, %v3290
      %v3296 = vld [vmem:[%s3 + $0x14] sm:$0x1]
      %3297 = vset.pattern.permute.xlu0 4
      %3298 = vperm.xlu0 %3297, %v3146
      %v3299 = vpop.permute.xlu0 %3298
      %3301 = vset.pattern.permute.xlu0 4
      %3302 = vperm.xlu0 %3301, %v3147
      %v3303 = vpop.permute.xlu0 %3302
      %3305 = vset.pattern.permute.xlu0 4
      %3306 = vperm.xlu0 %3305, %v3148
      %v3307 = vpop.permute.xlu0 %3306
      %3309 = vset.pattern.permute.xlu0 4
      %3310 = vperm.xlu0 %3309, %v3149
      %v3311 = vpop.permute.xlu0 %3310
      %3313 = vset.pattern.permute.xlu0 4
      %3314 = vperm.xlu0 %3313, %v3150
      %v3315 = vpop.permute.xlu0 %3314
      %v3317 = vlaneseq
      %v3318 = vshrl.u32 %v3317, 7
      %v3319 = vsub.s32 0, %v3318
      %v3320 = vrot.slane %v3296, %v3319
      %v3321 = vmul.f32 %v3299, %v3320
      %v3322 = vmul.f32 %v3303, %v3320
      %v3323 = vmul.f32 %v3307, %v3320
      %v3324 = vmul.f32 %v3311, %v3320
      %v3325 = vmul.f32 %v3315, %v3320
      %v3326 = vadd.f32 %v3291, %v3321
      %v3327 = vadd.f32 %v3292, %v3322
      %v3328 = vadd.f32 %v3293, %v3323
      %v3329 = vadd.f32 %v3294, %v3324
      %v3330 = vadd.f32 %v3295, %v3325
      %v3331 = vld [vmem:[%s3 + $0x15] sm:$0x1]
      %3332 = vset.pattern.permute.xlu0 5
      %3333 = vperm.xlu0 %3332, %v3146
      %v3334 = vpop.permute.xlu0 %3333
      %3336 = vset.pattern.permute.xlu0 5
      %3337 = vperm.xlu0 %3336, %v3147
      %v3338 = vpop.permute.xlu0 %3337
      %3340 = vset.pattern.permute.xlu0 5
      %3341 = vperm.xlu0 %3340, %v3148
      %v3342 = vpop.permute.xlu0 %3341
      %3344 = vset.pattern.permute.xlu0 5
      %3345 = vperm.xlu0 %3344, %v3149
      %v3346 = vpop.permute.xlu0 %3345
      %3348 = vset.pattern.permute.xlu0 5
      %3349 = vperm.xlu0 %3348, %v3150
      %v3350 = vpop.permute.xlu0 %3349
      %v3352 = vlaneseq
      %v3353 = vshrl.u32 %v3352, 7
      %v3354 = vsub.s32 0, %v3353
      %v3355 = vrot.slane %v3331, %v3354
      %v3356 = vmul.f32 %v3334, %v3355
      %v3357 = vmul.f32 %v3338, %v3355
      %v3358 = vmul.f32 %v3342, %v3355
      %v3359 = vmul.f32 %v3346, %v3355
      %v3360 = vmul.f32 %v3350, %v3355
      %v3361 = vadd.f32 %v3326, %v3356
      %v3362 = vadd.f32 %v3327, %v3357
      %v3363 = vadd.f32 %v3328, %v3358
      %v3364 = vadd.f32 %v3329, %v3359
      %v3365 = vadd.f32 %v3330, %v3360
      %v3366 = vld [vmem:[%s3 + $0x16] sm:$0x1]
      %3367 = vset.pattern.permute.xlu0 6
      %3368 = vperm.xlu0 %3367, %v3146
      %v3369 = vpop.permute.xlu0 %3368
      %3371 = vset.pattern.permute.xlu0 6
      %3372 = vperm.xlu0 %3371, %v3147
      %v3373 = vpop.permute.xlu0 %3372
      %3375 = vset.pattern.permute.xlu0 6
      %3376 = vperm.xlu0 %3375, %v3148
      %v3377 = vpop.permute.xlu0 %3376
      %3379 = vset.pattern.permute.xlu0 6
      %3380 = vperm.xlu0 %3379, %v3149
      %v3381 = vpop.permute.xlu0 %3380
      %3383 = vset.pattern.permute.xlu0 6
      %3384 = vperm.xlu0 %3383, %v3150
      %v3385 = vpop.permute.xlu0 %3384
      %v3387 = vlaneseq
      %v3388 = vshrl.u32 %v3387, 7
      %v3389 = vsub.s32 0, %v3388
      %v3390 = vrot.slane %v3366, %v3389
      %v3391 = vmul.f32 %v3369, %v3390
      %v3392 = vmul.f32 %v3373, %v3390
      %v3393 = vmul.f32 %v3377, %v3390
      %v3394 = vmul.f32 %v3381, %v3390
      %v3395 = vmul.f32 %v3385, %v3390
      %v3396 = vadd.f32 %v3361, %v3391
      %v3397 = vadd.f32 %v3362, %v3392
      %v3398 = vadd.f32 %v3363, %v3393
      %v3399 = vadd.f32 %v3364, %v3394
      %v3400 = vadd.f32 %v3365, %v3395
      %v3401 = vld [vmem:[%s3 + $0x17] sm:$0x1]
      %3402 = vset.pattern.permute.xlu0 7
      %3403 = vperm.xlu0 %3402, %v3146
      %v3404 = vpop.permute.xlu0 %3403
      %3406 = vset.pattern.permute.xlu0 7
      %3407 = vperm.xlu0 %3406, %v3147
      %v3408 = vpop.permute.xlu0 %3407
      %3410 = vset.pattern.permute.xlu0 7
      %3411 = vperm.xlu0 %3410, %v3148
      %v3412 = vpop.permute.xlu0 %3411
      %3414 = vset.pattern.permute.xlu0 7
      %3415 = vperm.xlu0 %3414, %v3149
      %v3416 = vpop.permute.xlu0 %3415
      %3418 = vset.pattern.permute.xlu0 7
      %3419 = vperm.xlu0 %3418, %v3150
      %v3420 = vpop.permute.xlu0 %3419
      %v3422 = vlaneseq
      %v3423 = vshrl.u32 %v3422, 7
      %v3424 = vsub.s32 0, %v3423
      %v3425 = vrot.slane %v3401, %v3424
      %v3426 = vmul.f32 %v3404, %v3425
      %v3427 = vmul.f32 %v3408, %v3425
      %v3428 = vmul.f32 %v3412, %v3425
      %v3429 = vmul.f32 %v3416, %v3425
      %v3430 = vmul.f32 %v3420, %v3425
      %v3431 = vadd.f32 %v3396, %v3426
      %v3432 = vadd.f32 %v3397, %v3427
      %v3433 = vadd.f32 %v3398, %v3428
      %v3434 = vadd.f32 %v3399, %v3429
      %v3435 = vadd.f32 %v3400, %v3430
      %s3436 = scalar_lea.vmem [#allocation2], 8
      %v3437 = vld [vmem:[%s3436] sm:$0x1f]
      %v3438 = vld [vmem:[%s3436 + $0x8] sm:$0x1f]
      %v3439 = vld [vmem:[%s3436 + $0x10] sm:$0x1f]
      %v3440 = vld [vmem:[%s3436 + $0x18] sm:$0x1f]
      %v3441 = vld [vmem:[%s3436 + $0x20] sm:$0x1f]
      %v3442 = vld [vmem:[%s3 + $0x18] sm:$0x1]
      %3444 = vset.pattern.permute.xlu0 0
      %3445 = vperm.xlu0 %3444, %v3437
      %v3446 = vpop.permute.xlu0 %3445
      %3449 = vset.pattern.permute.xlu0 0
      %3450 = vperm.xlu0 %3449, %v3438
      %v3451 = vpop.permute.xlu0 %3450
      %3454 = vset.pattern.permute.xlu0 0
      %3455 = vperm.xlu0 %3454, %v3439
      %v3456 = vpop.permute.xlu0 %3455
      %3459 = vset.pattern.permute.xlu0 0
      %3460 = vperm.xlu0 %3459, %v3440
      %v3461 = vpop.permute.xlu0 %3460
      %3464 = vset.pattern.permute.xlu0 0
      %3465 = vperm.xlu0 %3464, %v3441
      %v3466 = vpop.permute.xlu0 %3465
      %v3468 = vlaneseq
      %v3469 = vshrl.u32 %v3468, 7
      %v3470 = vsub.s32 0, %v3469
      %v3471 = vrot.slane %v3442, %v3470
      %v3472 = vmul.f32 %v3446, %v3471
      %v3473 = vmul.f32 %v3451, %v3471
      %v3474 = vmul.f32 %v3456, %v3471
      %v3475 = vmul.f32 %v3461, %v3471
      %v3476 = vmul.f32 %v3466, %v3471
      %v3477 = vadd.f32 %v3431, %v3472
      %v3478 = vadd.f32 %v3432, %v3473
      %v3479 = vadd.f32 %v3433, %v3474
      %v3480 = vadd.f32 %v3434, %v3475
      %v3481 = vadd.f32 %v3435, %v3476
      %v3482 = vld [vmem:[%s3 + $0x19] sm:$0x1]
      %3483 = vset.pattern.permute.xlu0 1
      %3484 = vperm.xlu0 %3483, %v3437
      %v3485 = vpop.permute.xlu0 %3484
      %3487 = vset.pattern.permute.xlu0 1
      %3488 = vperm.xlu0 %3487, %v3438
      %v3489 = vpop.permute.xlu0 %3488
      %3491 = vset.pattern.permute.xlu0 1
      %3492 = vperm.xlu0 %3491, %v3439
      %v3493 = vpop.permute.xlu0 %3492
      %3495 = vset.pattern.permute.xlu0 1
      %3496 = vperm.xlu0 %3495, %v3440
      %v3497 = vpop.permute.xlu0 %3496
      %3499 = vset.pattern.permute.xlu0 1
      %3500 = vperm.xlu0 %3499, %v3441
      %v3501 = vpop.permute.xlu0 %3500
      %v3503 = vlaneseq
      %v3504 = vshrl.u32 %v3503, 7
      %v3505 = vsub.s32 0, %v3504
      %v3506 = vrot.slane %v3482, %v3505
      %v3507 = vmul.f32 %v3485, %v3506
      %v3508 = vmul.f32 %v3489, %v3506
      %v3509 = vmul.f32 %v3493, %v3506
      %v3510 = vmul.f32 %v3497, %v3506
      %v3511 = vmul.f32 %v3501, %v3506
      %v3512 = vadd.f32 %v3477, %v3507
      %v3513 = vadd.f32 %v3478, %v3508
      %v3514 = vadd.f32 %v3479, %v3509
      %v3515 = vadd.f32 %v3480, %v3510
      %v3516 = vadd.f32 %v3481, %v3511
      %v3517 = vld [vmem:[%s3 + $0x1a] sm:$0x1]
      %3518 = vset.pattern.permute.xlu0 2
      %3519 = vperm.xlu0 %3518, %v3437
      %v3520 = vpop.permute.xlu0 %3519
      %3522 = vset.pattern.permute.xlu0 2
      %3523 = vperm.xlu0 %3522, %v3438
      %v3524 = vpop.permute.xlu0 %3523
      %3526 = vset.pattern.permute.xlu0 2
      %3527 = vperm.xlu0 %3526, %v3439
      %v3528 = vpop.permute.xlu0 %3527
      %3530 = vset.pattern.permute.xlu0 2
      %3531 = vperm.xlu0 %3530, %v3440
      %v3532 = vpop.permute.xlu0 %3531
      %3534 = vset.pattern.permute.xlu0 2
      %3535 = vperm.xlu0 %3534, %v3441
      %v3536 = vpop.permute.xlu0 %3535
      %v3538 = vlaneseq
      %v3539 = vshrl.u32 %v3538, 7
      %v3540 = vsub.s32 0, %v3539
      %v3541 = vrot.slane %v3517, %v3540
      %v3542 = vmul.f32 %v3520, %v3541
      %v3543 = vmul.f32 %v3524, %v3541
      %v3544 = vmul.f32 %v3528, %v3541
      %v3545 = vmul.f32 %v3532, %v3541
      %v3546 = vmul.f32 %v3536, %v3541
      %v3547 = vadd.f32 %v3512, %v3542
      %v3548 = vadd.f32 %v3513, %v3543
      %v3549 = vadd.f32 %v3514, %v3544
      %v3550 = vadd.f32 %v3515, %v3545
      %v3551 = vadd.f32 %v3516, %v3546
      %v3552 = vld [vmem:[%s3 + $0x1b] sm:$0x1]
      %3553 = vset.pattern.permute.xlu0 3
      %3554 = vperm.xlu0 %3553, %v3437
      %v3555 = vpop.permute.xlu0 %3554
      %3557 = vset.pattern.permute.xlu0 3
      %3558 = vperm.xlu0 %3557, %v3438
      %v3559 = vpop.permute.xlu0 %3558
      %3561 = vset.pattern.permute.xlu0 3
      %3562 = vperm.xlu0 %3561, %v3439
      %v3563 = vpop.permute.xlu0 %3562
      %3565 = vset.pattern.permute.xlu0 3
      %3566 = vperm.xlu0 %3565, %v3440
      %v3567 = vpop.permute.xlu0 %3566
      %3569 = vset.pattern.permute.xlu0 3
      %3570 = vperm.xlu0 %3569, %v3441
      %v3571 = vpop.permute.xlu0 %3570
      %v3573 = vlaneseq
      %v3574 = vshrl.u32 %v3573, 7
      %v3575 = vsub.s32 0, %v3574
      %v3576 = vrot.slane %v3552, %v3575
      %v3577 = vmul.f32 %v3555, %v3576
      %v3578 = vmul.f32 %v3559, %v3576
      %v3579 = vmul.f32 %v3563, %v3576
      %v3580 = vmul.f32 %v3567, %v3576
      %v3581 = vmul.f32 %v3571, %v3576
      %v3582 = vadd.f32 %v3547, %v3577
      %v3583 = vadd.f32 %v3548, %v3578
      %v3584 = vadd.f32 %v3549, %v3579
      %v3585 = vadd.f32 %v3550, %v3580
      %v3586 = vadd.f32 %v3551, %v3581
      %v3587 = vld [vmem:[%s3 + $0x1c] sm:$0x1]
      %3588 = vset.pattern.permute.xlu0 4
      %3589 = vperm.xlu0 %3588, %v3437
      %v3590 = vpop.permute.xlu0 %3589
      %3592 = vset.pattern.permute.xlu0 4
      %3593 = vperm.xlu0 %3592, %v3438
      %v3594 = vpop.permute.xlu0 %3593
      %3596 = vset.pattern.permute.xlu0 4
      %3597 = vperm.xlu0 %3596, %v3439
      %v3598 = vpop.permute.xlu0 %3597
      %3600 = vset.pattern.permute.xlu0 4
      %3601 = vperm.xlu0 %3600, %v3440
      %v3602 = vpop.permute.xlu0 %3601
      %3604 = vset.pattern.permute.xlu0 4
      %3605 = vperm.xlu0 %3604, %v3441
      %v3606 = vpop.permute.xlu0 %3605
      %v3608 = vlaneseq
      %v3609 = vshrl.u32 %v3608, 7
      %v3610 = vsub.s32 0, %v3609
      %v3611 = vrot.slane %v3587, %v3610
      %v3612 = vmul.f32 %v3590, %v3611
      %v3613 = vmul.f32 %v3594, %v3611
      %v3614 = vmul.f32 %v3598, %v3611
      %v3615 = vmul.f32 %v3602, %v3611
      %v3616 = vmul.f32 %v3606, %v3611
      %v3617 = vadd.f32 %v3582, %v3612
      %v3618 = vadd.f32 %v3583, %v3613
      %v3619 = vadd.f32 %v3584, %v3614
      %v3620 = vadd.f32 %v3585, %v3615
      %v3621 = vadd.f32 %v3586, %v3616
      %v3622 = vld [vmem:[%s3 + $0x1d] sm:$0x1]
      %3623 = vset.pattern.permute.xlu0 5
      %3624 = vperm.xlu0 %3623, %v3437
      %v3625 = vpop.permute.xlu0 %3624
      %3627 = vset.pattern.permute.xlu0 5
      %3628 = vperm.xlu0 %3627, %v3438
      %v3629 = vpop.permute.xlu0 %3628
      %3631 = vset.pattern.permute.xlu0 5
      %3632 = vperm.xlu0 %3631, %v3439
      %v3633 = vpop.permute.xlu0 %3632
      %3635 = vset.pattern.permute.xlu0 5
      %3636 = vperm.xlu0 %3635, %v3440
      %v3637 = vpop.permute.xlu0 %3636
      %3639 = vset.pattern.permute.xlu0 5
      %3640 = vperm.xlu0 %3639, %v3441
      %v3641 = vpop.permute.xlu0 %3640
      %v3643 = vlaneseq
      %v3644 = vshrl.u32 %v3643, 7
      %v3645 = vsub.s32 0, %v3644
      %v3646 = vrot.slane %v3622, %v3645
      %v3647 = vmul.f32 %v3625, %v3646
      %v3648 = vmul.f32 %v3629, %v3646
      %v3649 = vmul.f32 %v3633, %v3646
      %v3650 = vmul.f32 %v3637, %v3646
      %v3651 = vmul.f32 %v3641, %v3646
      %v3652 = vadd.f32 %v3617, %v3647
      %v3653 = vadd.f32 %v3618, %v3648
      %v3654 = vadd.f32 %v3619, %v3649
      %v3655 = vadd.f32 %v3620, %v3650
      %v3656 = vadd.f32 %v3621, %v3651
      %v3657 = vld [vmem:[%s3 + $0x1e] sm:$0x1]
      %3658 = vset.pattern.permute.xlu0 6
      %3659 = vperm.xlu0 %3658, %v3437
      %v3660 = vpop.permute.xlu0 %3659
      %3662 = vset.pattern.permute.xlu0 6
      %3663 = vperm.xlu0 %3662, %v3438
      %v3664 = vpop.permute.xlu0 %3663
      %3666 = vset.pattern.permute.xlu0 6
      %3667 = vperm.xlu0 %3666, %v3439
      %v3668 = vpop.permute.xlu0 %3667
      %3670 = vset.pattern.permute.xlu0 6
      %3671 = vperm.xlu0 %3670, %v3440
      %v3672 = vpop.permute.xlu0 %3671
      %3674 = vset.pattern.permute.xlu0 6
      %3675 = vperm.xlu0 %3674, %v3441
      %v3676 = vpop.permute.xlu0 %3675
      %v3678 = vlaneseq
      %v3679 = vshrl.u32 %v3678, 7
      %v3680 = vsub.s32 0, %v3679
      %v3681 = vrot.slane %v3657, %v3680
      %v3682 = vmul.f32 %v3660, %v3681
      %v3683 = vmul.f32 %v3664, %v3681
      %v3684 = vmul.f32 %v3668, %v3681
      %v3685 = vmul.f32 %v3672, %v3681
      %v3686 = vmul.f32 %v3676, %v3681
      %v3687 = vadd.f32 %v3652, %v3682
      %v3688 = vadd.f32 %v3653, %v3683
      %v3689 = vadd.f32 %v3654, %v3684
      %v3690 = vadd.f32 %v3655, %v3685
      %v3691 = vadd.f32 %v3656, %v3686
      %v3692 = vld [vmem:[%s3 + $0x1f] sm:$0x1]
      %3693 = vset.pattern.permute.xlu0 7
      %3694 = vperm.xlu0 %3693, %v3437
      %v3695 = vpop.permute.xlu0 %3694
      %3697 = vset.pattern.permute.xlu0 7
      %3698 = vperm.xlu0 %3697, %v3438
      %v3699 = vpop.permute.xlu0 %3698
      %3701 = vset.pattern.permute.xlu0 7
      %3702 = vperm.xlu0 %3701, %v3439
      %v3703 = vpop.permute.xlu0 %3702
      %3705 = vset.pattern.permute.xlu0 7
      %3706 = vperm.xlu0 %3705, %v3440
      %v3707 = vpop.permute.xlu0 %3706
      %3709 = vset.pattern.permute.xlu0 7
      %3710 = vperm.xlu0 %3709, %v3441
      %v3711 = vpop.permute.xlu0 %3710
      %v3713 = vlaneseq
      %v3714 = vshrl.u32 %v3713, 7
      %v3715 = vsub.s32 0, %v3714
      %v3716 = vrot.slane %v3692, %v3715
      %v3717 = vmul.f32 %v3695, %v3716
      %v3718 = vmul.f32 %v3699, %v3716
      %v3719 = vmul.f32 %v3703, %v3716
      %v3720 = vmul.f32 %v3707, %v3716
      %v3721 = vmul.f32 %v3711, %v3716
      %v3722 = vadd.f32 %v3687, %v3717
      %v3723 = vadd.f32 %v3688, %v3718
      %v3724 = vadd.f32 %v3689, %v3719
      %v3725 = vadd.f32 %v3690, %v3720
      %v3726 = vadd.f32 %v3691, %v3721
      %v3727 = vld [vmem:[%s3436 + $0x1] sm:$0x1f]
      %v3728 = vld [vmem:[%s3436 + $0x9] sm:$0x1f]
      %v3729 = vld [vmem:[%s3436 + $0x11] sm:$0x1f]
      %v3730 = vld [vmem:[%s3436 + $0x19] sm:$0x1f]
      %v3731 = vld [vmem:[%s3436 + $0x21] sm:$0x1f]
      %v3732 = vld [vmem:[%s3 + $0x20] sm:$0x1]
      %3734 = vset.pattern.permute.xlu0 0
      %3735 = vperm.xlu0 %3734, %v3727
      %v3736 = vpop.permute.xlu0 %3735
      %3739 = vset.pattern.permute.xlu0 0
      %3740 = vperm.xlu0 %3739, %v3728
      %v3741 = vpop.permute.xlu0 %3740
      %3744 = vset.pattern.permute.xlu0 0
      %3745 = vperm.xlu0 %3744, %v3729
      %v3746 = vpop.permute.xlu0 %3745
      %3749 = vset.pattern.permute.xlu0 0
      %3750 = vperm.xlu0 %3749, %v3730
      %v3751 = vpop.permute.xlu0 %3750
      %3754 = vset.pattern.permute.xlu0 0
      %3755 = vperm.xlu0 %3754, %v3731
      %v3756 = vpop.permute.xlu0 %3755
      %v3758 = vlaneseq
      %v3759 = vshrl.u32 %v3758, 7
      %v3760 = vsub.s32 0, %v3759
      %v3761 = vrot.slane %v3732, %v3760
      %v3762 = vmul.f32 %v3736, %v3761
      %v3763 = vmul.f32 %v3741, %v3761
      %v3764 = vmul.f32 %v3746, %v3761
      %v3765 = vmul.f32 %v3751, %v3761
      %v3766 = vmul.f32 %v3756, %v3761
      %v3767 = vadd.f32 %v3722, %v3762
      %v3768 = vadd.f32 %v3723, %v3763
      %v3769 = vadd.f32 %v3724, %v3764
      %v3770 = vadd.f32 %v3725, %v3765
      %v3771 = vadd.f32 %v3726, %v3766
      %v3772 = vld [vmem:[%s3 + $0x21] sm:$0x1]
      %3773 = vset.pattern.permute.xlu0 1
      %3774 = vperm.xlu0 %3773, %v3727
      %v3775 = vpop.permute.xlu0 %3774
      %3777 = vset.pattern.permute.xlu0 1
      %3778 = vperm.xlu0 %3777, %v3728
      %v3779 = vpop.permute.xlu0 %3778
      %3781 = vset.pattern.permute.xlu0 1
      %3782 = vperm.xlu0 %3781, %v3729
      %v3783 = vpop.permute.xlu0 %3782
      %3785 = vset.pattern.permute.xlu0 1
      %3786 = vperm.xlu0 %3785, %v3730
      %v3787 = vpop.permute.xlu0 %3786
      %3789 = vset.pattern.permute.xlu0 1
      %3790 = vperm.xlu0 %3789, %v3731
      %v3791 = vpop.permute.xlu0 %3790
      %v3793 = vlaneseq
      %v3794 = vshrl.u32 %v3793, 7
      %v3795 = vsub.s32 0, %v3794
      %v3796 = vrot.slane %v3772, %v3795
      %v3797 = vmul.f32 %v3775, %v3796
      %v3798 = vmul.f32 %v3779, %v3796
      %v3799 = vmul.f32 %v3783, %v3796
      %v3800 = vmul.f32 %v3787, %v3796
      %v3801 = vmul.f32 %v3791, %v3796
      %v3802 = vadd.f32 %v3767, %v3797
      %v3803 = vadd.f32 %v3768, %v3798
      %v3804 = vadd.f32 %v3769, %v3799
      %v3805 = vadd.f32 %v3770, %v3800
      %v3806 = vadd.f32 %v3771, %v3801
      %v3807 = vld [vmem:[%s3 + $0x22] sm:$0x1]
      %3808 = vset.pattern.permute.xlu0 2
      %3809 = vperm.xlu0 %3808, %v3727
      %v3810 = vpop.permute.xlu0 %3809
      %3812 = vset.pattern.permute.xlu0 2
      %3813 = vperm.xlu0 %3812, %v3728
      %v3814 = vpop.permute.xlu0 %3813
      %3816 = vset.pattern.permute.xlu0 2
      %3817 = vperm.xlu0 %3816, %v3729
      %v3818 = vpop.permute.xlu0 %3817
      %3820 = vset.pattern.permute.xlu0 2
      %3821 = vperm.xlu0 %3820, %v3730
      %v3822 = vpop.permute.xlu0 %3821
      %3824 = vset.pattern.permute.xlu0 2
      %3825 = vperm.xlu0 %3824, %v3731
      %v3826 = vpop.permute.xlu0 %3825
      %v3828 = vlaneseq
      %v3829 = vshrl.u32 %v3828, 7
      %v3830 = vsub.s32 0, %v3829
      %v3831 = vrot.slane %v3807, %v3830
      %v3832 = vmul.f32 %v3810, %v3831
      %v3833 = vmul.f32 %v3814, %v3831
      %v3834 = vmul.f32 %v3818, %v3831
      %v3835 = vmul.f32 %v3822, %v3831
      %v3836 = vmul.f32 %v3826, %v3831
      %v3837 = vadd.f32 %v3802, %v3832
      %v3838 = vadd.f32 %v3803, %v3833
      %v3839 = vadd.f32 %v3804, %v3834
      %v3840 = vadd.f32 %v3805, %v3835
      %v3841 = vadd.f32 %v3806, %v3836
      %v3842 = vld [vmem:[%s3 + $0x23] sm:$0x1]
      %3843 = vset.pattern.permute.xlu0 3
      %3844 = vperm.xlu0 %3843, %v3727
      %v3845 = vpop.permute.xlu0 %3844
      %3847 = vset.pattern.permute.xlu0 3
      %3848 = vperm.xlu0 %3847, %v3728
      %v3849 = vpop.permute.xlu0 %3848
      %3851 = vset.pattern.permute.xlu0 3
      %3852 = vperm.xlu0 %3851, %v3729
      %v3853 = vpop.permute.xlu0 %3852
      %3855 = vset.pattern.permute.xlu0 3
      %3856 = vperm.xlu0 %3855, %v3730
      %v3857 = vpop.permute.xlu0 %3856
      %3859 = vset.pattern.permute.xlu0 3
      %3860 = vperm.xlu0 %3859, %v3731
      %v3861 = vpop.permute.xlu0 %3860
      %v3863 = vlaneseq
      %v3864 = vshrl.u32 %v3863, 7
      %v3865 = vsub.s32 0, %v3864
      %v3866 = vrot.slane %v3842, %v3865
      %v3867 = vmul.f32 %v3845, %v3866
      %v3868 = vmul.f32 %v3849, %v3866
      %v3869 = vmul.f32 %v3853, %v3866
      %v3870 = vmul.f32 %v3857, %v3866
      %v3871 = vmul.f32 %v3861, %v3866
      %v3872 = vadd.f32 %v3837, %v3867
      %v3873 = vadd.f32 %v3838, %v3868
      %v3874 = vadd.f32 %v3839, %v3869
      %v3875 = vadd.f32 %v3840, %v3870
      %v3876 = vadd.f32 %v3841, %v3871
      %v3877 = vld [vmem:[%s3 + $0x24] sm:$0x1]
      %3878 = vset.pattern.permute.xlu0 4
      %3879 = vperm.xlu0 %3878, %v3727
      %v3880 = vpop.permute.xlu0 %3879
      %3882 = vset.pattern.permute.xlu0 4
      %3883 = vperm.xlu0 %3882, %v3728
      %v3884 = vpop.permute.xlu0 %3883
      %3886 = vset.pattern.permute.xlu0 4
      %3887 = vperm.xlu0 %3886, %v3729
      %v3888 = vpop.permute.xlu0 %3887
      %3890 = vset.pattern.permute.xlu0 4
      %3891 = vperm.xlu0 %3890, %v3730
      %v3892 = vpop.permute.xlu0 %3891
      %3894 = vset.pattern.permute.xlu0 4
      %3895 = vperm.xlu0 %3894, %v3731
      %v3896 = vpop.permute.xlu0 %3895
      %v3898 = vlaneseq
      %v3899 = vshrl.u32 %v3898, 7
      %v3900 = vsub.s32 0, %v3899
      %v3901 = vrot.slane %v3877, %v3900
      %v3902 = vmul.f32 %v3880, %v3901
      %v3903 = vmul.f32 %v3884, %v3901
      %v3904 = vmul.f32 %v3888, %v3901
      %v3905 = vmul.f32 %v3892, %v3901
      %v3906 = vmul.f32 %v3896, %v3901
      %v3907 = vadd.f32 %v3872, %v3902
      %v3908 = vadd.f32 %v3873, %v3903
      %v3909 = vadd.f32 %v3874, %v3904
      %v3910 = vadd.f32 %v3875, %v3905
      %v3911 = vadd.f32 %v3876, %v3906
      %v3912 = vld [vmem:[%s3 + $0x25] sm:$0x1]
      %3913 = vset.pattern.permute.xlu0 5
      %3914 = vperm.xlu0 %3913, %v3727
      %v3915 = vpop.permute.xlu0 %3914
      %3917 = vset.pattern.permute.xlu0 5
      %3918 = vperm.xlu0 %3917, %v3728
      %v3919 = vpop.permute.xlu0 %3918
      %3921 = vset.pattern.permute.xlu0 5
      %3922 = vperm.xlu0 %3921, %v3729
      %v3923 = vpop.permute.xlu0 %3922
      %3925 = vset.pattern.permute.xlu0 5
      %3926 = vperm.xlu0 %3925, %v3730
      %v3927 = vpop.permute.xlu0 %3926
      %3929 = vset.pattern.permute.xlu0 5
      %3930 = vperm.xlu0 %3929, %v3731
      %v3931 = vpop.permute.xlu0 %3930
      %v3933 = vlaneseq
      %v3934 = vshrl.u32 %v3933, 7
      %v3935 = vsub.s32 0, %v3934
      %v3936 = vrot.slane %v3912, %v3935
      %v3937 = vmul.f32 %v3915, %v3936
      %v3938 = vmul.f32 %v3919, %v3936
      %v3939 = vmul.f32 %v3923, %v3936
      %v3940 = vmul.f32 %v3927, %v3936
      %v3941 = vmul.f32 %v3931, %v3936
      %v3942 = vadd.f32 %v3907, %v3937
      %v3943 = vadd.f32 %v3908, %v3938
      %v3944 = vadd.f32 %v3909, %v3939
      %v3945 = vadd.f32 %v3910, %v3940
      %v3946 = vadd.f32 %v3911, %v3941
      %v3947 = vld [vmem:[%s3 + $0x26] sm:$0x1]
      %3948 = vset.pattern.permute.xlu0 6
      %3949 = vperm.xlu0 %3948, %v3727
      %v3950 = vpop.permute.xlu0 %3949
      %3952 = vset.pattern.permute.xlu0 6
      %3953 = vperm.xlu0 %3952, %v3728
      %v3954 = vpop.permute.xlu0 %3953
      %3956 = vset.pattern.permute.xlu0 6
      %3957 = vperm.xlu0 %3956, %v3729
      %v3958 = vpop.permute.xlu0 %3957
      %3960 = vset.pattern.permute.xlu0 6
      %3961 = vperm.xlu0 %3960, %v3730
      %v3962 = vpop.permute.xlu0 %3961
      %3964 = vset.pattern.permute.xlu0 6
      %3965 = vperm.xlu0 %3964, %v3731
      %v3966 = vpop.permute.xlu0 %3965
      %v3968 = vlaneseq
      %v3969 = vshrl.u32 %v3968, 7
      %v3970 = vsub.s32 0, %v3969
      %v3971 = vrot.slane %v3947, %v3970
      %v3972 = vmul.f32 %v3950, %v3971
      %v3973 = vmul.f32 %v3954, %v3971
      %v3974 = vmul.f32 %v3958, %v3971
      %v3975 = vmul.f32 %v3962, %v3971
      %v3976 = vmul.f32 %v3966, %v3971
      %v3977 = vadd.f32 %v3942, %v3972
      %v3978 = vadd.f32 %v3943, %v3973
      %v3979 = vadd.f32 %v3944, %v3974
      %v3980 = vadd.f32 %v3945, %v3975
      %v3981 = vadd.f32 %v3946, %v3976
      %v3982 = vld [vmem:[%s3 + $0x27] sm:$0x1]
      %3983 = vset.pattern.permute.xlu0 7
      %3984 = vperm.xlu0 %3983, %v3727
      %v3985 = vpop.permute.xlu0 %3984
      %3987 = vset.pattern.permute.xlu0 7
      %3988 = vperm.xlu0 %3987, %v3728
      %v3989 = vpop.permute.xlu0 %3988
      %3991 = vset.pattern.permute.xlu0 7
      %3992 = vperm.xlu0 %3991, %v3729
      %v3993 = vpop.permute.xlu0 %3992
      %3995 = vset.pattern.permute.xlu0 7
      %3996 = vperm.xlu0 %3995, %v3730
      %v3997 = vpop.permute.xlu0 %3996
      %3999 = vset.pattern.permute.xlu0 7
      %4000 = vperm.xlu0 %3999, %v3731
      %v4001 = vpop.permute.xlu0 %4000
      %v4003 = vlaneseq
      %v4004 = vshrl.u32 %v4003, 7
      %v4005 = vsub.s32 0, %v4004
      %v4006 = vrot.slane %v3982, %v4005
      %v4007 = vmul.f32 %v3985, %v4006
      %v4008 = vmul.f32 %v3989, %v4006
      %v4009 = vmul.f32 %v3993, %v4006
      %v4010 = vmul.f32 %v3997, %v4006
      %v4011 = vmul.f32 %v4001, %v4006
      %v4012 = vadd.f32 %v3977, %v4007
      %v4013 = vadd.f32 %v3978, %v4008
      %v4014 = vadd.f32 %v3979, %v4009
      %v4015 = vadd.f32 %v3980, %v4010
      %v4016 = vadd.f32 %v3981, %v4011
      %v4017 = vld [vmem:[%s3436 + $0x2] sm:$0x1f]
      %v4018 = vld [vmem:[%s3436 + $0xa] sm:$0x1f]
      %v4019 = vld [vmem:[%s3436 + $0x12] sm:$0x1f]
      %v4020 = vld [vmem:[%s3436 + $0x1a] sm:$0x1f]
      %v4021 = vld [vmem:[%s3436 + $0x22] sm:$0x1f]
      %v4022 = vld [vmem:[%s3 + $0x28] sm:$0x1]
      %4024 = vset.pattern.permute.xlu0 0
      %4025 = vperm.xlu0 %4024, %v4017
      %v4026 = vpop.permute.xlu0 %4025
      %4029 = vset.pattern.permute.xlu0 0
      %4030 = vperm.xlu0 %4029, %v4018
      %v4031 = vpop.permute.xlu0 %4030
      %4034 = vset.pattern.permute.xlu0 0
      %4035 = vperm.xlu0 %4034, %v4019
      %v4036 = vpop.permute.xlu0 %4035
      %4039 = vset.pattern.permute.xlu0 0
      %4040 = vperm.xlu0 %4039, %v4020
      %v4041 = vpop.permute.xlu0 %4040
      %4044 = vset.pattern.permute.xlu0 0
      %4045 = vperm.xlu0 %4044, %v4021
      %v4046 = vpop.permute.xlu0 %4045
      %v4048 = vlaneseq
      %v4049 = vshrl.u32 %v4048, 7
      %v4050 = vsub.s32 0, %v4049
      %v4051 = vrot.slane %v4022, %v4050
      %v4052 = vmul.f32 %v4026, %v4051
      %v4053 = vmul.f32 %v4031, %v4051
      %v4054 = vmul.f32 %v4036, %v4051
      %v4055 = vmul.f32 %v4041, %v4051
      %v4056 = vmul.f32 %v4046, %v4051
      %v4057 = vadd.f32 %v4012, %v4052
      %v4058 = vadd.f32 %v4013, %v4053
      %v4059 = vadd.f32 %v4014, %v4054
      %v4060 = vadd.f32 %v4015, %v4055
      %v4061 = vadd.f32 %v4016, %v4056
      %v4062 = vld [vmem:[%s3 + $0x29] sm:$0x1]
      %4063 = vset.pattern.permute.xlu0 1
      %4064 = vperm.xlu0 %4063, %v4017
      %v4065 = vpop.permute.xlu0 %4064
      %4067 = vset.pattern.permute.xlu0 1
      %4068 = vperm.xlu0 %4067, %v4018
      %v4069 = vpop.permute.xlu0 %4068
      %4071 = vset.pattern.permute.xlu0 1
      %4072 = vperm.xlu0 %4071, %v4019
      %v4073 = vpop.permute.xlu0 %4072
      %4075 = vset.pattern.permute.xlu0 1
      %4076 = vperm.xlu0 %4075, %v4020
      %v4077 = vpop.permute.xlu0 %4076
      %4079 = vset.pattern.permute.xlu0 1
      %4080 = vperm.xlu0 %4079, %v4021
      %v4081 = vpop.permute.xlu0 %4080
      %v4083 = vlaneseq
      %v4084 = vshrl.u32 %v4083, 7
      %v4085 = vsub.s32 0, %v4084
      %v4086 = vrot.slane %v4062, %v4085
      %v4087 = vmul.f32 %v4065, %v4086
      %v4088 = vmul.f32 %v4069, %v4086
      %v4089 = vmul.f32 %v4073, %v4086
      %v4090 = vmul.f32 %v4077, %v4086
      %v4091 = vmul.f32 %v4081, %v4086
      %v4092 = vadd.f32 %v4057, %v4087
      %v4093 = vadd.f32 %v4058, %v4088
      %v4094 = vadd.f32 %v4059, %v4089
      %v4095 = vadd.f32 %v4060, %v4090
      %v4096 = vadd.f32 %v4061, %v4091
      %v4097 = vld [vmem:[%s3 + $0x2a] sm:$0x1]
      %4098 = vset.pattern.permute.xlu0 2
      %4099 = vperm.xlu0 %4098, %v4017
      %v4100 = vpop.permute.xlu0 %4099
      %4102 = vset.pattern.permute.xlu0 2
      %4103 = vperm.xlu0 %4102, %v4018
      %v4104 = vpop.permute.xlu0 %4103
      %4106 = vset.pattern.permute.xlu0 2
      %4107 = vperm.xlu0 %4106, %v4019
      %v4108 = vpop.permute.xlu0 %4107
      %4110 = vset.pattern.permute.xlu0 2
      %4111 = vperm.xlu0 %4110, %v4020
      %v4112 = vpop.permute.xlu0 %4111
      %4114 = vset.pattern.permute.xlu0 2
      %4115 = vperm.xlu0 %4114, %v4021
      %v4116 = vpop.permute.xlu0 %4115
      %v4118 = vlaneseq
      %v4119 = vshrl.u32 %v4118, 7
      %v4120 = vsub.s32 0, %v4119
      %v4121 = vrot.slane %v4097, %v4120
      %v4122 = vmul.f32 %v4100, %v4121
      %v4123 = vmul.f32 %v4104, %v4121
      %v4124 = vmul.f32 %v4108, %v4121
      %v4125 = vmul.f32 %v4112, %v4121
      %v4126 = vmul.f32 %v4116, %v4121
      %v4127 = vadd.f32 %v4092, %v4122
      %v4128 = vadd.f32 %v4093, %v4123
      %v4129 = vadd.f32 %v4094, %v4124
      %v4130 = vadd.f32 %v4095, %v4125
      %v4131 = vadd.f32 %v4096, %v4126
      %v4132 = vld [vmem:[%s3 + $0x2b] sm:$0x1]
      %4133 = vset.pattern.permute.xlu0 3
      %4134 = vperm.xlu0 %4133, %v4017
      %v4135 = vpop.permute.xlu0 %4134
      %4137 = vset.pattern.permute.xlu0 3
      %4138 = vperm.xlu0 %4137, %v4018
      %v4139 = vpop.permute.xlu0 %4138
      %4141 = vset.pattern.permute.xlu0 3
      %4142 = vperm.xlu0 %4141, %v4019
      %v4143 = vpop.permute.xlu0 %4142
      %4145 = vset.pattern.permute.xlu0 3
      %4146 = vperm.xlu0 %4145, %v4020
      %v4147 = vpop.permute.xlu0 %4146
      %4149 = vset.pattern.permute.xlu0 3
      %4150 = vperm.xlu0 %4149, %v4021
      %v4151 = vpop.permute.xlu0 %4150
      %v4153 = vlaneseq
      %v4154 = vshrl.u32 %v4153, 7
      %v4155 = vsub.s32 0, %v4154
      %v4156 = vrot.slane %v4132, %v4155
      %v4157 = vmul.f32 %v4135, %v4156
      %v4158 = vmul.f32 %v4139, %v4156
      %v4159 = vmul.f32 %v4143, %v4156
      %v4160 = vmul.f32 %v4147, %v4156
      %v4161 = vmul.f32 %v4151, %v4156
      %v4162 = vadd.f32 %v4127, %v4157
      %v4163 = vadd.f32 %v4128, %v4158
      %v4164 = vadd.f32 %v4129, %v4159
      %v4165 = vadd.f32 %v4130, %v4160
      %v4166 = vadd.f32 %v4131, %v4161
      %v4167 = vld [vmem:[%s3 + $0x2c] sm:$0x1]
      %4168 = vset.pattern.permute.xlu0 4
      %4169 = vperm.xlu0 %4168, %v4017
      %v4170 = vpop.permute.xlu0 %4169
      %4172 = vset.pattern.permute.xlu0 4
      %4173 = vperm.xlu0 %4172, %v4018
      %v4174 = vpop.permute.xlu0 %4173
      %4176 = vset.pattern.permute.xlu0 4
      %4177 = vperm.xlu0 %4176, %v4019
      %v4178 = vpop.permute.xlu0 %4177
      %4180 = vset.pattern.permute.xlu0 4
      %4181 = vperm.xlu0 %4180, %v4020
      %v4182 = vpop.permute.xlu0 %4181
      %4184 = vset.pattern.permute.xlu0 4
      %4185 = vperm.xlu0 %4184, %v4021
      %v4186 = vpop.permute.xlu0 %4185
      %v4188 = vlaneseq
      %v4189 = vshrl.u32 %v4188, 7
      %v4190 = vsub.s32 0, %v4189
      %v4191 = vrot.slane %v4167, %v4190
      %v4192 = vmul.f32 %v4170, %v4191
      %v4193 = vmul.f32 %v4174, %v4191
      %v4194 = vmul.f32 %v4178, %v4191
      %v4195 = vmul.f32 %v4182, %v4191
      %v4196 = vmul.f32 %v4186, %v4191
      %v4197 = vadd.f32 %v4162, %v4192
      %v4198 = vadd.f32 %v4163, %v4193
      %v4199 = vadd.f32 %v4164, %v4194
      %v4200 = vadd.f32 %v4165, %v4195
      %v4201 = vadd.f32 %v4166, %v4196
      %v4202 = vld [vmem:[%s3 + $0x2d] sm:$0x1]
      %4203 = vset.pattern.permute.xlu0 5
      %4204 = vperm.xlu0 %4203, %v4017
      %v4205 = vpop.permute.xlu0 %4204
      %4207 = vset.pattern.permute.xlu0 5
      %4208 = vperm.xlu0 %4207, %v4018
      %v4209 = vpop.permute.xlu0 %4208
      %4211 = vset.pattern.permute.xlu0 5
      %4212 = vperm.xlu0 %4211, %v4019
      %v4213 = vpop.permute.xlu0 %4212
      %4215 = vset.pattern.permute.xlu0 5
      %4216 = vperm.xlu0 %4215, %v4020
      %v4217 = vpop.permute.xlu0 %4216
      %4219 = vset.pattern.permute.xlu0 5
      %4220 = vperm.xlu0 %4219, %v4021
      %v4221 = vpop.permute.xlu0 %4220
      %v4223 = vlaneseq
      %v4224 = vshrl.u32 %v4223, 7
      %v4225 = vsub.s32 0, %v4224
      %v4226 = vrot.slane %v4202, %v4225
      %v4227 = vmul.f32 %v4205, %v4226
      %v4228 = vmul.f32 %v4209, %v4226
      %v4229 = vmul.f32 %v4213, %v4226
      %v4230 = vmul.f32 %v4217, %v4226
      %v4231 = vmul.f32 %v4221, %v4226
      %v4232 = vadd.f32 %v4197, %v4227
      %v4233 = vadd.f32 %v4198, %v4228
      %v4234 = vadd.f32 %v4199, %v4229
      %v4235 = vadd.f32 %v4200, %v4230
      %v4236 = vadd.f32 %v4201, %v4231
      %v4237 = vld [vmem:[%s3 + $0x2e] sm:$0x1]
      %4238 = vset.pattern.permute.xlu0 6
      %4239 = vperm.xlu0 %4238, %v4017
      %v4240 = vpop.permute.xlu0 %4239
      %4242 = vset.pattern.permute.xlu0 6
      %4243 = vperm.xlu0 %4242, %v4018
      %v4244 = vpop.permute.xlu0 %4243
      %4246 = vset.pattern.permute.xlu0 6
      %4247 = vperm.xlu0 %4246, %v4019
      %v4248 = vpop.permute.xlu0 %4247
      %4250 = vset.pattern.permute.xlu0 6
      %4251 = vperm.xlu0 %4250, %v4020
      %v4252 = vpop.permute.xlu0 %4251
      %4254 = vset.pattern.permute.xlu0 6
      %4255 = vperm.xlu0 %4254, %v4021
      %v4256 = vpop.permute.xlu0 %4255
      %v4258 = vlaneseq
      %v4259 = vshrl.u32 %v4258, 7
      %v4260 = vsub.s32 0, %v4259
      %v4261 = vrot.slane %v4237, %v4260
      %v4262 = vmul.f32 %v4240, %v4261
      %v4263 = vmul.f32 %v4244, %v4261
      %v4264 = vmul.f32 %v4248, %v4261
      %v4265 = vmul.f32 %v4252, %v4261
      %v4266 = vmul.f32 %v4256, %v4261
      %v4267 = vadd.f32 %v4232, %v4262
      %v4268 = vadd.f32 %v4233, %v4263
      %v4269 = vadd.f32 %v4234, %v4264
      %v4270 = vadd.f32 %v4235, %v4265
      %v4271 = vadd.f32 %v4236, %v4266
      %v4272 = vld [vmem:[%s3 + $0x2f] sm:$0x1]
      %4273 = vset.pattern.permute.xlu0 7
      %4274 = vperm.xlu0 %4273, %v4017
      %v4275 = vpop.permute.xlu0 %4274
      %4277 = vset.pattern.permute.xlu0 7
      %4278 = vperm.xlu0 %4277, %v4018
      %v4279 = vpop.permute.xlu0 %4278
      %4281 = vset.pattern.permute.xlu0 7
      %4282 = vperm.xlu0 %4281, %v4019
      %v4283 = vpop.permute.xlu0 %4282
      %4285 = vset.pattern.permute.xlu0 7
      %4286 = vperm.xlu0 %4285, %v4020
      %v4287 = vpop.permute.xlu0 %4286
      %4289 = vset.pattern.permute.xlu0 7
      %4290 = vperm.xlu0 %4289, %v4021
      %v4291 = vpop.permute.xlu0 %4290
      %v4293 = vlaneseq
      %v4294 = vshrl.u32 %v4293, 7
      %v4295 = vsub.s32 0, %v4294
      %v4296 = vrot.slane %v4272, %v4295
      %v4297 = vmul.f32 %v4275, %v4296
      %v4298 = vmul.f32 %v4279, %v4296
      %v4299 = vmul.f32 %v4283, %v4296
      %v4300 = vmul.f32 %v4287, %v4296
      %v4301 = vmul.f32 %v4291, %v4296
      %v4302 = vadd.f32 %v4267, %v4297
      %v4303 = vadd.f32 %v4268, %v4298
      %v4304 = vadd.f32 %v4269, %v4299
      %v4305 = vadd.f32 %v4270, %v4300
      %v4306 = vadd.f32 %v4271, %v4301
      %s4307 = scalar_lea.vmem [#allocation2], 16
      %v4308 = vld [vmem:[%s4307] sm:$0x1f]
      %v4309 = vld [vmem:[%s4307 + $0x8] sm:$0x1f]
      %v4310 = vld [vmem:[%s4307 + $0x10] sm:$0x1f]
      %v4311 = vld [vmem:[%s4307 + $0x18] sm:$0x1f]
      %v4312 = vld [vmem:[%s4307 + $0x20] sm:$0x1f]
      %v4313 = vld [vmem:[%s3 + $0x30] sm:$0x1]
      %4315 = vset.pattern.permute.xlu0 0
      %4316 = vperm.xlu0 %4315, %v4308
      %v4317 = vpop.permute.xlu0 %4316
      %4320 = vset.pattern.permute.xlu0 0
      %4321 = vperm.xlu0 %4320, %v4309
      %v4322 = vpop.permute.xlu0 %4321
      %4325 = vset.pattern.permute.xlu0 0
      %4326 = vperm.xlu0 %4325, %v4310
      %v4327 = vpop.permute.xlu0 %4326
      %4330 = vset.pattern.permute.xlu0 0
      %4331 = vperm.xlu0 %4330, %v4311
      %v4332 = vpop.permute.xlu0 %4331
      %4335 = vset.pattern.permute.xlu0 0
      %4336 = vperm.xlu0 %4335, %v4312
      %v4337 = vpop.permute.xlu0 %4336
      %v4339 = vlaneseq
      %v4340 = vshrl.u32 %v4339, 7
      %v4341 = vsub.s32 0, %v4340
      %v4342 = vrot.slane %v4313, %v4341
      %v4343 = vmul.f32 %v4317, %v4342
      %v4344 = vmul.f32 %v4322, %v4342
      %v4345 = vmul.f32 %v4327, %v4342
      %v4346 = vmul.f32 %v4332, %v4342
      %v4347 = vmul.f32 %v4337, %v4342
      %v4348 = vadd.f32 %v4302, %v4343
      %v4349 = vadd.f32 %v4303, %v4344
      %v4350 = vadd.f32 %v4304, %v4345
      %v4351 = vadd.f32 %v4305, %v4346
      %v4352 = vadd.f32 %v4306, %v4347
      %v4353 = vld [vmem:[%s3 + $0x31] sm:$0x1]
      %4354 = vset.pattern.permute.xlu0 1
      %4355 = vperm.xlu0 %4354, %v4308
      %v4356 = vpop.permute.xlu0 %4355
      %4358 = vset.pattern.permute.xlu0 1
      %4359 = vperm.xlu0 %4358, %v4309
      %v4360 = vpop.permute.xlu0 %4359
      %4362 = vset.pattern.permute.xlu0 1
      %4363 = vperm.xlu0 %4362, %v4310
      %v4364 = vpop.permute.xlu0 %4363
      %4366 = vset.pattern.permute.xlu0 1
      %4367 = vperm.xlu0 %4366, %v4311
      %v4368 = vpop.permute.xlu0 %4367
      %4370 = vset.pattern.permute.xlu0 1
      %4371 = vperm.xlu0 %4370, %v4312
      %v4372 = vpop.permute.xlu0 %4371
      %v4374 = vlaneseq
      %v4375 = vshrl.u32 %v4374, 7
      %v4376 = vsub.s32 0, %v4375
      %v4377 = vrot.slane %v4353, %v4376
      %v4378 = vmul.f32 %v4356, %v4377
      %v4379 = vmul.f32 %v4360, %v4377
      %v4380 = vmul.f32 %v4364, %v4377
      %v4381 = vmul.f32 %v4368, %v4377
      %v4382 = vmul.f32 %v4372, %v4377
      %v4383 = vadd.f32 %v4348, %v4378
      %v4384 = vadd.f32 %v4349, %v4379
      %v4385 = vadd.f32 %v4350, %v4380
      %v4386 = vadd.f32 %v4351, %v4381
      %v4387 = vadd.f32 %v4352, %v4382
      %v4388 = vld [vmem:[%s3 + $0x32] sm:$0x1]
      %4389 = vset.pattern.permute.xlu0 2
      %4390 = vperm.xlu0 %4389, %v4308
      %v4391 = vpop.permute.xlu0 %4390
      %4393 = vset.pattern.permute.xlu0 2
      %4394 = vperm.xlu0 %4393, %v4309
      %v4395 = vpop.permute.xlu0 %4394
      %4397 = vset.pattern.permute.xlu0 2
      %4398 = vperm.xlu0 %4397, %v4310
      %v4399 = vpop.permute.xlu0 %4398
      %4401 = vset.pattern.permute.xlu0 2
      %4402 = vperm.xlu0 %4401, %v4311
      %v4403 = vpop.permute.xlu0 %4402
      %4405 = vset.pattern.permute.xlu0 2
      %4406 = vperm.xlu0 %4405, %v4312
      %v4407 = vpop.permute.xlu0 %4406
      %v4409 = vlaneseq
      %v4410 = vshrl.u32 %v4409, 7
      %v4411 = vsub.s32 0, %v4410
      %v4412 = vrot.slane %v4388, %v4411
      %v4413 = vmul.f32 %v4391, %v4412
      %v4414 = vmul.f32 %v4395, %v4412
      %v4415 = vmul.f32 %v4399, %v4412
      %v4416 = vmul.f32 %v4403, %v4412
      %v4417 = vmul.f32 %v4407, %v4412
      %v4418 = vadd.f32 %v4383, %v4413
      %v4419 = vadd.f32 %v4384, %v4414
      %v4420 = vadd.f32 %v4385, %v4415
      %v4421 = vadd.f32 %v4386, %v4416
      %v4422 = vadd.f32 %v4387, %v4417
      %v4423 = vld [vmem:[%s3 + $0x33] sm:$0x1]
      %4424 = vset.pattern.permute.xlu0 3
      %4425 = vperm.xlu0 %4424, %v4308
      %v4426 = vpop.permute.xlu0 %4425
      %4428 = vset.pattern.permute.xlu0 3
      %4429 = vperm.xlu0 %4428, %v4309
      %v4430 = vpop.permute.xlu0 %4429
      %4432 = vset.pattern.permute.xlu0 3
      %4433 = vperm.xlu0 %4432, %v4310
      %v4434 = vpop.permute.xlu0 %4433
      %4436 = vset.pattern.permute.xlu0 3
      %4437 = vperm.xlu0 %4436, %v4311
      %v4438 = vpop.permute.xlu0 %4437
      %4440 = vset.pattern.permute.xlu0 3
      %4441 = vperm.xlu0 %4440, %v4312
      %v4442 = vpop.permute.xlu0 %4441
      %v4444 = vlaneseq
      %v4445 = vshrl.u32 %v4444, 7
      %v4446 = vsub.s32 0, %v4445
      %v4447 = vrot.slane %v4423, %v4446
      %v4448 = vmul.f32 %v4426, %v4447
      %v4449 = vmul.f32 %v4430, %v4447
      %v4450 = vmul.f32 %v4434, %v4447
      %v4451 = vmul.f32 %v4438, %v4447
      %v4452 = vmul.f32 %v4442, %v4447
      %v4453 = vadd.f32 %v4418, %v4448
      %v4454 = vadd.f32 %v4419, %v4449
      %v4455 = vadd.f32 %v4420, %v4450
      %v4456 = vadd.f32 %v4421, %v4451
      %v4457 = vadd.f32 %v4422, %v4452
      %v4458 = vld [vmem:[%s3 + $0x34] sm:$0x1]
      %4459 = vset.pattern.permute.xlu0 4
      %4460 = vperm.xlu0 %4459, %v4308
      %v4461 = vpop.permute.xlu0 %4460
      %4463 = vset.pattern.permute.xlu0 4
      %4464 = vperm.xlu0 %4463, %v4309
      %v4465 = vpop.permute.xlu0 %4464
      %4467 = vset.pattern.permute.xlu0 4
      %4468 = vperm.xlu0 %4467, %v4310
      %v4469 = vpop.permute.xlu0 %4468
      %4471 = vset.pattern.permute.xlu0 4
      %4472 = vperm.xlu0 %4471, %v4311
      %v4473 = vpop.permute.xlu0 %4472
      %4475 = vset.pattern.permute.xlu0 4
      %4476 = vperm.xlu0 %4475, %v4312
      %v4477 = vpop.permute.xlu0 %4476
      %v4479 = vlaneseq
      %v4480 = vshrl.u32 %v4479, 7
      %v4481 = vsub.s32 0, %v4480
      %v4482 = vrot.slane %v4458, %v4481
      %v4483 = vmul.f32 %v4461, %v4482
      %v4484 = vmul.f32 %v4465, %v4482
      %v4485 = vmul.f32 %v4469, %v4482
      %v4486 = vmul.f32 %v4473, %v4482
      %v4487 = vmul.f32 %v4477, %v4482
      %v4488 = vadd.f32 %v4453, %v4483
      %v4489 = vadd.f32 %v4454, %v4484
      %v4490 = vadd.f32 %v4455, %v4485
      %v4491 = vadd.f32 %v4456, %v4486
      %v4492 = vadd.f32 %v4457, %v4487
      %v4493 = vld [vmem:[%s3 + $0x35] sm:$0x1]
      %4494 = vset.pattern.permute.xlu0 5
      %4495 = vperm.xlu0 %4494, %v4308
      %v4496 = vpop.permute.xlu0 %4495
      %4498 = vset.pattern.permute.xlu0 5
      %4499 = vperm.xlu0 %4498, %v4309
      %v4500 = vpop.permute.xlu0 %4499
      %4502 = vset.pattern.permute.xlu0 5
      %4503 = vperm.xlu0 %4502, %v4310
      %v4504 = vpop.permute.xlu0 %4503
      %4506 = vset.pattern.permute.xlu0 5
      %4507 = vperm.xlu0 %4506, %v4311
      %v4508 = vpop.permute.xlu0 %4507
      %4510 = vset.pattern.permute.xlu0 5
      %4511 = vperm.xlu0 %4510, %v4312
      %v4512 = vpop.permute.xlu0 %4511
      %v4514 = vlaneseq
      %v4515 = vshrl.u32 %v4514, 7
      %v4516 = vsub.s32 0, %v4515
      %v4517 = vrot.slane %v4493, %v4516
      %v4518 = vmul.f32 %v4496, %v4517
      %v4519 = vmul.f32 %v4500, %v4517
      %v4520 = vmul.f32 %v4504, %v4517
      %v4521 = vmul.f32 %v4508, %v4517
      %v4522 = vmul.f32 %v4512, %v4517
      %v4523 = vadd.f32 %v4488, %v4518
      %v4524 = vadd.f32 %v4489, %v4519
      %v4525 = vadd.f32 %v4490, %v4520
      %v4526 = vadd.f32 %v4491, %v4521
      %v4527 = vadd.f32 %v4492, %v4522
      %v4528 = vld [vmem:[%s3 + $0x36] sm:$0x1]
      %4529 = vset.pattern.permute.xlu0 6
      %4530 = vperm.xlu0 %4529, %v4308
      %v4531 = vpop.permute.xlu0 %4530
      %4533 = vset.pattern.permute.xlu0 6
      %4534 = vperm.xlu0 %4533, %v4309
      %v4535 = vpop.permute.xlu0 %4534
      %4537 = vset.pattern.permute.xlu0 6
      %4538 = vperm.xlu0 %4537, %v4310
      %v4539 = vpop.permute.xlu0 %4538
      %4541 = vset.pattern.permute.xlu0 6
      %4542 = vperm.xlu0 %4541, %v4311
      %v4543 = vpop.permute.xlu0 %4542
      %4545 = vset.pattern.permute.xlu0 6
      %4546 = vperm.xlu0 %4545, %v4312
      %v4547 = vpop.permute.xlu0 %4546
      %v4549 = vlaneseq
      %v4550 = vshrl.u32 %v4549, 7
      %v4551 = vsub.s32 0, %v4550
      %v4552 = vrot.slane %v4528, %v4551
      %v4553 = vmul.f32 %v4531, %v4552
      %v4554 = vmul.f32 %v4535, %v4552
      %v4555 = vmul.f32 %v4539, %v4552
      %v4556 = vmul.f32 %v4543, %v4552
      %v4557 = vmul.f32 %v4547, %v4552
      %v4558 = vadd.f32 %v4523, %v4553
      %v4559 = vadd.f32 %v4524, %v4554
      %v4560 = vadd.f32 %v4525, %v4555
      %v4561 = vadd.f32 %v4526, %v4556
      %v4562 = vadd.f32 %v4527, %v4557
      %v4563 = vld [vmem:[%s3 + $0x37] sm:$0x1]
      %4564 = vset.pattern.permute.xlu0 7
      %4565 = vperm.xlu0 %4564, %v4308
      %v4566 = vpop.permute.xlu0 %4565
      %4568 = vset.pattern.permute.xlu0 7
      %4569 = vperm.xlu0 %4568, %v4309
      %v4570 = vpop.permute.xlu0 %4569
      %4572 = vset.pattern.permute.xlu0 7
      %4573 = vperm.xlu0 %4572, %v4310
      %v4574 = vpop.permute.xlu0 %4573
      %4576 = vset.pattern.permute.xlu0 7
      %4577 = vperm.xlu0 %4576, %v4311
      %v4578 = vpop.permute.xlu0 %4577
      %4580 = vset.pattern.permute.xlu0 7
      %4581 = vperm.xlu0 %4580, %v4312
      %v4582 = vpop.permute.xlu0 %4581
      %v4584 = vlaneseq
      %v4585 = vshrl.u32 %v4584, 7
      %v4586 = vsub.s32 0, %v4585
      %v4587 = vrot.slane %v4563, %v4586
      %v4588 = vmul.f32 %v4566, %v4587
      %v4589 = vmul.f32 %v4570, %v4587
      %v4590 = vmul.f32 %v4574, %v4587
      %v4591 = vmul.f32 %v4578, %v4587
      %v4592 = vmul.f32 %v4582, %v4587
      %v4593 = vadd.f32 %v4558, %v4588
      %v4594 = vadd.f32 %v4559, %v4589
      %v4595 = vadd.f32 %v4560, %v4590
      %v4596 = vadd.f32 %v4561, %v4591
      %v4597 = vadd.f32 %v4562, %v4592
      %v4598 = vld [vmem:[%s4307 + $0x1] sm:$0x1f]
      %v4599 = vld [vmem:[%s4307 + $0x9] sm:$0x1f]
      %v4600 = vld [vmem:[%s4307 + $0x11] sm:$0x1f]
      %v4601 = vld [vmem:[%s4307 + $0x19] sm:$0x1f]
      %v4602 = vld [vmem:[%s4307 + $0x21] sm:$0x1f]
      %v4603 = vld [vmem:[%s3 + $0x38] sm:$0x1]
      %4605 = vset.pattern.permute.xlu0 0
      %4606 = vperm.xlu0 %4605, %v4598
      %v4607 = vpop.permute.xlu0 %4606
      %4610 = vset.pattern.permute.xlu0 0
      %4611 = vperm.xlu0 %4610, %v4599
      %v4612 = vpop.permute.xlu0 %4611
      %4615 = vset.pattern.permute.xlu0 0
      %4616 = vperm.xlu0 %4615, %v4600
      %v4617 = vpop.permute.xlu0 %4616
      %4620 = vset.pattern.permute.xlu0 0
      %4621 = vperm.xlu0 %4620, %v4601
      %v4622 = vpop.permute.xlu0 %4621
      %4625 = vset.pattern.permute.xlu0 0
      %4626 = vperm.xlu0 %4625, %v4602
      %v4627 = vpop.permute.xlu0 %4626
      %v4629 = vlaneseq
      %v4630 = vshrl.u32 %v4629, 7
      %v4631 = vsub.s32 0, %v4630
      %v4632 = vrot.slane %v4603, %v4631
      %v4633 = vmul.f32 %v4607, %v4632
      %v4634 = vmul.f32 %v4612, %v4632
      %v4635 = vmul.f32 %v4617, %v4632
      %v4636 = vmul.f32 %v4622, %v4632
      %v4637 = vmul.f32 %v4627, %v4632
      %v4638 = vadd.f32 %v4593, %v4633
      %v4639 = vadd.f32 %v4594, %v4634
      %v4640 = vadd.f32 %v4595, %v4635
      %v4641 = vadd.f32 %v4596, %v4636
      %v4642 = vadd.f32 %v4597, %v4637
      %v4643 = vld [vmem:[%s3 + $0x39] sm:$0x1]
      %4644 = vset.pattern.permute.xlu0 1
      %4645 = vperm.xlu0 %4644, %v4598
      %v4646 = vpop.permute.xlu0 %4645
      %4648 = vset.pattern.permute.xlu0 1
      %4649 = vperm.xlu0 %4648, %v4599
      %v4650 = vpop.permute.xlu0 %4649
      %4652 = vset.pattern.permute.xlu0 1
      %4653 = vperm.xlu0 %4652, %v4600
      %v4654 = vpop.permute.xlu0 %4653
      %4656 = vset.pattern.permute.xlu0 1
      %4657 = vperm.xlu0 %4656, %v4601
      %v4658 = vpop.permute.xlu0 %4657
      %4660 = vset.pattern.permute.xlu0 1
      %4661 = vperm.xlu0 %4660, %v4602
      %v4662 = vpop.permute.xlu0 %4661
      %v4664 = vlaneseq
      %v4665 = vshrl.u32 %v4664, 7
      %v4666 = vsub.s32 0, %v4665
      %v4667 = vrot.slane %v4643, %v4666
      %v4668 = vmul.f32 %v4646, %v4667
      %v4669 = vmul.f32 %v4650, %v4667
      %v4670 = vmul.f32 %v4654, %v4667
      %v4671 = vmul.f32 %v4658, %v4667
      %v4672 = vmul.f32 %v4662, %v4667
      %v4673 = vadd.f32 %v4638, %v4668
      %v4674 = vadd.f32 %v4639, %v4669
      %v4675 = vadd.f32 %v4640, %v4670
      %v4676 = vadd.f32 %v4641, %v4671
      %v4677 = vadd.f32 %v4642, %v4672
      %v4678 = vld [vmem:[%s3 + $0x3a] sm:$0x1]
      %4679 = vset.pattern.permute.xlu0 2
      %4680 = vperm.xlu0 %4679, %v4598
      %v4681 = vpop.permute.xlu0 %4680
      %4683 = vset.pattern.permute.xlu0 2
      %4684 = vperm.xlu0 %4683, %v4599
      %v4685 = vpop.permute.xlu0 %4684
      %4687 = vset.pattern.permute.xlu0 2
      %4688 = vperm.xlu0 %4687, %v4600
      %v4689 = vpop.permute.xlu0 %4688
      %4691 = vset.pattern.permute.xlu0 2
      %4692 = vperm.xlu0 %4691, %v4601
      %v4693 = vpop.permute.xlu0 %4692
      %4695 = vset.pattern.permute.xlu0 2
      %4696 = vperm.xlu0 %4695, %v4602
      %v4697 = vpop.permute.xlu0 %4696
      %v4699 = vlaneseq
      %v4700 = vshrl.u32 %v4699, 7
      %v4701 = vsub.s32 0, %v4700
      %v4702 = vrot.slane %v4678, %v4701
      %v4703 = vmul.f32 %v4681, %v4702
      %v4704 = vmul.f32 %v4685, %v4702
      %v4705 = vmul.f32 %v4689, %v4702
      %v4706 = vmul.f32 %v4693, %v4702
      %v4707 = vmul.f32 %v4697, %v4702
      %v4708 = vadd.f32 %v4673, %v4703
      %v4709 = vadd.f32 %v4674, %v4704
      %v4710 = vadd.f32 %v4675, %v4705
      %v4711 = vadd.f32 %v4676, %v4706
      %v4712 = vadd.f32 %v4677, %v4707
      %v4713 = vld [vmem:[%s3 + $0x3b] sm:$0x1]
      %4714 = vset.pattern.permute.xlu0 3
      %4715 = vperm.xlu0 %4714, %v4598
      %v4716 = vpop.permute.xlu0 %4715
      %4718 = vset.pattern.permute.xlu0 3
      %4719 = vperm.xlu0 %4718, %v4599
      %v4720 = vpop.permute.xlu0 %4719
      %4722 = vset.pattern.permute.xlu0 3
      %4723 = vperm.xlu0 %4722, %v4600
      %v4724 = vpop.permute.xlu0 %4723
      %4726 = vset.pattern.permute.xlu0 3
      %4727 = vperm.xlu0 %4726, %v4601
      %v4728 = vpop.permute.xlu0 %4727
      %4730 = vset.pattern.permute.xlu0 3
      %4731 = vperm.xlu0 %4730, %v4602
      %v4732 = vpop.permute.xlu0 %4731
      %v4734 = vlaneseq
      %v4735 = vshrl.u32 %v4734, 7
      %v4736 = vsub.s32 0, %v4735
      %v4737 = vrot.slane %v4713, %v4736
      %v4738 = vmul.f32 %v4716, %v4737
      %v4739 = vmul.f32 %v4720, %v4737
      %v4740 = vmul.f32 %v4724, %v4737
      %v4741 = vmul.f32 %v4728, %v4737
      %v4742 = vmul.f32 %v4732, %v4737
      %v4743 = vadd.f32 %v4708, %v4738
      %v4744 = vadd.f32 %v4709, %v4739
      %v4745 = vadd.f32 %v4710, %v4740
      %v4746 = vadd.f32 %v4711, %v4741
      %v4747 = vadd.f32 %v4712, %v4742
      %v4748 = vld [vmem:[%s3 + $0x3c] sm:$0x1]
      %4749 = vset.pattern.permute.xlu0 4
      %4750 = vperm.xlu0 %4749, %v4598
      %v4751 = vpop.permute.xlu0 %4750
      %4753 = vset.pattern.permute.xlu0 4
      %4754 = vperm.xlu0 %4753, %v4599
      %v4755 = vpop.permute.xlu0 %4754
      %4757 = vset.pattern.permute.xlu0 4
      %4758 = vperm.xlu0 %4757, %v4600
      %v4759 = vpop.permute.xlu0 %4758
      %4761 = vset.pattern.permute.xlu0 4
      %4762 = vperm.xlu0 %4761, %v4601
      %v4763 = vpop.permute.xlu0 %4762
      %4765 = vset.pattern.permute.xlu0 4
      %4766 = vperm.xlu0 %4765, %v4602
      %v4767 = vpop.permute.xlu0 %4766
      %v4769 = vlaneseq
      %v4770 = vshrl.u32 %v4769, 7
      %v4771 = vsub.s32 0, %v4770
      %v4772 = vrot.slane %v4748, %v4771
      %v4773 = vmul.f32 %v4751, %v4772
      %v4774 = vmul.f32 %v4755, %v4772
      %v4775 = vmul.f32 %v4759, %v4772
      %v4776 = vmul.f32 %v4763, %v4772
      %v4777 = vmul.f32 %v4767, %v4772
      %v4778 = vadd.f32 %v4743, %v4773
      %v4779 = vadd.f32 %v4744, %v4774
      %v4780 = vadd.f32 %v4745, %v4775
      %v4781 = vadd.f32 %v4746, %v4776
      %v4782 = vadd.f32 %v4747, %v4777
      %v4783 = vld [vmem:[%s3 + $0x3d] sm:$0x1]
      %4784 = vset.pattern.permute.xlu0 5
      %4785 = vperm.xlu0 %4784, %v4598
      %v4786 = vpop.permute.xlu0 %4785
      %4788 = vset.pattern.permute.xlu0 5
      %4789 = vperm.xlu0 %4788, %v4599
      %v4790 = vpop.permute.xlu0 %4789
      %4792 = vset.pattern.permute.xlu0 5
      %4793 = vperm.xlu0 %4792, %v4600
      %v4794 = vpop.permute.xlu0 %4793
      %4796 = vset.pattern.permute.xlu0 5
      %4797 = vperm.xlu0 %4796, %v4601
      %v4798 = vpop.permute.xlu0 %4797
      %4800 = vset.pattern.permute.xlu0 5
      %4801 = vperm.xlu0 %4800, %v4602
      %v4802 = vpop.permute.xlu0 %4801
      %v4804 = vlaneseq
      %v4805 = vshrl.u32 %v4804, 7
      %v4806 = vsub.s32 0, %v4805
      %v4807 = vrot.slane %v4783, %v4806
      %v4808 = vmul.f32 %v4786, %v4807
      %v4809 = vmul.f32 %v4790, %v4807
      %v4810 = vmul.f32 %v4794, %v4807
      %v4811 = vmul.f32 %v4798, %v4807
      %v4812 = vmul.f32 %v4802, %v4807
      %v4813 = vadd.f32 %v4778, %v4808
      %v4814 = vadd.f32 %v4779, %v4809
      %v4815 = vadd.f32 %v4780, %v4810
      %v4816 = vadd.f32 %v4781, %v4811
      %v4817 = vadd.f32 %v4782, %v4812
      %v4818 = vld [vmem:[%s3 + $0x3e] sm:$0x1]
      %4819 = vset.pattern.permute.xlu0 6
      %4820 = vperm.xlu0 %4819, %v4598
      %v4821 = vpop.permute.xlu0 %4820
      %4823 = vset.pattern.permute.xlu0 6
      %4824 = vperm.xlu0 %4823, %v4599
      %v4825 = vpop.permute.xlu0 %4824
      %4827 = vset.pattern.permute.xlu0 6
      %4828 = vperm.xlu0 %4827, %v4600
      %v4829 = vpop.permute.xlu0 %4828
      %4831 = vset.pattern.permute.xlu0 6
      %4832 = vperm.xlu0 %4831, %v4601
      %v4833 = vpop.permute.xlu0 %4832
      %4835 = vset.pattern.permute.xlu0 6
      %4836 = vperm.xlu0 %4835, %v4602
      %v4837 = vpop.permute.xlu0 %4836
      %v4839 = vlaneseq
      %v4840 = vshrl.u32 %v4839, 7
      %v4841 = vsub.s32 0, %v4840
      %v4842 = vrot.slane %v4818, %v4841
      %v4843 = vmul.f32 %v4821, %v4842
      %v4844 = vmul.f32 %v4825, %v4842
      %v4845 = vmul.f32 %v4829, %v4842
      %v4846 = vmul.f32 %v4833, %v4842
      %v4847 = vmul.f32 %v4837, %v4842
      %v4848 = vadd.f32 %v4813, %v4843
      %v4849 = vadd.f32 %v4814, %v4844
      %v4850 = vadd.f32 %v4815, %v4845
      %v4851 = vadd.f32 %v4816, %v4846
      %v4852 = vadd.f32 %v4817, %v4847
      %v4853 = vld [vmem:[%s3 + $0x3f] sm:$0x1]
      %4854 = vset.pattern.permute.xlu0 7
      %4855 = vperm.xlu0 %4854, %v4598
      %v4856 = vpop.permute.xlu0 %4855
      %4858 = vset.pattern.permute.xlu0 7
      %4859 = vperm.xlu0 %4858, %v4599
      %v4860 = vpop.permute.xlu0 %4859
      %4862 = vset.pattern.permute.xlu0 7
      %4863 = vperm.xlu0 %4862, %v4600
      %v4864 = vpop.permute.xlu0 %4863
      %4866 = vset.pattern.permute.xlu0 7
      %4867 = vperm.xlu0 %4866, %v4601
      %v4868 = vpop.permute.xlu0 %4867
      %4870 = vset.pattern.permute.xlu0 7
      %4871 = vperm.xlu0 %4870, %v4602
      %v4872 = vpop.permute.xlu0 %4871
      %v4874 = vlaneseq
      %v4875 = vshrl.u32 %v4874, 7
      %v4876 = vsub.s32 0, %v4875
      %v4877 = vrot.slane %v4853, %v4876
      %v4878 = vmul.f32 %v4856, %v4877
      %v4879 = vmul.f32 %v4860, %v4877
      %v4880 = vmul.f32 %v4864, %v4877
      %v4881 = vmul.f32 %v4868, %v4877
      %v4882 = vmul.f32 %v4872, %v4877
      %v4883 = vadd.f32 %v4848, %v4878
      %v4884 = vadd.f32 %v4849, %v4879
      %v4885 = vadd.f32 %v4850, %v4880
      %v4886 = vadd.f32 %v4851, %v4881
      %v4887 = vadd.f32 %v4852, %v4882
      %v4888 = vld [vmem:[%s4307 + $0x2] sm:$0x1f]
      %v4889 = vld [vmem:[%s4307 + $0xa] sm:$0x1f]
      %v4890 = vld [vmem:[%s4307 + $0x12] sm:$0x1f]
      %v4891 = vld [vmem:[%s4307 + $0x1a] sm:$0x1f]
      %v4892 = vld [vmem:[%s4307 + $0x22] sm:$0x1f]
      %v4893 = vld [vmem:[%s3 + $0x40] sm:$0x1]
      %4895 = vset.pattern.permute.xlu0 0
      %4896 = vperm.xlu0 %4895, %v4888
      %v4897 = vpop.permute.xlu0 %4896
      %4900 = vset.pattern.permute.xlu0 0
      %4901 = vperm.xlu0 %4900, %v4889
      %v4902 = vpop.permute.xlu0 %4901
      %4905 = vset.pattern.permute.xlu0 0
      %4906 = vperm.xlu0 %4905, %v4890
      %v4907 = vpop.permute.xlu0 %4906
      %4910 = vset.pattern.permute.xlu0 0
      %4911 = vperm.xlu0 %4910, %v4891
      %v4912 = vpop.permute.xlu0 %4911
      %4915 = vset.pattern.permute.xlu0 0
      %4916 = vperm.xlu0 %4915, %v4892
      %v4917 = vpop.permute.xlu0 %4916
      %v4919 = vlaneseq
      %v4920 = vshrl.u32 %v4919, 7
      %v4921 = vsub.s32 0, %v4920
      %v4922 = vrot.slane %v4893, %v4921
      %v4923 = vmul.f32 %v4897, %v4922
      %v4924 = vmul.f32 %v4902, %v4922
      %v4925 = vmul.f32 %v4907, %v4922
      %v4926 = vmul.f32 %v4912, %v4922
      %v4927 = vmul.f32 %v4917, %v4922
      %v4928 = vadd.f32 %v4883, %v4923
      %v4929 = vadd.f32 %v4884, %v4924
      %v4930 = vadd.f32 %v4885, %v4925
      %v4931 = vadd.f32 %v4886, %v4926
      %v4932 = vadd.f32 %v4887, %v4927
      %v4933 = vld [vmem:[%s3 + $0x41] sm:$0x1]
      %4934 = vset.pattern.permute.xlu0 1
      %4935 = vperm.xlu0 %4934, %v4888
      %v4936 = vpop.permute.xlu0 %4935
      %4938 = vset.pattern.permute.xlu0 1
      %4939 = vperm.xlu0 %4938, %v4889
      %v4940 = vpop.permute.xlu0 %4939
      %4942 = vset.pattern.permute.xlu0 1
      %4943 = vperm.xlu0 %4942, %v4890
      %v4944 = vpop.permute.xlu0 %4943
      %4946 = vset.pattern.permute.xlu0 1
      %4947 = vperm.xlu0 %4946, %v4891
      %v4948 = vpop.permute.xlu0 %4947
      %4950 = vset.pattern.permute.xlu0 1
      %4951 = vperm.xlu0 %4950, %v4892
      %v4952 = vpop.permute.xlu0 %4951
      %v4954 = vlaneseq
      %v4955 = vshrl.u32 %v4954, 7
      %v4956 = vsub.s32 0, %v4955
      %v4957 = vrot.slane %v4933, %v4956
      %v4958 = vmul.f32 %v4936, %v4957
      %v4959 = vmul.f32 %v4940, %v4957
      %v4960 = vmul.f32 %v4944, %v4957
      %v4961 = vmul.f32 %v4948, %v4957
      %v4962 = vmul.f32 %v4952, %v4957
      %v4963 = vadd.f32 %v4928, %v4958
      %v4964 = vadd.f32 %v4929, %v4959
      %v4965 = vadd.f32 %v4930, %v4960
      %v4966 = vadd.f32 %v4931, %v4961
      %v4967 = vadd.f32 %v4932, %v4962
      %v4968 = vld [vmem:[%s3 + $0x42] sm:$0x1]
      %4969 = vset.pattern.permute.xlu0 2
      %4970 = vperm.xlu0 %4969, %v4888
      %v4971 = vpop.permute.xlu0 %4970
      %4973 = vset.pattern.permute.xlu0 2
      %4974 = vperm.xlu0 %4973, %v4889
      %v4975 = vpop.permute.xlu0 %4974
      %4977 = vset.pattern.permute.xlu0 2
      %4978 = vperm.xlu0 %4977, %v4890
      %v4979 = vpop.permute.xlu0 %4978
      %4981 = vset.pattern.permute.xlu0 2
      %4982 = vperm.xlu0 %4981, %v4891
      %v4983 = vpop.permute.xlu0 %4982
      %4985 = vset.pattern.permute.xlu0 2
      %4986 = vperm.xlu0 %4985, %v4892
      %v4987 = vpop.permute.xlu0 %4986
      %v4989 = vlaneseq
      %v4990 = vshrl.u32 %v4989, 7
      %v4991 = vsub.s32 0, %v4990
      %v4992 = vrot.slane %v4968, %v4991
      %v4993 = vmul.f32 %v4971, %v4992
      %v4994 = vmul.f32 %v4975, %v4992
      %v4995 = vmul.f32 %v4979, %v4992
      %v4996 = vmul.f32 %v4983, %v4992
      %v4997 = vmul.f32 %v4987, %v4992
      %v4998 = vadd.f32 %v4963, %v4993
      %v4999 = vadd.f32 %v4964, %v4994
      %v5000 = vadd.f32 %v4965, %v4995
      %v5001 = vadd.f32 %v4966, %v4996
      %v5002 = vadd.f32 %v4967, %v4997
      %v5003 = vld [vmem:[%s3 + $0x43] sm:$0x1]
      %5004 = vset.pattern.permute.xlu0 3
      %5005 = vperm.xlu0 %5004, %v4888
      %v5006 = vpop.permute.xlu0 %5005
      %5008 = vset.pattern.permute.xlu0 3
      %5009 = vperm.xlu0 %5008, %v4889
      %v5010 = vpop.permute.xlu0 %5009
      %5012 = vset.pattern.permute.xlu0 3
      %5013 = vperm.xlu0 %5012, %v4890
      %v5014 = vpop.permute.xlu0 %5013
      %5016 = vset.pattern.permute.xlu0 3
      %5017 = vperm.xlu0 %5016, %v4891
      %v5018 = vpop.permute.xlu0 %5017
      %5020 = vset.pattern.permute.xlu0 3
      %5021 = vperm.xlu0 %5020, %v4892
      %v5022 = vpop.permute.xlu0 %5021
      %v5024 = vlaneseq
      %v5025 = vshrl.u32 %v5024, 7
      %v5026 = vsub.s32 0, %v5025
      %v5027 = vrot.slane %v5003, %v5026
      %v5028 = vmul.f32 %v5006, %v5027
      %v5029 = vmul.f32 %v5010, %v5027
      %v5030 = vmul.f32 %v5014, %v5027
      %v5031 = vmul.f32 %v5018, %v5027
      %v5032 = vmul.f32 %v5022, %v5027
      %v5033 = vadd.f32 %v4998, %v5028
      %v5034 = vadd.f32 %v4999, %v5029
      %v5035 = vadd.f32 %v5000, %v5030
      %v5036 = vadd.f32 %v5001, %v5031
      %v5037 = vadd.f32 %v5002, %v5032
      %v5038 = vld [vmem:[%s3 + $0x44] sm:$0x1]
      %5039 = vset.pattern.permute.xlu0 4
      %5040 = vperm.xlu0 %5039, %v4888
      %v5041 = vpop.permute.xlu0 %5040
      %5043 = vset.pattern.permute.xlu0 4
      %5044 = vperm.xlu0 %5043, %v4889
      %v5045 = vpop.permute.xlu0 %5044
      %5047 = vset.pattern.permute.xlu0 4
      %5048 = vperm.xlu0 %5047, %v4890
      %v5049 = vpop.permute.xlu0 %5048
      %5051 = vset.pattern.permute.xlu0 4
      %5052 = vperm.xlu0 %5051, %v4891
      %v5053 = vpop.permute.xlu0 %5052
      %5055 = vset.pattern.permute.xlu0 4
      %5056 = vperm.xlu0 %5055, %v4892
      %v5057 = vpop.permute.xlu0 %5056
      %v5059 = vlaneseq
      %v5060 = vshrl.u32 %v5059, 7
      %v5061 = vsub.s32 0, %v5060
      %v5062 = vrot.slane %v5038, %v5061
      %v5063 = vmul.f32 %v5041, %v5062
      %v5064 = vmul.f32 %v5045, %v5062
      %v5065 = vmul.f32 %v5049, %v5062
      %v5066 = vmul.f32 %v5053, %v5062
      %v5067 = vmul.f32 %v5057, %v5062
      %v5068 = vadd.f32 %v5033, %v5063
      %v5069 = vadd.f32 %v5034, %v5064
      %v5070 = vadd.f32 %v5035, %v5065
      %v5071 = vadd.f32 %v5036, %v5066
      %v5072 = vadd.f32 %v5037, %v5067
      %v5073 = vld [vmem:[%s3 + $0x45] sm:$0x1]
      %5074 = vset.pattern.permute.xlu0 5
      %5075 = vperm.xlu0 %5074, %v4888
      %v5076 = vpop.permute.xlu0 %5075
      %5078 = vset.pattern.permute.xlu0 5
      %5079 = vperm.xlu0 %5078, %v4889
      %v5080 = vpop.permute.xlu0 %5079
      %5082 = vset.pattern.permute.xlu0 5
      %5083 = vperm.xlu0 %5082, %v4890
      %v5084 = vpop.permute.xlu0 %5083
      %5086 = vset.pattern.permute.xlu0 5
      %5087 = vperm.xlu0 %5086, %v4891
      %v5088 = vpop.permute.xlu0 %5087
      %5090 = vset.pattern.permute.xlu0 5
      %5091 = vperm.xlu0 %5090, %v4892
      %v5092 = vpop.permute.xlu0 %5091
      %v5094 = vlaneseq
      %v5095 = vshrl.u32 %v5094, 7
      %v5096 = vsub.s32 0, %v5095
      %v5097 = vrot.slane %v5073, %v5096
      %v5098 = vmul.f32 %v5076, %v5097
      %v5099 = vmul.f32 %v5080, %v5097
      %v5100 = vmul.f32 %v5084, %v5097
      %v5101 = vmul.f32 %v5088, %v5097
      %v5102 = vmul.f32 %v5092, %v5097
      %v5103 = vadd.f32 %v5068, %v5098
      %v5104 = vadd.f32 %v5069, %v5099
      %v5105 = vadd.f32 %v5070, %v5100
      %v5106 = vadd.f32 %v5071, %v5101
      %v5107 = vadd.f32 %v5072, %v5102
      %v5108 = vld [vmem:[%s3 + $0x46] sm:$0x1]
      %5109 = vset.pattern.permute.xlu0 6
      %5110 = vperm.xlu0 %5109, %v4888
      %v5111 = vpop.permute.xlu0 %5110
      %5113 = vset.pattern.permute.xlu0 6
      %5114 = vperm.xlu0 %5113, %v4889
      %v5115 = vpop.permute.xlu0 %5114
      %5117 = vset.pattern.permute.xlu0 6
      %5118 = vperm.xlu0 %5117, %v4890
      %v5119 = vpop.permute.xlu0 %5118
      %5121 = vset.pattern.permute.xlu0 6
      %5122 = vperm.xlu0 %5121, %v4891
      %v5123 = vpop.permute.xlu0 %5122
      %5125 = vset.pattern.permute.xlu0 6
      %5126 = vperm.xlu0 %5125, %v4892
      %v5127 = vpop.permute.xlu0 %5126
      %v5129 = vlaneseq
      %v5130 = vshrl.u32 %v5129, 7
      %v5131 = vsub.s32 0, %v5130
      %v5132 = vrot.slane %v5108, %v5131
      %v5133 = vmul.f32 %v5111, %v5132
      %v5134 = vmul.f32 %v5115, %v5132
      %v5135 = vmul.f32 %v5119, %v5132
      %v5136 = vmul.f32 %v5123, %v5132
      %v5137 = vmul.f32 %v5127, %v5132
      %v5138 = vadd.f32 %v5103, %v5133
      %v5139 = vadd.f32 %v5104, %v5134
      %v5140 = vadd.f32 %v5105, %v5135
      %v5141 = vadd.f32 %v5106, %v5136
      %v5142 = vadd.f32 %v5107, %v5137
      %v5143 = vld [vmem:[%s3 + $0x47] sm:$0x1]
      %5144 = vset.pattern.permute.xlu0 7
      %5145 = vperm.xlu0 %5144, %v4888
      %v5146 = vpop.permute.xlu0 %5145
      %5148 = vset.pattern.permute.xlu0 7
      %5149 = vperm.xlu0 %5148, %v4889
      %v5150 = vpop.permute.xlu0 %5149
      %5152 = vset.pattern.permute.xlu0 7
      %5153 = vperm.xlu0 %5152, %v4890
      %v5154 = vpop.permute.xlu0 %5153
      %5156 = vset.pattern.permute.xlu0 7
      %5157 = vperm.xlu0 %5156, %v4891
      %v5158 = vpop.permute.xlu0 %5157
      %5160 = vset.pattern.permute.xlu0 7
      %5161 = vperm.xlu0 %5160, %v4892
      %v5162 = vpop.permute.xlu0 %5161
      %v5164 = vlaneseq
      %v5165 = vshrl.u32 %v5164, 7
      %v5166 = vsub.s32 0, %v5165
      %v5167 = vrot.slane %v5143, %v5166
      %v5168 = vmul.f32 %v5146, %v5167
      %v5169 = vmul.f32 %v5150, %v5167
      %v5170 = vmul.f32 %v5154, %v5167
      %v5171 = vmul.f32 %v5158, %v5167
      %v5172 = vmul.f32 %v5162, %v5167
      %v5173 = vadd.f32 %v5138, %v5168
      %v5174 = vadd.f32 %v5139, %v5169
      %v5175 = vadd.f32 %v5140, %v5170
      %v5176 = vadd.f32 %v5141, %v5171
      %v5177 = vadd.f32 %v5142, %v5172
      %v5178 = vmax.f32 %v5173, 0.0
      %v5179 = vmax.f32 %v5174, 0.0
      %v5180 = vmax.f32 %v5175, 0.0
      %v5181 = vmax.f32 %v5176, 0.0
      %v5182 = vmax.f32 %v5177, 0.0
      %vm5183 = vcmask 61440
      %5184 = vst.msk [vmem:[#allocation3] sm:$0x1f] %vm5183, %v5178
      %5185 = vst.msk [vmem:[#allocation3 + $0x8] sm:$0x1f] %vm5183, %v5179
      %5186 = vst.msk [vmem:[#allocation3 + $0x10] sm:$0x1f] %vm5183, %v5180
      %5187 = vst.msk [vmem:[#allocation3 + $0x18] sm:$0x1f] %vm5183, %v5181
      %5188 = vst.msk [vmem:[#allocation3 + $0x20] sm:$0x1f] %vm5183, %v5182
      %v5189 = vld [vmem:[%s7] sm:$0x1]
      %v5190 = vld [vmem:[#allocation3] sm:$0x1]
      %v5191 = vld [vmem:[%s6] sm:$0xff]
      %vm5192 = vcmask 64512
      %v5194 = vsel %vm5192, %v5190, 0
      %5196 = vmatprep.subr.mxu0 0.0
      %5197 = vmatpush1.msra.mxu0 %v5191
      %5198 = vmatprep.subr.mxu0 0.0
      %5199 = vmatpush1.msra.mxu0 0.0
      %5200 = vmatprep.subr.mxu0 0.0
      %5201 = vmatpush1.msra.mxu0 0.0
      %5202 = vmatprep.subr.mxu0 0.0
      %5203 = vmatpush1.msra.mxu0 0.0
      %5204 = vmatprep.subr.mxu0 0.0
      %5205 = vmatpush1.msra.mxu0 0.0
      %5206 = vmatprep.subr.mxu0 0.0
      %5207 = vmatpush1.msra.mxu0 0.0
      %5208 = vmatprep.subr.mxu0 0.0
      %5209 = vmatpush1.msra.mxu0 0.0
      %5210 = vmatprep.subr.mxu0 0.0
      %5211 = vmatpush1.msra.mxu0 0.0
      %5212 = vmatprep.subr.mxu0 0.0
      %5213 = vmatpush1.msra.mxu0 0.0
      %5214 = vmatprep.subr.mxu0 0.0
      %5215 = vmatpush1.msra.mxu0 0.0
      %5216 = vmatprep.subr.mxu0 0.0
      %5217 = vmatpush1.msra.mxu0 0.0
      %5218 = vmatprep.subr.mxu0 0.0
      %5219 = vmatpush1.msra.mxu0 0.0
      %5220 = vmatprep.subr.mxu0 0.0
      %5221 = vmatpush1.msra.mxu0 0.0
      %5222 = vmatprep.subr.mxu0 0.0
      %5223 = vmatpush1.msra.mxu0 0.0
      %5224 = vmatprep.subr.mxu0 0.0
      %5225 = vmatpush1.msra.mxu0 0.0
      %5226 = vmatprep.subr.mxu0 0.0
      %5227 = vmatpush1.msra.mxu0 0.0
      %5228 = vmatprep.subr.mxu0 0.0
      %5229 = vmatpush1.msra.mxu0 0.0
      %5230 = vmatprep.subr.mxu0 0.0
      %5231 = vmatpush1.msra.mxu0 0.0
      %5232 = vmatprep.subr.mxu0 0.0
      %5233 = vmatpush1.msra.mxu0 0.0
      %5234 = vmatprep.subr.mxu0 0.0
      %5235 = vmatpush1.msra.mxu0 0.0
      %5236 = vmatprep.subr.mxu0 0.0
      %5237 = vmatpush1.msra.mxu0 0.0
      %5238 = vmatprep.subr.mxu0 0.0
      %5239 = vmatpush1.msra.mxu0 0.0
      %5240 = vmatprep.subr.mxu0 0.0
      %5241 = vmatpush1.msra.mxu0 0.0
      %5242 = vmatprep.subr.mxu0 0.0
      %5243 = vmatpush1.msra.mxu0 0.0
      %5244 = vmatprep.subr.mxu0 0.0
      %5245 = vmatpush1.msra.mxu0 0.0
      %5246 = vmatprep.subr.mxu0 0.0
      %5247 = vmatpush1.msra.mxu0 0.0
      %5248 = vmatprep.subr.mxu0 0.0
      %5249 = vmatpush1.msra.mxu0 0.0
      %5250 = vmatprep.subr.mxu0 0.0
      %5251 = vmatpush1.msra.mxu0 0.0
      %5252 = vmatprep.subr.mxu0 0.0
      %5253 = vmatpush1.msra.mxu0 0.0
      %5254 = vmatprep.subr.mxu0 0.0
      %5255 = vmatpush1.msra.mxu0 0.0
      %5256 = vmatprep.subr.mxu0 0.0
      %5257 = vmatpush1.msra.mxu0 0.0
      %5258 = vmatprep.subr.mxu0 0.0
      %5259 = vmatpush1.msra.mxu0 0.0
      %5260 = vmatprep.mubr.f32.mxu0 0.0
      %5261 = vmatmul.mubr.f32.gmra.mrb[0].mxu0 %v5194
      %v5262 = vpop.f32.mrb[0].mxu0
      %v5263 = vadd.f32 0.0, %v5262
      %v5264 = vpop.f32.mrb[0].mxu0
      %5265 = vdwg.mxu0
      %v5266 = vadd.f32 %v5189, %v5263
      %v5267 = vld [vmem:[#allocation3 + $0x1] sm:$0x1]
      %v5268 = vld [vmem:[%s6 + $0x8] sm:$0xff]
      %v5270 = vsel %vm5192, %v5267, 0
      %5272 = vmatprep.subr.mxu0 0.0
      %5273 = vmatpush1.msra.mxu0 %v5268
      %5274 = vmatprep.subr.mxu0 0.0
      %5275 = vmatpush1.msra.mxu0 0.0
      %5276 = vmatprep.subr.mxu0 0.0
      %5277 = vmatpush1.msra.mxu0 0.0
      %5278 = vmatprep.subr.mxu0 0.0
      %5279 = vmatpush1.msra.mxu0 0.0
      %5280 = vmatprep.subr.mxu0 0.0
      %5281 = vmatpush1.msra.mxu0 0.0
      %5282 = vmatprep.subr.mxu0 0.0
      %5283 = vmatpush1.msra.mxu0 0.0
      %5284 = vmatprep.subr.mxu0 0.0
      %5285 = vmatpush1.msra.mxu0 0.0
      %5286 = vmatprep.subr.mxu0 0.0
      %5287 = vmatpush1.msra.mxu0 0.0
      %5288 = vmatprep.subr.mxu0 0.0
      %5289 = vmatpush1.msra.mxu0 0.0
      %5290 = vmatprep.subr.mxu0 0.0
      %5291 = vmatpush1.msra.mxu0 0.0
      %5292 = vmatprep.subr.mxu0 0.0
      %5293 = vmatpush1.msra.mxu0 0.0
      %5294 = vmatprep.subr.mxu0 0.0
      %5295 = vmatpush1.msra.mxu0 0.0
      %5296 = vmatprep.subr.mxu0 0.0
      %5297 = vmatpush1.msra.mxu0 0.0
      %5298 = vmatprep.subr.mxu0 0.0
      %5299 = vmatpush1.msra.mxu0 0.0
      %5300 = vmatprep.subr.mxu0 0.0
      %5301 = vmatpush1.msra.mxu0 0.0
      %5302 = vmatprep.subr.mxu0 0.0
      %5303 = vmatpush1.msra.mxu0 0.0
      %5304 = vmatprep.subr.mxu0 0.0
      %5305 = vmatpush1.msra.mxu0 0.0
      %5306 = vmatprep.subr.mxu0 0.0
      %5307 = vmatpush1.msra.mxu0 0.0
      %5308 = vmatprep.subr.mxu0 0.0
      %5309 = vmatpush1.msra.mxu0 0.0
      %5310 = vmatprep.subr.mxu0 0.0
      %5311 = vmatpush1.msra.mxu0 0.0
      %5312 = vmatprep.subr.mxu0 0.0
      %5313 = vmatpush1.msra.mxu0 0.0
      %5314 = vmatprep.subr.mxu0 0.0
      %5315 = vmatpush1.msra.mxu0 0.0
      %5316 = vmatprep.subr.mxu0 0.0
      %5317 = vmatpush1.msra.mxu0 0.0
      %5318 = vmatprep.subr.mxu0 0.0
      %5319 = vmatpush1.msra.mxu0 0.0
      %5320 = vmatprep.subr.mxu0 0.0
      %5321 = vmatpush1.msra.mxu0 0.0
      %5322 = vmatprep.subr.mxu0 0.0
      %5323 = vmatpush1.msra.mxu0 0.0
      %5324 = vmatprep.subr.mxu0 0.0
      %5325 = vmatpush1.msra.mxu0 0.0
      %5326 = vmatprep.subr.mxu0 0.0
      %5327 = vmatpush1.msra.mxu0 0.0
      %5328 = vmatprep.subr.mxu0 0.0
      %5329 = vmatpush1.msra.mxu0 0.0
      %5330 = vmatprep.subr.mxu0 0.0
      %5331 = vmatpush1.msra.mxu0 0.0
      %5332 = vmatprep.subr.mxu0 0.0
      %5333 = vmatpush1.msra.mxu0 0.0
      %5334 = vmatprep.subr.mxu0 0.0
      %5335 = vmatpush1.msra.mxu0 0.0
      %5336 = vmatprep.mubr.f32.mxu0 0.0
      %5337 = vmatmul.mubr.f32.gmra.mrb[0].mxu0 %v5270
      %v5338 = vpop.f32.mrb[0].mxu0
      %v5339 = vadd.f32 0.0, %v5338
      %v5340 = vpop.f32.mrb[0].mxu0
      %5341 = vdwg.mxu0
      %v5342 = vadd.f32 %v5266, %v5339
      %v5343 = vld [vmem:[#allocation3 + $0x2] sm:$0x1]
      %v5344 = vld [vmem:[%s6 + $0x10] sm:$0xff]
      %v5346 = vsel %vm5192, %v5343, 0
      %5348 = vmatprep.subr.mxu0 0.0
      %5349 = vmatpush1.msra.mxu0 %v5344
      %5350 = vmatprep.subr.mxu0 0.0
      %5351 = vmatpush1.msra.mxu0 0.0
      %5352 = vmatprep.subr.mxu0 0.0
      %5353 = vmatpush1.msra.mxu0 0.0
      %5354 = vmatprep.subr.mxu0 0.0
      %5355 = vmatpush1.msra.mxu0 0.0
      %5356 = vmatprep.subr.mxu0 0.0
      %5357 = vmatpush1.msra.mxu0 0.0
      %5358 = vmatprep.subr.mxu0 0.0
      %5359 = vmatpush1.msra.mxu0 0.0
      %5360 = vmatprep.subr.mxu0 0.0
      %5361 = vmatpush1.msra.mxu0 0.0
      %5362 = vmatprep.subr.mxu0 0.0
      %5363 = vmatpush1.msra.mxu0 0.0
      %5364 = vmatprep.subr.mxu0 0.0
      %5365 = vmatpush1.msra.mxu0 0.0
      %5366 = vmatprep.subr.mxu0 0.0
      %5367 = vmatpush1.msra.mxu0 0.0
      %5368 = vmatprep.subr.mxu0 0.0
      %5369 = vmatpush1.msra.mxu0 0.0
      %5370 = vmatprep.subr.mxu0 0.0
      %5371 = vmatpush1.msra.mxu0 0.0
      %5372 = vmatprep.subr.mxu0 0.0
      %5373 = vmatpush1.msra.mxu0 0.0
      %5374 = vmatprep.subr.mxu0 0.0
      %5375 = vmatpush1.msra.mxu0 0.0
      %5376 = vmatprep.subr.mxu0 0.0
      %5377 = vmatpush1.msra.mxu0 0.0
      %5378 = vmatprep.subr.mxu0 0.0
      %5379 = vmatpush1.msra.mxu0 0.0
      %5380 = vmatprep.subr.mxu0 0.0
      %5381 = vmatpush1.msra.mxu0 0.0
      %5382 = vmatprep.subr.mxu0 0.0
      %5383 = vmatpush1.msra.mxu0 0.0
      %5384 = vmatprep.subr.mxu0 0.0
      %5385 = vmatpush1.msra.mxu0 0.0
      %5386 = vmatprep.subr.mxu0 0.0
      %5387 = vmatpush1.msra.mxu0 0.0
      %5388 = vmatprep.subr.mxu0 0.0
      %5389 = vmatpush1.msra.mxu0 0.0
      %5390 = vmatprep.subr.mxu0 0.0
      %5391 = vmatpush1.msra.mxu0 0.0
      %5392 = vmatprep.subr.mxu0 0.0
      %5393 = vmatpush1.msra.mxu0 0.0
      %5394 = vmatprep.subr.mxu0 0.0
      %5395 = vmatpush1.msra.mxu0 0.0
      %5396 = vmatprep.subr.mxu0 0.0
      %5397 = vmatpush1.msra.mxu0 0.0
      %5398 = vmatprep.subr.mxu0 0.0
      %5399 = vmatpush1.msra.mxu0 0.0
      %5400 = vmatprep.subr.mxu0 0.0
      %5401 = vmatpush1.msra.mxu0 0.0
      %5402 = vmatprep.subr.mxu0 0.0
      %5403 = vmatpush1.msra.mxu0 0.0
      %5404 = vmatprep.subr.mxu0 0.0
      %5405 = vmatpush1.msra.mxu0 0.0
      %5406 = vmatprep.subr.mxu0 0.0
      %5407 = vmatpush1.msra.mxu0 0.0
      %5408 = vmatprep.subr.mxu0 0.0
      %5409 = vmatpush1.msra.mxu0 0.0
      %5410 = vmatprep.subr.mxu0 0.0
      %5411 = vmatpush1.msra.mxu0 0.0
      %5412 = vmatprep.mubr.f32.mxu0 0.0
      %5413 = vmatmul.mubr.f32.gmra.mrb[0].mxu0 %v5346
      %v5414 = vpop.f32.mrb[0].mxu0
      %v5415 = vadd.f32 0.0, %v5414
      %v5416 = vpop.f32.mrb[0].mxu0
      %5417 = vdwg.mxu0
      %v5418 = vadd.f32 %v5342, %v5415
      %v5419 = vld [vmem:[#allocation3 + $0x3] sm:$0x1]
      %v5420 = vld [vmem:[%s6 + $0x18] sm:$0xff]
      %v5422 = vsel %vm5192, %v5419, 0
      %5424 = vmatprep.subr.mxu0 0.0
      %5425 = vmatpush1.msra.mxu0 %v5420
      %5426 = vmatprep.subr.mxu0 0.0
      %5427 = vmatpush1.msra.mxu0 0.0
      %5428 = vmatprep.subr.mxu0 0.0
      %5429 = vmatpush1.msra.mxu0 0.0
      %5430 = vmatprep.subr.mxu0 0.0
      %5431 = vmatpush1.msra.mxu0 0.0
      %5432 = vmatprep.subr.mxu0 0.0
      %5433 = vmatpush1.msra.mxu0 0.0
      %5434 = vmatprep.subr.mxu0 0.0
      %5435 = vmatpush1.msra.mxu0 0.0
      %5436 = vmatprep.subr.mxu0 0.0
      %5437 = vmatpush1.msra.mxu0 0.0
      %5438 = vmatprep.subr.mxu0 0.0
      %5439 = vmatpush1.msra.mxu0 0.0
      %5440 = vmatprep.subr.mxu0 0.0
      %5441 = vmatpush1.msra.mxu0 0.0
      %5442 = vmatprep.subr.mxu0 0.0
      %5443 = vmatpush1.msra.mxu0 0.0
      %5444 = vmatprep.subr.mxu0 0.0
      %5445 = vmatpush1.msra.mxu0 0.0
      %5446 = vmatprep.subr.mxu0 0.0
      %5447 = vmatpush1.msra.mxu0 0.0
      %5448 = vmatprep.subr.mxu0 0.0
      %5449 = vmatpush1.msra.mxu0 0.0
      %5450 = vmatprep.subr.mxu0 0.0
      %5451 = vmatpush1.msra.mxu0 0.0
      %5452 = vmatprep.subr.mxu0 0.0
      %5453 = vmatpush1.msra.mxu0 0.0
      %5454 = vmatprep.subr.mxu0 0.0
      %5455 = vmatpush1.msra.mxu0 0.0
      %5456 = vmatprep.subr.mxu0 0.0
      %5457 = vmatpush1.msra.mxu0 0.0
      %5458 = vmatprep.subr.mxu0 0.0
      %5459 = vmatpush1.msra.mxu0 0.0
      %5460 = vmatprep.subr.mxu0 0.0
      %5461 = vmatpush1.msra.mxu0 0.0
      %5462 = vmatprep.subr.mxu0 0.0
      %5463 = vmatpush1.msra.mxu0 0.0
      %5464 = vmatprep.subr.mxu0 0.0
      %5465 = vmatpush1.msra.mxu0 0.0
      %5466 = vmatprep.subr.mxu0 0.0
      %5467 = vmatpush1.msra.mxu0 0.0
      %5468 = vmatprep.subr.mxu0 0.0
      %5469 = vmatpush1.msra.mxu0 0.0
      %5470 = vmatprep.subr.mxu0 0.0
      %5471 = vmatpush1.msra.mxu0 0.0
      %5472 = vmatprep.subr.mxu0 0.0
      %5473 = vmatpush1.msra.mxu0 0.0
      %5474 = vmatprep.subr.mxu0 0.0
      %5475 = vmatpush1.msra.mxu0 0.0
      %5476 = vmatprep.subr.mxu0 0.0
      %5477 = vmatpush1.msra.mxu0 0.0
      %5478 = vmatprep.subr.mxu0 0.0
      %5479 = vmatpush1.msra.mxu0 0.0
      %5480 = vmatprep.subr.mxu0 0.0
      %5481 = vmatpush1.msra.mxu0 0.0
      %5482 = vmatprep.subr.mxu0 0.0
      %5483 = vmatpush1.msra.mxu0 0.0
      %5484 = vmatprep.subr.mxu0 0.0
      %5485 = vmatpush1.msra.mxu0 0.0
      %5486 = vmatprep.subr.mxu0 0.0
      %5487 = vmatpush1.msra.mxu0 0.0
      %5488 = vmatprep.mubr.f32.mxu0 0.0
      %5489 = vmatmul.mubr.f32.gmra.mrb[0].mxu0 %v5422
      %v5490 = vpop.f32.mrb[0].mxu0
      %v5491 = vadd.f32 0.0, %v5490
      %v5492 = vpop.f32.mrb[0].mxu0
      %5493 = vdwg.mxu0
      %v5494 = vadd.f32 %v5418, %v5491
      %v5495 = vld [vmem:[#allocation3 + $0x4] sm:$0x1]
      %v5496 = vld [vmem:[%s6 + $0x20] sm:$0xff]
      %v5498 = vsel %vm5192, %v5495, 0
      %5500 = vmatprep.subr.mxu0 0.0
      %5501 = vmatpush1.msra.mxu0 %v5496
      %5502 = vmatprep.subr.mxu0 0.0
      %5503 = vmatpush1.msra.mxu0 0.0
      %5504 = vmatprep.subr.mxu0 0.0
      %5505 = vmatpush1.msra.mxu0 0.0
      %5506 = vmatprep.subr.mxu0 0.0
      %5507 = vmatpush1.msra.mxu0 0.0
      %5508 = vmatprep.subr.mxu0 0.0
      %5509 = vmatpush1.msra.mxu0 0.0
      %5510 = vmatprep.subr.mxu0 0.0
      %5511 = vmatpush1.msra.mxu0 0.0
      %5512 = vmatprep.subr.mxu0 0.0
      %5513 = vmatpush1.msra.mxu0 0.0
      %5514 = vmatprep.subr.mxu0 0.0
      %5515 = vmatpush1.msra.mxu0 0.0
      %5516 = vmatprep.subr.mxu0 0.0
      %5517 = vmatpush1.msra.mxu0 0.0
      %5518 = vmatprep.subr.mxu0 0.0
      %5519 = vmatpush1.msra.mxu0 0.0
      %5520 = vmatprep.subr.mxu0 0.0
      %5521 = vmatpush1.msra.mxu0 0.0
      %5522 = vmatprep.subr.mxu0 0.0
      %5523 = vmatpush1.msra.mxu0 0.0
      %5524 = vmatprep.subr.mxu0 0.0
      %5525 = vmatpush1.msra.mxu0 0.0
      %5526 = vmatprep.subr.mxu0 0.0
      %5527 = vmatpush1.msra.mxu0 0.0
      %5528 = vmatprep.subr.mxu0 0.0
      %5529 = vmatpush1.msra.mxu0 0.0
      %5530 = vmatprep.subr.mxu0 0.0
      %5531 = vmatpush1.msra.mxu0 0.0
      %5532 = vmatprep.subr.mxu0 0.0
      %5533 = vmatpush1.msra.mxu0 0.0
      %5534 = vmatprep.subr.mxu0 0.0
      %5535 = vmatpush1.msra.mxu0 0.0
      %5536 = vmatprep.subr.mxu0 0.0
      %5537 = vmatpush1.msra.mxu0 0.0
      %5538 = vmatprep.subr.mxu0 0.0
      %5539 = vmatpush1.msra.mxu0 0.0
      %5540 = vmatprep.subr.mxu0 0.0
      %5541 = vmatpush1.msra.mxu0 0.0
      %5542 = vmatprep.subr.mxu0 0.0
      %5543 = vmatpush1.msra.mxu0 0.0
      %5544 = vmatprep.subr.mxu0 0.0
      %5545 = vmatpush1.msra.mxu0 0.0
      %5546 = vmatprep.subr.mxu0 0.0
      %5547 = vmatpush1.msra.mxu0 0.0
      %5548 = vmatprep.subr.mxu0 0.0
      %5549 = vmatpush1.msra.mxu0 0.0
      %5550 = vmatprep.subr.mxu0 0.0
      %5551 = vmatpush1.msra.mxu0 0.0
      %5552 = vmatprep.subr.mxu0 0.0
      %5553 = vmatpush1.msra.mxu0 0.0
      %5554 = vmatprep.subr.mxu0 0.0
      %5555 = vmatpush1.msra.mxu0 0.0
      %5556 = vmatprep.subr.mxu0 0.0
      %5557 = vmatpush1.msra.mxu0 0.0
      %5558 = vmatprep.subr.mxu0 0.0
      %5559 = vmatpush1.msra.mxu0 0.0
      %5560 = vmatprep.subr.mxu0 0.0
      %5561 = vmatpush1.msra.mxu0 0.0
      %5562 = vmatprep.subr.mxu0 0.0
      %5563 = vmatpush1.msra.mxu0 0.0
      %5564 = vmatprep.mubr.f32.mxu0 0.0
      %5565 = vmatmul.mubr.f32.gmra.mrb[0].mxu0 %v5498
      %v5566 = vpop.f32.mrb[0].mxu0
      %v5567 = vadd.f32 0.0, %v5566
      %v5568 = vpop.f32.mrb[0].mxu0
      %5569 = vdwg.mxu0
      %v5570 = vadd.f32 %v5494, %v5567
      %s5571 = scalar_lea.vmem [#allocation3], 8
      %v5572 = vld [vmem:[%s5571] sm:$0x1]
      %v5573 = vld [vmem:[%s6 + $0x28] sm:$0xff]
      %v5575 = vsel %vm5192, %v5572, 0
      %5577 = vmatprep.subr.mxu0 0.0
      %5578 = vmatpush1.msra.mxu0 %v5573
      %5579 = vmatprep.subr.mxu0 0.0
      %5580 = vmatpush1.msra.mxu0 0.0
      %5581 = vmatprep.subr.mxu0 0.0
      %5582 = vmatpush1.msra.mxu0 0.0
      %5583 = vmatprep.subr.mxu0 0.0
      %5584 = vmatpush1.msra.mxu0 0.0
      %5585 = vmatprep.subr.mxu0 0.0
      %5586 = vmatpush1.msra.mxu0 0.0
      %5587 = vmatprep.subr.mxu0 0.0
      %5588 = vmatpush1.msra.mxu0 0.0
      %5589 = vmatprep.subr.mxu0 0.0
      %5590 = vmatpush1.msra.mxu0 0.0
      %5591 = vmatprep.subr.mxu0 0.0
      %5592 = vmatpush1.msra.mxu0 0.0
      %5593 = vmatprep.subr.mxu0 0.0
      %5594 = vmatpush1.msra.mxu0 0.0
      %5595 = vmatprep.subr.mxu0 0.0
      %5596 = vmatpush1.msra.mxu0 0.0
      %5597 = vmatprep.subr.mxu0 0.0
      %5598 = vmatpush1.msra.mxu0 0.0
      %5599 = vmatprep.subr.mxu0 0.0
      %5600 = vmatpush1.msra.mxu0 0.0
      %5601 = vmatprep.subr.mxu0 0.0
      %5602 = vmatpush1.msra.mxu0 0.0
      %5603 = vmatprep.subr.mxu0 0.0
      %5604 = vmatpush1.msra.mxu0 0.0
      %5605 = vmatprep.subr.mxu0 0.0
      %5606 = vmatpush1.msra.mxu0 0.0
      %5607 = vmatprep.subr.mxu0 0.0
      %5608 = vmatpush1.msra.mxu0 0.0
      %5609 = vmatprep.subr.mxu0 0.0
      %5610 = vmatpush1.msra.mxu0 0.0
      %5611 = vmatprep.subr.mxu0 0.0
      %5612 = vmatpush1.msra.mxu0 0.0
      %5613 = vmatprep.subr.mxu0 0.0
      %5614 = vmatpush1.msra.mxu0 0.0
      %5615 = vmatprep.subr.mxu0 0.0
      %5616 = vmatpush1.msra.mxu0 0.0
      %5617 = vmatprep.subr.mxu0 0.0
      %5618 = vmatpush1.msra.mxu0 0.0
      %5619 = vmatprep.subr.mxu0 0.0
      %5620 = vmatpush1.msra.mxu0 0.0
      %5621 = vmatprep.subr.mxu0 0.0
      %5622 = vmatpush1.msra.mxu0 0.0
      %5623 = vmatprep.subr.mxu0 0.0
      %5624 = vmatpush1.msra.mxu0 0.0
      %5625 = vmatprep.subr.mxu0 0.0
      %5626 = vmatpush1.msra.mxu0 0.0
      %5627 = vmatprep.subr.mxu0 0.0
      %5628 = vmatpush1.msra.mxu0 0.0
      %5629 = vmatprep.subr.mxu0 0.0
      %5630 = vmatpush1.msra.mxu0 0.0
      %5631 = vmatprep.subr.mxu0 0.0
      %5632 = vmatpush1.msra.mxu0 0.0
      %5633 = vmatprep.subr.mxu0 0.0
      %5634 = vmatpush1.msra.mxu0 0.0
      %5635 = vmatprep.subr.mxu0 0.0
      %5636 = vmatpush1.msra.mxu0 0.0
      %5637 = vmatprep.subr.mxu0 0.0
      %5638 = vmatpush1.msra.mxu0 0.0
      %5639 = vmatprep.subr.mxu0 0.0
      %5640 = vmatpush1.msra.mxu0 0.0
      %5641 = vmatprep.mubr.f32.mxu0 0.0
      %5642 = vmatmul.mubr.f32.gmra.mrb[0].mxu0 %v5575
      %v5643 = vpop.f32.mrb[0].mxu0
      %v5644 = vadd.f32 0.0, %v5643
      %v5645 = vpop.f32.mrb[0].mxu0
      %5646 = vdwg.mxu0
      %v5647 = vadd.f32 %v5570, %v5644
      %v5648 = vld [vmem:[%s5571 + $0x1] sm:$0x1]
      %v5649 = vld [vmem:[%s6 + $0x30] sm:$0xff]
      %v5651 = vsel %vm5192, %v5648, 0
      %5653 = vmatprep.subr.mxu0 0.0
      %5654 = vmatpush1.msra.mxu0 %v5649
      %5655 = vmatprep.subr.mxu0 0.0
      %5656 = vmatpush1.msra.mxu0 0.0
      %5657 = vmatprep.subr.mxu0 0.0
      %5658 = vmatpush1.msra.mxu0 0.0
      %5659 = vmatprep.subr.mxu0 0.0
      %5660 = vmatpush1.msra.mxu0 0.0
      %5661 = vmatprep.subr.mxu0 0.0
      %5662 = vmatpush1.msra.mxu0 0.0
      %5663 = vmatprep.subr.mxu0 0.0
      %5664 = vmatpush1.msra.mxu0 0.0
      %5665 = vmatprep.subr.mxu0 0.0
      %5666 = vmatpush1.msra.mxu0 0.0
      %5667 = vmatprep.subr.mxu0 0.0
      %5668 = vmatpush1.msra.mxu0 0.0
      %5669 = vmatprep.subr.mxu0 0.0
      %5670 = vmatpush1.msra.mxu0 0.0
      %5671 = vmatprep.subr.mxu0 0.0
      %5672 = vmatpush1.msra.mxu0 0.0
      %5673 = vmatprep.subr.mxu0 0.0
      %5674 = vmatpush1.msra.mxu0 0.0
      %5675 = vmatprep.subr.mxu0 0.0
      %5676 = vmatpush1.msra.mxu0 0.0
      %5677 = vmatprep.subr.mxu0 0.0
      %5678 = vmatpush1.msra.mxu0 0.0
      %5679 = vmatprep.subr.mxu0 0.0
      %5680 = vmatpush1.msra.mxu0 0.0
      %5681 = vmatprep.subr.mxu0 0.0
      %5682 = vmatpush1.msra.mxu0 0.0
      %5683 = vmatprep.subr.mxu0 0.0
      %5684 = vmatpush1.msra.mxu0 0.0
      %5685 = vmatprep.subr.mxu0 0.0
      %5686 = vmatpush1.msra.mxu0 0.0
      %5687 = vmatprep.subr.mxu0 0.0
      %5688 = vmatpush1.msra.mxu0 0.0
      %5689 = vmatprep.subr.mxu0 0.0
      %5690 = vmatpush1.msra.mxu0 0.0
      %5691 = vmatprep.subr.mxu0 0.0
      %5692 = vmatpush1.msra.mxu0 0.0
      %5693 = vmatprep.subr.mxu0 0.0
      %5694 = vmatpush1.msra.mxu0 0.0
      %5695 = vmatprep.subr.mxu0 0.0
      %5696 = vmatpush1.msra.mxu0 0.0
      %5697 = vmatprep.subr.mxu0 0.0
      %5698 = vmatpush1.msra.mxu0 0.0
      %5699 = vmatprep.subr.mxu0 0.0
      %5700 = vmatpush1.msra.mxu0 0.0
      %5701 = vmatprep.subr.mxu0 0.0
      %5702 = vmatpush1.msra.mxu0 0.0
      %5703 = vmatprep.subr.mxu0 0.0
      %5704 = vmatpush1.msra.mxu0 0.0
      %5705 = vmatprep.subr.mxu0 0.0
      %5706 = vmatpush1.msra.mxu0 0.0
      %5707 = vmatprep.subr.mxu0 0.0
      %5708 = vmatpush1.msra.mxu0 0.0
      %5709 = vmatprep.subr.mxu0 0.0
      %5710 = vmatpush1.msra.mxu0 0.0
      %5711 = vmatprep.subr.mxu0 0.0
      %5712 = vmatpush1.msra.mxu0 0.0
      %5713 = vmatprep.subr.mxu0 0.0
      %5714 = vmatpush1.msra.mxu0 0.0
      %5715 = vmatprep.subr.mxu0 0.0
      %5716 = vmatpush1.msra.mxu0 0.0
      %5717 = vmatprep.mubr.f32.mxu0 0.0
      %5718 = vmatmul.mubr.f32.gmra.mrb[0].mxu0 %v5651
      %v5719 = vpop.f32.mrb[0].mxu0
      %v5720 = vadd.f32 0.0, %v5719
      %v5721 = vpop.f32.mrb[0].mxu0
      %5722 = vdwg.mxu0
      %v5723 = vadd.f32 %v5647, %v5720
      %v5724 = vld [vmem:[%s5571 + $0x2] sm:$0x1]
      %v5725 = vld [vmem:[%s6 + $0x38] sm:$0xff]
      %v5727 = vsel %vm5192, %v5724, 0
      %5729 = vmatprep.subr.mxu0 0.0
      %5730 = vmatpush1.msra.mxu0 %v5725
      %5731 = vmatprep.subr.mxu0 0.0
      %5732 = vmatpush1.msra.mxu0 0.0
      %5733 = vmatprep.subr.mxu0 0.0
      %5734 = vmatpush1.msra.mxu0 0.0
      %5735 = vmatprep.subr.mxu0 0.0
      %5736 = vmatpush1.msra.mxu0 0.0
      %5737 = vmatprep.subr.mxu0 0.0
      %5738 = vmatpush1.msra.mxu0 0.0
      %5739 = vmatprep.subr.mxu0 0.0
      %5740 = vmatpush1.msra.mxu0 0.0
      %5741 = vmatprep.subr.mxu0 0.0
      %5742 = vmatpush1.msra.mxu0 0.0
      %5743 = vmatprep.subr.mxu0 0.0
      %5744 = vmatpush1.msra.mxu0 0.0
      %5745 = vmatprep.subr.mxu0 0.0
      %5746 = vmatpush1.msra.mxu0 0.0
      %5747 = vmatprep.subr.mxu0 0.0
      %5748 = vmatpush1.msra.mxu0 0.0
      %5749 = vmatprep.subr.mxu0 0.0
      %5750 = vmatpush1.msra.mxu0 0.0
      %5751 = vmatprep.subr.mxu0 0.0
      %5752 = vmatpush1.msra.mxu0 0.0
      %5753 = vmatprep.subr.mxu0 0.0
      %5754 = vmatpush1.msra.mxu0 0.0
      %5755 = vmatprep.subr.mxu0 0.0
      %5756 = vmatpush1.msra.mxu0 0.0
      %5757 = vmatprep.subr.mxu0 0.0
      %5758 = vmatpush1.msra.mxu0 0.0
      %5759 = vmatprep.subr.mxu0 0.0
      %5760 = vmatpush1.msra.mxu0 0.0
      %5761 = vmatprep.subr.mxu0 0.0
      %5762 = vmatpush1.msra.mxu0 0.0
      %5763 = vmatprep.subr.mxu0 0.0
      %5764 = vmatpush1.msra.mxu0 0.0
      %5765 = vmatprep.subr.mxu0 0.0
      %5766 = vmatpush1.msra.mxu0 0.0
      %5767 = vmatprep.subr.mxu0 0.0
      %5768 = vmatpush1.msra.mxu0 0.0
      %5769 = vmatprep.subr.mxu0 0.0
      %5770 = vmatpush1.msra.mxu0 0.0
      %5771 = vmatprep.subr.mxu0 0.0
      %5772 = vmatpush1.msra.mxu0 0.0
      %5773 = vmatprep.subr.mxu0 0.0
      %5774 = vmatpush1.msra.mxu0 0.0
      %5775 = vmatprep.subr.mxu0 0.0
      %5776 = vmatpush1.msra.mxu0 0.0
      %5777 = vmatprep.subr.mxu0 0.0
      %5778 = vmatpush1.msra.mxu0 0.0
      %5779 = vmatprep.subr.mxu0 0.0
      %5780 = vmatpush1.msra.mxu0 0.0
      %5781 = vmatprep.subr.mxu0 0.0
      %5782 = vmatpush1.msra.mxu0 0.0
      %5783 = vmatprep.subr.mxu0 0.0
      %5784 = vmatpush1.msra.mxu0 0.0
      %5785 = vmatprep.subr.mxu0 0.0
      %5786 = vmatpush1.msra.mxu0 0.0
      %5787 = vmatprep.subr.mxu0 0.0
      %5788 = vmatpush1.msra.mxu0 0.0
      %5789 = vmatprep.subr.mxu0 0.0
      %5790 = vmatpush1.msra.mxu0 0.0
      %5791 = vmatprep.subr.mxu0 0.0
      %5792 = vmatpush1.msra.mxu0 0.0
      %5793 = vmatprep.mubr.f32.mxu0 0.0
      %5794 = vmatmul.mubr.f32.gmra.mrb[0].mxu0 %v5727
      %v5795 = vpop.f32.mrb[0].mxu0
      %v5796 = vadd.f32 0.0, %v5795
      %v5797 = vpop.f32.mrb[0].mxu0
      %5798 = vdwg.mxu0
      %v5799 = vadd.f32 %v5723, %v5796
      %v5800 = vld [vmem:[%s5571 + $0x3] sm:$0x1]
      %v5801 = vld [vmem:[%s6 + $0x40] sm:$0xff]
      %v5803 = vsel %vm5192, %v5800, 0
      %5805 = vmatprep.subr.mxu0 0.0
      %5806 = vmatpush1.msra.mxu0 %v5801
      %5807 = vmatprep.subr.mxu0 0.0
      %5808 = vmatpush1.msra.mxu0 0.0
      %5809 = vmatprep.subr.mxu0 0.0
      %5810 = vmatpush1.msra.mxu0 0.0
      %5811 = vmatprep.subr.mxu0 0.0
      %5812 = vmatpush1.msra.mxu0 0.0
      %5813 = vmatprep.subr.mxu0 0.0
      %5814 = vmatpush1.msra.mxu0 0.0
      %5815 = vmatprep.subr.mxu0 0.0
      %5816 = vmatpush1.msra.mxu0 0.0
      %5817 = vmatprep.subr.mxu0 0.0
      %5818 = vmatpush1.msra.mxu0 0.0
      %5819 = vmatprep.subr.mxu0 0.0
      %5820 = vmatpush1.msra.mxu0 0.0
      %5821 = vmatprep.subr.mxu0 0.0
      %5822 = vmatpush1.msra.mxu0 0.0
      %5823 = vmatprep.subr.mxu0 0.0
      %5824 = vmatpush1.msra.mxu0 0.0
      %5825 = vmatprep.subr.mxu0 0.0
      %5826 = vmatpush1.msra.mxu0 0.0
      %5827 = vmatprep.subr.mxu0 0.0
      %5828 = vmatpush1.msra.mxu0 0.0
      %5829 = vmatprep.subr.mxu0 0.0
      %5830 = vmatpush1.msra.mxu0 0.0
      %5831 = vmatprep.subr.mxu0 0.0
      %5832 = vmatpush1.msra.mxu0 0.0
      %5833 = vmatprep.subr.mxu0 0.0
      %5834 = vmatpush1.msra.mxu0 0.0
      %5835 = vmatprep.subr.mxu0 0.0
      %5836 = vmatpush1.msra.mxu0 0.0
      %5837 = vmatprep.subr.mxu0 0.0
      %5838 = vmatpush1.msra.mxu0 0.0
      %5839 = vmatprep.subr.mxu0 0.0
      %5840 = vmatpush1.msra.mxu0 0.0
      %5841 = vmatprep.subr.mxu0 0.0
      %5842 = vmatpush1.msra.mxu0 0.0
      %5843 = vmatprep.subr.mxu0 0.0
      %5844 = vmatpush1.msra.mxu0 0.0
      %5845 = vmatprep.subr.mxu0 0.0
      %5846 = vmatpush1.msra.mxu0 0.0
      %5847 = vmatprep.subr.mxu0 0.0
      %5848 = vmatpush1.msra.mxu0 0.0
      %5849 = vmatprep.subr.mxu0 0.0
      %5850 = vmatpush1.msra.mxu0 0.0
      %5851 = vmatprep.subr.mxu0 0.0
      %5852 = vmatpush1.msra.mxu0 0.0
      %5853 = vmatprep.subr.mxu0 0.0
      %5854 = vmatpush1.msra.mxu0 0.0
      %5855 = vmatprep.subr.mxu0 0.0
      %5856 = vmatpush1.msra.mxu0 0.0
      %5857 = vmatprep.subr.mxu0 0.0
      %5858 = vmatpush1.msra.mxu0 0.0
      %5859 = vmatprep.subr.mxu0 0.0
      %5860 = vmatpush1.msra.mxu0 0.0
      %5861 = vmatprep.subr.mxu0 0.0
      %5862 = vmatpush1.msra.mxu0 0.0
      %5863 = vmatprep.subr.mxu0 0.0
      %5864 = vmatpush1.msra.mxu0 0.0
      %5865 = vmatprep.subr.mxu0 0.0
      %5866 = vmatpush1.msra.mxu0 0.0
      %5867 = vmatprep.subr.mxu0 0.0
      %5868 = vmatpush1.msra.mxu0 0.0
      %5869 = vmatprep.mubr.f32.mxu0 0.0
      %5870 = vmatmul.mubr.f32.gmra.mrb[0].mxu0 %v5803
      %v5871 = vpop.f32.mrb[0].mxu0
      %v5872 = vadd.f32 0.0, %v5871
      %v5873 = vpop.f32.mrb[0].mxu0
      %5874 = vdwg.mxu0
      %v5875 = vadd.f32 %v5799, %v5872
      %v5876 = vld [vmem:[%s5571 + $0x4] sm:$0x1]
      %v5877 = vld [vmem:[%s6 + $0x48] sm:$0xff]
      %v5879 = vsel %vm5192, %v5876, 0
      %5881 = vmatprep.subr.mxu0 0.0
      %5882 = vmatpush1.msra.mxu0 %v5877
      %5883 = vmatprep.subr.mxu0 0.0
      %5884 = vmatpush1.msra.mxu0 0.0
      %5885 = vmatprep.subr.mxu0 0.0
      %5886 = vmatpush1.msra.mxu0 0.0
      %5887 = vmatprep.subr.mxu0 0.0
      %5888 = vmatpush1.msra.mxu0 0.0
      %5889 = vmatprep.subr.mxu0 0.0
      %5890 = vmatpush1.msra.mxu0 0.0
      %5891 = vmatprep.subr.mxu0 0.0
      %5892 = vmatpush1.msra.mxu0 0.0
      %5893 = vmatprep.subr.mxu0 0.0
      %5894 = vmatpush1.msra.mxu0 0.0
      %5895 = vmatprep.subr.mxu0 0.0
      %5896 = vmatpush1.msra.mxu0 0.0
      %5897 = vmatprep.subr.mxu0 0.0
      %5898 = vmatpush1.msra.mxu0 0.0
      %5899 = vmatprep.subr.mxu0 0.0
      %5900 = vmatpush1.msra.mxu0 0.0
      %5901 = vmatprep.subr.mxu0 0.0
      %5902 = vmatpush1.msra.mxu0 0.0
      %5903 = vmatprep.subr.mxu0 0.0
      %5904 = vmatpush1.msra.mxu0 0.0
      %5905 = vmatprep.subr.mxu0 0.0
      %5906 = vmatpush1.msra.mxu0 0.0
      %5907 = vmatprep.subr.mxu0 0.0
      %5908 = vmatpush1.msra.mxu0 0.0
      %5909 = vmatprep.subr.mxu0 0.0
      %5910 = vmatpush1.msra.mxu0 0.0
      %5911 = vmatprep.subr.mxu0 0.0
      %5912 = vmatpush1.msra.mxu0 0.0
      %5913 = vmatprep.subr.mxu0 0.0
      %5914 = vmatpush1.msra.mxu0 0.0
      %5915 = vmatprep.subr.mxu0 0.0
      %5916 = vmatpush1.msra.mxu0 0.0
      %5917 = vmatprep.subr.mxu0 0.0
      %5918 = vmatpush1.msra.mxu0 0.0
      %5919 = vmatprep.subr.mxu0 0.0
      %5920 = vmatpush1.msra.mxu0 0.0
      %5921 = vmatprep.subr.mxu0 0.0
      %5922 = vmatpush1.msra.mxu0 0.0
      %5923 = vmatprep.subr.mxu0 0.0
      %5924 = vmatpush1.msra.mxu0 0.0
      %5925 = vmatprep.subr.mxu0 0.0
      %5926 = vmatpush1.msra.mxu0 0.0
      %5927 = vmatprep.subr.mxu0 0.0
      %5928 = vmatpush1.msra.mxu0 0.0
      %5929 = vmatprep.subr.mxu0 0.0
      %5930 = vmatpush1.msra.mxu0 0.0
      %5931 = vmatprep.subr.mxu0 0.0
      %5932 = vmatpush1.msra.mxu0 0.0
      %5933 = vmatprep.subr.mxu0 0.0
      %5934 = vmatpush1.msra.mxu0 0.0
      %5935 = vmatprep.subr.mxu0 0.0
      %5936 = vmatpush1.msra.mxu0 0.0
      %5937 = vmatprep.subr.mxu0 0.0
      %5938 = vmatpush1.msra.mxu0 0.0
      %5939 = vmatprep.subr.mxu0 0.0
      %5940 = vmatpush1.msra.mxu0 0.0
      %5941 = vmatprep.subr.mxu0 0.0
      %5942 = vmatpush1.msra.mxu0 0.0
      %5943 = vmatprep.subr.mxu0 0.0
      %5944 = vmatpush1.msra.mxu0 0.0
      %5945 = vmatprep.mubr.f32.mxu0 0.0
      %5946 = vmatmul.mubr.f32.gmra.mrb[0].mxu0 %v5879
      %v5947 = vpop.f32.mrb[0].mxu0
      %v5948 = vadd.f32 0.0, %v5947
      %v5949 = vpop.f32.mrb[0].mxu0
      %5950 = vdwg.mxu0
      %v5951 = vadd.f32 %v5875, %v5948
      %s5952 = scalar_lea.vmem [#allocation3], 16
      %v5953 = vld [vmem:[%s5952] sm:$0x1]
      %v5954 = vld [vmem:[%s6 + $0x50] sm:$0xff]
      %v5956 = vsel %vm5192, %v5953, 0
      %5958 = vmatprep.subr.mxu0 0.0
      %5959 = vmatpush1.msra.mxu0 %v5954
      %5960 = vmatprep.subr.mxu0 0.0
      %5961 = vmatpush1.msra.mxu0 0.0
      %5962 = vmatprep.subr.mxu0 0.0
      %5963 = vmatpush1.msra.mxu0 0.0
      %5964 = vmatprep.subr.mxu0 0.0
      %5965 = vmatpush1.msra.mxu0 0.0
      %5966 = vmatprep.subr.mxu0 0.0
      %5967 = vmatpush1.msra.mxu0 0.0
      %5968 = vmatprep.subr.mxu0 0.0
      %5969 = vmatpush1.msra.mxu0 0.0
      %5970 = vmatprep.subr.mxu0 0.0
      %5971 = vmatpush1.msra.mxu0 0.0
      %5972 = vmatprep.subr.mxu0 0.0
      %5973 = vmatpush1.msra.mxu0 0.0
      %5974 = vmatprep.subr.mxu0 0.0
      %5975 = vmatpush1.msra.mxu0 0.0
      %5976 = vmatprep.subr.mxu0 0.0
      %5977 = vmatpush1.msra.mxu0 0.0
      %5978 = vmatprep.subr.mxu0 0.0
      %5979 = vmatpush1.msra.mxu0 0.0
      %5980 = vmatprep.subr.mxu0 0.0
      %5981 = vmatpush1.msra.mxu0 0.0
      %5982 = vmatprep.subr.mxu0 0.0
      %5983 = vmatpush1.msra.mxu0 0.0
      %5984 = vmatprep.subr.mxu0 0.0
      %5985 = vmatpush1.msra.mxu0 0.0
      %5986 = vmatprep.subr.mxu0 0.0
      %5987 = vmatpush1.msra.mxu0 0.0
      %5988 = vmatprep.subr.mxu0 0.0
      %5989 = vmatpush1.msra.mxu0 0.0
      %5990 = vmatprep.subr.mxu0 0.0
      %5991 = vmatpush1.msra.mxu0 0.0
      %5992 = vmatprep.subr.mxu0 0.0
      %5993 = vmatpush1.msra.mxu0 0.0
      %5994 = vmatprep.subr.mxu0 0.0
      %5995 = vmatpush1.msra.mxu0 0.0
      %5996 = vmatprep.subr.mxu0 0.0
      %5997 = vmatpush1.msra.mxu0 0.0
      %5998 = vmatprep.subr.mxu0 0.0
      %5999 = vmatpush1.msra.mxu0 0.0
      %6000 = vmatprep.subr.mxu0 0.0
      %6001 = vmatpush1.msra.mxu0 0.0
      %6002 = vmatprep.subr.mxu0 0.0
      %6003 = vmatpush1.msra.mxu0 0.0
      %6004 = vmatprep.subr.mxu0 0.0
      %6005 = vmatpush1.msra.mxu0 0.0
      %6006 = vmatprep.subr.mxu0 0.0
      %6007 = vmatpush1.msra.mxu0 0.0
      %6008 = vmatprep.subr.mxu0 0.0
      %6009 = vmatpush1.msra.mxu0 0.0
      %6010 = vmatprep.subr.mxu0 0.0
      %6011 = vmatpush1.msra.mxu0 0.0
      %6012 = vmatprep.subr.mxu0 0.0
      %6013 = vmatpush1.msra.mxu0 0.0
      %6014 = vmatprep.subr.mxu0 0.0
      %6015 = vmatpush1.msra.mxu0 0.0
      %6016 = vmatprep.subr.mxu0 0.0
      %6017 = vmatpush1.msra.mxu0 0.0
      %6018 = vmatprep.subr.mxu0 0.0
      %6019 = vmatpush1.msra.mxu0 0.0
      %6020 = vmatprep.subr.mxu0 0.0
      %6021 = vmatpush1.msra.mxu0 0.0
      %6022 = vmatprep.mubr.f32.mxu0 0.0
      %6023 = vmatmul.mubr.f32.gmra.mrb[0].mxu0 %v5956
      %v6024 = vpop.f32.mrb[0].mxu0
      %v6025 = vadd.f32 0.0, %v6024
      %v6026 = vpop.f32.mrb[0].mxu0
      %6027 = vdwg.mxu0
      %v6028 = vadd.f32 %v5951, %v6025
      %v6029 = vld [vmem:[%s5952 + $0x1] sm:$0x1]
      %v6030 = vld [vmem:[%s6 + $0x58] sm:$0xff]
      %v6032 = vsel %vm5192, %v6029, 0
      %6034 = vmatprep.subr.mxu0 0.0
      %6035 = vmatpush1.msra.mxu0 %v6030
      %6036 = vmatprep.subr.mxu0 0.0
      %6037 = vmatpush1.msra.mxu0 0.0
      %6038 = vmatprep.subr.mxu0 0.0
      %6039 = vmatpush1.msra.mxu0 0.0
      %6040 = vmatprep.subr.mxu0 0.0
      %6041 = vmatpush1.msra.mxu0 0.0
      %6042 = vmatprep.subr.mxu0 0.0
      %6043 = vmatpush1.msra.mxu0 0.0
      %6044 = vmatprep.subr.mxu0 0.0
      %6045 = vmatpush1.msra.mxu0 0.0
      %6046 = vmatprep.subr.mxu0 0.0
      %6047 = vmatpush1.msra.mxu0 0.0
      %6048 = vmatprep.subr.mxu0 0.0
      %6049 = vmatpush1.msra.mxu0 0.0
      %6050 = vmatprep.subr.mxu0 0.0
      %6051 = vmatpush1.msra.mxu0 0.0
      %6052 = vmatprep.subr.mxu0 0.0
      %6053 = vmatpush1.msra.mxu0 0.0
      %6054 = vmatprep.subr.mxu0 0.0
      %6055 = vmatpush1.msra.mxu0 0.0
      %6056 = vmatprep.subr.mxu0 0.0
      %6057 = vmatpush1.msra.mxu0 0.0
      %6058 = vmatprep.subr.mxu0 0.0
      %6059 = vmatpush1.msra.mxu0 0.0
      %6060 = vmatprep.subr.mxu0 0.0
      %6061 = vmatpush1.msra.mxu0 0.0
      %6062 = vmatprep.subr.mxu0 0.0
      %6063 = vmatpush1.msra.mxu0 0.0
      %6064 = vmatprep.subr.mxu0 0.0
      %6065 = vmatpush1.msra.mxu0 0.0
      %6066 = vmatprep.subr.mxu0 0.0
      %6067 = vmatpush1.msra.mxu0 0.0
      %6068 = vmatprep.subr.mxu0 0.0
      %6069 = vmatpush1.msra.mxu0 0.0
      %6070 = vmatprep.subr.mxu0 0.0
      %6071 = vmatpush1.msra.mxu0 0.0
      %6072 = vmatprep.subr.mxu0 0.0
      %6073 = vmatpush1.msra.mxu0 0.0
      %6074 = vmatprep.subr.mxu0 0.0
      %6075 = vmatpush1.msra.mxu0 0.0
      %6076 = vmatprep.subr.mxu0 0.0
      %6077 = vmatpush1.msra.mxu0 0.0
      %6078 = vmatprep.subr.mxu0 0.0
      %6079 = vmatpush1.msra.mxu0 0.0
      %6080 = vmatprep.subr.mxu0 0.0
      %6081 = vmatpush1.msra.mxu0 0.0
      %6082 = vmatprep.subr.mxu0 0.0
      %6083 = vmatpush1.msra.mxu0 0.0
      %6084 = vmatprep.subr.mxu0 0.0
      %6085 = vmatpush1.msra.mxu0 0.0
      %6086 = vmatprep.subr.mxu0 0.0
      %6087 = vmatpush1.msra.mxu0 0.0
      %6088 = vmatprep.subr.mxu0 0.0
      %6089 = vmatpush1.msra.mxu0 0.0
      %6090 = vmatprep.subr.mxu0 0.0
      %6091 = vmatpush1.msra.mxu0 0.0
      %6092 = vmatprep.subr.mxu0 0.0
      %6093 = vmatpush1.msra.mxu0 0.0
      %6094 = vmatprep.subr.mxu0 0.0
      %6095 = vmatpush1.msra.mxu0 0.0
      %6096 = vmatprep.subr.mxu0 0.0
      %6097 = vmatpush1.msra.mxu0 0.0
      %6098 = vmatprep.mubr.f32.mxu0 0.0
      %6099 = vmatmul.mubr.f32.gmra.mrb[0].mxu0 %v6032
      %v6100 = vpop.f32.mrb[0].mxu0
      %v6101 = vadd.f32 0.0, %v6100
      %v6102 = vpop.f32.mrb[0].mxu0
      %6103 = vdwg.mxu0
      %v6104 = vadd.f32 %v6028, %v6101
      %v6105 = vld [vmem:[%s5952 + $0x2] sm:$0x1]
      %v6106 = vld [vmem:[%s6 + $0x60] sm:$0xff]
      %v6108 = vsel %vm5192, %v6105, 0
      %6110 = vmatprep.subr.mxu0 0.0
      %6111 = vmatpush1.msra.mxu0 %v6106
      %6112 = vmatprep.subr.mxu0 0.0
      %6113 = vmatpush1.msra.mxu0 0.0
      %6114 = vmatprep.subr.mxu0 0.0
      %6115 = vmatpush1.msra.mxu0 0.0
      %6116 = vmatprep.subr.mxu0 0.0
      %6117 = vmatpush1.msra.mxu0 0.0
      %6118 = vmatprep.subr.mxu0 0.0
      %6119 = vmatpush1.msra.mxu0 0.0
      %6120 = vmatprep.subr.mxu0 0.0
      %6121 = vmatpush1.msra.mxu0 0.0
      %6122 = vmatprep.subr.mxu0 0.0
      %6123 = vmatpush1.msra.mxu0 0.0
      %6124 = vmatprep.subr.mxu0 0.0
      %6125 = vmatpush1.msra.mxu0 0.0
      %6126 = vmatprep.subr.mxu0 0.0
      %6127 = vmatpush1.msra.mxu0 0.0
      %6128 = vmatprep.subr.mxu0 0.0
      %6129 = vmatpush1.msra.mxu0 0.0
      %6130 = vmatprep.subr.mxu0 0.0
      %6131 = vmatpush1.msra.mxu0 0.0
      %6132 = vmatprep.subr.mxu0 0.0
      %6133 = vmatpush1.msra.mxu0 0.0
      %6134 = vmatprep.subr.mxu0 0.0
      %6135 = vmatpush1.msra.mxu0 0.0
      %6136 = vmatprep.subr.mxu0 0.0
      %6137 = vmatpush1.msra.mxu0 0.0
      %6138 = vmatprep.subr.mxu0 0.0
      %6139 = vmatpush1.msra.mxu0 0.0
      %6140 = vmatprep.subr.mxu0 0.0
      %6141 = vmatpush1.msra.mxu0 0.0
      %6142 = vmatprep.subr.mxu0 0.0
      %6143 = vmatpush1.msra.mxu0 0.0
      %6144 = vmatprep.subr.mxu0 0.0
      %6145 = vmatpush1.msra.mxu0 0.0
      %6146 = vmatprep.subr.mxu0 0.0
      %6147 = vmatpush1.msra.mxu0 0.0
      %6148 = vmatprep.subr.mxu0 0.0
      %6149 = vmatpush1.msra.mxu0 0.0
      %6150 = vmatprep.subr.mxu0 0.0
      %6151 = vmatpush1.msra.mxu0 0.0
      %6152 = vmatprep.subr.mxu0 0.0
      %6153 = vmatpush1.msra.mxu0 0.0
      %6154 = vmatprep.subr.mxu0 0.0
      %6155 = vmatpush1.msra.mxu0 0.0
      %6156 = vmatprep.subr.mxu0 0.0
      %6157 = vmatpush1.msra.mxu0 0.0
      %6158 = vmatprep.subr.mxu0 0.0
      %6159 = vmatpush1.msra.mxu0 0.0
      %6160 = vmatprep.subr.mxu0 0.0
      %6161 = vmatpush1.msra.mxu0 0.0
      %6162 = vmatprep.subr.mxu0 0.0
      %6163 = vmatpush1.msra.mxu0 0.0
      %6164 = vmatprep.subr.mxu0 0.0
      %6165 = vmatpush1.msra.mxu0 0.0
      %6166 = vmatprep.subr.mxu0 0.0
      %6167 = vmatpush1.msra.mxu0 0.0
      %6168 = vmatprep.subr.mxu0 0.0
      %6169 = vmatpush1.msra.mxu0 0.0
      %6170 = vmatprep.subr.mxu0 0.0
      %6171 = vmatpush1.msra.mxu0 0.0
      %6172 = vmatprep.subr.mxu0 0.0
      %6173 = vmatpush1.msra.mxu0 0.0
      %6174 = vmatprep.mubr.f32.mxu0 0.0
      %6175 = vmatmul.mubr.f32.gmra.mrb[0].mxu0 %v6108
      %v6176 = vpop.f32.mrb[0].mxu0
      %v6177 = vadd.f32 0.0, %v6176
      %v6178 = vpop.f32.mrb[0].mxu0
      %6179 = vdwg.mxu0
      %v6180 = vadd.f32 %v6104, %v6177
      %v6181 = vld [vmem:[%s5952 + $0x3] sm:$0x1]
      %v6182 = vld [vmem:[%s6 + $0x68] sm:$0xff]
      %v6184 = vsel %vm5192, %v6181, 0
      %6186 = vmatprep.subr.mxu0 0.0
      %6187 = vmatpush1.msra.mxu0 %v6182
      %6188 = vmatprep.subr.mxu0 0.0
      %6189 = vmatpush1.msra.mxu0 0.0
      %6190 = vmatprep.subr.mxu0 0.0
      %6191 = vmatpush1.msra.mxu0 0.0
      %6192 = vmatprep.subr.mxu0 0.0
      %6193 = vmatpush1.msra.mxu0 0.0
      %6194 = vmatprep.subr.mxu0 0.0
      %6195 = vmatpush1.msra.mxu0 0.0
      %6196 = vmatprep.subr.mxu0 0.0
      %6197 = vmatpush1.msra.mxu0 0.0
      %6198 = vmatprep.subr.mxu0 0.0
      %6199 = vmatpush1.msra.mxu0 0.0
      %6200 = vmatprep.subr.mxu0 0.0
      %6201 = vmatpush1.msra.mxu0 0.0
      %6202 = vmatprep.subr.mxu0 0.0
      %6203 = vmatpush1.msra.mxu0 0.0
      %6204 = vmatprep.subr.mxu0 0.0
      %6205 = vmatpush1.msra.mxu0 0.0
      %6206 = vmatprep.subr.mxu0 0.0
      %6207 = vmatpush1.msra.mxu0 0.0
      %6208 = vmatprep.subr.mxu0 0.0
      %6209 = vmatpush1.msra.mxu0 0.0
      %6210 = vmatprep.subr.mxu0 0.0
      %6211 = vmatpush1.msra.mxu0 0.0
      %6212 = vmatprep.subr.mxu0 0.0
      %6213 = vmatpush1.msra.mxu0 0.0
      %6214 = vmatprep.subr.mxu0 0.0
      %6215 = vmatpush1.msra.mxu0 0.0
      %6216 = vmatprep.subr.mxu0 0.0
      %6217 = vmatpush1.msra.mxu0 0.0
      %6218 = vmatprep.subr.mxu0 0.0
      %6219 = vmatpush1.msra.mxu0 0.0
      %6220 = vmatprep.subr.mxu0 0.0
      %6221 = vmatpush1.msra.mxu0 0.0
      %6222 = vmatprep.subr.mxu0 0.0
      %6223 = vmatpush1.msra.mxu0 0.0
      %6224 = vmatprep.subr.mxu0 0.0
      %6225 = vmatpush1.msra.mxu0 0.0
      %6226 = vmatprep.subr.mxu0 0.0
      %6227 = vmatpush1.msra.mxu0 0.0
      %6228 = vmatprep.subr.mxu0 0.0
      %6229 = vmatpush1.msra.mxu0 0.0
      %6230 = vmatprep.subr.mxu0 0.0
      %6231 = vmatpush1.msra.mxu0 0.0
      %6232 = vmatprep.subr.mxu0 0.0
      %6233 = vmatpush1.msra.mxu0 0.0
      %6234 = vmatprep.subr.mxu0 0.0
      %6235 = vmatpush1.msra.mxu0 0.0
      %6236 = vmatprep.subr.mxu0 0.0
      %6237 = vmatpush1.msra.mxu0 0.0
      %6238 = vmatprep.subr.mxu0 0.0
      %6239 = vmatpush1.msra.mxu0 0.0
      %6240 = vmatprep.subr.mxu0 0.0
      %6241 = vmatpush1.msra.mxu0 0.0
      %6242 = vmatprep.subr.mxu0 0.0
      %6243 = vmatpush1.msra.mxu0 0.0
      %6244 = vmatprep.subr.mxu0 0.0
      %6245 = vmatpush1.msra.mxu0 0.0
      %6246 = vmatprep.subr.mxu0 0.0
      %6247 = vmatpush1.msra.mxu0 0.0
      %6248 = vmatprep.subr.mxu0 0.0
      %6249 = vmatpush1.msra.mxu0 0.0
      %6250 = vmatprep.mubr.f32.mxu0 0.0
      %6251 = vmatmul.mubr.f32.gmra.mrb[0].mxu0 %v6184
      %v6252 = vpop.f32.mrb[0].mxu0
      %v6253 = vadd.f32 0.0, %v6252
      %v6254 = vpop.f32.mrb[0].mxu0
      %6255 = vdwg.mxu0
      %v6256 = vadd.f32 %v6180, %v6253
      %v6257 = vld [vmem:[%s5952 + $0x4] sm:$0x1]
      %v6258 = vld [vmem:[%s6 + $0x70] sm:$0xff]
      %v6260 = vsel %vm5192, %v6257, 0
      %6262 = vmatprep.subr.mxu0 0.0
      %6263 = vmatpush1.msra.mxu0 %v6258
      %6264 = vmatprep.subr.mxu0 0.0
      %6265 = vmatpush1.msra.mxu0 0.0
      %6266 = vmatprep.subr.mxu0 0.0
      %6267 = vmatpush1.msra.mxu0 0.0
      %6268 = vmatprep.subr.mxu0 0.0
      %6269 = vmatpush1.msra.mxu0 0.0
      %6270 = vmatprep.subr.mxu0 0.0
      %6271 = vmatpush1.msra.mxu0 0.0
      %6272 = vmatprep.subr.mxu0 0.0
      %6273 = vmatpush1.msra.mxu0 0.0
      %6274 = vmatprep.subr.mxu0 0.0
      %6275 = vmatpush1.msra.mxu0 0.0
      %6276 = vmatprep.subr.mxu0 0.0
      %6277 = vmatpush1.msra.mxu0 0.0
      %6278 = vmatprep.subr.mxu0 0.0
      %6279 = vmatpush1.msra.mxu0 0.0
      %6280 = vmatprep.subr.mxu0 0.0
      %6281 = vmatpush1.msra.mxu0 0.0
      %6282 = vmatprep.subr.mxu0 0.0
      %6283 = vmatpush1.msra.mxu0 0.0
      %6284 = vmatprep.subr.mxu0 0.0
      %6285 = vmatpush1.msra.mxu0 0.0
      %6286 = vmatprep.subr.mxu0 0.0
      %6287 = vmatpush1.msra.mxu0 0.0
      %6288 = vmatprep.subr.mxu0 0.0
      %6289 = vmatpush1.msra.mxu0 0.0
      %6290 = vmatprep.subr.mxu0 0.0
      %6291 = vmatpush1.msra.mxu0 0.0
      %6292 = vmatprep.subr.mxu0 0.0
      %6293 = vmatpush1.msra.mxu0 0.0
      %6294 = vmatprep.subr.mxu0 0.0
      %6295 = vmatpush1.msra.mxu0 0.0
      %6296 = vmatprep.subr.mxu0 0.0
      %6297 = vmatpush1.msra.mxu0 0.0
      %6298 = vmatprep.subr.mxu0 0.0
      %6299 = vmatpush1.msra.mxu0 0.0
      %6300 = vmatprep.subr.mxu0 0.0
      %6301 = vmatpush1.msra.mxu0 0.0
      %6302 = vmatprep.subr.mxu0 0.0
      %6303 = vmatpush1.msra.mxu0 0.0
      %6304 = vmatprep.subr.mxu0 0.0
      %6305 = vmatpush1.msra.mxu0 0.0
      %6306 = vmatprep.subr.mxu0 0.0
      %6307 = vmatpush1.msra.mxu0 0.0
      %6308 = vmatprep.subr.mxu0 0.0
      %6309 = vmatpush1.msra.mxu0 0.0
      %6310 = vmatprep.subr.mxu0 0.0
      %6311 = vmatpush1.msra.mxu0 0.0
      %6312 = vmatprep.subr.mxu0 0.0
      %6313 = vmatpush1.msra.mxu0 0.0
      %6314 = vmatprep.subr.mxu0 0.0
      %6315 = vmatpush1.msra.mxu0 0.0
      %6316 = vmatprep.subr.mxu0 0.0
      %6317 = vmatpush1.msra.mxu0 0.0
      %6318 = vmatprep.subr.mxu0 0.0
      %6319 = vmatpush1.msra.mxu0 0.0
      %6320 = vmatprep.subr.mxu0 0.0
      %6321 = vmatpush1.msra.mxu0 0.0
      %6322 = vmatprep.subr.mxu0 0.0
      %6323 = vmatpush1.msra.mxu0 0.0
      %6324 = vmatprep.subr.mxu0 0.0
      %6325 = vmatpush1.msra.mxu0 0.0
      %6326 = vmatprep.mubr.f32.mxu0 0.0
      %6327 = vmatmul.mubr.f32.gmra.mrb[0].mxu0 %v6260
      %v6328 = vpop.f32.mrb[0].mxu0
      %v6329 = vadd.f32 0.0, %v6328
      %v6330 = vpop.f32.mrb[0].mxu0
      %6331 = vdwg.mxu0
      %v6332 = vadd.f32 %v6256, %v6329
      %s6333 = scalar_lea.vmem [#allocation3], 24
      %v6334 = vld [vmem:[%s6333] sm:$0x1]
      %v6335 = vld [vmem:[%s6 + $0x78] sm:$0xff]
      %v6337 = vsel %vm5192, %v6334, 0
      %6339 = vmatprep.subr.mxu0 0.0
      %6340 = vmatpush1.msra.mxu0 %v6335
      %6341 = vmatprep.subr.mxu0 0.0
      %6342 = vmatpush1.msra.mxu0 0.0
      %6343 = vmatprep.subr.mxu0 0.0
      %6344 = vmatpush1.msra.mxu0 0.0
      %6345 = vmatprep.subr.mxu0 0.0
      %6346 = vmatpush1.msra.mxu0 0.0
      %6347 = vmatprep.subr.mxu0 0.0
      %6348 = vmatpush1.msra.mxu0 0.0
      %6349 = vmatprep.subr.mxu0 0.0
      %6350 = vmatpush1.msra.mxu0 0.0
      %6351 = vmatprep.subr.mxu0 0.0
      %6352 = vmatpush1.msra.mxu0 0.0
      %6353 = vmatprep.subr.mxu0 0.0
      %6354 = vmatpush1.msra.mxu0 0.0
      %6355 = vmatprep.subr.mxu0 0.0
      %6356 = vmatpush1.msra.mxu0 0.0
      %6357 = vmatprep.subr.mxu0 0.0
      %6358 = vmatpush1.msra.mxu0 0.0
      %6359 = vmatprep.subr.mxu0 0.0
      %6360 = vmatpush1.msra.mxu0 0.0
      %6361 = vmatprep.subr.mxu0 0.0
      %6362 = vmatpush1.msra.mxu0 0.0
      %6363 = vmatprep.subr.mxu0 0.0
      %6364 = vmatpush1.msra.mxu0 0.0
      %6365 = vmatprep.subr.mxu0 0.0
      %6366 = vmatpush1.msra.mxu0 0.0
      %6367 = vmatprep.subr.mxu0 0.0
      %6368 = vmatpush1.msra.mxu0 0.0
      %6369 = vmatprep.subr.mxu0 0.0
      %6370 = vmatpush1.msra.mxu0 0.0
      %6371 = vmatprep.subr.mxu0 0.0
      %6372 = vmatpush1.msra.mxu0 0.0
      %6373 = vmatprep.subr.mxu0 0.0
      %6374 = vmatpush1.msra.mxu0 0.0
      %6375 = vmatprep.subr.mxu0 0.0
      %6376 = vmatpush1.msra.mxu0 0.0
      %6377 = vmatprep.subr.mxu0 0.0
      %6378 = vmatpush1.msra.mxu0 0.0
      %6379 = vmatprep.subr.mxu0 0.0
      %6380 = vmatpush1.msra.mxu0 0.0
      %6381 = vmatprep.subr.mxu0 0.0
      %6382 = vmatpush1.msra.mxu0 0.0
      %6383 = vmatprep.subr.mxu0 0.0
      %6384 = vmatpush1.msra.mxu0 0.0
      %6385 = vmatprep.subr.mxu0 0.0
      %6386 = vmatpush1.msra.mxu0 0.0
      %6387 = vmatprep.subr.mxu0 0.0
      %6388 = vmatpush1.msra.mxu0 0.0
      %6389 = vmatprep.subr.mxu0 0.0
      %6390 = vmatpush1.msra.mxu0 0.0
      %6391 = vmatprep.subr.mxu0 0.0
      %6392 = vmatpush1.msra.mxu0 0.0
      %6393 = vmatprep.subr.mxu0 0.0
      %6394 = vmatpush1.msra.mxu0 0.0
      %6395 = vmatprep.subr.mxu0 0.0
      %6396 = vmatpush1.msra.mxu0 0.0
      %6397 = vmatprep.subr.mxu0 0.0
      %6398 = vmatpush1.msra.mxu0 0.0
      %6399 = vmatprep.subr.mxu0 0.0
      %6400 = vmatpush1.msra.mxu0 0.0
      %6401 = vmatprep.subr.mxu0 0.0
      %6402 = vmatpush1.msra.mxu0 0.0
      %6403 = vmatprep.mubr.f32.mxu0 0.0
      %6404 = vmatmul.mubr.f32.gmra.mrb[0].mxu0 %v6337
      %v6405 = vpop.f32.mrb[0].mxu0
      %v6406 = vadd.f32 0.0, %v6405
      %v6407 = vpop.f32.mrb[0].mxu0
      %6408 = vdwg.mxu0
      %v6409 = vadd.f32 %v6332, %v6406
      %v6410 = vld [vmem:[%s6333 + $0x1] sm:$0x1]
      %v6411 = vld [vmem:[%s6 + $0x80] sm:$0xff]
      %v6413 = vsel %vm5192, %v6410, 0
      %6415 = vmatprep.subr.mxu0 0.0
      %6416 = vmatpush1.msra.mxu0 %v6411
      %6417 = vmatprep.subr.mxu0 0.0
      %6418 = vmatpush1.msra.mxu0 0.0
      %6419 = vmatprep.subr.mxu0 0.0
      %6420 = vmatpush1.msra.mxu0 0.0
      %6421 = vmatprep.subr.mxu0 0.0
      %6422 = vmatpush1.msra.mxu0 0.0
      %6423 = vmatprep.subr.mxu0 0.0
      %6424 = vmatpush1.msra.mxu0 0.0
      %6425 = vmatprep.subr.mxu0 0.0
      %6426 = vmatpush1.msra.mxu0 0.0
      %6427 = vmatprep.subr.mxu0 0.0
      %6428 = vmatpush1.msra.mxu0 0.0
      %6429 = vmatprep.subr.mxu0 0.0
      %6430 = vmatpush1.msra.mxu0 0.0
      %6431 = vmatprep.subr.mxu0 0.0
      %6432 = vmatpush1.msra.mxu0 0.0
      %6433 = vmatprep.subr.mxu0 0.0
      %6434 = vmatpush1.msra.mxu0 0.0
      %6435 = vmatprep.subr.mxu0 0.0
      %6436 = vmatpush1.msra.mxu0 0.0
      %6437 = vmatprep.subr.mxu0 0.0
      %6438 = vmatpush1.msra.mxu0 0.0
      %6439 = vmatprep.subr.mxu0 0.0
      %6440 = vmatpush1.msra.mxu0 0.0
      %6441 = vmatprep.subr.mxu0 0.0
      %6442 = vmatpush1.msra.mxu0 0.0
      %6443 = vmatprep.subr.mxu0 0.0
      %6444 = vmatpush1.msra.mxu0 0.0
      %6445 = vmatprep.subr.mxu0 0.0
      %6446 = vmatpush1.msra.mxu0 0.0
      %6447 = vmatprep.subr.mxu0 0.0
      %6448 = vmatpush1.msra.mxu0 0.0
      %6449 = vmatprep.subr.mxu0 0.0
      %6450 = vmatpush1.msra.mxu0 0.0
      %6451 = vmatprep.subr.mxu0 0.0
      %6452 = vmatpush1.msra.mxu0 0.0
      %6453 = vmatprep.subr.mxu0 0.0
      %6454 = vmatpush1.msra.mxu0 0.0
      %6455 = vmatprep.subr.mxu0 0.0
      %6456 = vmatpush1.msra.mxu0 0.0
      %6457 = vmatprep.subr.mxu0 0.0
      %6458 = vmatpush1.msra.mxu0 0.0
      %6459 = vmatprep.subr.mxu0 0.0
      %6460 = vmatpush1.msra.mxu0 0.0
      %6461 = vmatprep.subr.mxu0 0.0
      %6462 = vmatpush1.msra.mxu0 0.0
      %6463 = vmatprep.subr.mxu0 0.0
      %6464 = vmatpush1.msra.mxu0 0.0
      %6465 = vmatprep.subr.mxu0 0.0
      %6466 = vmatpush1.msra.mxu0 0.0
      %6467 = vmatprep.subr.mxu0 0.0
      %6468 = vmatpush1.msra.mxu0 0.0
      %6469 = vmatprep.subr.mxu0 0.0
      %6470 = vmatpush1.msra.mxu0 0.0
      %6471 = vmatprep.subr.mxu0 0.0
      %6472 = vmatpush1.msra.mxu0 0.0
      %6473 = vmatprep.subr.mxu0 0.0
      %6474 = vmatpush1.msra.mxu0 0.0
      %6475 = vmatprep.subr.mxu0 0.0
      %6476 = vmatpush1.msra.mxu0 0.0
      %6477 = vmatprep.subr.mxu0 0.0
      %6478 = vmatpush1.msra.mxu0 0.0
      %6479 = vmatprep.mubr.f32.mxu0 0.0
      %6480 = vmatmul.mubr.f32.gmra.mrb[0].mxu0 %v6413
      %v6481 = vpop.f32.mrb[0].mxu0
      %v6482 = vadd.f32 0.0, %v6481
      %v6483 = vpop.f32.mrb[0].mxu0
      %6484 = vdwg.mxu0
      %v6485 = vadd.f32 %v6409, %v6482
      %v6486 = vld [vmem:[%s6333 + $0x2] sm:$0x1]
      %v6487 = vld [vmem:[%s6 + $0x88] sm:$0xff]
      %v6489 = vsel %vm5192, %v6486, 0
      %6491 = vmatprep.subr.mxu0 0.0
      %6492 = vmatpush1.msra.mxu0 %v6487
      %6493 = vmatprep.subr.mxu0 0.0
      %6494 = vmatpush1.msra.mxu0 0.0
      %6495 = vmatprep.subr.mxu0 0.0
      %6496 = vmatpush1.msra.mxu0 0.0
      %6497 = vmatprep.subr.mxu0 0.0
      %6498 = vmatpush1.msra.mxu0 0.0
      %6499 = vmatprep.subr.mxu0 0.0
      %6500 = vmatpush1.msra.mxu0 0.0
      %6501 = vmatprep.subr.mxu0 0.0
      %6502 = vmatpush1.msra.mxu0 0.0
      %6503 = vmatprep.subr.mxu0 0.0
      %6504 = vmatpush1.msra.mxu0 0.0
      %6505 = vmatprep.subr.mxu0 0.0
      %6506 = vmatpush1.msra.mxu0 0.0
      %6507 = vmatprep.subr.mxu0 0.0
      %6508 = vmatpush1.msra.mxu0 0.0
      %6509 = vmatprep.subr.mxu0 0.0
      %6510 = vmatpush1.msra.mxu0 0.0
      %6511 = vmatprep.subr.mxu0 0.0
      %6512 = vmatpush1.msra.mxu0 0.0
      %6513 = vmatprep.subr.mxu0 0.0
      %6514 = vmatpush1.msra.mxu0 0.0
      %6515 = vmatprep.subr.mxu0 0.0
      %6516 = vmatpush1.msra.mxu0 0.0
      %6517 = vmatprep.subr.mxu0 0.0
      %6518 = vmatpush1.msra.mxu0 0.0
      %6519 = vmatprep.subr.mxu0 0.0
      %6520 = vmatpush1.msra.mxu0 0.0
      %6521 = vmatprep.subr.mxu0 0.0
      %6522 = vmatpush1.msra.mxu0 0.0
      %6523 = vmatprep.subr.mxu0 0.0
      %6524 = vmatpush1.msra.mxu0 0.0
      %6525 = vmatprep.subr.mxu0 0.0
      %6526 = vmatpush1.msra.mxu0 0.0
      %6527 = vmatprep.subr.mxu0 0.0
      %6528 = vmatpush1.msra.mxu0 0.0
      %6529 = vmatprep.subr.mxu0 0.0
      %6530 = vmatpush1.msra.mxu0 0.0
      %6531 = vmatprep.subr.mxu0 0.0
      %6532 = vmatpush1.msra.mxu0 0.0
      %6533 = vmatprep.subr.mxu0 0.0
      %6534 = vmatpush1.msra.mxu0 0.0
      %6535 = vmatprep.subr.mxu0 0.0
      %6536 = vmatpush1.msra.mxu0 0.0
      %6537 = vmatprep.subr.mxu0 0.0
      %6538 = vmatpush1.msra.mxu0 0.0
      %6539 = vmatprep.subr.mxu0 0.0
      %6540 = vmatpush1.msra.mxu0 0.0
      %6541 = vmatprep.subr.mxu0 0.0
      %6542 = vmatpush1.msra.mxu0 0.0
      %6543 = vmatprep.subr.mxu0 0.0
      %6544 = vmatpush1.msra.mxu0 0.0
      %6545 = vmatprep.subr.mxu0 0.0
      %6546 = vmatpush1.msra.mxu0 0.0
      %6547 = vmatprep.subr.mxu0 0.0
      %6548 = vmatpush1.msra.mxu0 0.0
      %6549 = vmatprep.subr.mxu0 0.0
      %6550 = vmatpush1.msra.mxu0 0.0
      %6551 = vmatprep.subr.mxu0 0.0
      %6552 = vmatpush1.msra.mxu0 0.0
      %6553 = vmatprep.subr.mxu0 0.0
      %6554 = vmatpush1.msra.mxu0 0.0
      %6555 = vmatprep.mubr.f32.mxu0 0.0
      %6556 = vmatmul.mubr.f32.gmra.mrb[0].mxu0 %v6489
      %v6557 = vpop.f32.mrb[0].mxu0
      %v6558 = vadd.f32 0.0, %v6557
      %v6559 = vpop.f32.mrb[0].mxu0
      %6560 = vdwg.mxu0
      %v6561 = vadd.f32 %v6485, %v6558
      %v6562 = vld [vmem:[%s6333 + $0x3] sm:$0x1]
      %v6563 = vld [vmem:[%s6 + $0x90] sm:$0xff]
      %v6565 = vsel %vm5192, %v6562, 0
      %6567 = vmatprep.subr.mxu0 0.0
      %6568 = vmatpush1.msra.mxu0 %v6563
      %6569 = vmatprep.subr.mxu0 0.0
      %6570 = vmatpush1.msra.mxu0 0.0
      %6571 = vmatprep.subr.mxu0 0.0
      %6572 = vmatpush1.msra.mxu0 0.0
      %6573 = vmatprep.subr.mxu0 0.0
      %6574 = vmatpush1.msra.mxu0 0.0
      %6575 = vmatprep.subr.mxu0 0.0
      %6576 = vmatpush1.msra.mxu0 0.0
      %6577 = vmatprep.subr.mxu0 0.0
      %6578 = vmatpush1.msra.mxu0 0.0
      %6579 = vmatprep.subr.mxu0 0.0
      %6580 = vmatpush1.msra.mxu0 0.0
      %6581 = vmatprep.subr.mxu0 0.0
      %6582 = vmatpush1.msra.mxu0 0.0
      %6583 = vmatprep.subr.mxu0 0.0
      %6584 = vmatpush1.msra.mxu0 0.0
      %6585 = vmatprep.subr.mxu0 0.0
      %6586 = vmatpush1.msra.mxu0 0.0
      %6587 = vmatprep.subr.mxu0 0.0
      %6588 = vmatpush1.msra.mxu0 0.0
      %6589 = vmatprep.subr.mxu0 0.0
      %6590 = vmatpush1.msra.mxu0 0.0
      %6591 = vmatprep.subr.mxu0 0.0
      %6592 = vmatpush1.msra.mxu0 0.0
      %6593 = vmatprep.subr.mxu0 0.0
      %6594 = vmatpush1.msra.mxu0 0.0
      %6595 = vmatprep.subr.mxu0 0.0
      %6596 = vmatpush1.msra.mxu0 0.0
      %6597 = vmatprep.subr.mxu0 0.0
      %6598 = vmatpush1.msra.mxu0 0.0
      %6599 = vmatprep.subr.mxu0 0.0
      %6600 = vmatpush1.msra.mxu0 0.0
      %6601 = vmatprep.subr.mxu0 0.0
      %6602 = vmatpush1.msra.mxu0 0.0
      %6603 = vmatprep.subr.mxu0 0.0
      %6604 = vmatpush1.msra.mxu0 0.0
      %6605 = vmatprep.subr.mxu0 0.0
      %6606 = vmatpush1.msra.mxu0 0.0
      %6607 = vmatprep.subr.mxu0 0.0
      %6608 = vmatpush1.msra.mxu0 0.0
      %6609 = vmatprep.subr.mxu0 0.0
      %6610 = vmatpush1.msra.mxu0 0.0
      %6611 = vmatprep.subr.mxu0 0.0
      %6612 = vmatpush1.msra.mxu0 0.0
      %6613 = vmatprep.subr.mxu0 0.0
      %6614 = vmatpush1.msra.mxu0 0.0
      %6615 = vmatprep.subr.mxu0 0.0
      %6616 = vmatpush1.msra.mxu0 0.0
      %6617 = vmatprep.subr.mxu0 0.0
      %6618 = vmatpush1.msra.mxu0 0.0
      %6619 = vmatprep.subr.mxu0 0.0
      %6620 = vmatpush1.msra.mxu0 0.0
      %6621 = vmatprep.subr.mxu0 0.0
      %6622 = vmatpush1.msra.mxu0 0.0
      %6623 = vmatprep.subr.mxu0 0.0
      %6624 = vmatpush1.msra.mxu0 0.0
      %6625 = vmatprep.subr.mxu0 0.0
      %6626 = vmatpush1.msra.mxu0 0.0
      %6627 = vmatprep.subr.mxu0 0.0
      %6628 = vmatpush1.msra.mxu0 0.0
      %6629 = vmatprep.subr.mxu0 0.0
      %6630 = vmatpush1.msra.mxu0 0.0
      %6631 = vmatprep.mubr.f32.mxu0 0.0
      %6632 = vmatmul.mubr.f32.gmra.mrb[0].mxu0 %v6565
      %v6633 = vpop.f32.mrb[0].mxu0
      %v6634 = vadd.f32 0.0, %v6633
      %v6635 = vpop.f32.mrb[0].mxu0
      %6636 = vdwg.mxu0
      %v6637 = vadd.f32 %v6561, %v6634
      %v6638 = vld [vmem:[%s6333 + $0x4] sm:$0x1]
      %v6639 = vld [vmem:[%s6 + $0x98] sm:$0xff]
      %v6641 = vsel %vm5192, %v6638, 0
      %6643 = vmatprep.subr.mxu0 0.0
      %6644 = vmatpush1.msra.mxu0 %v6639
      %6645 = vmatprep.subr.mxu0 0.0
      %6646 = vmatpush1.msra.mxu0 0.0
      %6647 = vmatprep.subr.mxu0 0.0
      %6648 = vmatpush1.msra.mxu0 0.0
      %6649 = vmatprep.subr.mxu0 0.0
      %6650 = vmatpush1.msra.mxu0 0.0
      %6651 = vmatprep.subr.mxu0 0.0
      %6652 = vmatpush1.msra.mxu0 0.0
      %6653 = vmatprep.subr.mxu0 0.0
      %6654 = vmatpush1.msra.mxu0 0.0
      %6655 = vmatprep.subr.mxu0 0.0
      %6656 = vmatpush1.msra.mxu0 0.0
      %6657 = vmatprep.subr.mxu0 0.0
      %6658 = vmatpush1.msra.mxu0 0.0
      %6659 = vmatprep.subr.mxu0 0.0
      %6660 = vmatpush1.msra.mxu0 0.0
      %6661 = vmatprep.subr.mxu0 0.0
      %6662 = vmatpush1.msra.mxu0 0.0
      %6663 = vmatprep.subr.mxu0 0.0
      %6664 = vmatpush1.msra.mxu0 0.0
      %6665 = vmatprep.subr.mxu0 0.0
      %6666 = vmatpush1.msra.mxu0 0.0
      %6667 = vmatprep.subr.mxu0 0.0
      %6668 = vmatpush1.msra.mxu0 0.0
      %6669 = vmatprep.subr.mxu0 0.0
      %6670 = vmatpush1.msra.mxu0 0.0
      %6671 = vmatprep.subr.mxu0 0.0
      %6672 = vmatpush1.msra.mxu0 0.0
      %6673 = vmatprep.subr.mxu0 0.0
      %6674 = vmatpush1.msra.mxu0 0.0
      %6675 = vmatprep.subr.mxu0 0.0
      %6676 = vmatpush1.msra.mxu0 0.0
      %6677 = vmatprep.subr.mxu0 0.0
      %6678 = vmatpush1.msra.mxu0 0.0
      %6679 = vmatprep.subr.mxu0 0.0
      %6680 = vmatpush1.msra.mxu0 0.0
      %6681 = vmatprep.subr.mxu0 0.0
      %6682 = vmatpush1.msra.mxu0 0.0
      %6683 = vmatprep.subr.mxu0 0.0
      %6684 = vmatpush1.msra.mxu0 0.0
      %6685 = vmatprep.subr.mxu0 0.0
      %6686 = vmatpush1.msra.mxu0 0.0
      %6687 = vmatprep.subr.mxu0 0.0
      %6688 = vmatpush1.msra.mxu0 0.0
      %6689 = vmatprep.subr.mxu0 0.0
      %6690 = vmatpush1.msra.mxu0 0.0
      %6691 = vmatprep.subr.mxu0 0.0
      %6692 = vmatpush1.msra.mxu0 0.0
      %6693 = vmatprep.subr.mxu0 0.0
      %6694 = vmatpush1.msra.mxu0 0.0
      %6695 = vmatprep.subr.mxu0 0.0
      %6696 = vmatpush1.msra.mxu0 0.0
      %6697 = vmatprep.subr.mxu0 0.0
      %6698 = vmatpush1.msra.mxu0 0.0
      %6699 = vmatprep.subr.mxu0 0.0
      %6700 = vmatpush1.msra.mxu0 0.0
      %6701 = vmatprep.subr.mxu0 0.0
      %6702 = vmatpush1.msra.mxu0 0.0
      %6703 = vmatprep.subr.mxu0 0.0
      %6704 = vmatpush1.msra.mxu0 0.0
      %6705 = vmatprep.subr.mxu0 0.0
      %6706 = vmatpush1.msra.mxu0 0.0
      %6707 = vmatprep.mubr.f32.mxu0 0.0
      %6708 = vmatmul.mubr.f32.gmra.mrb[0].mxu0 %v6641
      %v6709 = vpop.f32.mrb[0].mxu0
      %v6710 = vadd.f32 0.0, %v6709
      %v6711 = vpop.f32.mrb[0].mxu0
      %6712 = vdwg.mxu0
      %v6713 = vadd.f32 %v6637, %v6710
      %s6714 = scalar_lea.vmem [#allocation3], 32
      %v6715 = vld [vmem:[%s6714] sm:$0x1]
      %v6716 = vld [vmem:[%s6 + $0xa0] sm:$0xff]
      %v6718 = vsel %vm5192, %v6715, 0
      %6720 = vmatprep.subr.mxu0 0.0
      %6721 = vmatpush1.msra.mxu0 %v6716
      %6722 = vmatprep.subr.mxu0 0.0
      %6723 = vmatpush1.msra.mxu0 0.0
      %6724 = vmatprep.subr.mxu0 0.0
      %6725 = vmatpush1.msra.mxu0 0.0
      %6726 = vmatprep.subr.mxu0 0.0
      %6727 = vmatpush1.msra.mxu0 0.0
      %6728 = vmatprep.subr.mxu0 0.0
      %6729 = vmatpush1.msra.mxu0 0.0
      %6730 = vmatprep.subr.mxu0 0.0
      %6731 = vmatpush1.msra.mxu0 0.0
      %6732 = vmatprep.subr.mxu0 0.0
      %6733 = vmatpush1.msra.mxu0 0.0
      %6734 = vmatprep.subr.mxu0 0.0
      %6735 = vmatpush1.msra.mxu0 0.0
      %6736 = vmatprep.subr.mxu0 0.0
      %6737 = vmatpush1.msra.mxu0 0.0
      %6738 = vmatprep.subr.mxu0 0.0
      %6739 = vmatpush1.msra.mxu0 0.0
      %6740 = vmatprep.subr.mxu0 0.0
      %6741 = vmatpush1.msra.mxu0 0.0
      %6742 = vmatprep.subr.mxu0 0.0
      %6743 = vmatpush1.msra.mxu0 0.0
      %6744 = vmatprep.subr.mxu0 0.0
      %6745 = vmatpush1.msra.mxu0 0.0
      %6746 = vmatprep.subr.mxu0 0.0
      %6747 = vmatpush1.msra.mxu0 0.0
      %6748 = vmatprep.subr.mxu0 0.0
      %6749 = vmatpush1.msra.mxu0 0.0
      %6750 = vmatprep.subr.mxu0 0.0
      %6751 = vmatpush1.msra.mxu0 0.0
      %6752 = vmatprep.subr.mxu0 0.0
      %6753 = vmatpush1.msra.mxu0 0.0
      %6754 = vmatprep.subr.mxu0 0.0
      %6755 = vmatpush1.msra.mxu0 0.0
      %6756 = vmatprep.subr.mxu0 0.0
      %6757 = vmatpush1.msra.mxu0 0.0
      %6758 = vmatprep.subr.mxu0 0.0
      %6759 = vmatpush1.msra.mxu0 0.0
      %6760 = vmatprep.subr.mxu0 0.0
      %6761 = vmatpush1.msra.mxu0 0.0
      %6762 = vmatprep.subr.mxu0 0.0
      %6763 = vmatpush1.msra.mxu0 0.0
      %6764 = vmatprep.subr.mxu0 0.0
      %6765 = vmatpush1.msra.mxu0 0.0
      %6766 = vmatprep.subr.mxu0 0.0
      %6767 = vmatpush1.msra.mxu0 0.0
      %6768 = vmatprep.subr.mxu0 0.0
      %6769 = vmatpush1.msra.mxu0 0.0
      %6770 = vmatprep.subr.mxu0 0.0
      %6771 = vmatpush1.msra.mxu0 0.0
      %6772 = vmatprep.subr.mxu0 0.0
      %6773 = vmatpush1.msra.mxu0 0.0
      %6774 = vmatprep.subr.mxu0 0.0
      %6775 = vmatpush1.msra.mxu0 0.0
      %6776 = vmatprep.subr.mxu0 0.0
      %6777 = vmatpush1.msra.mxu0 0.0
      %6778 = vmatprep.subr.mxu0 0.0
      %6779 = vmatpush1.msra.mxu0 0.0
      %6780 = vmatprep.subr.mxu0 0.0
      %6781 = vmatpush1.msra.mxu0 0.0
      %6782 = vmatprep.subr.mxu0 0.0
      %6783 = vmatpush1.msra.mxu0 0.0
      %6784 = vmatprep.mubr.f32.mxu0 0.0
      %6785 = vmatmul.mubr.f32.gmra.mrb[0].mxu0 %v6718
      %v6786 = vpop.f32.mrb[0].mxu0
      %v6787 = vadd.f32 0.0, %v6786
      %v6788 = vpop.f32.mrb[0].mxu0
      %6789 = vdwg.mxu0
      %v6790 = vadd.f32 %v6713, %v6787
      %v6791 = vld [vmem:[%s6714 + $0x1] sm:$0x1]
      %v6792 = vld [vmem:[%s6 + $0xa8] sm:$0xff]
      %v6794 = vsel %vm5192, %v6791, 0
      %6796 = vmatprep.subr.mxu0 0.0
      %6797 = vmatpush1.msra.mxu0 %v6792
      %6798 = vmatprep.subr.mxu0 0.0
      %6799 = vmatpush1.msra.mxu0 0.0
      %6800 = vmatprep.subr.mxu0 0.0
      %6801 = vmatpush1.msra.mxu0 0.0
      %6802 = vmatprep.subr.mxu0 0.0
      %6803 = vmatpush1.msra.mxu0 0.0
      %6804 = vmatprep.subr.mxu0 0.0
      %6805 = vmatpush1.msra.mxu0 0.0
      %6806 = vmatprep.subr.mxu0 0.0
      %6807 = vmatpush1.msra.mxu0 0.0
      %6808 = vmatprep.subr.mxu0 0.0
      %6809 = vmatpush1.msra.mxu0 0.0
      %6810 = vmatprep.subr.mxu0 0.0
      %6811 = vmatpush1.msra.mxu0 0.0
      %6812 = vmatprep.subr.mxu0 0.0
      %6813 = vmatpush1.msra.mxu0 0.0
      %6814 = vmatprep.subr.mxu0 0.0
      %6815 = vmatpush1.msra.mxu0 0.0
      %6816 = vmatprep.subr.mxu0 0.0
      %6817 = vmatpush1.msra.mxu0 0.0
      %6818 = vmatprep.subr.mxu0 0.0
      %6819 = vmatpush1.msra.mxu0 0.0
      %6820 = vmatprep.subr.mxu0 0.0
      %6821 = vmatpush1.msra.mxu0 0.0
      %6822 = vmatprep.subr.mxu0 0.0
      %6823 = vmatpush1.msra.mxu0 0.0
      %6824 = vmatprep.subr.mxu0 0.0
      %6825 = vmatpush1.msra.mxu0 0.0
      %6826 = vmatprep.subr.mxu0 0.0
      %6827 = vmatpush1.msra.mxu0 0.0
      %6828 = vmatprep.subr.mxu0 0.0
      %6829 = vmatpush1.msra.mxu0 0.0
      %6830 = vmatprep.subr.mxu0 0.0
      %6831 = vmatpush1.msra.mxu0 0.0
      %6832 = vmatprep.subr.mxu0 0.0
      %6833 = vmatpush1.msra.mxu0 0.0
      %6834 = vmatprep.subr.mxu0 0.0
      %6835 = vmatpush1.msra.mxu0 0.0
      %6836 = vmatprep.subr.mxu0 0.0
      %6837 = vmatpush1.msra.mxu0 0.0
      %6838 = vmatprep.subr.mxu0 0.0
      %6839 = vmatpush1.msra.mxu0 0.0
      %6840 = vmatprep.subr.mxu0 0.0
      %6841 = vmatpush1.msra.mxu0 0.0
      %6842 = vmatprep.subr.mxu0 0.0
      %6843 = vmatpush1.msra.mxu0 0.0
      %6844 = vmatprep.subr.mxu0 0.0
      %6845 = vmatpush1.msra.mxu0 0.0
      %6846 = vmatprep.subr.mxu0 0.0
      %6847 = vmatpush1.msra.mxu0 0.0
      %6848 = vmatprep.subr.mxu0 0.0
      %6849 = vmatpush1.msra.mxu0 0.0
      %6850 = vmatprep.subr.mxu0 0.0
      %6851 = vmatpush1.msra.mxu0 0.0
      %6852 = vmatprep.subr.mxu0 0.0
      %6853 = vmatpush1.msra.mxu0 0.0
      %6854 = vmatprep.subr.mxu0 0.0
      %6855 = vmatpush1.msra.mxu0 0.0
      %6856 = vmatprep.subr.mxu0 0.0
      %6857 = vmatpush1.msra.mxu0 0.0
      %6858 = vmatprep.subr.mxu0 0.0
      %6859 = vmatpush1.msra.mxu0 0.0
      %6860 = vmatprep.mubr.f32.mxu0 0.0
      %6861 = vmatmul.mubr.f32.gmra.mrb[0].mxu0 %v6794
      %v6862 = vpop.f32.mrb[0].mxu0
      %v6863 = vadd.f32 0.0, %v6862
      %v6864 = vpop.f32.mrb[0].mxu0
      %6865 = vdwg.mxu0
      %v6866 = vadd.f32 %v6790, %v6863
      %v6867 = vld [vmem:[%s6714 + $0x2] sm:$0x1]
      %v6868 = vld [vmem:[%s6 + $0xb0] sm:$0xff]
      %v6870 = vsel %vm5192, %v6867, 0
      %6872 = vmatprep.subr.mxu0 0.0
      %6873 = vmatpush1.msra.mxu0 %v6868
      %6874 = vmatprep.subr.mxu0 0.0
      %6875 = vmatpush1.msra.mxu0 0.0
      %6876 = vmatprep.subr.mxu0 0.0
      %6877 = vmatpush1.msra.mxu0 0.0
      %6878 = vmatprep.subr.mxu0 0.0
      %6879 = vmatpush1.msra.mxu0 0.0
      %6880 = vmatprep.subr.mxu0 0.0
      %6881 = vmatpush1.msra.mxu0 0.0
      %6882 = vmatprep.subr.mxu0 0.0
      %6883 = vmatpush1.msra.mxu0 0.0
      %6884 = vmatprep.subr.mxu0 0.0
      %6885 = vmatpush1.msra.mxu0 0.0
      %6886 = vmatprep.subr.mxu0 0.0
      %6887 = vmatpush1.msra.mxu0 0.0
      %6888 = vmatprep.subr.mxu0 0.0
      %6889 = vmatpush1.msra.mxu0 0.0
      %6890 = vmatprep.subr.mxu0 0.0
      %6891 = vmatpush1.msra.mxu0 0.0
      %6892 = vmatprep.subr.mxu0 0.0
      %6893 = vmatpush1.msra.mxu0 0.0
      %6894 = vmatprep.subr.mxu0 0.0
      %6895 = vmatpush1.msra.mxu0 0.0
      %6896 = vmatprep.subr.mxu0 0.0
      %6897 = vmatpush1.msra.mxu0 0.0
      %6898 = vmatprep.subr.mxu0 0.0
      %6899 = vmatpush1.msra.mxu0 0.0
      %6900 = vmatprep.subr.mxu0 0.0
      %6901 = vmatpush1.msra.mxu0 0.0
      %6902 = vmatprep.subr.mxu0 0.0
      %6903 = vmatpush1.msra.mxu0 0.0
      %6904 = vmatprep.subr.mxu0 0.0
      %6905 = vmatpush1.msra.mxu0 0.0
      %6906 = vmatprep.subr.mxu0 0.0
      %6907 = vmatpush1.msra.mxu0 0.0
      %6908 = vmatprep.subr.mxu0 0.0
      %6909 = vmatpush1.msra.mxu0 0.0
      %6910 = vmatprep.subr.mxu0 0.0
      %6911 = vmatpush1.msra.mxu0 0.0
      %6912 = vmatprep.subr.mxu0 0.0
      %6913 = vmatpush1.msra.mxu0 0.0
      %6914 = vmatprep.subr.mxu0 0.0
      %6915 = vmatpush1.msra.mxu0 0.0
      %6916 = vmatprep.subr.mxu0 0.0
      %6917 = vmatpush1.msra.mxu0 0.0
      %6918 = vmatprep.subr.mxu0 0.0
      %6919 = vmatpush1.msra.mxu0 0.0
      %6920 = vmatprep.subr.mxu0 0.0
      %6921 = vmatpush1.msra.mxu0 0.0
      %6922 = vmatprep.subr.mxu0 0.0
      %6923 = vmatpush1.msra.mxu0 0.0
      %6924 = vmatprep.subr.mxu0 0.0
      %6925 = vmatpush1.msra.mxu0 0.0
      %6926 = vmatprep.subr.mxu0 0.0
      %6927 = vmatpush1.msra.mxu0 0.0
      %6928 = vmatprep.subr.mxu0 0.0
      %6929 = vmatpush1.msra.mxu0 0.0
      %6930 = vmatprep.subr.mxu0 0.0
      %6931 = vmatpush1.msra.mxu0 0.0
      %6932 = vmatprep.subr.mxu0 0.0
      %6933 = vmatpush1.msra.mxu0 0.0
      %6934 = vmatprep.subr.mxu0 0.0
      %6935 = vmatpush1.msra.mxu0 0.0
      %6936 = vmatprep.mubr.f32.mxu0 0.0
      %6937 = vmatmul.mubr.f32.gmra.mrb[0].mxu0 %v6870
      %v6938 = vpop.f32.mrb[0].mxu0
      %v6939 = vadd.f32 0.0, %v6938
      %v6940 = vpop.f32.mrb[0].mxu0
      %6941 = vdwg.mxu0
      %v6942 = vadd.f32 %v6866, %v6939
      %v6943 = vld [vmem:[%s6714 + $0x3] sm:$0x1]
      %v6944 = vld [vmem:[%s6 + $0xb8] sm:$0xff]
      %v6946 = vsel %vm5192, %v6943, 0
      %6948 = vmatprep.subr.mxu0 0.0
      %6949 = vmatpush1.msra.mxu0 %v6944
      %6950 = vmatprep.subr.mxu0 0.0
      %6951 = vmatpush1.msra.mxu0 0.0
      %6952 = vmatprep.subr.mxu0 0.0
      %6953 = vmatpush1.msra.mxu0 0.0
      %6954 = vmatprep.subr.mxu0 0.0
      %6955 = vmatpush1.msra.mxu0 0.0
      %6956 = vmatprep.subr.mxu0 0.0
      %6957 = vmatpush1.msra.mxu0 0.0
      %6958 = vmatprep.subr.mxu0 0.0
      %6959 = vmatpush1.msra.mxu0 0.0
      %6960 = vmatprep.subr.mxu0 0.0
      %6961 = vmatpush1.msra.mxu0 0.0
      %6962 = vmatprep.subr.mxu0 0.0
      %6963 = vmatpush1.msra.mxu0 0.0
      %6964 = vmatprep.subr.mxu0 0.0
      %6965 = vmatpush1.msra.mxu0 0.0
      %6966 = vmatprep.subr.mxu0 0.0
      %6967 = vmatpush1.msra.mxu0 0.0
      %6968 = vmatprep.subr.mxu0 0.0
      %6969 = vmatpush1.msra.mxu0 0.0
      %6970 = vmatprep.subr.mxu0 0.0
      %6971 = vmatpush1.msra.mxu0 0.0
      %6972 = vmatprep.subr.mxu0 0.0
      %6973 = vmatpush1.msra.mxu0 0.0
      %6974 = vmatprep.subr.mxu0 0.0
      %6975 = vmatpush1.msra.mxu0 0.0
      %6976 = vmatprep.subr.mxu0 0.0
      %6977 = vmatpush1.msra.mxu0 0.0
      %6978 = vmatprep.subr.mxu0 0.0
      %6979 = vmatpush1.msra.mxu0 0.0
      %6980 = vmatprep.subr.mxu0 0.0
      %6981 = vmatpush1.msra.mxu0 0.0
      %6982 = vmatprep.subr.mxu0 0.0
      %6983 = vmatpush1.msra.mxu0 0.0
      %6984 = vmatprep.subr.mxu0 0.0
      %6985 = vmatpush1.msra.mxu0 0.0
      %6986 = vmatprep.subr.mxu0 0.0
      %6987 = vmatpush1.msra.mxu0 0.0
      %6988 = vmatprep.subr.mxu0 0.0
      %6989 = vmatpush1.msra.mxu0 0.0
      %6990 = vmatprep.subr.mxu0 0.0
      %6991 = vmatpush1.msra.mxu0 0.0
      %6992 = vmatprep.subr.mxu0 0.0
      %6993 = vmatpush1.msra.mxu0 0.0
      %6994 = vmatprep.subr.mxu0 0.0
      %6995 = vmatpush1.msra.mxu0 0.0
      %6996 = vmatprep.subr.mxu0 0.0
      %6997 = vmatpush1.msra.mxu0 0.0
      %6998 = vmatprep.subr.mxu0 0.0
      %6999 = vmatpush1.msra.mxu0 0.0
      %7000 = vmatprep.subr.mxu0 0.0
      %7001 = vmatpush1.msra.mxu0 0.0
      %7002 = vmatprep.subr.mxu0 0.0
      %7003 = vmatpush1.msra.mxu0 0.0
      %7004 = vmatprep.subr.mxu0 0.0
      %7005 = vmatpush1.msra.mxu0 0.0
      %7006 = vmatprep.subr.mxu0 0.0
      %7007 = vmatpush1.msra.mxu0 0.0
      %7008 = vmatprep.subr.mxu0 0.0
      %7009 = vmatpush1.msra.mxu0 0.0
      %7010 = vmatprep.subr.mxu0 0.0
      %7011 = vmatpush1.msra.mxu0 0.0
      %7012 = vmatprep.mubr.f32.mxu0 0.0
      %7013 = vmatmul.mubr.f32.gmra.mrb[0].mxu0 %v6946
      %v7014 = vpop.f32.mrb[0].mxu0
      %v7015 = vadd.f32 0.0, %v7014
      %v7016 = vpop.f32.mrb[0].mxu0
      %7017 = vdwg.mxu0
      %v7018 = vadd.f32 %v6942, %v7015
      %v7019 = vld [vmem:[%s6714 + $0x4] sm:$0x1]
      %v7020 = vld [vmem:[%s6 + $0xc0] sm:$0xff]
      %v7022 = vsel %vm5192, %v7019, 0
      %7024 = vmatprep.subr.mxu0 0.0
      %7025 = vmatpush1.msra.mxu0 %v7020
      %7026 = vmatprep.subr.mxu0 0.0
      %7027 = vmatpush1.msra.mxu0 0.0
      %7028 = vmatprep.subr.mxu0 0.0
      %7029 = vmatpush1.msra.mxu0 0.0
      %7030 = vmatprep.subr.mxu0 0.0
      %7031 = vmatpush1.msra.mxu0 0.0
      %7032 = vmatprep.subr.mxu0 0.0
      %7033 = vmatpush1.msra.mxu0 0.0
      %7034 = vmatprep.subr.mxu0 0.0
      %7035 = vmatpush1.msra.mxu0 0.0
      %7036 = vmatprep.subr.mxu0 0.0
      %7037 = vmatpush1.msra.mxu0 0.0
      %7038 = vmatprep.subr.mxu0 0.0
      %7039 = vmatpush1.msra.mxu0 0.0
      %7040 = vmatprep.subr.mxu0 0.0
      %7041 = vmatpush1.msra.mxu0 0.0
      %7042 = vmatprep.subr.mxu0 0.0
      %7043 = vmatpush1.msra.mxu0 0.0
      %7044 = vmatprep.subr.mxu0 0.0
      %7045 = vmatpush1.msra.mxu0 0.0
      %7046 = vmatprep.subr.mxu0 0.0
      %7047 = vmatpush1.msra.mxu0 0.0
      %7048 = vmatprep.subr.mxu0 0.0
      %7049 = vmatpush1.msra.mxu0 0.0
      %7050 = vmatprep.subr.mxu0 0.0
      %7051 = vmatpush1.msra.mxu0 0.0
      %7052 = vmatprep.subr.mxu0 0.0
      %7053 = vmatpush1.msra.mxu0 0.0
      %7054 = vmatprep.subr.mxu0 0.0
      %7055 = vmatpush1.msra.mxu0 0.0
      %7056 = vmatprep.subr.mxu0 0.0
      %7057 = vmatpush1.msra.mxu0 0.0
      %7058 = vmatprep.subr.mxu0 0.0
      %7059 = vmatpush1.msra.mxu0 0.0
      %7060 = vmatprep.subr.mxu0 0.0
      %7061 = vmatpush1.msra.mxu0 0.0
      %7062 = vmatprep.subr.mxu0 0.0
      %7063 = vmatpush1.msra.mxu0 0.0
      %7064 = vmatprep.subr.mxu0 0.0
      %7065 = vmatpush1.msra.mxu0 0.0
      %7066 = vmatprep.subr.mxu0 0.0
      %7067 = vmatpush1.msra.mxu0 0.0
      %7068 = vmatprep.subr.mxu0 0.0
      %7069 = vmatpush1.msra.mxu0 0.0
      %7070 = vmatprep.subr.mxu0 0.0
      %7071 = vmatpush1.msra.mxu0 0.0
      %7072 = vmatprep.subr.mxu0 0.0
      %7073 = vmatpush1.msra.mxu0 0.0
      %7074 = vmatprep.subr.mxu0 0.0
      %7075 = vmatpush1.msra.mxu0 0.0
      %7076 = vmatprep.subr.mxu0 0.0
      %7077 = vmatpush1.msra.mxu0 0.0
      %7078 = vmatprep.subr.mxu0 0.0
      %7079 = vmatpush1.msra.mxu0 0.0
      %7080 = vmatprep.subr.mxu0 0.0
      %7081 = vmatpush1.msra.mxu0 0.0
      %7082 = vmatprep.subr.mxu0 0.0
      %7083 = vmatpush1.msra.mxu0 0.0
      %7084 = vmatprep.subr.mxu0 0.0
      %7085 = vmatpush1.msra.mxu0 0.0
      %7086 = vmatprep.subr.mxu0 0.0
      %7087 = vmatpush1.msra.mxu0 0.0
      %7088 = vmatprep.mubr.f32.mxu0 0.0
      %7089 = vmatmul.mubr.f32.gmra.mrb[0].mxu0 %v7022
      %v7090 = vpop.f32.mrb[0].mxu0
      %v7091 = vadd.f32 0.0, %v7090
      %v7092 = vpop.f32.mrb[0].mxu0
      %7093 = vdwg.mxu0
      %v7094 = vadd.f32 %v7018, %v7091
      %vm7095 = vcmask 253952
      %v7096 = vsel %vm7095, %v7094, 0.0
      %7097 = vadd.xlane.f32.xlu0 %v7096
      %v7098 = vpop.xlane.xlu0 %7097
      %v7099 = vrcp.pop 32.0
      %v7100 = vmul.f32 %v7098, %v7099
      %v7101 = vsub.f32 %v7094, %v7100
      %v7102 = vmul.f32 %v7101, %v7101
      %v7103 = vsel %vm7095, %v7102, 0.0
      %7104 = vadd.xlane.f32.xlu0 %v7103
      %v7105 = vpop.xlane.xlu0 %7104
      %v7106 = vmul.f32 %v7105, %v7099
      %v7107 = vadd.f32 %v7106, 1e-05
      %v7108 = vrsqrt.pop %v7107
      %v7109 = vmul.f32 %v7101, %v7108
      %v7110 = vld [vmem:[%s8] sm:$0x1]
      %v7111 = vmul.f32 %v7109, %v7110
      %v7112 = vld [vmem:[%s9] sm:$0x1]
      %v7113 = vadd.f32 %v7111, %v7112
      %v7114 = vld [vmem:[%s705] sm:$0x1]
      %v7115 = vld [vmem:[%s10] sm:$0xff]
      %v7116 = vld [vmem:[%s10 + $0x8] sm:$0xff]
      %v7117 = vld [vmem:[%s10 + $0x10] sm:$0xff]
      %v7118 = vld [vmem:[%s10 + $0x18] sm:$0xff]
      %v7119 = vld [vmem:[%s11] sm:$0x3f]
      %vm7120 = vcmask 48128
      %v7122 = vsel %vm7120, %v7114, 0
      %vm7124 = vcmask 1045504
      %v7126 = vsel %vm7124, %v7119, 0
      %7128 = vmatprep.subr.mxu0 0.0
      %7129 = vmatpush1.msra.mxu0 %v7126
      %7130 = vmatprep.subr.mxu0 0.0
      %7131 = vmatpush1.msra.mxu0 0.0
      %7132 = vmatprep.subr.mxu0 0.0
      %7133 = vmatpush1.msra.mxu0 0.0
      %7134 = vmatprep.subr.mxu0 0.0
      %7135 = vmatpush1.msra.mxu0 0.0
      %7136 = vmatprep.subr.mxu0 0.0
      %7137 = vmatpush1.msra.mxu0 0.0
      %7138 = vmatprep.subr.mxu0 0.0
      %7139 = vmatpush1.msra.mxu0 0.0
      %7140 = vmatprep.subr.mxu0 0.0
      %7141 = vmatpush1.msra.mxu0 0.0
      %7142 = vmatprep.subr.mxu0 0.0
      %7143 = vmatpush1.msra.mxu0 0.0
      %7144 = vmatprep.subr.mxu0 0.0
      %7145 = vmatpush1.msra.mxu0 0.0
      %7146 = vmatprep.subr.mxu0 0.0
      %7147 = vmatpush1.msra.mxu0 0.0
      %7148 = vmatprep.subr.mxu0 0.0
      %7149 = vmatpush1.msra.mxu0 0.0
      %7150 = vmatprep.subr.mxu0 0.0
      %7151 = vmatpush1.msra.mxu0 0.0
      %7152 = vmatprep.subr.mxu0 0.0
      %7153 = vmatpush1.msra.mxu0 0.0
      %7154 = vmatprep.subr.mxu0 0.0
      %7155 = vmatpush1.msra.mxu0 0.0
      %7156 = vmatprep.subr.mxu0 0.0
      %7157 = vmatpush1.msra.mxu0 0.0
      %7158 = vmatprep.subr.mxu0 0.0
      %7159 = vmatpush1.msra.mxu0 0.0
      %7160 = vmatprep.subr.mxu0 0.0
      %7161 = vmatpush1.msra.mxu0 0.0
      %7162 = vmatprep.subr.mxu0 0.0
      %7163 = vmatpush1.msra.mxu0 0.0
      %7164 = vmatprep.subr.mxu0 0.0
      %7165 = vmatpush1.msra.mxu0 0.0
      %7166 = vmatprep.subr.mxu0 0.0
      %7167 = vmatpush1.msra.mxu0 0.0
      %7168 = vmatprep.subr.mxu0 0.0
      %7169 = vmatpush1.msra.mxu0 0.0
      %7170 = vmatprep.subr.mxu0 0.0
      %7171 = vmatpush1.msra.mxu0 0.0
      %7172 = vmatprep.subr.mxu0 0.0
      %7173 = vmatpush1.msra.mxu0 0.0
      %7174 = vmatprep.subr.mxu0 0.0
      %7175 = vmatpush1.msra.mxu0 0.0
      %7176 = vmatprep.subr.mxu0 0.0
      %7177 = vmatpush1.msra.mxu0 0.0
      %7178 = vmatprep.subr.mxu0 0.0
      %7179 = vmatpush1.msra.mxu0 0.0
      %7180 = vmatprep.subr.mxu0 0.0
      %7181 = vmatpush1.msra.mxu0 0.0
      %7182 = vmatprep.subr.mxu0 0.0
      %7183 = vmatpush1.msra.mxu0 0.0
      %7184 = vmatprep.subr.mxu0 0.0
      %7185 = vmatpush1.msra.mxu0 0.0
      %7186 = vmatprep.subr.mxu0 0.0
      %7187 = vmatpush1.msra.mxu0 0.0
      %7188 = vmatprep.subr.mxu0 0.0
      %7189 = vmatpush1.msra.mxu0 0.0
      %7190 = vmatprep.subr.mxu0 0.0
      %7191 = vmatpush1.msra.mxu0 0.0
      %7192 = vmatprep.mubr.f32.mxu0 0.0
      %7193 = vmatmul.mubr.f32.gmra.mrb[0].mxu0 %v7122
      %v7194 = vpop.f32.mrb[0].mxu0
      %v7195 = vadd.f32 0.0, %v7194
      %v7196 = vpop.f32.mrb[0].mxu0
      %7197 = vdwg.mxu0
      %vm7198 = vcmask 261120
      %v7200 = vsel %vm7198, %v7113, 0
      %7202 = vmatprep.subr.mxu0 0.0
      %7203 = vmatpush1.msra.mxu0 %v7115
      %7204 = vmatprep.subr.mxu0 0.0
      %7205 = vmatpush1.msra.mxu0 %v7116
      %7206 = vmatprep.subr.mxu0 0.0
      %7207 = vmatpush1.msra.mxu0 %v7117
      %7208 = vmatprep.subr.mxu0 0.0
      %7209 = vmatpush1.msra.mxu0 %v7118
      %7210 = vmatprep.subr.mxu0 0.0
      %7211 = vmatpush1.msra.mxu0 0.0
      %7212 = vmatprep.subr.mxu0 0.0
      %7213 = vmatpush1.msra.mxu0 0.0
      %7214 = vmatprep.subr.mxu0 0.0
      %7215 = vmatpush1.msra.mxu0 0.0
      %7216 = vmatprep.subr.mxu0 0.0
      %7217 = vmatpush1.msra.mxu0 0.0
      %7218 = vmatprep.subr.mxu0 0.0
      %7219 = vmatpush1.msra.mxu0 0.0
      %7220 = vmatprep.subr.mxu0 0.0
      %7221 = vmatpush1.msra.mxu0 0.0
      %7222 = vmatprep.subr.mxu0 0.0
      %7223 = vmatpush1.msra.mxu0 0.0
      %7224 = vmatprep.subr.mxu0 0.0
      %7225 = vmatpush1.msra.mxu0 0.0
      %7226 = vmatprep.subr.mxu0 0.0
      %7227 = vmatpush1.msra.mxu0 0.0
      %7228 = vmatprep.subr.mxu0 0.0
      %7229 = vmatpush1.msra.mxu0 0.0
      %7230 = vmatprep.subr.mxu0 0.0
      %7231 = vmatpush1.msra.mxu0 0.0
      %7232 = vmatprep.subr.mxu0 0.0
      %7233 = vmatpush1.msra.mxu0 0.0
      %7234 = vmatprep.subr.mxu0 0.0
      %7235 = vmatpush1.msra.mxu0 0.0
      %7236 = vmatprep.subr.mxu0 0.0
      %7237 = vmatpush1.msra.mxu0 0.0
      %7238 = vmatprep.subr.mxu0 0.0
      %7239 = vmatpush1.msra.mxu0 0.0
      %7240 = vmatprep.subr.mxu0 0.0
      %7241 = vmatpush1.msra.mxu0 0.0
      %7242 = vmatprep.subr.mxu0 0.0
      %7243 = vmatpush1.msra.mxu0 0.0
      %7244 = vmatprep.subr.mxu0 0.0
      %7245 = vmatpush1.msra.mxu0 0.0
      %7246 = vmatprep.subr.mxu0 0.0
      %7247 = vmatpush1.msra.mxu0 0.0
      %7248 = vmatprep.subr.mxu0 0.0
      %7249 = vmatpush1.msra.mxu0 0.0
      %7250 = vmatprep.subr.mxu0 0.0
      %7251 = vmatpush1.msra.mxu0 0.0
      %7252 = vmatprep.subr.mxu0 0.0
      %7253 = vmatpush1.msra.mxu0 0.0
      %7254 = vmatprep.subr.mxu0 0.0
      %7255 = vmatpush1.msra.mxu0 0.0
      %7256 = vmatprep.subr.mxu0 0.0
      %7257 = vmatpush1.msra.mxu0 0.0
      %7258 = vmatprep.subr.mxu0 0.0
      %7259 = vmatpush1.msra.mxu0 0.0
      %7260 = vmatprep.subr.mxu0 0.0
      %7261 = vmatpush1.msra.mxu0 0.0
      %7262 = vmatprep.subr.mxu0 0.0
      %7263 = vmatpush1.msra.mxu0 0.0
      %7264 = vmatprep.subr.mxu0 0.0
      %7265 = vmatpush1.msra.mxu0 0.0
      %7266 = vmatprep.mubr.f32.mxu0 0.0
      %7267 = vmatmul.mubr.f32.gmra.mrb[0].mxu0 %v7200
      %v7268 = vpop.f32.mrb[0].mxu0
      %v7269 = vadd.f32 %v7195, %v7268
      %v7270 = vpop.f32.mrb[0].mxu0
      %7271 = vdwg.mxu0
      %v7272 = vld [vmem:[%s12] sm:$0x1]
      %v7273 = vadd.f32 %v7269, %v7272
      %v7274 = vmax.f32 %v7273, 0.0
      %v7275 = vld [vmem:[%s13] sm:$0xff]
      %v7276 = vld [vmem:[%s13 + $0x8] sm:$0xff]
      %v7277 = vld [vmem:[%s13 + $0x10] sm:$0xff]
      %v7278 = vld [vmem:[%s13 + $0x18] sm:$0xff]
      %v7279 = vld [vmem:[%s15] sm:$0x1]
      %v7281 = vsel %vm7198, %v7274, 0
      %7283 = vmatprep.subr.mxu0 0.0
      %7284 = vmatpush1.msra.mxu0 %v7275
      %7285 = vmatprep.subr.mxu0 0.0
      %7286 = vmatpush1.msra.mxu0 %v7276
      %7287 = vmatprep.subr.mxu0 0.0
      %7288 = vmatpush1.msra.mxu0 %v7277
      %7289 = vmatprep.subr.mxu0 0.0
      %7290 = vmatpush1.msra.mxu0 %v7278
      %7291 = vmatprep.subr.mxu0 0.0
      %7292 = vmatpush1.msra.mxu0 0.0
      %7293 = vmatprep.subr.mxu0 0.0
      %7294 = vmatpush1.msra.mxu0 0.0
      %7295 = vmatprep.subr.mxu0 0.0
      %7296 = vmatpush1.msra.mxu0 0.0
      %7297 = vmatprep.subr.mxu0 0.0
      %7298 = vmatpush1.msra.mxu0 0.0
      %7299 = vmatprep.subr.mxu0 0.0
      %7300 = vmatpush1.msra.mxu0 0.0
      %7301 = vmatprep.subr.mxu0 0.0
      %7302 = vmatpush1.msra.mxu0 0.0
      %7303 = vmatprep.subr.mxu0 0.0
      %7304 = vmatpush1.msra.mxu0 0.0
      %7305 = vmatprep.subr.mxu0 0.0
      %7306 = vmatpush1.msra.mxu0 0.0
      %7307 = vmatprep.subr.mxu0 0.0
      %7308 = vmatpush1.msra.mxu0 0.0
      %7309 = vmatprep.subr.mxu0 0.0
      %7310 = vmatpush1.msra.mxu0 0.0
      %7311 = vmatprep.subr.mxu0 0.0
      %7312 = vmatpush1.msra.mxu0 0.0
      %7313 = vmatprep.subr.mxu0 0.0
      %7314 = vmatpush1.msra.mxu0 0.0
      %7315 = vmatprep.subr.mxu0 0.0
      %7316 = vmatpush1.msra.mxu0 0.0
      %7317 = vmatprep.subr.mxu0 0.0
      %7318 = vmatpush1.msra.mxu0 0.0
      %7319 = vmatprep.subr.mxu0 0.0
      %7320 = vmatpush1.msra.mxu0 0.0
      %7321 = vmatprep.subr.mxu0 0.0
      %7322 = vmatpush1.msra.mxu0 0.0
      %7323 = vmatprep.subr.mxu0 0.0
      %7324 = vmatpush1.msra.mxu0 0.0
      %7325 = vmatprep.subr.mxu0 0.0
      %7326 = vmatpush1.msra.mxu0 0.0
      %7327 = vmatprep.subr.mxu0 0.0
      %7328 = vmatpush1.msra.mxu0 0.0
      %7329 = vmatprep.subr.mxu0 0.0
      %7330 = vmatpush1.msra.mxu0 0.0
      %7331 = vmatprep.subr.mxu0 0.0
      %7332 = vmatpush1.msra.mxu0 0.0
      %7333 = vmatprep.subr.mxu0 0.0
      %7334 = vmatpush1.msra.mxu0 0.0
      %7335 = vmatprep.subr.mxu0 0.0
      %7336 = vmatpush1.msra.mxu0 0.0
      %7337 = vmatprep.subr.mxu0 0.0
      %7338 = vmatpush1.msra.mxu0 0.0
      %7339 = vmatprep.subr.mxu0 0.0
      %7340 = vmatpush1.msra.mxu0 0.0
      %7341 = vmatprep.subr.mxu0 0.0
      %7342 = vmatpush1.msra.mxu0 0.0
      %7343 = vmatprep.subr.mxu0 0.0
      %7344 = vmatpush1.msra.mxu0 0.0
      %7345 = vmatprep.subr.mxu0 0.0
      %7346 = vmatpush1.msra.mxu0 0.0
      %7347 = vmatprep.mubr.f32.mxu0 0.0
      %7348 = vmatmul.mubr.f32.gmra.mrb[0].mxu0 %v7281
      %v7349 = vpop.f32.mrb[0].mxu0
      %v7350 = vadd.f32 %v7279, %v7349
      %v7351 = vpop.f32.mrb[0].mxu0
      %7352 = vdwg.mxu0
      %v7353 = vmax.f32 %v7350, 0.0
      %v7354 = vld [vmem:[%s14] sm:$0xff]
      %v7355 = vld [vmem:[%s14 + $0x8] sm:$0xff]
      %v7356 = vld [vmem:[%s14 + $0x10] sm:$0xff]
      %v7357 = vld [vmem:[%s14 + $0x18] sm:$0xff]
      %v7358 = vld [vmem:[%s16] sm:$0x1]
      %7359 = vrot.lane.b32.xlu0 %v7274, 96
      %v7360 = vpop.permute.xlu0 %7359
      %v7361 = vsel %vm7198, %v7360, 0
      %7363 = vmatprep.subr.mxu0 0.0
      %7364 = vmatpush1.msra.mxu0 %v7354
      %7365 = vmatprep.subr.mxu0 0.0
      %7366 = vmatpush1.msra.mxu0 %v7355
      %7367 = vmatprep.subr.mxu0 0.0
      %7368 = vmatpush1.msra.mxu0 %v7356
      %7369 = vmatprep.subr.mxu0 0.0
      %7370 = vmatpush1.msra.mxu0 %v7357
      %7371 = vmatprep.subr.mxu0 0.0
      %7372 = vmatpush1.msra.mxu0 0.0
      %7373 = vmatprep.subr.mxu0 0.0
      %7374 = vmatpush1.msra.mxu0 0.0
      %7375 = vmatprep.subr.mxu0 0.0
      %7376 = vmatpush1.msra.mxu0 0.0
      %7377 = vmatprep.subr.mxu0 0.0
      %7378 = vmatpush1.msra.mxu0 0.0
      %7379 = vmatprep.subr.mxu0 0.0
      %7380 = vmatpush1.msra.mxu0 0.0
      %7381 = vmatprep.subr.mxu0 0.0
      %7382 = vmatpush1.msra.mxu0 0.0
      %7383 = vmatprep.subr.mxu0 0.0
      %7384 = vmatpush1.msra.mxu0 0.0
      %7385 = vmatprep.subr.mxu0 0.0
      %7386 = vmatpush1.msra.mxu0 0.0
      %7387 = vmatprep.subr.mxu0 0.0
      %7388 = vmatpush1.msra.mxu0 0.0
      %7389 = vmatprep.subr.mxu0 0.0
      %7390 = vmatpush1.msra.mxu0 0.0
      %7391 = vmatprep.subr.mxu0 0.0
      %7392 = vmatpush1.msra.mxu0 0.0
      %7393 = vmatprep.subr.mxu0 0.0
      %7394 = vmatpush1.msra.mxu0 0.0
      %7395 = vmatprep.subr.mxu0 0.0
      %7396 = vmatpush1.msra.mxu0 0.0
      %7397 = vmatprep.subr.mxu0 0.0
      %7398 = vmatpush1.msra.mxu0 0.0
      %7399 = vmatprep.subr.mxu0 0.0
      %7400 = vmatpush1.msra.mxu0 0.0
      %7401 = vmatprep.subr.mxu0 0.0
      %7402 = vmatpush1.msra.mxu0 0.0
      %7403 = vmatprep.subr.mxu0 0.0
      %7404 = vmatpush1.msra.mxu0 0.0
      %7405 = vmatprep.subr.mxu0 0.0
      %7406 = vmatpush1.msra.mxu0 0.0
      %7407 = vmatprep.subr.mxu0 0.0
      %7408 = vmatpush1.msra.mxu0 0.0
      %7409 = vmatprep.subr.mxu0 0.0
      %7410 = vmatpush1.msra.mxu0 0.0
      %7411 = vmatprep.subr.mxu0 0.0
      %7412 = vmatpush1.msra.mxu0 0.0
      %7413 = vmatprep.subr.mxu0 0.0
      %7414 = vmatpush1.msra.mxu0 0.0
      %7415 = vmatprep.subr.mxu0 0.0
      %7416 = vmatpush1.msra.mxu0 0.0
      %7417 = vmatprep.subr.mxu0 0.0
      %7418 = vmatpush1.msra.mxu0 0.0
      %7419 = vmatprep.subr.mxu0 0.0
      %7420 = vmatpush1.msra.mxu0 0.0
      %7421 = vmatprep.subr.mxu0 0.0
      %7422 = vmatpush1.msra.mxu0 0.0
      %7423 = vmatprep.subr.mxu0 0.0
      %7424 = vmatpush1.msra.mxu0 0.0
      %7425 = vmatprep.subr.mxu0 0.0
      %7426 = vmatpush1.msra.mxu0 0.0
      %7427 = vmatprep.mubr.f32.mxu0 0.0
      %7428 = vmatmul.mubr.f32.gmra.mrb[0].mxu0 %v7361
      %v7429 = vpop.f32.mrb[0].mxu0
      %v7430 = vadd.f32 %v7358, %v7429
      %v7431 = vpop.f32.mrb[0].mxu0
      %7432 = vdwg.mxu0
      %v7433 = vmax.f32 %v7430, 0.0
      %v7434 = vld [vmem:[%s17] sm:$0xff]
      %v7435 = vld [vmem:[%s17 + $0x8] sm:$0xff]
      %v7436 = vld [vmem:[%s17 + $0x10] sm:$0xff]
      %v7437 = vld [vmem:[%s17 + $0x18] sm:$0xff]
      %v7438 = vld [vmem:[#allocation4] sm:$0x1]
      %v7440 = vsel %vm7198, %v7353, 0
      %7442 = vmatprep.subr.mxu0 0.0
      %7443 = vmatpush1.msra.mxu0 %v7434
      %7444 = vmatprep.subr.mxu0 0.0
      %7445 = vmatpush1.msra.mxu0 %v7435
      %7446 = vmatprep.subr.mxu0 0.0
      %7447 = vmatpush1.msra.mxu0 %v7436
      %7448 = vmatprep.subr.mxu0 0.0
      %7449 = vmatpush1.msra.mxu0 %v7437
      %7450 = vmatprep.subr.mxu0 0.0
      %7451 = vmatpush1.msra.mxu0 0.0
      %7452 = vmatprep.subr.mxu0 0.0
      %7453 = vmatpush1.msra.mxu0 0.0
      %7454 = vmatprep.subr.mxu0 0.0
      %7455 = vmatpush1.msra.mxu0 0.0
      %7456 = vmatprep.subr.mxu0 0.0
      %7457 = vmatpush1.msra.mxu0 0.0
      %7458 = vmatprep.subr.mxu0 0.0
      %7459 = vmatpush1.msra.mxu0 0.0
      %7460 = vmatprep.subr.mxu0 0.0
      %7461 = vmatpush1.msra.mxu0 0.0
      %7462 = vmatprep.subr.mxu0 0.0
      %7463 = vmatpush1.msra.mxu0 0.0
      %7464 = vmatprep.subr.mxu0 0.0
      %7465 = vmatpush1.msra.mxu0 0.0
      %7466 = vmatprep.subr.mxu0 0.0
      %7467 = vmatpush1.msra.mxu0 0.0
      %7468 = vmatprep.subr.mxu0 0.0
      %7469 = vmatpush1.msra.mxu0 0.0
      %7470 = vmatprep.subr.mxu0 0.0
      %7471 = vmatpush1.msra.mxu0 0.0
      %7472 = vmatprep.subr.mxu0 0.0
      %7473 = vmatpush1.msra.mxu0 0.0
      %7474 = vmatprep.subr.mxu0 0.0
      %7475 = vmatpush1.msra.mxu0 0.0
      %7476 = vmatprep.subr.mxu0 0.0
      %7477 = vmatpush1.msra.mxu0 0.0
      %7478 = vmatprep.subr.mxu0 0.0
      %7479 = vmatpush1.msra.mxu0 0.0
      %7480 = vmatprep.subr.mxu0 0.0
      %7481 = vmatpush1.msra.mxu0 0.0
      %7482 = vmatprep.subr.mxu0 0.0
      %7483 = vmatpush1.msra.mxu0 0.0
      %7484 = vmatprep.subr.mxu0 0.0
      %7485 = vmatpush1.msra.mxu0 0.0
      %7486 = vmatprep.subr.mxu0 0.0
      %7487 = vmatpush1.msra.mxu0 0.0
      %7488 = vmatprep.subr.mxu0 0.0
      %7489 = vmatpush1.msra.mxu0 0.0
      %7490 = vmatprep.subr.mxu0 0.0
      %7491 = vmatpush1.msra.mxu0 0.0
      %7492 = vmatprep.subr.mxu0 0.0
      %7493 = vmatpush1.msra.mxu0 0.0
      %7494 = vmatprep.subr.mxu0 0.0
      %7495 = vmatpush1.msra.mxu0 0.0
      %7496 = vmatprep.subr.mxu0 0.0
      %7497 = vmatpush1.msra.mxu0 0.0
      %7498 = vmatprep.subr.mxu0 0.0
      %7499 = vmatpush1.msra.mxu0 0.0
      %7500 = vmatprep.subr.mxu0 0.0
      %7501 = vmatpush1.msra.mxu0 0.0
      %7502 = vmatprep.subr.mxu0 0.0
      %7503 = vmatpush1.msra.mxu0 0.0
      %7504 = vmatprep.subr.mxu0 0.0
      %7505 = vmatpush1.msra.mxu0 0.0
      %7506 = vmatprep.mubr.f32.mxu0 0.0
      %7507 = vmatmul.mubr.f32.gmra.mrb[0].mxu0 %v7440
      %v7508 = vpop.f32.mrb[0].mxu0
      %v7509 = vadd.f32 %v7438, %v7508
      %v7510 = vpop.f32.mrb[0].mxu0
      %7511 = vdwg.mxu0
      %vm7512 = vcmask 0
      %7513 = vst.msk [vmem:[%s708] sm:$0x1] %vm7512, %v7509
      %v7514 = vld [vmem:[%s18] sm:$0xff]
      %v7515 = vld [vmem:[%s18 + $0x8] sm:$0xff]
      %v7516 = vld [vmem:[%s18 + $0x10] sm:$0xff]
      %v7517 = vld [vmem:[%s18 + $0x18] sm:$0xff]
      %v7518 = vld [vmem:[#allocation5] sm:$0x1]
      %v7520 = vsel %vm7198, %v7433, 0
      %7522 = vmatprep.subr.mxu0 0.0
      %7523 = vmatpush1.msra.mxu0 %v7514
      %7524 = vmatprep.subr.mxu0 0.0
      %7525 = vmatpush1.msra.mxu0 %v7515
      %7526 = vmatprep.subr.mxu0 0.0
      %7527 = vmatpush1.msra.mxu0 %v7516
      %7528 = vmatprep.subr.mxu0 0.0
      %7529 = vmatpush1.msra.mxu0 %v7517
      %7530 = vmatprep.subr.mxu0 0.0
      %7531 = vmatpush1.msra.mxu0 0.0
      %7532 = vmatprep.subr.mxu0 0.0
      %7533 = vmatpush1.msra.mxu0 0.0
      %7534 = vmatprep.subr.mxu0 0.0
      %7535 = vmatpush1.msra.mxu0 0.0
      %7536 = vmatprep.subr.mxu0 0.0
      %7537 = vmatpush1.msra.mxu0 0.0
      %7538 = vmatprep.subr.mxu0 0.0
      %7539 = vmatpush1.msra.mxu0 0.0
      %7540 = vmatprep.subr.mxu0 0.0
      %7541 = vmatpush1.msra.mxu0 0.0
      %7542 = vmatprep.subr.mxu0 0.0
      %7543 = vmatpush1.msra.mxu0 0.0
      %7544 = vmatprep.subr.mxu0 0.0
      %7545 = vmatpush1.msra.mxu0 0.0
      %7546 = vmatprep.subr.mxu0 0.0
      %7547 = vmatpush1.msra.mxu0 0.0
      %7548 = vmatprep.subr.mxu0 0.0
      %7549 = vmatpush1.msra.mxu0 0.0
      %7550 = vmatprep.subr.mxu0 0.0
      %7551 = vmatpush1.msra.mxu0 0.0
      %7552 = vmatprep.subr.mxu0 0.0
      %7553 = vmatpush1.msra.mxu0 0.0
      %7554 = vmatprep.subr.mxu0 0.0
      %7555 = vmatpush1.msra.mxu0 0.0
      %7556 = vmatprep.subr.mxu0 0.0
      %7557 = vmatpush1.msra.mxu0 0.0
      %7558 = vmatprep.subr.mxu0 0.0
      %7559 = vmatpush1.msra.mxu0 0.0
      %7560 = vmatprep.subr.mxu0 0.0
      %7561 = vmatpush1.msra.mxu0 0.0
      %7562 = vmatprep.subr.mxu0 0.0
      %7563 = vmatpush1.msra.mxu0 0.0
      %7564 = vmatprep.subr.mxu0 0.0
      %7565 = vmatpush1.msra.mxu0 0.0
      %7566 = vmatprep.subr.mxu0 0.0
      %7567 = vmatpush1.msra.mxu0 0.0
      %7568 = vmatprep.subr.mxu0 0.0
      %7569 = vmatpush1.msra.mxu0 0.0
      %7570 = vmatprep.subr.mxu0 0.0
      %7571 = vmatpush1.msra.mxu0 0.0
      %7572 = vmatprep.subr.mxu0 0.0
      %7573 = vmatpush1.msra.mxu0 0.0
      %7574 = vmatprep.subr.mxu0 0.0
      %7575 = vmatpush1.msra.mxu0 0.0
      %7576 = vmatprep.subr.mxu0 0.0
      %7577 = vmatpush1.msra.mxu0 0.0
      %7578 = vmatprep.subr.mxu0 0.0
      %7579 = vmatpush1.msra.mxu0 0.0
      %7580 = vmatprep.subr.mxu0 0.0
      %7581 = vmatpush1.msra.mxu0 0.0
      %7582 = vmatprep.subr.mxu0 0.0
      %7583 = vmatpush1.msra.mxu0 0.0
      %7584 = vmatprep.subr.mxu0 0.0
      %7585 = vmatpush1.msra.mxu0 0.0
      %7586 = vmatprep.mubr.f32.mxu0 0.0
      %7587 = vmatmul.mubr.f32.gmra.mrb[0].mxu0 %v7520
      %v7588 = vpop.f32.mrb[0].mxu0
      %v7589 = vadd.f32 %v7518, %v7588
      %v7590 = vpop.f32.mrb[0].mxu0
      %7591 = vdwg.mxu0
      %7592 = vst.msk [vmem:[%s711] sm:$0x1] %vm7512, %v7589
      %p7593 = scmp.lt.s32.totalorder %s38, 1
      %s7594 = scalar_select %p7593, %s38, 1
      %s7595 = scalar_lea.vmem %s21, %s7594
      %p7596 = scmp.lt.s32.totalorder %s38, 1
      %s7597 = scalar_select %p7596, %s38, 1
      %s7598 = scalar_lea.vmem %s22, %s7597
      // Predicated region
      $region105: #{critic_forward.1} parent=103 // pred_check
        %p7599 = pneg %p507
      $region106: #{critic_forward.1} parent=103 // pred_check_branch
        %7601 = sbr.rel (%p7599) target = $region108
      $region107: #{critic_forward.1} parent=103 // pred_region
        _
      $region108: #{critic_forward.1} parent=103 // pred_fallthru
        _
      // Predicated region
      $region109: #{critic_forward.1} parent=103 // pred_check
        %p7602 = pneg %p533
      $region110: #{critic_forward.1} parent=103 // pred_check_branch
        %7604 = sbr.rel (%p7602) target = $region112
      $region111: #{critic_forward.1} parent=103 // pred_region
        _
      $region112: #{critic_forward.1} parent=103 // pred_fallthru
        _
    $region104: #{critic_forward.1} parent=5 // pred_fallthru
      _
    %p7605 = scmp.le.s32.totalorder 2, %s33
    // Predicated region
    $region113: #{critic_forward.1} parent=5 // pred_check
      %p7606 = pneg %p7605
    $region114: #{critic_forward.1} parent=5 // pred_check_branch
      %7608 = sbr.rel (%p7606) target = $region116
    $region115: #{critic_forward.1} parent=5 // pred_region
      %s7609 = ssub.s32 %s33, 2
      // Predicated region
      $region117: #{critic_forward.1} parent=115 // pred_check
        %p7610 = pneg %p513
      $region118: #{critic_forward.1} parent=115 // pred_check_branch
        %7612 = sbr.rel (%p7610) target = $region120
      $region119: #{critic_forward.1} parent=115 // pred_region
        %p7613 = scmp.lt.s32.totalorder %s39, 1
        %s7614 = scalar_select %p7613, %s39, 1
        %s7615 = scalar_lea.vmem %s21, %s7614
      $region120: #{critic_forward.1} parent=115 // pred_fallthru
        _
      // Predicated region
      $region121: #{critic_forward.1} parent=115 // pred_check
        %p7616 = pneg %p539
      $region122: #{critic_forward.1} parent=115 // pred_check_branch
        %7618 = sbr.rel (%p7616) target = $region124
      $region123: #{critic_forward.1} parent=115 // pred_region
        %p7619 = scmp.lt.s32.totalorder %s39, 1
        %s7620 = scalar_select %p7619, %s39, 1
        %s7621 = scalar_lea.vmem %s22, %s7620
      $region124: #{critic_forward.1} parent=115 // pred_fallthru
        _
    $region116: #{critic_forward.1} parent=5 // pred_fallthru
      _
  $region6: #{critic_forward.1} parent=0 // loop_footer
    %s37 = sadd.s32 1, %s33
  $region7: #{critic_forward.1} parent=0 // loop_footer_branch
    %32 = sbr.rel target = $region3
  $region8: #{critic_forward.1} parent=0 // loop_exit
    _

</llo_original>
